<compile_context>
chip_gen: v7x
topology: tpu7x:2x2x1
jax: 0.10.0
libtpu: 0.0.40
codegen_flags: <defaults>
</compile_context>

<pallas_src>
import jax
import jax.numpy as jnp
from jax import lax
from jax.experimental import pallas as pl
from jax.experimental.pallas import tpu as pltpu

HID_P = 128  # hidden padded to a full lane tile


# --------------------------------------------------------------------------
# Fused Pallas kernel: conv (VPU, per-channel) + bias + ReLU + one MXU linear
# --------------------------------------------------------------------------
def _fused_block_kernel(xt_ref, wc_ref, cb_ref, lw_ref, lb_ref, o_ref, act_ref):
    # xt_ref : [K, B_TILE, HW]      f32  (VMEM) im2col patches, patch-feature major
    # wc_ref : [Cout, K]            f32  (SMEM) conv weight scalars
    # cb_ref : [Cout]               f32  (SMEM) conv bias scalars
    # lw_ref : [Cout*HW, HID_P]     bf16 (VMEM) linear weight, hidden padded to 128
    # lb_ref : [1, HID_P]           f32  (VMEM) linear bias (padded)
    # o_ref  : [B_TILE, HID_P]      f32  output tile (lane-dense)
    # act_ref: [B_TILE, Cout*HW]    bf16 (VMEM scratch) conv+ReLU act, NCHW-flat
    K, _, HW = xt_ref.shape
    Cout = wc_ref.shape[0]

    # Conv2dNode + bias + ReLUNode, one output channel at a time.
    # Each channel is 36 scalar-broadcast multiply-adds over a [B_TILE, HW]
    # plane; the result is stored at lanes [c*HW, (c+1)*HW) of the activation
    # scratch, which is exactly torch's NCHW flatten order per batch row.
    for c in range(Cout):
        parts = [jnp.zeros(xt_ref.shape[1:], jnp.float32) for _ in range(4)]
        for k in range(K):
            parts[k % 4] = parts[k % 4] + xt_ref[k] * wc_ref[c, k]
        a = (parts[0] + parts[1]) + (parts[2] + parts[3])
        a = jnp.maximum(a + cb_ref[c], 0.0)
        act_ref[:, c * HW:(c + 1) * HW] = a.astype(act_ref.dtype)

    # LinearNode: single [B_TILE, Cout*HW] @ [Cout*HW, HID_P] MXU contraction,
    # bf16 operands with f32 accumulation, lane-dense 128-wide output store.
    out = jnp.dot(act_ref[...], lw_ref[...], preferred_element_type=jnp.float32)
    o_ref[...] = out + lb_ref[...]


# --------------------------------------------------------------------------
# ComputeBlock.forward(): run the nodes (fused) and return the last output
# --------------------------------------------------------------------------
def compute_block_forward(x, params):
    N, Cin, H, W = x.shape
    Cout, _, KH, KW = params["conv_w"].shape
    hidden = params["lin_b"].shape[0]
    HW = H * W
    K = KH * KW * Cin
    pad = KH // 2

    # Batch tile: multiple of 8 (sublane tile), capped at 128 (full MXU rows,
    # and keeps 2x(xt block) + weights + scratch under ~12 MiB VMEM per step).
    B_TILE = min(128, ((N + 7) // 8) * 8)
    N_pad = ((N + B_TILE - 1) // B_TILE) * B_TILE
    n_tiles = N_pad // B_TILE

    # ---- trace-time glue: im2col laid out [K, N_pad, HW] --------------------
    # x_t[(kh*KW+kw)*Cin+cin, n, h*W+w] = x_padded[n, cin, h+kh-pad, w+kw-pad]
    # TODO(synk): build the taps inside the kernel from a padded raw-input slab
    # to remove this 9x HBM read amplification.
    x_nhwc = jnp.transpose(x, (0, 2, 3, 1))
    xp = jnp.pad(x_nhwc, ((0, 0), (pad, pad), (pad, pad), (0, 0)))
    taps = []
    for i in range(KH):
        for j in range(KW):
            taps.append(xp[:, i:i + H, j:j + W, :])          # [N, H, W, Cin]
    x_t = jnp.stack(taps, axis=3)                            # [N, H, W, 9, Cin]
    x_t = jnp.transpose(x_t, (3, 4, 0, 1, 2)).reshape(K, N, HW)
    if N_pad != N:
        x_t = jnp.pad(x_t, ((0, 0), (0, N_pad - N), (0, 0)))

    # conv weight OIHW -> [Cout, (kh, kw, cin)] scalars (matches x_t's K order)
    w_c = jnp.transpose(params["conv_w"], (0, 2, 3, 1)).reshape(Cout, K)
    c_b = params["conv_b"]

    # linear weight rows are already torch-NCHW-flatten ordered; pad hidden to
    # 128 lanes (dense VMEM layout + unmasked stores) and cast to bf16.
    lw = jnp.pad(params["lin_w"], ((0, 0), (0, HID_P - hidden))).astype(jnp.bfloat16)
    lb = jnp.pad(params["lin_b"], (0, HID_P - hidden)).reshape(1, HID_P)

    out = pl.pallas_call(
        _fused_block_kernel,
        out_shape=jax.ShapeDtypeStruct((N_pad, HID_P), jnp.float32),
        grid_spec=pltpu.PrefetchScalarGridSpec(
            num_scalar_prefetch=0,
            grid=(n_tiles,),                                  # one step per batch tile
            in_specs=[
                pl.BlockSpec((K, B_TILE, HW), lambda n: (0, n, 0)),
                pl.BlockSpec(memory_space=pltpu.MemorySpace.SMEM),   # conv weight scalars
                pl.BlockSpec(memory_space=pltpu.MemorySpace.SMEM),   # conv bias scalars
                pl.BlockSpec((Cout * HW, HID_P), lambda n: (0, 0)),  # resident lin weight
                pl.BlockSpec((1, HID_P), lambda n: (0, 0)),
            ],
            out_specs=pl.BlockSpec((B_TILE, HID_P), lambda n: (n, 0)),
            scratch_shapes=[pltpu.VMEM((B_TILE, Cout * HW), jnp.bfloat16)],
        ),
        compiler_params=pltpu.CompilerParams(
            dimension_semantics=("parallel",)),               # batch tiles independent
    )(x_t, w_c, c_b, lw, lb)

    return out[:N, :hidden]


# --------------------------------------------------------------------------
# Pure-JAX reference (for correctness check only)
# --------------------------------------------------------------------------
def reference_forward(x, p):
    y = lax.conv_general_dilated(
        x, p["conv_w"], window_strides=(1, 1), padding="SAME",
        dimension_numbers=("NCHW", "OIHW", "NCHW"))
    y = jax.nn.relu(y + p["conv_b"].reshape(1, -1, 1, 1))
    y = y.reshape(y.shape[0], -1)
    return y @ p["lin_w"] + p["lin_b"]


if __name__ == "__main__":
    N, Cin, H, W = 2, 4, 16, 16
    Cout, KH, KW = 8, 3, 3
    hidden = 32
    feat = Cout * H * W  # 2048

    key = jax.random.PRNGKey(0)
    k_x, k_cw, k_cb, k_lw, k_lb = jax.random.split(key, 5)

    x = jax.random.normal(k_x, (N, Cin, H, W), jnp.float32)
    params = {
        "conv_w": jax.random.normal(k_cw, (Cout, Cin, KH, KW), jnp.float32)
                  * (1.0 / (Cin * KH * KW) ** 0.5),
        "conv_b": jax.random.normal(k_cb, (Cout,), jnp.float32) * 0.1,
        "lin_w": jax.random.normal(k_lw, (feat, hidden), jnp.float32)
                 * (1.0 / feat ** 0.5),
        "lin_b": jax.random.normal(k_lb, (hidden,), jnp.float32) * 0.1,
    }

    fwd = jax.jit(compute_block_forward)
    out = jax.block_until_ready(fwd(x, params))
    ref = jax.block_until_ready(reference_forward(x, params))

    assert out.shape == (N, hidden), out.shape
    # bf16 operands in the linear matmul (f32 accumulation) -> loosened tolerance
    if not jnp.allclose(out, ref, atol=3e-2, rtol=3e-2):
        raise AssertionError("Pallas ComputeBlock output mismatch vs reference")

    print("KERNEL_OK")
</pallas_src>

<mosaic_0001>
module attributes {stable_mosaic.version = 11 : i64} {
  func.func @_fused_block_kernel(%arg0: i32, %arg1: memref<36x8x256xf32, #tpu.memory_space<vmem>>, %arg2: memref<8x36xf32, #tpu.memory_space<smem>>, %arg3: memref<8xf32, #tpu.memory_space<smem>>, %arg4: memref<2048x128xbf16, #tpu.memory_space<vmem>>, %arg5: memref<1x128xf32, #tpu.memory_space<vmem>>, %arg6: memref<8x128xf32, #tpu.memory_space<vmem>>, %arg7: memref<8x2048xbf16, #tpu.memory_space<vmem>>) attributes {dimension_semantics = [#tpu.dimension_semantics<parallel>], iteration_bounds = array<i64: 1>, scalar_prefetch = 0 : i64, scratch_operands = 1 : i64, tpu.core_type = #tpu.core_type<tc>, window_params = [{transform_indices = @transform_0, window_bounds = array<i64: 36, 8, 256>}, {transform_indices = @transform_1, window_bounds = array<i64: 8, 36>}, {transform_indices = @transform_2, window_bounds = array<i64: 8>}, {pipeline_mode = #tpu.pipeline_mode<synchronous>, transform_indices = @transform_3, window_bounds = array<i64: 2048, 128>}, {pipeline_mode = #tpu.pipeline_mode<synchronous>, transform_indices = @transform_4, window_bounds = array<i64: 1, 128>}, {transform_indices = @transform_5, window_bounds = array<i64: 8, 128>}]} {
    %cst = arith.constant 0.000000e+00 : f32
    %0 = vector.broadcast %cst : f32 to vector<8x256xf32>
    %cst_0 = arith.constant 0.000000e+00 : f32
    %1 = vector.broadcast %cst_0 : f32 to vector<8x256xf32>
    %cst_1 = arith.constant 0.000000e+00 : f32
    %2 = vector.broadcast %cst_1 : f32 to vector<8x256xf32>
    %cst_2 = arith.constant 0.000000e+00 : f32
    %3 = vector.broadcast %cst_2 : f32 to vector<8x256xf32>
    %c0 = arith.constant 0 : index
    %c0_3 = arith.constant 0 : index
    %c0_4 = arith.constant 0 : index
    %4 = vector.load %arg1[%c0, %c0_3, %c0_4] : memref<36x8x256xf32, #tpu.memory_space<vmem>>, vector<1x8x256xf32>
    %5 = vector.shape_cast %4 : vector<1x8x256xf32> to vector<8x256xf32>
    %c0_5 = arith.constant 0 : index
    %c0_6 = arith.constant 0 : index
    %6 = memref.load %arg2[%c0_5, %c0_6] : memref<8x36xf32, #tpu.memory_space<smem>>
    %7 = vector.broadcast %6 : f32 to vector<8x256xf32>
    %8 = arith.mulf %5, %7 : vector<8x256xf32>
    %9 = arith.addf %0, %8 : vector<8x256xf32>
    %c1 = arith.constant 1 : index
    %c0_7 = arith.constant 0 : index
    %c0_8 = arith.constant 0 : index
    %10 = vector.load %arg1[%c1, %c0_7, %c0_8] : memref<36x8x256xf32, #tpu.memory_space<vmem>>, vector<1x8x256xf32>
    %11 = vector.shape_cast %10 : vector<1x8x256xf32> to vector<8x256xf32>
    %c0_9 = arith.constant 0 : index
    %c1_10 = arith.constant 1 : index
    %12 = memref.load %arg2[%c0_9, %c1_10] : memref<8x36xf32, #tpu.memory_space<smem>>
    %13 = vector.broadcast %12 : f32 to vector<8x256xf32>
    %14 = arith.mulf %11, %13 : vector<8x256xf32>
    %15 = arith.addf %1, %14 : vector<8x256xf32>
    %c2 = arith.constant 2 : index
    %c0_11 = arith.constant 0 : index
    %c0_12 = arith.constant 0 : index
    %16 = vector.load %arg1[%c2, %c0_11, %c0_12] : memref<36x8x256xf32, #tpu.memory_space<vmem>>, vector<1x8x256xf32>
    %17 = vector.shape_cast %16 : vector<1x8x256xf32> to vector<8x256xf32>
    %c0_13 = arith.constant 0 : index
    %c2_14 = arith.constant 2 : index
    %18 = memref.load %arg2[%c0_13, %c2_14] : memref<8x36xf32, #tpu.memory_space<smem>>
    %19 = vector.broadcast %18 : f32 to vector<8x256xf32>
    %20 = arith.mulf %17, %19 : vector<8x256xf32>
    %21 = arith.addf %2, %20 : vector<8x256xf32>
    %c3 = arith.constant 3 : index
    %c0_15 = arith.constant 0 : index
    %c0_16 = arith.constant 0 : index
    %22 = vector.load %arg1[%c3, %c0_15, %c0_16] : memref<36x8x256xf32, #tpu.memory_space<vmem>>, vector<1x8x256xf32>
    %23 = vector.shape_cast %22 : vector<1x8x256xf32> to vector<8x256xf32>
    %c0_17 = arith.constant 0 : index
    %c3_18 = arith.constant 3 : index
    %24 = memref.load %arg2[%c0_17, %c3_18] : memref<8x36xf32, #tpu.memory_space<smem>>
    %25 = vector.broadcast %24 : f32 to vector<8x256xf32>
    %26 = arith.mulf %23, %25 : vector<8x256xf32>
    %27 = arith.addf %3, %26 : vector<8x256xf32>
    %c4 = arith.constant 4 : index
    %c0_19 = arith.constant 0 : index
    %c0_20 = arith.constant 0 : index
    %28 = vector.load %arg1[%c4, %c0_19, %c0_20] : memref<36x8x256xf32, #tpu.memory_space<vmem>>, vector<1x8x256xf32>
    %29 = vector.shape_cast %28 : vector<1x8x256xf32> to vector<8x256xf32>
    %c0_21 = arith.constant 0 : index
    %c4_22 = arith.constant 4 : index
    %30 = memref.load %arg2[%c0_21, %c4_22] : memref<8x36xf32, #tpu.memory_space<smem>>
    %31 = vector.broadcast %30 : f32 to vector<8x256xf32>
    %32 = arith.mulf %29, %31 : vector<8x256xf32>
    %33 = arith.addf %9, %32 : vector<8x256xf32>
    %c5 = arith.constant 5 : index
    %c0_23 = arith.constant 0 : index
    %c0_24 = arith.constant 0 : index
    %34 = vector.load %arg1[%c5, %c0_23, %c0_24] : memref<36x8x256xf32, #tpu.memory_space<vmem>>, vector<1x8x256xf32>
    %35 = vector.shape_cast %34 : vector<1x8x256xf32> to vector<8x256xf32>
    %c0_25 = arith.constant 0 : index
    %c5_26 = arith.constant 5 : index
    %36 = memref.load %arg2[%c0_25, %c5_26] : memref<8x36xf32, #tpu.memory_space<smem>>
    %37 = vector.broadcast %36 : f32 to vector<8x256xf32>
    %38 = arith.mulf %35, %37 : vector<8x256xf32>
    %39 = arith.addf %15, %38 : vector<8x256xf32>
    %c6 = arith.constant 6 : index
    %c0_27 = arith.constant 0 : index
    %c0_28 = arith.constant 0 : index
    %40 = vector.load %arg1[%c6, %c0_27, %c0_28] : memref<36x8x256xf32, #tpu.memory_space<vmem>>, vector<1x8x256xf32>
    %41 = vector.shape_cast %40 : vector<1x8x256xf32> to vector<8x256xf32>
    %c0_29 = arith.constant 0 : index
    %c6_30 = arith.constant 6 : index
    %42 = memref.load %arg2[%c0_29, %c6_30] : memref<8x36xf32, #tpu.memory_space<smem>>
    %43 = vector.broadcast %42 : f32 to vector<8x256xf32>
    %44 = arith.mulf %41, %43 : vector<8x256xf32>
    %45 = arith.addf %21, %44 : vector<8x256xf32>
    %c7 = arith.constant 7 : index
    %c0_31 = arith.constant 0 : index
    %c0_32 = arith.constant 0 : index
    %46 = vector.load %arg1[%c7, %c0_31, %c0_32] : memref<36x8x256xf32, #tpu.memory_space<vmem>>, vector<1x8x256xf32>
    %47 = vector.shape_cast %46 : vector<1x8x256xf32> to vector<8x256xf32>
    %c0_33 = arith.constant 0 : index
    %c7_34 = arith.constant 7 : index
    %48 = memref.load %arg2[%c0_33, %c7_34] : memref<8x36xf32, #tpu.memory_space<smem>>
    %49 = vector.broadcast %48 : f32 to vector<8x256xf32>
    %50 = arith.mulf %47, %49 : vector<8x256xf32>
    %51 = arith.addf %27, %50 : vector<8x256xf32>
    %c8 = arith.constant 8 : index
    %c0_35 = arith.constant 0 : index
    %c0_36 = arith.constant 0 : index
    %52 = vector.load %arg1[%c8, %c0_35, %c0_36] : memref<36x8x256xf32, #tpu.memory_space<vmem>>, vector<1x8x256xf32>
    %53 = vector.shape_cast %52 : vector<1x8x256xf32> to vector<8x256xf32>
    %c0_37 = arith.constant 0 : index
    %c8_38 = arith.constant 8 : index
    %54 = memref.load %arg2[%c0_37, %c8_38] : memref<8x36xf32, #tpu.memory_space<smem>>
    %55 = vector.broadcast %54 : f32 to vector<8x256xf32>
    %56 = arith.mulf %53, %55 : vector<8x256xf32>
    %57 = arith.addf %33, %56 : vector<8x256xf32>
    %c9 = arith.constant 9 : index
    %c0_39 = arith.constant 0 : index
    %c0_40 = arith.constant 0 : index
    %58 = vector.load %arg1[%c9, %c0_39, %c0_40] : memref<36x8x256xf32, #tpu.memory_space<vmem>>, vector<1x8x256xf32>
    %59 = vector.shape_cast %58 : vector<1x8x256xf32> to vector<8x256xf32>
    %c0_41 = arith.constant 0 : index
    %c9_42 = arith.constant 9 : index
    %60 = memref.load %arg2[%c0_41, %c9_42] : memref<8x36xf32, #tpu.memory_space<smem>>
    %61 = vector.broadcast %60 : f32 to vector<8x256xf32>
    %62 = arith.mulf %59, %61 : vector<8x256xf32>
    %63 = arith.addf %39, %62 : vector<8x256xf32>
    %c10 = arith.constant 10 : index
    %c0_43 = arith.constant 0 : index
    %c0_44 = arith.constant 0 : index
    %64 = vector.load %arg1[%c10, %c0_43, %c0_44] : memref<36x8x256xf32, #tpu.memory_space<vmem>>, vector<1x8x256xf32>
    %65 = vector.shape_cast %64 : vector<1x8x256xf32> to vector<8x256xf32>
    %c0_45 = arith.constant 0 : index
    %c10_46 = arith.constant 10 : index
    %66 = memref.load %arg2[%c0_45, %c10_46] : memref<8x36xf32, #tpu.memory_space<smem>>
    %67 = vector.broadcast %66 : f32 to vector<8x256xf32>
    %68 = arith.mulf %65, %67 : vector<8x256xf32>
    %69 = arith.addf %45, %68 : vector<8x256xf32>
    %c11 = arith.constant 11 : index
    %c0_47 = arith.constant 0 : index
    %c0_48 = arith.constant 0 : index
    %70 = vector.load %arg1[%c11, %c0_47, %c0_48] : memref<36x8x256xf32, #tpu.memory_space<vmem>>, vector<1x8x256xf32>
    %71 = vector.shape_cast %70 : vector<1x8x256xf32> to vector<8x256xf32>
    %c0_49 = arith.constant 0 : index
    %c11_50 = arith.constant 11 : index
    %72 = memref.load %arg2[%c0_49, %c11_50] : memref<8x36xf32, #tpu.memory_space<smem>>
    %73 = vector.broadcast %72 : f32 to vector<8x256xf32>
    %74 = arith.mulf %71, %73 : vector<8x256xf32>
    %75 = arith.addf %51, %74 : vector<8x256xf32>
    %c12 = arith.constant 12 : index
    %c0_51 = arith.constant 0 : index
    %c0_52 = arith.constant 0 : index
    %76 = vector.load %arg1[%c12, %c0_51, %c0_52] : memref<36x8x256xf32, #tpu.memory_space<vmem>>, vector<1x8x256xf32>
    %77 = vector.shape_cast %76 : vector<1x8x256xf32> to vector<8x256xf32>
    %c0_53 = arith.constant 0 : index
    %c12_54 = arith.constant 12 : index
    %78 = memref.load %arg2[%c0_53, %c12_54] : memref<8x36xf32, #tpu.memory_space<smem>>
    %79 = vector.broadcast %78 : f32 to vector<8x256xf32>
    %80 = arith.mulf %77, %79 : vector<8x256xf32>
    %81 = arith.addf %57, %80 : vector<8x256xf32>
    %c13 = arith.constant 13 : index
    %c0_55 = arith.constant 0 : index
    %c0_56 = arith.constant 0 : index
    %82 = vector.load %arg1[%c13, %c0_55, %c0_56] : memref<36x8x256xf32, #tpu.memory_space<vmem>>, vector<1x8x256xf32>
    %83 = vector.shape_cast %82 : vector<1x8x256xf32> to vector<8x256xf32>
    %c0_57 = arith.constant 0 : index
    %c13_58 = arith.constant 13 : index
    %84 = memref.load %arg2[%c0_57, %c13_58] : memref<8x36xf32, #tpu.memory_space<smem>>
    %85 = vector.broadcast %84 : f32 to vector<8x256xf32>
    %86 = arith.mulf %83, %85 : vector<8x256xf32>
    %87 = arith.addf %63, %86 : vector<8x256xf32>
    %c14 = arith.constant 14 : index
    %c0_59 = arith.constant 0 : index
    %c0_60 = arith.constant 0 : index
    %88 = vector.load %arg1[%c14, %c0_59, %c0_60] : memref<36x8x256xf32, #tpu.memory_space<vmem>>, vector<1x8x256xf32>
    %89 = vector.shape_cast %88 : vector<1x8x256xf32> to vector<8x256xf32>
    %c0_61 = arith.constant 0 : index
    %c14_62 = arith.constant 14 : index
    %90 = memref.load %arg2[%c0_61, %c14_62] : memref<8x36xf32, #tpu.memory_space<smem>>
    %91 = vector.broadcast %90 : f32 to vector<8x256xf32>
    %92 = arith.mulf %89, %91 : vector<8x256xf32>
    %93 = arith.addf %69, %92 : vector<8x256xf32>
    %c15 = arith.constant 15 : index
    %c0_63 = arith.constant 0 : index
    %c0_64 = arith.constant 0 : index
    %94 = vector.load %arg1[%c15, %c0_63, %c0_64] : memref<36x8x256xf32, #tpu.memory_space<vmem>>, vector<1x8x256xf32>
    %95 = vector.shape_cast %94 : vector<1x8x256xf32> to vector<8x256xf32>
    %c0_65 = arith.constant 0 : index
    %c15_66 = arith.constant 15 : index
    %96 = memref.load %arg2[%c0_65, %c15_66] : memref<8x36xf32, #tpu.memory_space<smem>>
    %97 = vector.broadcast %96 : f32 to vector<8x256xf32>
    %98 = arith.mulf %95, %97 : vector<8x256xf32>
    %99 = arith.addf %75, %98 : vector<8x256xf32>
    %c16 = arith.constant 16 : index
    %c0_67 = arith.constant 0 : index
    %c0_68 = arith.constant 0 : index
    %100 = vector.load %arg1[%c16, %c0_67, %c0_68] : memref<36x8x256xf32, #tpu.memory_space<vmem>>, vector<1x8x256xf32>
    %101 = vector.shape_cast %100 : vector<1x8x256xf32> to vector<8x256xf32>
    %c0_69 = arith.constant 0 : index
    %c16_70 = arith.constant 16 : index
    %102 = memref.load %arg2[%c0_69, %c16_70] : memref<8x36xf32, #tpu.memory_space<smem>>
    %103 = vector.broadcast %102 : f32 to vector<8x256xf32>
    %104 = arith.mulf %101, %103 : vector<8x256xf32>
    %105 = arith.addf %81, %104 : vector<8x256xf32>
    %c17 = arith.constant 17 : index
    %c0_71 = arith.constant 0 : index
    %c0_72 = arith.constant 0 : index
    %106 = vector.load %arg1[%c17, %c0_71, %c0_72] : memref<36x8x256xf32, #tpu.memory_space<vmem>>, vector<1x8x256xf32>
    %107 = vector.shape_cast %106 : vector<1x8x256xf32> to vector<8x256xf32>
    %c0_73 = arith.constant 0 : index
    %c17_74 = arith.constant 17 : index
    %108 = memref.load %arg2[%c0_73, %c17_74] : memref<8x36xf32, #tpu.memory_space<smem>>
    %109 = vector.broadcast %108 : f32 to vector<8x256xf32>
    %110 = arith.mulf %107, %109 : vector<8x256xf32>
    %111 = arith.addf %87, %110 : vector<8x256xf32>
    %c18 = arith.constant 18 : index
    %c0_75 = arith.constant 0 : index
    %c0_76 = arith.constant 0 : index
    %112 = vector.load %arg1[%c18, %c0_75, %c0_76] : memref<36x8x256xf32, #tpu.memory_space<vmem>>, vector<1x8x256xf32>
    %113 = vector.shape_cast %112 : vector<1x8x256xf32> to vector<8x256xf32>
    %c0_77 = arith.constant 0 : index
    %c18_78 = arith.constant 18 : index
    %114 = memref.load %arg2[%c0_77, %c18_78] : memref<8x36xf32, #tpu.memory_space<smem>>
    %115 = vector.broadcast %114 : f32 to vector<8x256xf32>
    %116 = arith.mulf %113, %115 : vector<8x256xf32>
    %117 = arith.addf %93, %116 : vector<8x256xf32>
    %c19 = arith.constant 19 : index
    %c0_79 = arith.constant 0 : index
    %c0_80 = arith.constant 0 : index
    %118 = vector.load %arg1[%c19, %c0_79, %c0_80] : memref<36x8x256xf32, #tpu.memory_space<vmem>>, vector<1x8x256xf32>
    %119 = vector.shape_cast %118 : vector<1x8x256xf32> to vector<8x256xf32>
    %c0_81 = arith.constant 0 : index
    %c19_82 = arith.constant 19 : index
    %120 = memref.load %arg2[%c0_81, %c19_82] : memref<8x36xf32, #tpu.memory_space<smem>>
    %121 = vector.broadcast %120 : f32 to vector<8x256xf32>
    %122 = arith.mulf %119, %121 : vector<8x256xf32>
    %123 = arith.addf %99, %122 : vector<8x256xf32>
    %c20 = arith.constant 20 : index
    %c0_83 = arith.constant 0 : index
    %c0_84 = arith.constant 0 : index
    %124 = vector.load %arg1[%c20, %c0_83, %c0_84] : memref<36x8x256xf32, #tpu.memory_space<vmem>>, vector<1x8x256xf32>
    %125 = vector.shape_cast %124 : vector<1x8x256xf32> to vector<8x256xf32>
    %c0_85 = arith.constant 0 : index
    %c20_86 = arith.constant 20 : index
    %126 = memref.load %arg2[%c0_85, %c20_86] : memref<8x36xf32, #tpu.memory_space<smem>>
    %127 = vector.broadcast %126 : f32 to vector<8x256xf32>
    %128 = arith.mulf %125, %127 : vector<8x256xf32>
    %129 = arith.addf %105, %128 : vector<8x256xf32>
    %c21 = arith.constant 21 : index
    %c0_87 = arith.constant 0 : index
    %c0_88 = arith.constant 0 : index
    %130 = vector.load %arg1[%c21, %c0_87, %c0_88] : memref<36x8x256xf32, #tpu.memory_space<vmem>>, vector<1x8x256xf32>
    %131 = vector.shape_cast %130 : vector<1x8x256xf32> to vector<8x256xf32>
    %c0_89 = arith.constant 0 : index
    %c21_90 = arith.constant 21 : index
    %132 = memref.load %arg2[%c0_89, %c21_90] : memref<8x36xf32, #tpu.memory_space<smem>>
    %133 = vector.broadcast %132 : f32 to vector<8x256xf32>
    %134 = arith.mulf %131, %133 : vector<8x256xf32>
    %135 = arith.addf %111, %134 : vector<8x256xf32>
    %c22 = arith.constant 22 : index
    %c0_91 = arith.constant 0 : index
    %c0_92 = arith.constant 0 : index
    %136 = vector.load %arg1[%c22, %c0_91, %c0_92] : memref<36x8x256xf32, #tpu.memory_space<vmem>>, vector<1x8x256xf32>
    %137 = vector.shape_cast %136 : vector<1x8x256xf32> to vector<8x256xf32>
    %c0_93 = arith.constant 0 : index
    %c22_94 = arith.constant 22 : index
    %138 = memref.load %arg2[%c0_93, %c22_94] : memref<8x36xf32, #tpu.memory_space<smem>>
    %139 = vector.broadcast %138 : f32 to vector<8x256xf32>
    %140 = arith.mulf %137, %139 : vector<8x256xf32>
    %141 = arith.addf %117, %140 : vector<8x256xf32>
    %c23 = arith.constant 23 : index
    %c0_95 = arith.constant 0 : index
    %c0_96 = arith.constant 0 : index
    %142 = vector.load %arg1[%c23, %c0_95, %c0_96] : memref<36x8x256xf32, #tpu.memory_space<vmem>>, vector<1x8x256xf32>
    %143 = vector.shape_cast %142 : vector<1x8x256xf32> to vector<8x256xf32>
    %c0_97 = arith.constant 0 : index
    %c23_98 = arith.constant 23 : index
    %144 = memref.load %arg2[%c0_97, %c23_98] : memref<8x36xf32, #tpu.memory_space<smem>>
    %145 = vector.broadcast %144 : f32 to vector<8x256xf32>
    %146 = arith.mulf %143, %145 : vector<8x256xf32>
    %147 = arith.addf %123, %146 : vector<8x256xf32>
    %c24 = arith.constant 24 : index
    %c0_99 = arith.constant 0 : index
    %c0_100 = arith.constant 0 : index
    %148 = vector.load %arg1[%c24, %c0_99, %c0_100] : memref<36x8x256xf32, #tpu.memory_space<vmem>>, vector<1x8x256xf32>
    %149 = vector.shape_cast %148 : vector<1x8x256xf32> to vector<8x256xf32>
    %c0_101 = arith.constant 0 : index
    %c24_102 = arith.constant 24 : index
    %150 = memref.load %arg2[%c0_101, %c24_102] : memref<8x36xf32, #tpu.memory_space<smem>>
    %151 = vector.broadcast %150 : f32 to vector<8x256xf32>
    %152 = arith.mulf %149, %151 : vector<8x256xf32>
    %153 = arith.addf %129, %152 : vector<8x256xf32>
    %c25 = arith.constant 25 : index
    %c0_103 = arith.constant 0 : index
    %c0_104 = arith.constant 0 : index
    %154 = vector.load %arg1[%c25, %c0_103, %c0_104] : memref<36x8x256xf32, #tpu.memory_space<vmem>>, vector<1x8x256xf32>
    %155 = vector.shape_cast %154 : vector<1x8x256xf32> to vector<8x256xf32>
    %c0_105 = arith.constant 0 : index
    %c25_106 = arith.constant 25 : index
    %156 = memref.load %arg2[%c0_105, %c25_106] : memref<8x36xf32, #tpu.memory_space<smem>>
    %157 = vector.broadcast %156 : f32 to vector<8x256xf32>
    %158 = arith.mulf %155, %157 : vector<8x256xf32>
    %159 = arith.addf %135, %158 : vector<8x256xf32>
    %c26 = arith.constant 26 : index
    %c0_107 = arith.constant 0 : index
    %c0_108 = arith.constant 0 : index
    %160 = vector.load %arg1[%c26, %c0_107, %c0_108] : memref<36x8x256xf32, #tpu.memory_space<vmem>>, vector<1x8x256xf32>
    %161 = vector.shape_cast %160 : vector<1x8x256xf32> to vector<8x256xf32>
    %c0_109 = arith.constant 0 : index
    %c26_110 = arith.constant 26 : index
    %162 = memref.load %arg2[%c0_109, %c26_110] : memref<8x36xf32, #tpu.memory_space<smem>>
    %163 = vector.broadcast %162 : f32 to vector<8x256xf32>
    %164 = arith.mulf %161, %163 : vector<8x256xf32>
    %165 = arith.addf %141, %164 : vector<8x256xf32>
    %c27 = arith.constant 27 : index
    %c0_111 = arith.constant 0 : index
    %c0_112 = arith.constant 0 : index
    %166 = vector.load %arg1[%c27, %c0_111, %c0_112] : memref<36x8x256xf32, #tpu.memory_space<vmem>>, vector<1x8x256xf32>
    %167 = vector.shape_cast %166 : vector<1x8x256xf32> to vector<8x256xf32>
    %c0_113 = arith.constant 0 : index
    %c27_114 = arith.constant 27 : index
    %168 = memref.load %arg2[%c0_113, %c27_114] : memref<8x36xf32, #tpu.memory_space<smem>>
    %169 = vector.broadcast %168 : f32 to vector<8x256xf32>
    %170 = arith.mulf %167, %169 : vector<8x256xf32>
    %171 = arith.addf %147, %170 : vector<8x256xf32>
    %c28 = arith.constant 28 : index
    %c0_115 = arith.constant 0 : index
    %c0_116 = arith.constant 0 : index
    %172 = vector.load %arg1[%c28, %c0_115, %c0_116] : memref<36x8x256xf32, #tpu.memory_space<vmem>>, vector<1x8x256xf32>
    %173 = vector.shape_cast %172 : vector<1x8x256xf32> to vector<8x256xf32>
    %c0_117 = arith.constant 0 : index
    %c28_118 = arith.constant 28 : index
    %174 = memref.load %arg2[%c0_117, %c28_118] : memref<8x36xf32, #tpu.memory_space<smem>>
    %175 = vector.broadcast %174 : f32 to vector<8x256xf32>
    %176 = arith.mulf %173, %175 : vector<8x256xf32>
    %177 = arith.addf %153, %176 : vector<8x256xf32>
    %c29 = arith.constant 29 : index
    %c0_119 = arith.constant 0 : index
    %c0_120 = arith.constant 0 : index
    %178 = vector.load %arg1[%c29, %c0_119, %c0_120] : memref<36x8x256xf32, #tpu.memory_space<vmem>>, vector<1x8x256xf32>
    %179 = vector.shape_cast %178 : vector<1x8x256xf32> to vector<8x256xf32>
    %c0_121 = arith.constant 0 : index
    %c29_122 = arith.constant 29 : index
    %180 = memref.load %arg2[%c0_121, %c29_122] : memref<8x36xf32, #tpu.memory_space<smem>>
    %181 = vector.broadcast %180 : f32 to vector<8x256xf32>
    %182 = arith.mulf %179, %181 : vector<8x256xf32>
    %183 = arith.addf %159, %182 : vector<8x256xf32>
    %c30 = arith.constant 30 : index
    %c0_123 = arith.constant 0 : index
    %c0_124 = arith.constant 0 : index
    %184 = vector.load %arg1[%c30, %c0_123, %c0_124] : memref<36x8x256xf32, #tpu.memory_space<vmem>>, vector<1x8x256xf32>
    %185 = vector.shape_cast %184 : vector<1x8x256xf32> to vector<8x256xf32>
    %c0_125 = arith.constant 0 : index
    %c30_126 = arith.constant 30 : index
    %186 = memref.load %arg2[%c0_125, %c30_126] : memref<8x36xf32, #tpu.memory_space<smem>>
    %187 = vector.broadcast %186 : f32 to vector<8x256xf32>
    %188 = arith.mulf %185, %187 : vector<8x256xf32>
    %189 = arith.addf %165, %188 : vector<8x256xf32>
    %c31 = arith.constant 31 : index
    %c0_127 = arith.constant 0 : index
    %c0_128 = arith.constant 0 : index
    %190 = vector.load %arg1[%c31, %c0_127, %c0_128] : memref<36x8x256xf32, #tpu.memory_space<vmem>>, vector<1x8x256xf32>
    %191 = vector.shape_cast %190 : vector<1x8x256xf32> to vector<8x256xf32>
    %c0_129 = arith.constant 0 : index
    %c31_130 = arith.constant 31 : index
    %192 = memref.load %arg2[%c0_129, %c31_130] : memref<8x36xf32, #tpu.memory_space<smem>>
    %193 = vector.broadcast %192 : f32 to vector<8x256xf32>
    %194 = arith.mulf %191, %193 : vector<8x256xf32>
    %195 = arith.addf %171, %194 : vector<8x256xf32>
    %c32 = arith.constant 32 : index
    %c0_131 = arith.constant 0 : index
    %c0_132 = arith.constant 0 : index
    %196 = vector.load %arg1[%c32, %c0_131, %c0_132] : memref<36x8x256xf32, #tpu.memory_space<vmem>>, vector<1x8x256xf32>
    %197 = vector.shape_cast %196 : vector<1x8x256xf32> to vector<8x256xf32>
    %c0_133 = arith.constant 0 : index
    %c32_134 = arith.constant 32 : index
    %198 = memref.load %arg2[%c0_133, %c32_134] : memref<8x36xf32, #tpu.memory_space<smem>>
    %199 = vector.broadcast %198 : f32 to vector<8x256xf32>
    %200 = arith.mulf %197, %199 : vector<8x256xf32>
    %201 = arith.addf %177, %200 : vector<8x256xf32>
    %c33 = arith.constant 33 : index
    %c0_135 = arith.constant 0 : index
    %c0_136 = arith.constant 0 : index
    %202 = vector.load %arg1[%c33, %c0_135, %c0_136] : memref<36x8x256xf32, #tpu.memory_space<vmem>>, vector<1x8x256xf32>
    %203 = vector.shape_cast %202 : vector<1x8x256xf32> to vector<8x256xf32>
    %c0_137 = arith.constant 0 : index
    %c33_138 = arith.constant 33 : index
    %204 = memref.load %arg2[%c0_137, %c33_138] : memref<8x36xf32, #tpu.memory_space<smem>>
    %205 = vector.broadcast %204 : f32 to vector<8x256xf32>
    %206 = arith.mulf %203, %205 : vector<8x256xf32>
    %207 = arith.addf %183, %206 : vector<8x256xf32>
    %c34 = arith.constant 34 : index
    %c0_139 = arith.constant 0 : index
    %c0_140 = arith.constant 0 : index
    %208 = vector.load %arg1[%c34, %c0_139, %c0_140] : memref<36x8x256xf32, #tpu.memory_space<vmem>>, vector<1x8x256xf32>
    %209 = vector.shape_cast %208 : vector<1x8x256xf32> to vector<8x256xf32>
    %c0_141 = arith.constant 0 : index
    %c34_142 = arith.constant 34 : index
    %210 = memref.load %arg2[%c0_141, %c34_142] : memref<8x36xf32, #tpu.memory_space<smem>>
    %211 = vector.broadcast %210 : f32 to vector<8x256xf32>
    %212 = arith.mulf %209, %211 : vector<8x256xf32>
    %213 = arith.addf %189, %212 : vector<8x256xf32>
    %c35 = arith.constant 35 : index
    %c0_143 = arith.constant 0 : index
    %c0_144 = arith.constant 0 : index
    %214 = vector.load %arg1[%c35, %c0_143, %c0_144] : memref<36x8x256xf32, #tpu.memory_space<vmem>>, vector<1x8x256xf32>
    %215 = vector.shape_cast %214 : vector<1x8x256xf32> to vector<8x256xf32>
    %c0_145 = arith.constant 0 : index
    %c35_146 = arith.constant 35 : index
    %216 = memref.load %arg2[%c0_145, %c35_146] : memref<8x36xf32, #tpu.memory_space<smem>>
    %217 = vector.broadcast %216 : f32 to vector<8x256xf32>
    %218 = arith.mulf %215, %217 : vector<8x256xf32>
    %219 = arith.addf %195, %218 : vector<8x256xf32>
    %220 = arith.addf %201, %207 : vector<8x256xf32>
    %221 = arith.addf %213, %219 : vector<8x256xf32>
    %222 = arith.addf %220, %221 : vector<8x256xf32>
    %c0_147 = arith.constant 0 : index
    %223 = memref.load %arg3[%c0_147] : memref<8xf32, #tpu.memory_space<smem>>
    %224 = vector.broadcast %223 : f32 to vector<8x256xf32>
    %225 = arith.addf %222, %224 : vector<8x256xf32>
    %cst_148 = arith.constant 0.000000e+00 : f32
    %226 = vector.broadcast %cst_148 : f32 to vector<8x256xf32>
    %227 = arith.maximumf %225, %226 : vector<8x256xf32>
    %228 = arith.truncf %227 : vector<8x256xf32> to vector<8x256xbf16>
    %c0_149 = arith.constant 0 : index
    %c0_150 = arith.constant 0 : index
    %229 = vector.load %arg7[%c0_149, %c0_150] : memref<8x2048xbf16, #tpu.memory_space<vmem>>, vector<8x256xbf16>
    tpu.vector_store %arg7[%c0_149, %c0_150], %228 {strides = array<i32>} : memref<8x2048xbf16, #tpu.memory_space<vmem>>, vector<8x256xbf16>,
    %cst_151 = arith.constant 0.000000e+00 : f32
    %230 = vector.broadcast %cst_151 : f32 to vector<8x256xf32>
    %cst_152 = arith.constant 0.000000e+00 : f32
    %231 = vector.broadcast %cst_152 : f32 to vector<8x256xf32>
    %cst_153 = arith.constant 0.000000e+00 : f32
    %232 = vector.broadcast %cst_153 : f32 to vector<8x256xf32>
    %cst_154 = arith.constant 0.000000e+00 : f32
    %233 = vector.broadcast %cst_154 : f32 to vector<8x256xf32>
    %c0_155 = arith.constant 0 : index
    %c0_156 = arith.constant 0 : index
    %c0_157 = arith.constant 0 : index
    %234 = vector.load %arg1[%c0_155, %c0_156, %c0_157] : memref<36x8x256xf32, #tpu.memory_space<vmem>>, vector<1x8x256xf32>
    %235 = vector.shape_cast %234 : vector<1x8x256xf32> to vector<8x256xf32>
    %c1_158 = arith.constant 1 : index
    %c0_159 = arith.constant 0 : index
    %236 = memref.load %arg2[%c1_158, %c0_159] : memref<8x36xf32, #tpu.memory_space<smem>>
    %237 = vector.broadcast %236 : f32 to vector<8x256xf32>
    %238 = arith.mulf %235, %237 : vector<8x256xf32>
    %239 = arith.addf %230, %238 : vector<8x256xf32>
    %c1_160 = arith.constant 1 : index
    %c0_161 = arith.constant 0 : index
    %c0_162 = arith.constant 0 : index
    %240 = vector.load %arg1[%c1_160, %c0_161, %c0_162] : memref<36x8x256xf32, #tpu.memory_space<vmem>>, vector<1x8x256xf32>
    %241 = vector.shape_cast %240 : vector<1x8x256xf32> to vector<8x256xf32>
    %c1_163 = arith.constant 1 : index
    %c1_164 = arith.constant 1 : index
    %242 = memref.load %arg2[%c1_163, %c1_164] : memref<8x36xf32, #tpu.memory_space<smem>>
    %243 = vector.broadcast %242 : f32 to vector<8x256xf32>
    %244 = arith.mulf %241, %243 : vector<8x256xf32>
    %245 = arith.addf %231, %244 : vector<8x256xf32>
    %c2_165 = arith.constant 2 : index
    %c0_166 = arith.constant 0 : index
    %c0_167 = arith.constant 0 : index
    %246 = vector.load %arg1[%c2_165, %c0_166, %c0_167] : memref<36x8x256xf32, #tpu.memory_space<vmem>>, vector<1x8x256xf32>
    %247 = vector.shape_cast %246 : vector<1x8x256xf32> to vector<8x256xf32>
    %c1_168 = arith.constant 1 : index
    %c2_169 = arith.constant 2 : index
    %248 = memref.load %arg2[%c1_168, %c2_169] : memref<8x36xf32, #tpu.memory_space<smem>>
    %249 = vector.broadcast %248 : f32 to vector<8x256xf32>
    %250 = arith.mulf %247, %249 : vector<8x256xf32>
    %251 = arith.addf %232, %250 : vector<8x256xf32>
    %c3_170 = arith.constant 3 : index
    %c0_171 = arith.constant 0 : index
    %c0_172 = arith.constant 0 : index
    %252 = vector.load %arg1[%c3_170, %c0_171, %c0_172] : memref<36x8x256xf32, #tpu.memory_space<vmem>>, vector<1x8x256xf32>
    %253 = vector.shape_cast %252 : vector<1x8x256xf32> to vector<8x256xf32>
    %c1_173 = arith.constant 1 : index
    %c3_174 = arith.constant 3 : index
    %254 = memref.load %arg2[%c1_173, %c3_174] : memref<8x36xf32, #tpu.memory_space<smem>>
    %255 = vector.broadcast %254 : f32 to vector<8x256xf32>
    %256 = arith.mulf %253, %255 : vector<8x256xf32>
    %257 = arith.addf %233, %256 : vector<8x256xf32>
    %c4_175 = arith.constant 4 : index
    %c0_176 = arith.constant 0 : index
    %c0_177 = arith.constant 0 : index
    %258 = vector.load %arg1[%c4_175, %c0_176, %c0_177] : memref<36x8x256xf32, #tpu.memory_space<vmem>>, vector<1x8x256xf32>
    %259 = vector.shape_cast %258 : vector<1x8x256xf32> to vector<8x256xf32>
    %c1_178 = arith.constant 1 : index
    %c4_179 = arith.constant 4 : index
    %260 = memref.load %arg2[%c1_178, %c4_179] : memref<8x36xf32, #tpu.memory_space<smem>>
    %261 = vector.broadcast %260 : f32 to vector<8x256xf32>
    %262 = arith.mulf %259, %261 : vector<8x256xf32>
    %263 = arith.addf %239, %262 : vector<8x256xf32>
    %c5_180 = arith.constant 5 : index
    %c0_181 = arith.constant 0 : index
    %c0_182 = arith.constant 0 : index
    %264 = vector.load %arg1[%c5_180, %c0_181, %c0_182] : memref<36x8x256xf32, #tpu.memory_space<vmem>>, vector<1x8x256xf32>
    %265 = vector.shape_cast %264 : vector<1x8x256xf32> to vector<8x256xf32>
    %c1_183 = arith.constant 1 : index
    %c5_184 = arith.constant 5 : index
    %266 = memref.load %arg2[%c1_183, %c5_184] : memref<8x36xf32, #tpu.memory_space<smem>>
    %267 = vector.broadcast %266 : f32 to vector<8x256xf32>
    %268 = arith.mulf %265, %267 : vector<8x256xf32>
    %269 = arith.addf %245, %268 : vector<8x256xf32>
    %c6_185 = arith.constant 6 : index
    %c0_186 = arith.constant 0 : index
    %c0_187 = arith.constant 0 : index
    %270 = vector.load %arg1[%c6_185, %c0_186, %c0_187] : memref<36x8x256xf32, #tpu.memory_space<vmem>>, vector<1x8x256xf32>
    %271 = vector.shape_cast %270 : vector<1x8x256xf32> to vector<8x256xf32>
    %c1_188 = arith.constant 1 : index
    %c6_189 = arith.constant 6 : index
    %272 = memref.load %arg2[%c1_188, %c6_189] : memref<8x36xf32, #tpu.memory_space<smem>>
    %273 = vector.broadcast %272 : f32 to vector<8x256xf32>
    %274 = arith.mulf %271, %273 : vector<8x256xf32>
    %275 = arith.addf %251, %274 : vector<8x256xf32>
    %c7_190 = arith.constant 7 : index
    %c0_191 = arith.constant 0 : index
    %c0_192 = arith.constant 0 : index
    %276 = vector.load %arg1[%c7_190, %c0_191, %c0_192] : memref<36x8x256xf32, #tpu.memory_space<vmem>>, vector<1x8x256xf32>
    %277 = vector.shape_cast %276 : vector<1x8x256xf32> to vector<8x256xf32>
    %c1_193 = arith.constant 1 : index
    %c7_194 = arith.constant 7 : index
    %278 = memref.load %arg2[%c1_193, %c7_194] : memref<8x36xf32, #tpu.memory_space<smem>>
    %279 = vector.broadcast %278 : f32 to vector<8x256xf32>
    %280 = arith.mulf %277, %279 : vector<8x256xf32>
    %281 = arith.addf %257, %280 : vector<8x256xf32>
    %c8_195 = arith.constant 8 : index
    %c0_196 = arith.constant 0 : index
    %c0_197 = arith.constant 0 : index
    %282 = vector.load %arg1[%c8_195, %c0_196, %c0_197] : memref<36x8x256xf32, #tpu.memory_space<vmem>>, vector<1x8x256xf32>
    %283 = vector.shape_cast %282 : vector<1x8x256xf32> to vector<8x256xf32>
    %c1_198 = arith.constant 1 : index
    %c8_199 = arith.constant 8 : index
    %284 = memref.load %arg2[%c1_198, %c8_199] : memref<8x36xf32, #tpu.memory_space<smem>>
    %285 = vector.broadcast %284 : f32 to vector<8x256xf32>
    %286 = arith.mulf %283, %285 : vector<8x256xf32>
    %287 = arith.addf %263, %286 : vector<8x256xf32>
    %c9_200 = arith.constant 9 : index
    %c0_201 = arith.constant 0 : index
    %c0_202 = arith.constant 0 : index
    %288 = vector.load %arg1[%c9_200, %c0_201, %c0_202] : memref<36x8x256xf32, #tpu.memory_space<vmem>>, vector<1x8x256xf32>
    %289 = vector.shape_cast %288 : vector<1x8x256xf32> to vector<8x256xf32>
    %c1_203 = arith.constant 1 : index
    %c9_204 = arith.constant 9 : index
    %290 = memref.load %arg2[%c1_203, %c9_204] : memref<8x36xf32, #tpu.memory_space<smem>>
    %291 = vector.broadcast %290 : f32 to vector<8x256xf32>
    %292 = arith.mulf %289, %291 : vector<8x256xf32>
    %293 = arith.addf %269, %292 : vector<8x256xf32>
    %c10_205 = arith.constant 10 : index
    %c0_206 = arith.constant 0 : index
    %c0_207 = arith.constant 0 : index
    %294 = vector.load %arg1[%c10_205, %c0_206, %c0_207] : memref<36x8x256xf32, #tpu.memory_space<vmem>>, vector<1x8x256xf32>
    %295 = vector.shape_cast %294 : vector<1x8x256xf32> to vector<8x256xf32>
    %c1_208 = arith.constant 1 : index
    %c10_209 = arith.constant 10 : index
    %296 = memref.load %arg2[%c1_208, %c10_209] : memref<8x36xf32, #tpu.memory_space<smem>>
    %297 = vector.broadcast %296 : f32 to vector<8x256xf32>
    %298 = arith.mulf %295, %297 : vector<8x256xf32>
    %299 = arith.addf %275, %298 : vector<8x256xf32>
    %c11_210 = arith.constant 11 : index
    %c0_211 = arith.constant 0 : index
    %c0_212 = arith.constant 0 : index
    %300 = vector.load %arg1[%c11_210, %c0_211, %c0_212] : memref<36x8x256xf32, #tpu.memory_space<vmem>>, vector<1x8x256xf32>
    %301 = vector.shape_cast %300 : vector<1x8x256xf32> to vector<8x256xf32>
    %c1_213 = arith.constant 1 : index
    %c11_214 = arith.constant 11 : index
    %302 = memref.load %arg2[%c1_213, %c11_214] : memref<8x36xf32, #tpu.memory_space<smem>>
    %303 = vector.broadcast %302 : f32 to vector<8x256xf32>
    %304 = arith.mulf %301, %303 : vector<8x256xf32>
    %305 = arith.addf %281, %304 : vector<8x256xf32>
    %c12_215 = arith.constant 12 : index
    %c0_216 = arith.constant 0 : index
    %c0_217 = arith.constant 0 : index
    %306 = vector.load %arg1[%c12_215, %c0_216, %c0_217] : memref<36x8x256xf32, #tpu.memory_space<vmem>>, vector<1x8x256xf32>
    %307 = vector.shape_cast %306 : vector<1x8x256xf32> to vector<8x256xf32>
    %c1_218 = arith.constant 1 : index
    %c12_219 = arith.constant 12 : index
    %308 = memref.load %arg2[%c1_218, %c12_219] : memref<8x36xf32, #tpu.memory_space<smem>>
    %309 = vector.broadcast %308 : f32 to vector<8x256xf32>
    %310 = arith.mulf %307, %309 : vector<8x256xf32>
    %311 = arith.addf %287, %310 : vector<8x256xf32>
    %c13_220 = arith.constant 13 : index
    %c0_221 = arith.constant 0 : index
    %c0_222 = arith.constant 0 : index
    %312 = vector.load %arg1[%c13_220, %c0_221, %c0_222] : memref<36x8x256xf32, #tpu.memory_space<vmem>>, vector<1x8x256xf32>
    %313 = vector.shape_cast %312 : vector<1x8x256xf32> to vector<8x256xf32>
    %c1_223 = arith.constant 1 : index
    %c13_224 = arith.constant 13 : index
    %314 = memref.load %arg2[%c1_223, %c13_224] : memref<8x36xf32, #tpu.memory_space<smem>>
    %315 = vector.broadcast %314 : f32 to vector<8x256xf32>
    %316 = arith.mulf %313, %315 : vector<8x256xf32>
    %317 = arith.addf %293, %316 : vector<8x256xf32>
    %c14_225 = arith.constant 14 : index
    %c0_226 = arith.constant 0 : index
    %c0_227 = arith.constant 0 : index
    %318 = vector.load %arg1[%c14_225, %c0_226, %c0_227] : memref<36x8x256xf32, #tpu.memory_space<vmem>>, vector<1x8x256xf32>
    %319 = vector.shape_cast %318 : vector<1x8x256xf32> to vector<8x256xf32>
    %c1_228 = arith.constant 1 : index
    %c14_229 = arith.constant 14 : index
    %320 = memref.load %arg2[%c1_228, %c14_229] : memref<8x36xf32, #tpu.memory_space<smem>>
    %321 = vector.broadcast %320 : f32 to vector<8x256xf32>
    %322 = arith.mulf %319, %321 : vector<8x256xf32>
    %323 = arith.addf %299, %322 : vector<8x256xf32>
    %c15_230 = arith.constant 15 : index
    %c0_231 = arith.constant 0 : index
    %c0_232 = arith.constant 0 : index
    %324 = vector.load %arg1[%c15_230, %c0_231, %c0_232] : memref<36x8x256xf32, #tpu.memory_space<vmem>>, vector<1x8x256xf32>
    %325 = vector.shape_cast %324 : vector<1x8x256xf32> to vector<8x256xf32>
    %c1_233 = arith.constant 1 : index
    %c15_234 = arith.constant 15 : index
    %326 = memref.load %arg2[%c1_233, %c15_234] : memref<8x36xf32, #tpu.memory_space<smem>>
    %327 = vector.broadcast %326 : f32 to vector<8x256xf32>
    %328 = arith.mulf %325, %327 : vector<8x256xf32>
    %329 = arith.addf %305, %328 : vector<8x256xf32>
    %c16_235 = arith.constant 16 : index
    %c0_236 = arith.constant 0 : index
    %c0_237 = arith.constant 0 : index
    %330 = vector.load %arg1[%c16_235, %c0_236, %c0_237] : memref<36x8x256xf32, #tpu.memory_space<vmem>>, vector<1x8x256xf32>
    %331 = vector.shape_cast %330 : vector<1x8x256xf32> to vector<8x256xf32>
    %c1_238 = arith.constant 1 : index
    %c16_239 = arith.constant 16 : index
    %332 = memref.load %arg2[%c1_238, %c16_239] : memref<8x36xf32, #tpu.memory_space<smem>>
    %333 = vector.broadcast %332 : f32 to vector<8x256xf32>
    %334 = arith.mulf %331, %333 : vector<8x256xf32>
    %335 = arith.addf %311, %334 : vector<8x256xf32>
    %c17_240 = arith.constant 17 : index
    %c0_241 = arith.constant 0 : index
    %c0_242 = arith.constant 0 : index
    %336 = vector.load %arg1[%c17_240, %c0_241, %c0_242] : memref<36x8x256xf32, #tpu.memory_space<vmem>>, vector<1x8x256xf32>
    %337 = vector.shape_cast %336 : vector<1x8x256xf32> to vector<8x256xf32>
    %c1_243 = arith.constant 1 : index
    %c17_244 = arith.constant 17 : index
    %338 = memref.load %arg2[%c1_243, %c17_244] : memref<8x36xf32, #tpu.memory_space<smem>>
    %339 = vector.broadcast %338 : f32 to vector<8x256xf32>
    %340 = arith.mulf %337, %339 : vector<8x256xf32>
    %341 = arith.addf %317, %340 : vector<8x256xf32>
    %c18_245 = arith.constant 18 : index
    %c0_246 = arith.constant 0 : index
    %c0_247 = arith.constant 0 : index
    %342 = vector.load %arg1[%c18_245, %c0_246, %c0_247] : memref<36x8x256xf32, #tpu.memory_space<vmem>>, vector<1x8x256xf32>
    %343 = vector.shape_cast %342 : vector<1x8x256xf32> to vector<8x256xf32>
    %c1_248 = arith.constant 1 : index
    %c18_249 = arith.constant 18 : index
    %344 = memref.load %arg2[%c1_248, %c18_249] : memref<8x36xf32, #tpu.memory_space<smem>>
    %345 = vector.broadcast %344 : f32 to vector<8x256xf32>
    %346 = arith.mulf %343, %345 : vector<8x256xf32>
    %347 = arith.addf %323, %346 : vector<8x256xf32>
    %c19_250 = arith.constant 19 : index
    %c0_251 = arith.constant 0 : index
    %c0_252 = arith.constant 0 : index
    %348 = vector.load %arg1[%c19_250, %c0_251, %c0_252] : memref<36x8x256xf32, #tpu.memory_space<vmem>>, vector<1x8x256xf32>
    %349 = vector.shape_cast %348 : vector<1x8x256xf32> to vector<8x256xf32>
    %c1_253 = arith.constant 1 : index
    %c19_254 = arith.constant 19 : index
    %350 = memref.load %arg2[%c1_253, %c19_254] : memref<8x36xf32, #tpu.memory_space<smem>>
    %351 = vector.broadcast %350 : f32 to vector<8x256xf32>
    %352 = arith.mulf %349, %351 : vector<8x256xf32>
    %353 = arith.addf %329, %352 : vector<8x256xf32>
    %c20_255 = arith.constant 20 : index
    %c0_256 = arith.constant 0 : index
    %c0_257 = arith.constant 0 : index
    %354 = vector.load %arg1[%c20_255, %c0_256, %c0_257] : memref<36x8x256xf32, #tpu.memory_space<vmem>>, vector<1x8x256xf32>
    %355 = vector.shape_cast %354 : vector<1x8x256xf32> to vector<8x256xf32>
    %c1_258 = arith.constant 1 : index
    %c20_259 = arith.constant 20 : index
    %356 = memref.load %arg2[%c1_258, %c20_259] : memref<8x36xf32, #tpu.memory_space<smem>>
    %357 = vector.broadcast %356 : f32 to vector<8x256xf32>
    %358 = arith.mulf %355, %357 : vector<8x256xf32>
    %359 = arith.addf %335, %358 : vector<8x256xf32>
    %c21_260 = arith.constant 21 : index
    %c0_261 = arith.constant 0 : index
    %c0_262 = arith.constant 0 : index
    %360 = vector.load %arg1[%c21_260, %c0_261, %c0_262] : memref<36x8x256xf32, #tpu.memory_space<vmem>>, vector<1x8x256xf32>
    %361 = vector.shape_cast %360 : vector<1x8x256xf32> to vector<8x256xf32>
    %c1_263 = arith.constant 1 : index
    %c21_264 = arith.constant 21 : index
    %362 = memref.load %arg2[%c1_263, %c21_264] : memref<8x36xf32, #tpu.memory_space<smem>>
    %363 = vector.broadcast %362 : f32 to vector<8x256xf32>
    %364 = arith.mulf %361, %363 : vector<8x256xf32>
    %365 = arith.addf %341, %364 : vector<8x256xf32>
    %c22_265 = arith.constant 22 : index
    %c0_266 = arith.constant 0 : index
    %c0_267 = arith.constant 0 : index
    %366 = vector.load %arg1[%c22_265, %c0_266, %c0_267] : memref<36x8x256xf32, #tpu.memory_space<vmem>>, vector<1x8x256xf32>
    %367 = vector.shape_cast %366 : vector<1x8x256xf32> to vector<8x256xf32>
    %c1_268 = arith.constant 1 : index
    %c22_269 = arith.constant 22 : index
    %368 = memref.load %arg2[%c1_268, %c22_269] : memref<8x36xf32, #tpu.memory_space<smem>>
    %369 = vector.broadcast %368 : f32 to vector<8x256xf32>
    %370 = arith.mulf %367, %369 : vector<8x256xf32>
    %371 = arith.addf %347, %370 : vector<8x256xf32>
    %c23_270 = arith.constant 23 : index
    %c0_271 = arith.constant 0 : index
    %c0_272 = arith.constant 0 : index
    %372 = vector.load %arg1[%c23_270, %c0_271, %c0_272] : memref<36x8x256xf32, #tpu.memory_space<vmem>>, vector<1x8x256xf32>
    %373 = vector.shape_cast %372 : vector<1x8x256xf32> to vector<8x256xf32>
    %c1_273 = arith.constant 1 : index
    %c23_274 = arith.constant 23 : index
    %374 = memref.load %arg2[%c1_273, %c23_274] : memref<8x36xf32, #tpu.memory_space<smem>>
    %375 = vector.broadcast %374 : f32 to vector<8x256xf32>
    %376 = arith.mulf %373, %375 : vector<8x256xf32>
    %377 = arith.addf %353, %376 : vector<8x256xf32>
    %c24_275 = arith.constant 24 : index
    %c0_276 = arith.constant 0 : index
    %c0_277 = arith.constant 0 : index
    %378 = vector.load %arg1[%c24_275, %c0_276, %c0_277] : memref<36x8x256xf32, #tpu.memory_space<vmem>>, vector<1x8x256xf32>
    %379 = vector.shape_cast %378 : vector<1x8x256xf32> to vector<8x256xf32>
    %c1_278 = arith.constant 1 : index
    %c24_279 = arith.constant 24 : index
    %380 = memref.load %arg2[%c1_278, %c24_279] : memref<8x36xf32, #tpu.memory_space<smem>>
    %381 = vector.broadcast %380 : f32 to vector<8x256xf32>
    %382 = arith.mulf %379, %381 : vector<8x256xf32>
    %383 = arith.addf %359, %382 : vector<8x256xf32>
    %c25_280 = arith.constant 25 : index
    %c0_281 = arith.constant 0 : index
    %c0_282 = arith.constant 0 : index
    %384 = vector.load %arg1[%c25_280, %c0_281, %c0_282] : memref<36x8x256xf32, #tpu.memory_space<vmem>>, vector<1x8x256xf32>
    %385 = vector.shape_cast %384 : vector<1x8x256xf32> to vector<8x256xf32>
    %c1_283 = arith.constant 1 : index
    %c25_284 = arith.constant 25 : index
    %386 = memref.load %arg2[%c1_283, %c25_284] : memref<8x36xf32, #tpu.memory_space<smem>>
    %387 = vector.broadcast %386 : f32 to vector<8x256xf32>
    %388 = arith.mulf %385, %387 : vector<8x256xf32>
    %389 = arith.addf %365, %388 : vector<8x256xf32>
    %c26_285 = arith.constant 26 : index
    %c0_286 = arith.constant 0 : index
    %c0_287 = arith.constant 0 : index
    %390 = vector.load %arg1[%c26_285, %c0_286, %c0_287] : memref<36x8x256xf32, #tpu.memory_space<vmem>>, vector<1x8x256xf32>
    %391 = vector.shape_cast %390 : vector<1x8x256xf32> to vector<8x256xf32>
    %c1_288 = arith.constant 1 : index
    %c26_289 = arith.constant 26 : index
    %392 = memref.load %arg2[%c1_288, %c26_289] : memref<8x36xf32, #tpu.memory_space<smem>>
    %393 = vector.broadcast %392 : f32 to vector<8x256xf32>
    %394 = arith.mulf %391, %393 : vector<8x256xf32>
    %395 = arith.addf %371, %394 : vector<8x256xf32>
    %c27_290 = arith.constant 27 : index
    %c0_291 = arith.constant 0 : index
    %c0_292 = arith.constant 0 : index
    %396 = vector.load %arg1[%c27_290, %c0_291, %c0_292] : memref<36x8x256xf32, #tpu.memory_space<vmem>>, vector<1x8x256xf32>
    %397 = vector.shape_cast %396 : vector<1x8x256xf32> to vector<8x256xf32>
    %c1_293 = arith.constant 1 : index
    %c27_294 = arith.constant 27 : index
    %398 = memref.load %arg2[%c1_293, %c27_294] : memref<8x36xf32, #tpu.memory_space<smem>>
    %399 = vector.broadcast %398 : f32 to vector<8x256xf32>
    %400 = arith.mulf %397, %399 : vector<8x256xf32>
    %401 = arith.addf %377, %400 : vector<8x256xf32>
    %c28_295 = arith.constant 28 : index
    %c0_296 = arith.constant 0 : index
    %c0_297 = arith.constant 0 : index
    %402 = vector.load %arg1[%c28_295, %c0_296, %c0_297] : memref<36x8x256xf32, #tpu.memory_space<vmem>>, vector<1x8x256xf32>
    %403 = vector.shape_cast %402 : vector<1x8x256xf32> to vector<8x256xf32>
    %c1_298 = arith.constant 1 : index
    %c28_299 = arith.constant 28 : index
    %404 = memref.load %arg2[%c1_298, %c28_299] : memref<8x36xf32, #tpu.memory_space<smem>>
    %405 = vector.broadcast %404 : f32 to vector<8x256xf32>
    %406 = arith.mulf %403, %405 : vector<8x256xf32>
    %407 = arith.addf %383, %406 : vector<8x256xf32>
    %c29_300 = arith.constant 29 : index
    %c0_301 = arith.constant 0 : index
    %c0_302 = arith.constant 0 : index
    %408 = vector.load %arg1[%c29_300, %c0_301, %c0_302] : memref<36x8x256xf32, #tpu.memory_space<vmem>>, vector<1x8x256xf32>
    %409 = vector.shape_cast %408 : vector<1x8x256xf32> to vector<8x256xf32>
    %c1_303 = arith.constant 1 : index
    %c29_304 = arith.constant 29 : index
    %410 = memref.load %arg2[%c1_303, %c29_304] : memref<8x36xf32, #tpu.memory_space<smem>>
    %411 = vector.broadcast %410 : f32 to vector<8x256xf32>
    %412 = arith.mulf %409, %411 : vector<8x256xf32>
    %413 = arith.addf %389, %412 : vector<8x256xf32>
    %c30_305 = arith.constant 30 : index
    %c0_306 = arith.constant 0 : index
    %c0_307 = arith.constant 0 : index
    %414 = vector.load %arg1[%c30_305, %c0_306, %c0_307] : memref<36x8x256xf32, #tpu.memory_space<vmem>>, vector<1x8x256xf32>
    %415 = vector.shape_cast %414 : vector<1x8x256xf32> to vector<8x256xf32>
    %c1_308 = arith.constant 1 : index
    %c30_309 = arith.constant 30 : index
    %416 = memref.load %arg2[%c1_308, %c30_309] : memref<8x36xf32, #tpu.memory_space<smem>>
    %417 = vector.broadcast %416 : f32 to vector<8x256xf32>
    %418 = arith.mulf %415, %417 : vector<8x256xf32>
    %419 = arith.addf %395, %418 : vector<8x256xf32>
    %c31_310 = arith.constant 31 : index
    %c0_311 = arith.constant 0 : index
    %c0_312 = arith.constant 0 : index
    %420 = vector.load %arg1[%c31_310, %c0_311, %c0_312] : memref<36x8x256xf32, #tpu.memory_space<vmem>>, vector<1x8x256xf32>
    %421 = vector.shape_cast %420 : vector<1x8x256xf32> to vector<8x256xf32>
    %c1_313 = arith.constant 1 : index
    %c31_314 = arith.constant 31 : index
    %422 = memref.load %arg2[%c1_313, %c31_314] : memref<8x36xf32, #tpu.memory_space<smem>>
    %423 = vector.broadcast %422 : f32 to vector<8x256xf32>
    %424 = arith.mulf %421, %423 : vector<8x256xf32>
    %425 = arith.addf %401, %424 : vector<8x256xf32>
    %c32_315 = arith.constant 32 : index
    %c0_316 = arith.constant 0 : index
    %c0_317 = arith.constant 0 : index
    %426 = vector.load %arg1[%c32_315, %c0_316, %c0_317] : memref<36x8x256xf32, #tpu.memory_space<vmem>>, vector<1x8x256xf32>
    %427 = vector.shape_cast %426 : vector<1x8x256xf32> to vector<8x256xf32>
    %c1_318 = arith.constant 1 : index
    %c32_319 = arith.constant 32 : index
    %428 = memref.load %arg2[%c1_318, %c32_319] : memref<8x36xf32, #tpu.memory_space<smem>>
    %429 = vector.broadcast %428 : f32 to vector<8x256xf32>
    %430 = arith.mulf %427, %429 : vector<8x256xf32>
    %431 = arith.addf %407, %430 : vector<8x256xf32>
    %c33_320 = arith.constant 33 : index
    %c0_321 = arith.constant 0 : index
    %c0_322 = arith.constant 0 : index
    %432 = vector.load %arg1[%c33_320, %c0_321, %c0_322] : memref<36x8x256xf32, #tpu.memory_space<vmem>>, vector<1x8x256xf32>
    %433 = vector.shape_cast %432 : vector<1x8x256xf32> to vector<8x256xf32>
    %c1_323 = arith.constant 1 : index
    %c33_324 = arith.constant 33 : index
    %434 = memref.load %arg2[%c1_323, %c33_324] : memref<8x36xf32, #tpu.memory_space<smem>>
    %435 = vector.broadcast %434 : f32 to vector<8x256xf32>
    %436 = arith.mulf %433, %435 : vector<8x256xf32>
    %437 = arith.addf %413, %436 : vector<8x256xf32>
    %c34_325 = arith.constant 34 : index
    %c0_326 = arith.constant 0 : index
    %c0_327 = arith.constant 0 : index
    %438 = vector.load %arg1[%c34_325, %c0_326, %c0_327] : memref<36x8x256xf32, #tpu.memory_space<vmem>>, vector<1x8x256xf32>
    %439 = vector.shape_cast %438 : vector<1x8x256xf32> to vector<8x256xf32>
    %c1_328 = arith.constant 1 : index
    %c34_329 = arith.constant 34 : index
    %440 = memref.load %arg2[%c1_328, %c34_329] : memref<8x36xf32, #tpu.memory_space<smem>>
    %441 = vector.broadcast %440 : f32 to vector<8x256xf32>
    %442 = arith.mulf %439, %441 : vector<8x256xf32>
    %443 = arith.addf %419, %442 : vector<8x256xf32>
    %c35_330 = arith.constant 35 : index
    %c0_331 = arith.constant 0 : index
    %c0_332 = arith.constant 0 : index
    %444 = vector.load %arg1[%c35_330, %c0_331, %c0_332] : memref<36x8x256xf32, #tpu.memory_space<vmem>>, vector<1x8x256xf32>
    %445 = vector.shape_cast %444 : vector<1x8x256xf32> to vector<8x256xf32>
    %c1_333 = arith.constant 1 : index
    %c35_334 = arith.constant 35 : index
    %446 = memref.load %arg2[%c1_333, %c35_334] : memref<8x36xf32, #tpu.memory_space<smem>>
    %447 = vector.broadcast %446 : f32 to vector<8x256xf32>
    %448 = arith.mulf %445, %447 : vector<8x256xf32>
    %449 = arith.addf %425, %448 : vector<8x256xf32>
    %450 = arith.addf %431, %437 : vector<8x256xf32>
    %451 = arith.addf %443, %449 : vector<8x256xf32>
    %452 = arith.addf %450, %451 : vector<8x256xf32>
    %c1_335 = arith.constant 1 : index
    %453 = memref.load %arg3[%c1_335] : memref<8xf32, #tpu.memory_space<smem>>
    %454 = vector.broadcast %453 : f32 to vector<8x256xf32>
    %455 = arith.addf %452, %454 : vector<8x256xf32>
    %cst_336 = arith.constant 0.000000e+00 : f32
    %456 = vector.broadcast %cst_336 : f32 to vector<8x256xf32>
    %457 = arith.maximumf %455, %456 : vector<8x256xf32>
    %458 = arith.truncf %457 : vector<8x256xf32> to vector<8x256xbf16>
    %c0_337 = arith.constant 0 : index
    %c256 = arith.constant 256 : index
    %459 = vector.load %arg7[%c0_337, %c256] : memref<8x2048xbf16, #tpu.memory_space<vmem>>, vector<8x256xbf16>
    tpu.vector_store %arg7[%c0_337, %c256], %458 {strides = array<i32>} : memref<8x2048xbf16, #tpu.memory_space<vmem>>, vector<8x256xbf16>,
    %cst_338 = arith.constant 0.000000e+00 : f32
    %460 = vector.broadcast %cst_338 : f32 to vector<8x256xf32>
    %cst_339 = arith.constant 0.000000e+00 : f32
    %461 = vector.broadcast %cst_339 : f32 to vector<8x256xf32>
    %cst_340 = arith.constant 0.000000e+00 : f32
    %462 = vector.broadcast %cst_340 : f32 to vector<8x256xf32>
    %cst_341 = arith.constant 0.000000e+00 : f32
    %463 = vector.broadcast %cst_341 : f32 to vector<8x256xf32>
    %c0_342 = arith.constant 0 : index
    %c0_343 = arith.constant 0 : index
    %c0_344 = arith.constant 0 : index
    %464 = vector.load %arg1[%c0_342, %c0_343, %c0_344] : memref<36x8x256xf32, #tpu.memory_space<vmem>>, vector<1x8x256xf32>
    %465 = vector.shape_cast %464 : vector<1x8x256xf32> to vector<8x256xf32>
    %c2_345 = arith.constant 2 : index
    %c0_346 = arith.constant 0 : index
    %466 = memref.load %arg2[%c2_345, %c0_346] : memref<8x36xf32, #tpu.memory_space<smem>>
    %467 = vector.broadcast %466 : f32 to vector<8x256xf32>
    %468 = arith.mulf %465, %467 : vector<8x256xf32>
    %469 = arith.addf %460, %468 : vector<8x256xf32>
    %c1_347 = arith.constant 1 : index
    %c0_348 = arith.constant 0 : index
    %c0_349 = arith.constant 0 : index
    %470 = vector.load %arg1[%c1_347, %c0_348, %c0_349] : memref<36x8x256xf32, #tpu.memory_space<vmem>>, vector<1x8x256xf32>
    %471 = vector.shape_cast %470 : vector<1x8x256xf32> to vector<8x256xf32>
    %c2_350 = arith.constant 2 : index
    %c1_351 = arith.constant 1 : index
    %472 = memref.load %arg2[%c2_350, %c1_351] : memref<8x36xf32, #tpu.memory_space<smem>>
    %473 = vector.broadcast %472 : f32 to vector<8x256xf32>
    %474 = arith.mulf %471, %473 : vector<8x256xf32>
    %475 = arith.addf %461, %474 : vector<8x256xf32>
    %c2_352 = arith.constant 2 : index
    %c0_353 = arith.constant 0 : index
    %c0_354 = arith.constant 0 : index
    %476 = vector.load %arg1[%c2_352, %c0_353, %c0_354] : memref<36x8x256xf32, #tpu.memory_space<vmem>>, vector<1x8x256xf32>
    %477 = vector.shape_cast %476 : vector<1x8x256xf32> to vector<8x256xf32>
    %c2_355 = arith.constant 2 : index
    %c2_356 = arith.constant 2 : index
    %478 = memref.load %arg2[%c2_355, %c2_356] : memref<8x36xf32, #tpu.memory_space<smem>>
    %479 = vector.broadcast %478 : f32 to vector<8x256xf32>
    %480 = arith.mulf %477, %479 : vector<8x256xf32>
    %481 = arith.addf %462, %480 : vector<8x256xf32>
    %c3_357 = arith.constant 3 : index
    %c0_358 = arith.constant 0 : index
    %c0_359 = arith.constant 0 : index
    %482 = vector.load %arg1[%c3_357, %c0_358, %c0_359] : memref<36x8x256xf32, #tpu.memory_space<vmem>>, vector<1x8x256xf32>
    %483 = vector.shape_cast %482 : vector<1x8x256xf32> to vector<8x256xf32>
    %c2_360 = arith.constant 2 : index
    %c3_361 = arith.constant 3 : index
    %484 = memref.load %arg2[%c2_360, %c3_361] : memref<8x36xf32, #tpu.memory_space<smem>>
    %485 = vector.broadcast %484 : f32 to vector<8x256xf32>
    %486 = arith.mulf %483, %485 : vector<8x256xf32>
    %487 = arith.addf %463, %486 : vector<8x256xf32>
    %c4_362 = arith.constant 4 : index
    %c0_363 = arith.constant 0 : index
    %c0_364 = arith.constant 0 : index
    %488 = vector.load %arg1[%c4_362, %c0_363, %c0_364] : memref<36x8x256xf32, #tpu.memory_space<vmem>>, vector<1x8x256xf32>
    %489 = vector.shape_cast %488 : vector<1x8x256xf32> to vector<8x256xf32>
    %c2_365 = arith.constant 2 : index
    %c4_366 = arith.constant 4 : index
    %490 = memref.load %arg2[%c2_365, %c4_366] : memref<8x36xf32, #tpu.memory_space<smem>>
    %491 = vector.broadcast %490 : f32 to vector<8x256xf32>
    %492 = arith.mulf %489, %491 : vector<8x256xf32>
    %493 = arith.addf %469, %492 : vector<8x256xf32>
    %c5_367 = arith.constant 5 : index
    %c0_368 = arith.constant 0 : index
    %c0_369 = arith.constant 0 : index
    %494 = vector.load %arg1[%c5_367, %c0_368, %c0_369] : memref<36x8x256xf32, #tpu.memory_space<vmem>>, vector<1x8x256xf32>
    %495 = vector.shape_cast %494 : vector<1x8x256xf32> to vector<8x256xf32>
    %c2_370 = arith.constant 2 : index
    %c5_371 = arith.constant 5 : index
    %496 = memref.load %arg2[%c2_370, %c5_371] : memref<8x36xf32, #tpu.memory_space<smem>>
    %497 = vector.broadcast %496 : f32 to vector<8x256xf32>
    %498 = arith.mulf %495, %497 : vector<8x256xf32>
    %499 = arith.addf %475, %498 : vector<8x256xf32>
    %c6_372 = arith.constant 6 : index
    %c0_373 = arith.constant 0 : index
    %c0_374 = arith.constant 0 : index
    %500 = vector.load %arg1[%c6_372, %c0_373, %c0_374] : memref<36x8x256xf32, #tpu.memory_space<vmem>>, vector<1x8x256xf32>
    %501 = vector.shape_cast %500 : vector<1x8x256xf32> to vector<8x256xf32>
    %c2_375 = arith.constant 2 : index
    %c6_376 = arith.constant 6 : index
    %502 = memref.load %arg2[%c2_375, %c6_376] : memref<8x36xf32, #tpu.memory_space<smem>>
    %503 = vector.broadcast %502 : f32 to vector<8x256xf32>
    %504 = arith.mulf %501, %503 : vector<8x256xf32>
    %505 = arith.addf %481, %504 : vector<8x256xf32>
    %c7_377 = arith.constant 7 : index
    %c0_378 = arith.constant 0 : index
    %c0_379 = arith.constant 0 : index
    %506 = vector.load %arg1[%c7_377, %c0_378, %c0_379] : memref<36x8x256xf32, #tpu.memory_space<vmem>>, vector<1x8x256xf32>
    %507 = vector.shape_cast %506 : vector<1x8x256xf32> to vector<8x256xf32>
    %c2_380 = arith.constant 2 : index
    %c7_381 = arith.constant 7 : index
    %508 = memref.load %arg2[%c2_380, %c7_381] : memref<8x36xf32, #tpu.memory_space<smem>>
    %509 = vector.broadcast %508 : f32 to vector<8x256xf32>
    %510 = arith.mulf %507, %509 : vector<8x256xf32>
    %511 = arith.addf %487, %510 : vector<8x256xf32>
    %c8_382 = arith.constant 8 : index
    %c0_383 = arith.constant 0 : index
    %c0_384 = arith.constant 0 : index
    %512 = vector.load %arg1[%c8_382, %c0_383, %c0_384] : memref<36x8x256xf32, #tpu.memory_space<vmem>>, vector<1x8x256xf32>
    %513 = vector.shape_cast %512 : vector<1x8x256xf32> to vector<8x256xf32>
    %c2_385 = arith.constant 2 : index
    %c8_386 = arith.constant 8 : index
    %514 = memref.load %arg2[%c2_385, %c8_386] : memref<8x36xf32, #tpu.memory_space<smem>>
    %515 = vector.broadcast %514 : f32 to vector<8x256xf32>
    %516 = arith.mulf %513, %515 : vector<8x256xf32>
    %517 = arith.addf %493, %516 : vector<8x256xf32>
    %c9_387 = arith.constant 9 : index
    %c0_388 = arith.constant 0 : index
    %c0_389 = arith.constant 0 : index
    %518 = vector.load %arg1[%c9_387, %c0_388, %c0_389] : memref<36x8x256xf32, #tpu.memory_space<vmem>>, vector<1x8x256xf32>
    %519 = vector.shape_cast %518 : vector<1x8x256xf32> to vector<8x256xf32>
    %c2_390 = arith.constant 2 : index
    %c9_391 = arith.constant 9 : index
    %520 = memref.load %arg2[%c2_390, %c9_391] : memref<8x36xf32, #tpu.memory_space<smem>>
    %521 = vector.broadcast %520 : f32 to vector<8x256xf32>
    %522 = arith.mulf %519, %521 : vector<8x256xf32>
    %523 = arith.addf %499, %522 : vector<8x256xf32>
    %c10_392 = arith.constant 10 : index
    %c0_393 = arith.constant 0 : index
    %c0_394 = arith.constant 0 : index
    %524 = vector.load %arg1[%c10_392, %c0_393, %c0_394] : memref<36x8x256xf32, #tpu.memory_space<vmem>>, vector<1x8x256xf32>
    %525 = vector.shape_cast %524 : vector<1x8x256xf32> to vector<8x256xf32>
    %c2_395 = arith.constant 2 : index
    %c10_396 = arith.constant 10 : index
    %526 = memref.load %arg2[%c2_395, %c10_396] : memref<8x36xf32, #tpu.memory_space<smem>>
    %527 = vector.broadcast %526 : f32 to vector<8x256xf32>
    %528 = arith.mulf %525, %527 : vector<8x256xf32>
    %529 = arith.addf %505, %528 : vector<8x256xf32>
    %c11_397 = arith.constant 11 : index
    %c0_398 = arith.constant 0 : index
    %c0_399 = arith.constant 0 : index
    %530 = vector.load %arg1[%c11_397, %c0_398, %c0_399] : memref<36x8x256xf32, #tpu.memory_space<vmem>>, vector<1x8x256xf32>
    %531 = vector.shape_cast %530 : vector<1x8x256xf32> to vector<8x256xf32>
    %c2_400 = arith.constant 2 : index
    %c11_401 = arith.constant 11 : index
    %532 = memref.load %arg2[%c2_400, %c11_401] : memref<8x36xf32, #tpu.memory_space<smem>>
    %533 = vector.broadcast %532 : f32 to vector<8x256xf32>
    %534 = arith.mulf %531, %533 : vector<8x256xf32>
    %535 = arith.addf %511, %534 : vector<8x256xf32>
    %c12_402 = arith.constant 12 : index
    %c0_403 = arith.constant 0 : index
    %c0_404 = arith.constant 0 : index
    %536 = vector.load %arg1[%c12_402, %c0_403, %c0_404] : memref<36x8x256xf32, #tpu.memory_space<vmem>>, vector<1x8x256xf32>
    %537 = vector.shape_cast %536 : vector<1x8x256xf32> to vector<8x256xf32>
    %c2_405 = arith.constant 2 : index
    %c12_406 = arith.constant 12 : index
    %538 = memref.load %arg2[%c2_405, %c12_406] : memref<8x36xf32, #tpu.memory_space<smem>>
    %539 = vector.broadcast %538 : f32 to vector<8x256xf32>
    %540 = arith.mulf %537, %539 : vector<8x256xf32>
    %541 = arith.addf %517, %540 : vector<8x256xf32>
    %c13_407 = arith.constant 13 : index
    %c0_408 = arith.constant 0 : index
    %c0_409 = arith.constant 0 : index
    %542 = vector.load %arg1[%c13_407, %c0_408, %c0_409] : memref<36x8x256xf32, #tpu.memory_space<vmem>>, vector<1x8x256xf32>
    %543 = vector.shape_cast %542 : vector<1x8x256xf32> to vector<8x256xf32>
    %c2_410 = arith.constant 2 : index
    %c13_411 = arith.constant 13 : index
    %544 = memref.load %arg2[%c2_410, %c13_411] : memref<8x36xf32, #tpu.memory_space<smem>>
    %545 = vector.broadcast %544 : f32 to vector<8x256xf32>
    %546 = arith.mulf %543, %545 : vector<8x256xf32>
    %547 = arith.addf %523, %546 : vector<8x256xf32>
    %c14_412 = arith.constant 14 : index
    %c0_413 = arith.constant 0 : index
    %c0_414 = arith.constant 0 : index
    %548 = vector.load %arg1[%c14_412, %c0_413, %c0_414] : memref<36x8x256xf32, #tpu.memory_space<vmem>>, vector<1x8x256xf32>
    %549 = vector.shape_cast %548 : vector<1x8x256xf32> to vector<8x256xf32>
    %c2_415 = arith.constant 2 : index
    %c14_416 = arith.constant 14 : index
    %550 = memref.load %arg2[%c2_415, %c14_416] : memref<8x36xf32, #tpu.memory_space<smem>>
    %551 = vector.broadcast %550 : f32 to vector<8x256xf32>
    %552 = arith.mulf %549, %551 : vector<8x256xf32>
    %553 = arith.addf %529, %552 : vector<8x256xf32>
    %c15_417 = arith.constant 15 : index
    %c0_418 = arith.constant 0 : index
    %c0_419 = arith.constant 0 : index
    %554 = vector.load %arg1[%c15_417, %c0_418, %c0_419] : memref<36x8x256xf32, #tpu.memory_space<vmem>>, vector<1x8x256xf32>
    %555 = vector.shape_cast %554 : vector<1x8x256xf32> to vector<8x256xf32>
    %c2_420 = arith.constant 2 : index
    %c15_421 = arith.constant 15 : index
    %556 = memref.load %arg2[%c2_420, %c15_421] : memref<8x36xf32, #tpu.memory_space<smem>>
    %557 = vector.broadcast %556 : f32 to vector<8x256xf32>
    %558 = arith.mulf %555, %557 : vector<8x256xf32>
    %559 = arith.addf %535, %558 : vector<8x256xf32>
    %c16_422 = arith.constant 16 : index
    %c0_423 = arith.constant 0 : index
    %c0_424 = arith.constant 0 : index
    %560 = vector.load %arg1[%c16_422, %c0_423, %c0_424] : memref<36x8x256xf32, #tpu.memory_space<vmem>>, vector<1x8x256xf32>
    %561 = vector.shape_cast %560 : vector<1x8x256xf32> to vector<8x256xf32>
    %c2_425 = arith.constant 2 : index
    %c16_426 = arith.constant 16 : index
    %562 = memref.load %arg2[%c2_425, %c16_426] : memref<8x36xf32, #tpu.memory_space<smem>>
    %563 = vector.broadcast %562 : f32 to vector<8x256xf32>
    %564 = arith.mulf %561, %563 : vector<8x256xf32>
    %565 = arith.addf %541, %564 : vector<8x256xf32>
    %c17_427 = arith.constant 17 : index
    %c0_428 = arith.constant 0 : index
    %c0_429 = arith.constant 0 : index
    %566 = vector.load %arg1[%c17_427, %c0_428, %c0_429] : memref<36x8x256xf32, #tpu.memory_space<vmem>>, vector<1x8x256xf32>
    %567 = vector.shape_cast %566 : vector<1x8x256xf32> to vector<8x256xf32>
    %c2_430 = arith.constant 2 : index
    %c17_431 = arith.constant 17 : index
    %568 = memref.load %arg2[%c2_430, %c17_431] : memref<8x36xf32, #tpu.memory_space<smem>>
    %569 = vector.broadcast %568 : f32 to vector<8x256xf32>
    %570 = arith.mulf %567, %569 : vector<8x256xf32>
    %571 = arith.addf %547, %570 : vector<8x256xf32>
    %c18_432 = arith.constant 18 : index
    %c0_433 = arith.constant 0 : index
    %c0_434 = arith.constant 0 : index
    %572 = vector.load %arg1[%c18_432, %c0_433, %c0_434] : memref<36x8x256xf32, #tpu.memory_space<vmem>>, vector<1x8x256xf32>
    %573 = vector.shape_cast %572 : vector<1x8x256xf32> to vector<8x256xf32>
    %c2_435 = arith.constant 2 : index
    %c18_436 = arith.constant 18 : index
    %574 = memref.load %arg2[%c2_435, %c18_436] : memref<8x36xf32, #tpu.memory_space<smem>>
    %575 = vector.broadcast %574 : f32 to vector<8x256xf32>
    %576 = arith.mulf %573, %575 : vector<8x256xf32>
    %577 = arith.addf %553, %576 : vector<8x256xf32>
    %c19_437 = arith.constant 19 : index
    %c0_438 = arith.constant 0 : index
    %c0_439 = arith.constant 0 : index
    %578 = vector.load %arg1[%c19_437, %c0_438, %c0_439] : memref<36x8x256xf32, #tpu.memory_space<vmem>>, vector<1x8x256xf32>
    %579 = vector.shape_cast %578 : vector<1x8x256xf32> to vector<8x256xf32>
    %c2_440 = arith.constant 2 : index
    %c19_441 = arith.constant 19 : index
    %580 = memref.load %arg2[%c2_440, %c19_441] : memref<8x36xf32, #tpu.memory_space<smem>>
    %581 = vector.broadcast %580 : f32 to vector<8x256xf32>
    %582 = arith.mulf %579, %581 : vector<8x256xf32>
    %583 = arith.addf %559, %582 : vector<8x256xf32>
    %c20_442 = arith.constant 20 : index
    %c0_443 = arith.constant 0 : index
    %c0_444 = arith.constant 0 : index
    %584 = vector.load %arg1[%c20_442, %c0_443, %c0_444] : memref<36x8x256xf32, #tpu.memory_space<vmem>>, vector<1x8x256xf32>
    %585 = vector.shape_cast %584 : vector<1x8x256xf32> to vector<8x256xf32>
    %c2_445 = arith.constant 2 : index
    %c20_446 = arith.constant 20 : index
    %586 = memref.load %arg2[%c2_445, %c20_446] : memref<8x36xf32, #tpu.memory_space<smem>>
    %587 = vector.broadcast %586 : f32 to vector<8x256xf32>
    %588 = arith.mulf %585, %587 : vector<8x256xf32>
    %589 = arith.addf %565, %588 : vector<8x256xf32>
    %c21_447 = arith.constant 21 : index
    %c0_448 = arith.constant 0 : index
    %c0_449 = arith.constant 0 : index
    %590 = vector.load %arg1[%c21_447, %c0_448, %c0_449] : memref<36x8x256xf32, #tpu.memory_space<vmem>>, vector<1x8x256xf32>
    %591 = vector.shape_cast %590 : vector<1x8x256xf32> to vector<8x256xf32>
    %c2_450 = arith.constant 2 : index
    %c21_451 = arith.constant 21 : index
    %592 = memref.load %arg2[%c2_450, %c21_451] : memref<8x36xf32, #tpu.memory_space<smem>>
    %593 = vector.broadcast %592 : f32 to vector<8x256xf32>
    %594 = arith.mulf %591, %593 : vector<8x256xf32>
    %595 = arith.addf %571, %594 : vector<8x256xf32>
    %c22_452 = arith.constant 22 : index
    %c0_453 = arith.constant 0 : index
    %c0_454 = arith.constant 0 : index
    %596 = vector.load %arg1[%c22_452, %c0_453, %c0_454] : memref<36x8x256xf32, #tpu.memory_space<vmem>>, vector<1x8x256xf32>
    %597 = vector.shape_cast %596 : vector<1x8x256xf32> to vector<8x256xf32>
    %c2_455 = arith.constant 2 : index
    %c22_456 = arith.constant 22 : index
    %598 = memref.load %arg2[%c2_455, %c22_456] : memref<8x36xf32, #tpu.memory_space<smem>>
    %599 = vector.broadcast %598 : f32 to vector<8x256xf32>
    %600 = arith.mulf %597, %599 : vector<8x256xf32>
    %601 = arith.addf %577, %600 : vector<8x256xf32>
    %c23_457 = arith.constant 23 : index
    %c0_458 = arith.constant 0 : index
    %c0_459 = arith.constant 0 : index
    %602 = vector.load %arg1[%c23_457, %c0_458, %c0_459] : memref<36x8x256xf32, #tpu.memory_space<vmem>>, vector<1x8x256xf32>
    %603 = vector.shape_cast %602 : vector<1x8x256xf32> to vector<8x256xf32>
    %c2_460 = arith.constant 2 : index
    %c23_461 = arith.constant 23 : index
    %604 = memref.load %arg2[%c2_460, %c23_461] : memref<8x36xf32, #tpu.memory_space<smem>>
    %605 = vector.broadcast %604 : f32 to vector<8x256xf32>
    %606 = arith.mulf %603, %605 : vector<8x256xf32>
    %607 = arith.addf %583, %606 : vector<8x256xf32>
    %c24_462 = arith.constant 24 : index
    %c0_463 = arith.constant 0 : index
    %c0_464 = arith.constant 0 : index
    %608 = vector.load %arg1[%c24_462, %c0_463, %c0_464] : memref<36x8x256xf32, #tpu.memory_space<vmem>>, vector<1x8x256xf32>
    %609 = vector.shape_cast %608 : vector<1x8x256xf32> to vector<8x256xf32>
    %c2_465 = arith.constant 2 : index
    %c24_466 = arith.constant 24 : index
    %610 = memref.load %arg2[%c2_465, %c24_466] : memref<8x36xf32, #tpu.memory_space<smem>>
    %611 = vector.broadcast %610 : f32 to vector<8x256xf32>
    %612 = arith.mulf %609, %611 : vector<8x256xf32>
    %613 = arith.addf %589, %612 : vector<8x256xf32>
    %c25_467 = arith.constant 25 : index
    %c0_468 = arith.constant 0 : index
    %c0_469 = arith.constant 0 : index
    %614 = vector.load %arg1[%c25_467, %c0_468, %c0_469] : memref<36x8x256xf32, #tpu.memory_space<vmem>>, vector<1x8x256xf32>
    %615 = vector.shape_cast %614 : vector<1x8x256xf32> to vector<8x256xf32>
    %c2_470 = arith.constant 2 : index
    %c25_471 = arith.constant 25 : index
    %616 = memref.load %arg2[%c2_470, %c25_471] : memref<8x36xf32, #tpu.memory_space<smem>>
    %617 = vector.broadcast %616 : f32 to vector<8x256xf32>
    %618 = arith.mulf %615, %617 : vector<8x256xf32>
    %619 = arith.addf %595, %618 : vector<8x256xf32>
    %c26_472 = arith.constant 26 : index
    %c0_473 = arith.constant 0 : index
    %c0_474 = arith.constant 0 : index
    %620 = vector.load %arg1[%c26_472, %c0_473, %c0_474] : memref<36x8x256xf32, #tpu.memory_space<vmem>>, vector<1x8x256xf32>
    %621 = vector.shape_cast %620 : vector<1x8x256xf32> to vector<8x256xf32>
    %c2_475 = arith.constant 2 : index
    %c26_476 = arith.constant 26 : index
    %622 = memref.load %arg2[%c2_475, %c26_476] : memref<8x36xf32, #tpu.memory_space<smem>>
    %623 = vector.broadcast %622 : f32 to vector<8x256xf32>
    %624 = arith.mulf %621, %623 : vector<8x256xf32>
    %625 = arith.addf %601, %624 : vector<8x256xf32>
    %c27_477 = arith.constant 27 : index
    %c0_478 = arith.constant 0 : index
    %c0_479 = arith.constant 0 : index
    %626 = vector.load %arg1[%c27_477, %c0_478, %c0_479] : memref<36x8x256xf32, #tpu.memory_space<vmem>>, vector<1x8x256xf32>
    %627 = vector.shape_cast %626 : vector<1x8x256xf32> to vector<8x256xf32>
    %c2_480 = arith.constant 2 : index
    %c27_481 = arith.constant 27 : index
    %628 = memref.load %arg2[%c2_480, %c27_481] : memref<8x36xf32, #tpu.memory_space<smem>>
    %629 = vector.broadcast %628 : f32 to vector<8x256xf32>
    %630 = arith.mulf %627, %629 : vector<8x256xf32>
    %631 = arith.addf %607, %630 : vector<8x256xf32>
    %c28_482 = arith.constant 28 : index
    %c0_483 = arith.constant 0 : index
    %c0_484 = arith.constant 0 : index
    %632 = vector.load %arg1[%c28_482, %c0_483, %c0_484] : memref<36x8x256xf32, #tpu.memory_space<vmem>>, vector<1x8x256xf32>
    %633 = vector.shape_cast %632 : vector<1x8x256xf32> to vector<8x256xf32>
    %c2_485 = arith.constant 2 : index
    %c28_486 = arith.constant 28 : index
    %634 = memref.load %arg2[%c2_485, %c28_486] : memref<8x36xf32, #tpu.memory_space<smem>>
    %635 = vector.broadcast %634 : f32 to vector<8x256xf32>
    %636 = arith.mulf %633, %635 : vector<8x256xf32>
    %637 = arith.addf %613, %636 : vector<8x256xf32>
    %c29_487 = arith.constant 29 : index
    %c0_488 = arith.constant 0 : index
    %c0_489 = arith.constant 0 : index
    %638 = vector.load %arg1[%c29_487, %c0_488, %c0_489] : memref<36x8x256xf32, #tpu.memory_space<vmem>>, vector<1x8x256xf32>
    %639 = vector.shape_cast %638 : vector<1x8x256xf32> to vector<8x256xf32>
    %c2_490 = arith.constant 2 : index
    %c29_491 = arith.constant 29 : index
    %640 = memref.load %arg2[%c2_490, %c29_491] : memref<8x36xf32, #tpu.memory_space<smem>>
    %641 = vector.broadcast %640 : f32 to vector<8x256xf32>
    %642 = arith.mulf %639, %641 : vector<8x256xf32>
    %643 = arith.addf %619, %642 : vector<8x256xf32>
    %c30_492 = arith.constant 30 : index
    %c0_493 = arith.constant 0 : index
    %c0_494 = arith.constant 0 : index
    %644 = vector.load %arg1[%c30_492, %c0_493, %c0_494] : memref<36x8x256xf32, #tpu.memory_space<vmem>>, vector<1x8x256xf32>
    %645 = vector.shape_cast %644 : vector<1x8x256xf32> to vector<8x256xf32>
    %c2_495 = arith.constant 2 : index
    %c30_496 = arith.constant 30 : index
    %646 = memref.load %arg2[%c2_495, %c30_496] : memref<8x36xf32, #tpu.memory_space<smem>>
    %647 = vector.broadcast %646 : f32 to vector<8x256xf32>
    %648 = arith.mulf %645, %647 : vector<8x256xf32>
    %649 = arith.addf %625, %648 : vector<8x256xf32>
    %c31_497 = arith.constant 31 : index
    %c0_498 = arith.constant 0 : index
    %c0_499 = arith.constant 0 : index
    %650 = vector.load %arg1[%c31_497, %c0_498, %c0_499] : memref<36x8x256xf32, #tpu.memory_space<vmem>>, vector<1x8x256xf32>
    %651 = vector.shape_cast %650 : vector<1x8x256xf32> to vector<8x256xf32>
    %c2_500 = arith.constant 2 : index
    %c31_501 = arith.constant 31 : index
    %652 = memref.load %arg2[%c2_500, %c31_501] : memref<8x36xf32, #tpu.memory_space<smem>>
    %653 = vector.broadcast %652 : f32 to vector<8x256xf32>
    %654 = arith.mulf %651, %653 : vector<8x256xf32>
    %655 = arith.addf %631, %654 : vector<8x256xf32>
    %c32_502 = arith.constant 32 : index
    %c0_503 = arith.constant 0 : index
    %c0_504 = arith.constant 0 : index
    %656 = vector.load %arg1[%c32_502, %c0_503, %c0_504] : memref<36x8x256xf32, #tpu.memory_space<vmem>>, vector<1x8x256xf32>
    %657 = vector.shape_cast %656 : vector<1x8x256xf32> to vector<8x256xf32>
    %c2_505 = arith.constant 2 : index
    %c32_506 = arith.constant 32 : index
    %658 = memref.load %arg2[%c2_505, %c32_506] : memref<8x36xf32, #tpu.memory_space<smem>>
    %659 = vector.broadcast %658 : f32 to vector<8x256xf32>
    %660 = arith.mulf %657, %659 : vector<8x256xf32>
    %661 = arith.addf %637, %660 : vector<8x256xf32>
    %c33_507 = arith.constant 33 : index
    %c0_508 = arith.constant 0 : index
    %c0_509 = arith.constant 0 : index
    %662 = vector.load %arg1[%c33_507, %c0_508, %c0_509] : memref<36x8x256xf32, #tpu.memory_space<vmem>>, vector<1x8x256xf32>
    %663 = vector.shape_cast %662 : vector<1x8x256xf32> to vector<8x256xf32>
    %c2_510 = arith.constant 2 : index
    %c33_511 = arith.constant 33 : index
    %664 = memref.load %arg2[%c2_510, %c33_511] : memref<8x36xf32, #tpu.memory_space<smem>>
    %665 = vector.broadcast %664 : f32 to vector<8x256xf32>
    %666 = arith.mulf %663, %665 : vector<8x256xf32>
    %667 = arith.addf %643, %666 : vector<8x256xf32>
    %c34_512 = arith.constant 34 : index
    %c0_513 = arith.constant 0 : index
    %c0_514 = arith.constant 0 : index
    %668 = vector.load %arg1[%c34_512, %c0_513, %c0_514] : memref<36x8x256xf32, #tpu.memory_space<vmem>>, vector<1x8x256xf32>
    %669 = vector.shape_cast %668 : vector<1x8x256xf32> to vector<8x256xf32>
    %c2_515 = arith.constant 2 : index
    %c34_516 = arith.constant 34 : index
    %670 = memref.load %arg2[%c2_515, %c34_516] : memref<8x36xf32, #tpu.memory_space<smem>>
    %671 = vector.broadcast %670 : f32 to vector<8x256xf32>
    %672 = arith.mulf %669, %671 : vector<8x256xf32>
    %673 = arith.addf %649, %672 : vector<8x256xf32>
    %c35_517 = arith.constant 35 : index
    %c0_518 = arith.constant 0 : index
    %c0_519 = arith.constant 0 : index
    %674 = vector.load %arg1[%c35_517, %c0_518, %c0_519] : memref<36x8x256xf32, #tpu.memory_space<vmem>>, vector<1x8x256xf32>
    %675 = vector.shape_cast %674 : vector<1x8x256xf32> to vector<8x256xf32>
    %c2_520 = arith.constant 2 : index
    %c35_521 = arith.constant 35 : index
    %676 = memref.load %arg2[%c2_520, %c35_521] : memref<8x36xf32, #tpu.memory_space<smem>>
    %677 = vector.broadcast %676 : f32 to vector<8x256xf32>
    %678 = arith.mulf %675, %677 : vector<8x256xf32>
    %679 = arith.addf %655, %678 : vector<8x256xf32>
    %680 = arith.addf %661, %667 : vector<8x256xf32>
    %681 = arith.addf %673, %679 : vector<8x256xf32>
    %682 = arith.addf %680, %681 : vector<8x256xf32>
    %c2_522 = arith.constant 2 : index
    %683 = memref.load %arg3[%c2_522] : memref<8xf32, #tpu.memory_space<smem>>
    %684 = vector.broadcast %683 : f32 to vector<8x256xf32>
    %685 = arith.addf %682, %684 : vector<8x256xf32>
    %cst_523 = arith.constant 0.000000e+00 : f32
    %686 = vector.broadcast %cst_523 : f32 to vector<8x256xf32>
    %687 = arith.maximumf %685, %686 : vector<8x256xf32>
    %688 = arith.truncf %687 : vector<8x256xf32> to vector<8x256xbf16>
    %c0_524 = arith.constant 0 : index
    %c512 = arith.constant 512 : index
    %689 = vector.load %arg7[%c0_524, %c512] : memref<8x2048xbf16, #tpu.memory_space<vmem>>, vector<8x256xbf16>
    tpu.vector_store %arg7[%c0_524, %c512], %688 {strides = array<i32>} : memref<8x2048xbf16, #tpu.memory_space<vmem>>, vector<8x256xbf16>,
    %cst_525 = arith.constant 0.000000e+00 : f32
    %690 = vector.broadcast %cst_525 : f32 to vector<8x256xf32>
    %cst_526 = arith.constant 0.000000e+00 : f32
    %691 = vector.broadcast %cst_526 : f32 to vector<8x256xf32>
    %cst_527 = arith.constant 0.000000e+00 : f32
    %692 = vector.broadcast %cst_527 : f32 to vector<8x256xf32>
    %cst_528 = arith.constant 0.000000e+00 : f32
    %693 = vector.broadcast %cst_528 : f32 to vector<8x256xf32>
    %c0_529 = arith.constant 0 : index
    %c0_530 = arith.constant 0 : index
    %c0_531 = arith.constant 0 : index
    %694 = vector.load %arg1[%c0_529, %c0_530, %c0_531] : memref<36x8x256xf32, #tpu.memory_space<vmem>>, vector<1x8x256xf32>
    %695 = vector.shape_cast %694 : vector<1x8x256xf32> to vector<8x256xf32>
    %c3_532 = arith.constant 3 : index
    %c0_533 = arith.constant 0 : index
    %696 = memref.load %arg2[%c3_532, %c0_533] : memref<8x36xf32, #tpu.memory_space<smem>>
    %697 = vector.broadcast %696 : f32 to vector<8x256xf32>
    %698 = arith.mulf %695, %697 : vector<8x256xf32>
    %699 = arith.addf %690, %698 : vector<8x256xf32>
    %c1_534 = arith.constant 1 : index
    %c0_535 = arith.constant 0 : index
    %c0_536 = arith.constant 0 : index
    %700 = vector.load %arg1[%c1_534, %c0_535, %c0_536] : memref<36x8x256xf32, #tpu.memory_space<vmem>>, vector<1x8x256xf32>
    %701 = vector.shape_cast %700 : vector<1x8x256xf32> to vector<8x256xf32>
    %c3_537 = arith.constant 3 : index
    %c1_538 = arith.constant 1 : index
    %702 = memref.load %arg2[%c3_537, %c1_538] : memref<8x36xf32, #tpu.memory_space<smem>>
    %703 = vector.broadcast %702 : f32 to vector<8x256xf32>
    %704 = arith.mulf %701, %703 : vector<8x256xf32>
    %705 = arith.addf %691, %704 : vector<8x256xf32>
    %c2_539 = arith.constant 2 : index
    %c0_540 = arith.constant 0 : index
    %c0_541 = arith.constant 0 : index
    %706 = vector.load %arg1[%c2_539, %c0_540, %c0_541] : memref<36x8x256xf32, #tpu.memory_space<vmem>>, vector<1x8x256xf32>
    %707 = vector.shape_cast %706 : vector<1x8x256xf32> to vector<8x256xf32>
    %c3_542 = arith.constant 3 : index
    %c2_543 = arith.constant 2 : index
    %708 = memref.load %arg2[%c3_542, %c2_543] : memref<8x36xf32, #tpu.memory_space<smem>>
    %709 = vector.broadcast %708 : f32 to vector<8x256xf32>
    %710 = arith.mulf %707, %709 : vector<8x256xf32>
    %711 = arith.addf %692, %710 : vector<8x256xf32>
    %c3_544 = arith.constant 3 : index
    %c0_545 = arith.constant 0 : index
    %c0_546 = arith.constant 0 : index
    %712 = vector.load %arg1[%c3_544, %c0_545, %c0_546] : memref<36x8x256xf32, #tpu.memory_space<vmem>>, vector<1x8x256xf32>
    %713 = vector.shape_cast %712 : vector<1x8x256xf32> to vector<8x256xf32>
    %c3_547 = arith.constant 3 : index
    %c3_548 = arith.constant 3 : index
    %714 = memref.load %arg2[%c3_547, %c3_548] : memref<8x36xf32, #tpu.memory_space<smem>>
    %715 = vector.broadcast %714 : f32 to vector<8x256xf32>
    %716 = arith.mulf %713, %715 : vector<8x256xf32>
    %717 = arith.addf %693, %716 : vector<8x256xf32>
    %c4_549 = arith.constant 4 : index
    %c0_550 = arith.constant 0 : index
    %c0_551 = arith.constant 0 : index
    %718 = vector.load %arg1[%c4_549, %c0_550, %c0_551] : memref<36x8x256xf32, #tpu.memory_space<vmem>>, vector<1x8x256xf32>
    %719 = vector.shape_cast %718 : vector<1x8x256xf32> to vector<8x256xf32>
    %c3_552 = arith.constant 3 : index
    %c4_553 = arith.constant 4 : index
    %720 = memref.load %arg2[%c3_552, %c4_553] : memref<8x36xf32, #tpu.memory_space<smem>>
    %721 = vector.broadcast %720 : f32 to vector<8x256xf32>
    %722 = arith.mulf %719, %721 : vector<8x256xf32>
    %723 = arith.addf %699, %722 : vector<8x256xf32>
    %c5_554 = arith.constant 5 : index
    %c0_555 = arith.constant 0 : index
    %c0_556 = arith.constant 0 : index
    %724 = vector.load %arg1[%c5_554, %c0_555, %c0_556] : memref<36x8x256xf32, #tpu.memory_space<vmem>>, vector<1x8x256xf32>
    %725 = vector.shape_cast %724 : vector<1x8x256xf32> to vector<8x256xf32>
    %c3_557 = arith.constant 3 : index
    %c5_558 = arith.constant 5 : index
    %726 = memref.load %arg2[%c3_557, %c5_558] : memref<8x36xf32, #tpu.memory_space<smem>>
    %727 = vector.broadcast %726 : f32 to vector<8x256xf32>
    %728 = arith.mulf %725, %727 : vector<8x256xf32>
    %729 = arith.addf %705, %728 : vector<8x256xf32>
    %c6_559 = arith.constant 6 : index
    %c0_560 = arith.constant 0 : index
    %c0_561 = arith.constant 0 : index
    %730 = vector.load %arg1[%c6_559, %c0_560, %c0_561] : memref<36x8x256xf32, #tpu.memory_space<vmem>>, vector<1x8x256xf32>
    %731 = vector.shape_cast %730 : vector<1x8x256xf32> to vector<8x256xf32>
    %c3_562 = arith.constant 3 : index
    %c6_563 = arith.constant 6 : index
    %732 = memref.load %arg2[%c3_562, %c6_563] : memref<8x36xf32, #tpu.memory_space<smem>>
    %733 = vector.broadcast %732 : f32 to vector<8x256xf32>
    %734 = arith.mulf %731, %733 : vector<8x256xf32>
    %735 = arith.addf %711, %734 : vector<8x256xf32>
    %c7_564 = arith.constant 7 : index
    %c0_565 = arith.constant 0 : index
    %c0_566 = arith.constant 0 : index
    %736 = vector.load %arg1[%c7_564, %c0_565, %c0_566] : memref<36x8x256xf32, #tpu.memory_space<vmem>>, vector<1x8x256xf32>
    %737 = vector.shape_cast %736 : vector<1x8x256xf32> to vector<8x256xf32>
    %c3_567 = arith.constant 3 : index
    %c7_568 = arith.constant 7 : index
    %738 = memref.load %arg2[%c3_567, %c7_568] : memref<8x36xf32, #tpu.memory_space<smem>>
    %739 = vector.broadcast %738 : f32 to vector<8x256xf32>
    %740 = arith.mulf %737, %739 : vector<8x256xf32>
    %741 = arith.addf %717, %740 : vector<8x256xf32>
    %c8_569 = arith.constant 8 : index
    %c0_570 = arith.constant 0 : index
    %c0_571 = arith.constant 0 : index
    %742 = vector.load %arg1[%c8_569, %c0_570, %c0_571] : memref<36x8x256xf32, #tpu.memory_space<vmem>>, vector<1x8x256xf32>
    %743 = vector.shape_cast %742 : vector<1x8x256xf32> to vector<8x256xf32>
    %c3_572 = arith.constant 3 : index
    %c8_573 = arith.constant 8 : index
    %744 = memref.load %arg2[%c3_572, %c8_573] : memref<8x36xf32, #tpu.memory_space<smem>>
    %745 = vector.broadcast %744 : f32 to vector<8x256xf32>
    %746 = arith.mulf %743, %745 : vector<8x256xf32>
    %747 = arith.addf %723, %746 : vector<8x256xf32>
    %c9_574 = arith.constant 9 : index
    %c0_575 = arith.constant 0 : index
    %c0_576 = arith.constant 0 : index
    %748 = vector.load %arg1[%c9_574, %c0_575, %c0_576] : memref<36x8x256xf32, #tpu.memory_space<vmem>>, vector<1x8x256xf32>
    %749 = vector.shape_cast %748 : vector<1x8x256xf32> to vector<8x256xf32>
    %c3_577 = arith.constant 3 : index
    %c9_578 = arith.constant 9 : index
    %750 = memref.load %arg2[%c3_577, %c9_578] : memref<8x36xf32, #tpu.memory_space<smem>>
    %751 = vector.broadcast %750 : f32 to vector<8x256xf32>
    %752 = arith.mulf %749, %751 : vector<8x256xf32>
    %753 = arith.addf %729, %752 : vector<8x256xf32>
    %c10_579 = arith.constant 10 : index
    %c0_580 = arith.constant 0 : index
    %c0_581 = arith.constant 0 : index
    %754 = vector.load %arg1[%c10_579, %c0_580, %c0_581] : memref<36x8x256xf32, #tpu.memory_space<vmem>>, vector<1x8x256xf32>
    %755 = vector.shape_cast %754 : vector<1x8x256xf32> to vector<8x256xf32>
    %c3_582 = arith.constant 3 : index
    %c10_583 = arith.constant 10 : index
    %756 = memref.load %arg2[%c3_582, %c10_583] : memref<8x36xf32, #tpu.memory_space<smem>>
    %757 = vector.broadcast %756 : f32 to vector<8x256xf32>
    %758 = arith.mulf %755, %757 : vector<8x256xf32>
    %759 = arith.addf %735, %758 : vector<8x256xf32>
    %c11_584 = arith.constant 11 : index
    %c0_585 = arith.constant 0 : index
    %c0_586 = arith.constant 0 : index
    %760 = vector.load %arg1[%c11_584, %c0_585, %c0_586] : memref<36x8x256xf32, #tpu.memory_space<vmem>>, vector<1x8x256xf32>
    %761 = vector.shape_cast %760 : vector<1x8x256xf32> to vector<8x256xf32>
    %c3_587 = arith.constant 3 : index
    %c11_588 = arith.constant 11 : index
    %762 = memref.load %arg2[%c3_587, %c11_588] : memref<8x36xf32, #tpu.memory_space<smem>>
    %763 = vector.broadcast %762 : f32 to vector<8x256xf32>
    %764 = arith.mulf %761, %763 : vector<8x256xf32>
    %765 = arith.addf %741, %764 : vector<8x256xf32>
    %c12_589 = arith.constant 12 : index
    %c0_590 = arith.constant 0 : index
    %c0_591 = arith.constant 0 : index
    %766 = vector.load %arg1[%c12_589, %c0_590, %c0_591] : memref<36x8x256xf32, #tpu.memory_space<vmem>>, vector<1x8x256xf32>
    %767 = vector.shape_cast %766 : vector<1x8x256xf32> to vector<8x256xf32>
    %c3_592 = arith.constant 3 : index
    %c12_593 = arith.constant 12 : index
    %768 = memref.load %arg2[%c3_592, %c12_593] : memref<8x36xf32, #tpu.memory_space<smem>>
    %769 = vector.broadcast %768 : f32 to vector<8x256xf32>
    %770 = arith.mulf %767, %769 : vector<8x256xf32>
    %771 = arith.addf %747, %770 : vector<8x256xf32>
    %c13_594 = arith.constant 13 : index
    %c0_595 = arith.constant 0 : index
    %c0_596 = arith.constant 0 : index
    %772 = vector.load %arg1[%c13_594, %c0_595, %c0_596] : memref<36x8x256xf32, #tpu.memory_space<vmem>>, vector<1x8x256xf32>
    %773 = vector.shape_cast %772 : vector<1x8x256xf32> to vector<8x256xf32>
    %c3_597 = arith.constant 3 : index
    %c13_598 = arith.constant 13 : index
    %774 = memref.load %arg2[%c3_597, %c13_598] : memref<8x36xf32, #tpu.memory_space<smem>>
    %775 = vector.broadcast %774 : f32 to vector<8x256xf32>
    %776 = arith.mulf %773, %775 : vector<8x256xf32>
    %777 = arith.addf %753, %776 : vector<8x256xf32>
    %c14_599 = arith.constant 14 : index
    %c0_600 = arith.constant 0 : index
    %c0_601 = arith.constant 0 : index
    %778 = vector.load %arg1[%c14_599, %c0_600, %c0_601] : memref<36x8x256xf32, #tpu.memory_space<vmem>>, vector<1x8x256xf32>
    %779 = vector.shape_cast %778 : vector<1x8x256xf32> to vector<8x256xf32>
    %c3_602 = arith.constant 3 : index
    %c14_603 = arith.constant 14 : index
    %780 = memref.load %arg2[%c3_602, %c14_603] : memref<8x36xf32, #tpu.memory_space<smem>>
    %781 = vector.broadcast %780 : f32 to vector<8x256xf32>
    %782 = arith.mulf %779, %781 : vector<8x256xf32>
    %783 = arith.addf %759, %782 : vector<8x256xf32>
    %c15_604 = arith.constant 15 : index
    %c0_605 = arith.constant 0 : index
    %c0_606 = arith.constant 0 : index
    %784 = vector.load %arg1[%c15_604, %c0_605, %c0_606] : memref<36x8x256xf32, #tpu.memory_space<vmem>>, vector<1x8x256xf32>
    %785 = vector.shape_cast %784 : vector<1x8x256xf32> to vector<8x256xf32>
    %c3_607 = arith.constant 3 : index
    %c15_608 = arith.constant 15 : index
    %786 = memref.load %arg2[%c3_607, %c15_608] : memref<8x36xf32, #tpu.memory_space<smem>>
    %787 = vector.broadcast %786 : f32 to vector<8x256xf32>
    %788 = arith.mulf %785, %787 : vector<8x256xf32>
    %789 = arith.addf %765, %788 : vector<8x256xf32>
    %c16_609 = arith.constant 16 : index
    %c0_610 = arith.constant 0 : index
    %c0_611 = arith.constant 0 : index
    %790 = vector.load %arg1[%c16_609, %c0_610, %c0_611] : memref<36x8x256xf32, #tpu.memory_space<vmem>>, vector<1x8x256xf32>
    %791 = vector.shape_cast %790 : vector<1x8x256xf32> to vector<8x256xf32>
    %c3_612 = arith.constant 3 : index
    %c16_613 = arith.constant 16 : index
    %792 = memref.load %arg2[%c3_612, %c16_613] : memref<8x36xf32, #tpu.memory_space<smem>>
    %793 = vector.broadcast %792 : f32 to vector<8x256xf32>
    %794 = arith.mulf %791, %793 : vector<8x256xf32>
    %795 = arith.addf %771, %794 : vector<8x256xf32>
    %c17_614 = arith.constant 17 : index
    %c0_615 = arith.constant 0 : index
    %c0_616 = arith.constant 0 : index
    %796 = vector.load %arg1[%c17_614, %c0_615, %c0_616] : memref<36x8x256xf32, #tpu.memory_space<vmem>>, vector<1x8x256xf32>
    %797 = vector.shape_cast %796 : vector<1x8x256xf32> to vector<8x256xf32>
    %c3_617 = arith.constant 3 : index
    %c17_618 = arith.constant 17 : index
    %798 = memref.load %arg2[%c3_617, %c17_618] : memref<8x36xf32, #tpu.memory_space<smem>>
    %799 = vector.broadcast %798 : f32 to vector<8x256xf32>
    %800 = arith.mulf %797, %799 : vector<8x256xf32>
    %801 = arith.addf %777, %800 : vector<8x256xf32>
    %c18_619 = arith.constant 18 : index
    %c0_620 = arith.constant 0 : index
    %c0_621 = arith.constant 0 : index
    %802 = vector.load %arg1[%c18_619, %c0_620, %c0_621] : memref<36x8x256xf32, #tpu.memory_space<vmem>>, vector<1x8x256xf32>
    %803 = vector.shape_cast %802 : vector<1x8x256xf32> to vector<8x256xf32>
    %c3_622 = arith.constant 3 : index
    %c18_623 = arith.constant 18 : index
    %804 = memref.load %arg2[%c3_622, %c18_623] : memref<8x36xf32, #tpu.memory_space<smem>>
    %805 = vector.broadcast %804 : f32 to vector<8x256xf32>
    %806 = arith.mulf %803, %805 : vector<8x256xf32>
    %807 = arith.addf %783, %806 : vector<8x256xf32>
    %c19_624 = arith.constant 19 : index
    %c0_625 = arith.constant 0 : index
    %c0_626 = arith.constant 0 : index
    %808 = vector.load %arg1[%c19_624, %c0_625, %c0_626] : memref<36x8x256xf32, #tpu.memory_space<vmem>>, vector<1x8x256xf32>
    %809 = vector.shape_cast %808 : vector<1x8x256xf32> to vector<8x256xf32>
    %c3_627 = arith.constant 3 : index
    %c19_628 = arith.constant 19 : index
    %810 = memref.load %arg2[%c3_627, %c19_628] : memref<8x36xf32, #tpu.memory_space<smem>>
    %811 = vector.broadcast %810 : f32 to vector<8x256xf32>
    %812 = arith.mulf %809, %811 : vector<8x256xf32>
    %813 = arith.addf %789, %812 : vector<8x256xf32>
    %c20_629 = arith.constant 20 : index
    %c0_630 = arith.constant 0 : index
    %c0_631 = arith.constant 0 : index
    %814 = vector.load %arg1[%c20_629, %c0_630, %c0_631] : memref<36x8x256xf32, #tpu.memory_space<vmem>>, vector<1x8x256xf32>
    %815 = vector.shape_cast %814 : vector<1x8x256xf32> to vector<8x256xf32>
    %c3_632 = arith.constant 3 : index
    %c20_633 = arith.constant 20 : index
    %816 = memref.load %arg2[%c3_632, %c20_633] : memref<8x36xf32, #tpu.memory_space<smem>>
    %817 = vector.broadcast %816 : f32 to vector<8x256xf32>
    %818 = arith.mulf %815, %817 : vector<8x256xf32>
    %819 = arith.addf %795, %818 : vector<8x256xf32>
    %c21_634 = arith.constant 21 : index
    %c0_635 = arith.constant 0 : index
    %c0_636 = arith.constant 0 : index
    %820 = vector.load %arg1[%c21_634, %c0_635, %c0_636] : memref<36x8x256xf32, #tpu.memory_space<vmem>>, vector<1x8x256xf32>
    %821 = vector.shape_cast %820 : vector<1x8x256xf32> to vector<8x256xf32>
    %c3_637 = arith.constant 3 : index
    %c21_638 = arith.constant 21 : index
    %822 = memref.load %arg2[%c3_637, %c21_638] : memref<8x36xf32, #tpu.memory_space<smem>>
    %823 = vector.broadcast %822 : f32 to vector<8x256xf32>
    %824 = arith.mulf %821, %823 : vector<8x256xf32>
    %825 = arith.addf %801, %824 : vector<8x256xf32>
    %c22_639 = arith.constant 22 : index
    %c0_640 = arith.constant 0 : index
    %c0_641 = arith.constant 0 : index
    %826 = vector.load %arg1[%c22_639, %c0_640, %c0_641] : memref<36x8x256xf32, #tpu.memory_space<vmem>>, vector<1x8x256xf32>
    %827 = vector.shape_cast %826 : vector<1x8x256xf32> to vector<8x256xf32>
    %c3_642 = arith.constant 3 : index
    %c22_643 = arith.constant 22 : index
    %828 = memref.load %arg2[%c3_642, %c22_643] : memref<8x36xf32, #tpu.memory_space<smem>>
    %829 = vector.broadcast %828 : f32 to vector<8x256xf32>
    %830 = arith.mulf %827, %829 : vector<8x256xf32>
    %831 = arith.addf %807, %830 : vector<8x256xf32>
    %c23_644 = arith.constant 23 : index
    %c0_645 = arith.constant 0 : index
    %c0_646 = arith.constant 0 : index
    %832 = vector.load %arg1[%c23_644, %c0_645, %c0_646] : memref<36x8x256xf32, #tpu.memory_space<vmem>>, vector<1x8x256xf32>
    %833 = vector.shape_cast %832 : vector<1x8x256xf32> to vector<8x256xf32>
    %c3_647 = arith.constant 3 : index
    %c23_648 = arith.constant 23 : index
    %834 = memref.load %arg2[%c3_647, %c23_648] : memref<8x36xf32, #tpu.memory_space<smem>>
    %835 = vector.broadcast %834 : f32 to vector<8x256xf32>
    %836 = arith.mulf %833, %835 : vector<8x256xf32>
    %837 = arith.addf %813, %836 : vector<8x256xf32>
    %c24_649 = arith.constant 24 : index
    %c0_650 = arith.constant 0 : index
    %c0_651 = arith.constant 0 : index
    %838 = vector.load %arg1[%c24_649, %c0_650, %c0_651] : memref<36x8x256xf32, #tpu.memory_space<vmem>>, vector<1x8x256xf32>
    %839 = vector.shape_cast %838 : vector<1x8x256xf32> to vector<8x256xf32>
    %c3_652 = arith.constant 3 : index
    %c24_653 = arith.constant 24 : index
    %840 = memref.load %arg2[%c3_652, %c24_653] : memref<8x36xf32, #tpu.memory_space<smem>>
    %841 = vector.broadcast %840 : f32 to vector<8x256xf32>
    %842 = arith.mulf %839, %841 : vector<8x256xf32>
    %843 = arith.addf %819, %842 : vector<8x256xf32>
    %c25_654 = arith.constant 25 : index
    %c0_655 = arith.constant 0 : index
    %c0_656 = arith.constant 0 : index
    %844 = vector.load %arg1[%c25_654, %c0_655, %c0_656] : memref<36x8x256xf32, #tpu.memory_space<vmem>>, vector<1x8x256xf32>
    %845 = vector.shape_cast %844 : vector<1x8x256xf32> to vector<8x256xf32>
    %c3_657 = arith.constant 3 : index
    %c25_658 = arith.constant 25 : index
    %846 = memref.load %arg2[%c3_657, %c25_658] : memref<8x36xf32, #tpu.memory_space<smem>>
    %847 = vector.broadcast %846 : f32 to vector<8x256xf32>
    %848 = arith.mulf %845, %847 : vector<8x256xf32>
    %849 = arith.addf %825, %848 : vector<8x256xf32>
    %c26_659 = arith.constant 26 : index
    %c0_660 = arith.constant 0 : index
    %c0_661 = arith.constant 0 : index
    %850 = vector.load %arg1[%c26_659, %c0_660, %c0_661] : memref<36x8x256xf32, #tpu.memory_space<vmem>>, vector<1x8x256xf32>
    %851 = vector.shape_cast %850 : vector<1x8x256xf32> to vector<8x256xf32>
    %c3_662 = arith.constant 3 : index
    %c26_663 = arith.constant 26 : index
    %852 = memref.load %arg2[%c3_662, %c26_663] : memref<8x36xf32, #tpu.memory_space<smem>>
    %853 = vector.broadcast %852 : f32 to vector<8x256xf32>
    %854 = arith.mulf %851, %853 : vector<8x256xf32>
    %855 = arith.addf %831, %854 : vector<8x256xf32>
    %c27_664 = arith.constant 27 : index
    %c0_665 = arith.constant 0 : index
    %c0_666 = arith.constant 0 : index
    %856 = vector.load %arg1[%c27_664, %c0_665, %c0_666] : memref<36x8x256xf32, #tpu.memory_space<vmem>>, vector<1x8x256xf32>
    %857 = vector.shape_cast %856 : vector<1x8x256xf32> to vector<8x256xf32>
    %c3_667 = arith.constant 3 : index
    %c27_668 = arith.constant 27 : index
    %858 = memref.load %arg2[%c3_667, %c27_668] : memref<8x36xf32, #tpu.memory_space<smem>>
    %859 = vector.broadcast %858 : f32 to vector<8x256xf32>
    %860 = arith.mulf %857, %859 : vector<8x256xf32>
    %861 = arith.addf %837, %860 : vector<8x256xf32>
    %c28_669 = arith.constant 28 : index
    %c0_670 = arith.constant 0 : index
    %c0_671 = arith.constant 0 : index
    %862 = vector.load %arg1[%c28_669, %c0_670, %c0_671] : memref<36x8x256xf32, #tpu.memory_space<vmem>>, vector<1x8x256xf32>
    %863 = vector.shape_cast %862 : vector<1x8x256xf32> to vector<8x256xf32>
    %c3_672 = arith.constant 3 : index
    %c28_673 = arith.constant 28 : index
    %864 = memref.load %arg2[%c3_672, %c28_673] : memref<8x36xf32, #tpu.memory_space<smem>>
    %865 = vector.broadcast %864 : f32 to vector<8x256xf32>
    %866 = arith.mulf %863, %865 : vector<8x256xf32>
    %867 = arith.addf %843, %866 : vector<8x256xf32>
    %c29_674 = arith.constant 29 : index
    %c0_675 = arith.constant 0 : index
    %c0_676 = arith.constant 0 : index
    %868 = vector.load %arg1[%c29_674, %c0_675, %c0_676] : memref<36x8x256xf32, #tpu.memory_space<vmem>>, vector<1x8x256xf32>
    %869 = vector.shape_cast %868 : vector<1x8x256xf32> to vector<8x256xf32>
    %c3_677 = arith.constant 3 : index
    %c29_678 = arith.constant 29 : index
    %870 = memref.load %arg2[%c3_677, %c29_678] : memref<8x36xf32, #tpu.memory_space<smem>>
    %871 = vector.broadcast %870 : f32 to vector<8x256xf32>
    %872 = arith.mulf %869, %871 : vector<8x256xf32>
    %873 = arith.addf %849, %872 : vector<8x256xf32>
    %c30_679 = arith.constant 30 : index
    %c0_680 = arith.constant 0 : index
    %c0_681 = arith.constant 0 : index
    %874 = vector.load %arg1[%c30_679, %c0_680, %c0_681] : memref<36x8x256xf32, #tpu.memory_space<vmem>>, vector<1x8x256xf32>
    %875 = vector.shape_cast %874 : vector<1x8x256xf32> to vector<8x256xf32>
    %c3_682 = arith.constant 3 : index
    %c30_683 = arith.constant 30 : index
    %876 = memref.load %arg2[%c3_682, %c30_683] : memref<8x36xf32, #tpu.memory_space<smem>>
    %877 = vector.broadcast %876 : f32 to vector<8x256xf32>
    %878 = arith.mulf %875, %877 : vector<8x256xf32>
    %879 = arith.addf %855, %878 : vector<8x256xf32>
    %c31_684 = arith.constant 31 : index
    %c0_685 = arith.constant 0 : index
    %c0_686 = arith.constant 0 : index
    %880 = vector.load %arg1[%c31_684, %c0_685, %c0_686] : memref<36x8x256xf32, #tpu.memory_space<vmem>>, vector<1x8x256xf32>
    %881 = vector.shape_cast %880 : vector<1x8x256xf32> to vector<8x256xf32>
    %c3_687 = arith.constant 3 : index
    %c31_688 = arith.constant 31 : index
    %882 = memref.load %arg2[%c3_687, %c31_688] : memref<8x36xf32, #tpu.memory_space<smem>>
    %883 = vector.broadcast %882 : f32 to vector<8x256xf32>
    %884 = arith.mulf %881, %883 : vector<8x256xf32>
    %885 = arith.addf %861, %884 : vector<8x256xf32>
    %c32_689 = arith.constant 32 : index
    %c0_690 = arith.constant 0 : index
    %c0_691 = arith.constant 0 : index
    %886 = vector.load %arg1[%c32_689, %c0_690, %c0_691] : memref<36x8x256xf32, #tpu.memory_space<vmem>>, vector<1x8x256xf32>
    %887 = vector.shape_cast %886 : vector<1x8x256xf32> to vector<8x256xf32>
    %c3_692 = arith.constant 3 : index
    %c32_693 = arith.constant 32 : index
    %888 = memref.load %arg2[%c3_692, %c32_693] : memref<8x36xf32, #tpu.memory_space<smem>>
    %889 = vector.broadcast %888 : f32 to vector<8x256xf32>
    %890 = arith.mulf %887, %889 : vector<8x256xf32>
    %891 = arith.addf %867, %890 : vector<8x256xf32>
    %c33_694 = arith.constant 33 : index
    %c0_695 = arith.constant 0 : index
    %c0_696 = arith.constant 0 : index
    %892 = vector.load %arg1[%c33_694, %c0_695, %c0_696] : memref<36x8x256xf32, #tpu.memory_space<vmem>>, vector<1x8x256xf32>
    %893 = vector.shape_cast %892 : vector<1x8x256xf32> to vector<8x256xf32>
    %c3_697 = arith.constant 3 : index
    %c33_698 = arith.constant 33 : index
    %894 = memref.load %arg2[%c3_697, %c33_698] : memref<8x36xf32, #tpu.memory_space<smem>>
    %895 = vector.broadcast %894 : f32 to vector<8x256xf32>
    %896 = arith.mulf %893, %895 : vector<8x256xf32>
    %897 = arith.addf %873, %896 : vector<8x256xf32>
    %c34_699 = arith.constant 34 : index
    %c0_700 = arith.constant 0 : index
    %c0_701 = arith.constant 0 : index
    %898 = vector.load %arg1[%c34_699, %c0_700, %c0_701] : memref<36x8x256xf32, #tpu.memory_space<vmem>>, vector<1x8x256xf32>
    %899 = vector.shape_cast %898 : vector<1x8x256xf32> to vector<8x256xf32>
    %c3_702 = arith.constant 3 : index
    %c34_703 = arith.constant 34 : index
    %900 = memref.load %arg2[%c3_702, %c34_703] : memref<8x36xf32, #tpu.memory_space<smem>>
    %901 = vector.broadcast %900 : f32 to vector<8x256xf32>
    %902 = arith.mulf %899, %901 : vector<8x256xf32>
    %903 = arith.addf %879, %902 : vector<8x256xf32>
    %c35_704 = arith.constant 35 : index
    %c0_705 = arith.constant 0 : index
    %c0_706 = arith.constant 0 : index
    %904 = vector.load %arg1[%c35_704, %c0_705, %c0_706] : memref<36x8x256xf32, #tpu.memory_space<vmem>>, vector<1x8x256xf32>
    %905 = vector.shape_cast %904 : vector<1x8x256xf32> to vector<8x256xf32>
    %c3_707 = arith.constant 3 : index
    %c35_708 = arith.constant 35 : index
    %906 = memref.load %arg2[%c3_707, %c35_708] : memref<8x36xf32, #tpu.memory_space<smem>>
    %907 = vector.broadcast %906 : f32 to vector<8x256xf32>
    %908 = arith.mulf %905, %907 : vector<8x256xf32>
    %909 = arith.addf %885, %908 : vector<8x256xf32>
    %910 = arith.addf %891, %897 : vector<8x256xf32>
    %911 = arith.addf %903, %909 : vector<8x256xf32>
    %912 = arith.addf %910, %911 : vector<8x256xf32>
    %c3_709 = arith.constant 3 : index
    %913 = memref.load %arg3[%c3_709] : memref<8xf32, #tpu.memory_space<smem>>
    %914 = vector.broadcast %913 : f32 to vector<8x256xf32>
    %915 = arith.addf %912, %914 : vector<8x256xf32>
    %cst_710 = arith.constant 0.000000e+00 : f32
    %916 = vector.broadcast %cst_710 : f32 to vector<8x256xf32>
    %917 = arith.maximumf %915, %916 : vector<8x256xf32>
    %918 = arith.truncf %917 : vector<8x256xf32> to vector<8x256xbf16>
    %c0_711 = arith.constant 0 : index
    %c768 = arith.constant 768 : index
    %919 = vector.load %arg7[%c0_711, %c768] : memref<8x2048xbf16, #tpu.memory_space<vmem>>, vector<8x256xbf16>
    tpu.vector_store %arg7[%c0_711, %c768], %918 {strides = array<i32>} : memref<8x2048xbf16, #tpu.memory_space<vmem>>, vector<8x256xbf16>,
    %cst_712 = arith.constant 0.000000e+00 : f32
    %920 = vector.broadcast %cst_712 : f32 to vector<8x256xf32>
    %cst_713 = arith.constant 0.000000e+00 : f32
    %921 = vector.broadcast %cst_713 : f32 to vector<8x256xf32>
    %cst_714 = arith.constant 0.000000e+00 : f32
    %922 = vector.broadcast %cst_714 : f32 to vector<8x256xf32>
    %cst_715 = arith.constant 0.000000e+00 : f32
    %923 = vector.broadcast %cst_715 : f32 to vector<8x256xf32>
    %c0_716 = arith.constant 0 : index
    %c0_717 = arith.constant 0 : index
    %c0_718 = arith.constant 0 : index
    %924 = vector.load %arg1[%c0_716, %c0_717, %c0_718] : memref<36x8x256xf32, #tpu.memory_space<vmem>>, vector<1x8x256xf32>
    %925 = vector.shape_cast %924 : vector<1x8x256xf32> to vector<8x256xf32>
    %c4_719 = arith.constant 4 : index
    %c0_720 = arith.constant 0 : index
    %926 = memref.load %arg2[%c4_719, %c0_720] : memref<8x36xf32, #tpu.memory_space<smem>>
    %927 = vector.broadcast %926 : f32 to vector<8x256xf32>
    %928 = arith.mulf %925, %927 : vector<8x256xf32>
    %929 = arith.addf %920, %928 : vector<8x256xf32>
    %c1_721 = arith.constant 1 : index
    %c0_722 = arith.constant 0 : index
    %c0_723 = arith.constant 0 : index
    %930 = vector.load %arg1[%c1_721, %c0_722, %c0_723] : memref<36x8x256xf32, #tpu.memory_space<vmem>>, vector<1x8x256xf32>
    %931 = vector.shape_cast %930 : vector<1x8x256xf32> to vector<8x256xf32>
    %c4_724 = arith.constant 4 : index
    %c1_725 = arith.constant 1 : index
    %932 = memref.load %arg2[%c4_724, %c1_725] : memref<8x36xf32, #tpu.memory_space<smem>>
    %933 = vector.broadcast %932 : f32 to vector<8x256xf32>
    %934 = arith.mulf %931, %933 : vector<8x256xf32>
    %935 = arith.addf %921, %934 : vector<8x256xf32>
    %c2_726 = arith.constant 2 : index
    %c0_727 = arith.constant 0 : index
    %c0_728 = arith.constant 0 : index
    %936 = vector.load %arg1[%c2_726, %c0_727, %c0_728] : memref<36x8x256xf32, #tpu.memory_space<vmem>>, vector<1x8x256xf32>
    %937 = vector.shape_cast %936 : vector<1x8x256xf32> to vector<8x256xf32>
    %c4_729 = arith.constant 4 : index
    %c2_730 = arith.constant 2 : index
    %938 = memref.load %arg2[%c4_729, %c2_730] : memref<8x36xf32, #tpu.memory_space<smem>>
    %939 = vector.broadcast %938 : f32 to vector<8x256xf32>
    %940 = arith.mulf %937, %939 : vector<8x256xf32>
    %941 = arith.addf %922, %940 : vector<8x256xf32>
    %c3_731 = arith.constant 3 : index
    %c0_732 = arith.constant 0 : index
    %c0_733 = arith.constant 0 : index
    %942 = vector.load %arg1[%c3_731, %c0_732, %c0_733] : memref<36x8x256xf32, #tpu.memory_space<vmem>>, vector<1x8x256xf32>
    %943 = vector.shape_cast %942 : vector<1x8x256xf32> to vector<8x256xf32>
    %c4_734 = arith.constant 4 : index
    %c3_735 = arith.constant 3 : index
    %944 = memref.load %arg2[%c4_734, %c3_735] : memref<8x36xf32, #tpu.memory_space<smem>>
    %945 = vector.broadcast %944 : f32 to vector<8x256xf32>
    %946 = arith.mulf %943, %945 : vector<8x256xf32>
    %947 = arith.addf %923, %946 : vector<8x256xf32>
    %c4_736 = arith.constant 4 : index
    %c0_737 = arith.constant 0 : index
    %c0_738 = arith.constant 0 : index
    %948 = vector.load %arg1[%c4_736, %c0_737, %c0_738] : memref<36x8x256xf32, #tpu.memory_space<vmem>>, vector<1x8x256xf32>
    %949 = vector.shape_cast %948 : vector<1x8x256xf32> to vector<8x256xf32>
    %c4_739 = arith.constant 4 : index
    %c4_740 = arith.constant 4 : index
    %950 = memref.load %arg2[%c4_739, %c4_740] : memref<8x36xf32, #tpu.memory_space<smem>>
    %951 = vector.broadcast %950 : f32 to vector<8x256xf32>
    %952 = arith.mulf %949, %951 : vector<8x256xf32>
    %953 = arith.addf %929, %952 : vector<8x256xf32>
    %c5_741 = arith.constant 5 : index
    %c0_742 = arith.constant 0 : index
    %c0_743 = arith.constant 0 : index
    %954 = vector.load %arg1[%c5_741, %c0_742, %c0_743] : memref<36x8x256xf32, #tpu.memory_space<vmem>>, vector<1x8x256xf32>
    %955 = vector.shape_cast %954 : vector<1x8x256xf32> to vector<8x256xf32>
    %c4_744 = arith.constant 4 : index
    %c5_745 = arith.constant 5 : index
    %956 = memref.load %arg2[%c4_744, %c5_745] : memref<8x36xf32, #tpu.memory_space<smem>>
    %957 = vector.broadcast %956 : f32 to vector<8x256xf32>
    %958 = arith.mulf %955, %957 : vector<8x256xf32>
    %959 = arith.addf %935, %958 : vector<8x256xf32>
    %c6_746 = arith.constant 6 : index
    %c0_747 = arith.constant 0 : index
    %c0_748 = arith.constant 0 : index
    %960 = vector.load %arg1[%c6_746, %c0_747, %c0_748] : memref<36x8x256xf32, #tpu.memory_space<vmem>>, vector<1x8x256xf32>
    %961 = vector.shape_cast %960 : vector<1x8x256xf32> to vector<8x256xf32>
    %c4_749 = arith.constant 4 : index
    %c6_750 = arith.constant 6 : index
    %962 = memref.load %arg2[%c4_749, %c6_750] : memref<8x36xf32, #tpu.memory_space<smem>>
    %963 = vector.broadcast %962 : f32 to vector<8x256xf32>
    %964 = arith.mulf %961, %963 : vector<8x256xf32>
    %965 = arith.addf %941, %964 : vector<8x256xf32>
    %c7_751 = arith.constant 7 : index
    %c0_752 = arith.constant 0 : index
    %c0_753 = arith.constant 0 : index
    %966 = vector.load %arg1[%c7_751, %c0_752, %c0_753] : memref<36x8x256xf32, #tpu.memory_space<vmem>>, vector<1x8x256xf32>
    %967 = vector.shape_cast %966 : vector<1x8x256xf32> to vector<8x256xf32>
    %c4_754 = arith.constant 4 : index
    %c7_755 = arith.constant 7 : index
    %968 = memref.load %arg2[%c4_754, %c7_755] : memref<8x36xf32, #tpu.memory_space<smem>>
    %969 = vector.broadcast %968 : f32 to vector<8x256xf32>
    %970 = arith.mulf %967, %969 : vector<8x256xf32>
    %971 = arith.addf %947, %970 : vector<8x256xf32>
    %c8_756 = arith.constant 8 : index
    %c0_757 = arith.constant 0 : index
    %c0_758 = arith.constant 0 : index
    %972 = vector.load %arg1[%c8_756, %c0_757, %c0_758] : memref<36x8x256xf32, #tpu.memory_space<vmem>>, vector<1x8x256xf32>
    %973 = vector.shape_cast %972 : vector<1x8x256xf32> to vector<8x256xf32>
    %c4_759 = arith.constant 4 : index
    %c8_760 = arith.constant 8 : index
    %974 = memref.load %arg2[%c4_759, %c8_760] : memref<8x36xf32, #tpu.memory_space<smem>>
    %975 = vector.broadcast %974 : f32 to vector<8x256xf32>
    %976 = arith.mulf %973, %975 : vector<8x256xf32>
    %977 = arith.addf %953, %976 : vector<8x256xf32>
    %c9_761 = arith.constant 9 : index
    %c0_762 = arith.constant 0 : index
    %c0_763 = arith.constant 0 : index
    %978 = vector.load %arg1[%c9_761, %c0_762, %c0_763] : memref<36x8x256xf32, #tpu.memory_space<vmem>>, vector<1x8x256xf32>
    %979 = vector.shape_cast %978 : vector<1x8x256xf32> to vector<8x256xf32>
    %c4_764 = arith.constant 4 : index
    %c9_765 = arith.constant 9 : index
    %980 = memref.load %arg2[%c4_764, %c9_765] : memref<8x36xf32, #tpu.memory_space<smem>>
    %981 = vector.broadcast %980 : f32 to vector<8x256xf32>
    %982 = arith.mulf %979, %981 : vector<8x256xf32>
    %983 = arith.addf %959, %982 : vector<8x256xf32>
    %c10_766 = arith.constant 10 : index
    %c0_767 = arith.constant 0 : index
    %c0_768 = arith.constant 0 : index
    %984 = vector.load %arg1[%c10_766, %c0_767, %c0_768] : memref<36x8x256xf32, #tpu.memory_space<vmem>>, vector<1x8x256xf32>
    %985 = vector.shape_cast %984 : vector<1x8x256xf32> to vector<8x256xf32>
    %c4_769 = arith.constant 4 : index
    %c10_770 = arith.constant 10 : index
    %986 = memref.load %arg2[%c4_769, %c10_770] : memref<8x36xf32, #tpu.memory_space<smem>>
    %987 = vector.broadcast %986 : f32 to vector<8x256xf32>
    %988 = arith.mulf %985, %987 : vector<8x256xf32>
    %989 = arith.addf %965, %988 : vector<8x256xf32>
    %c11_771 = arith.constant 11 : index
    %c0_772 = arith.constant 0 : index
    %c0_773 = arith.constant 0 : index
    %990 = vector.load %arg1[%c11_771, %c0_772, %c0_773] : memref<36x8x256xf32, #tpu.memory_space<vmem>>, vector<1x8x256xf32>
    %991 = vector.shape_cast %990 : vector<1x8x256xf32> to vector<8x256xf32>
    %c4_774 = arith.constant 4 : index
    %c11_775 = arith.constant 11 : index
    %992 = memref.load %arg2[%c4_774, %c11_775] : memref<8x36xf32, #tpu.memory_space<smem>>
    %993 = vector.broadcast %992 : f32 to vector<8x256xf32>
    %994 = arith.mulf %991, %993 : vector<8x256xf32>
    %995 = arith.addf %971, %994 : vector<8x256xf32>
    %c12_776 = arith.constant 12 : index
    %c0_777 = arith.constant 0 : index
    %c0_778 = arith.constant 0 : index
    %996 = vector.load %arg1[%c12_776, %c0_777, %c0_778] : memref<36x8x256xf32, #tpu.memory_space<vmem>>, vector<1x8x256xf32>
    %997 = vector.shape_cast %996 : vector<1x8x256xf32> to vector<8x256xf32>
    %c4_779 = arith.constant 4 : index
    %c12_780 = arith.constant 12 : index
    %998 = memref.load %arg2[%c4_779, %c12_780] : memref<8x36xf32, #tpu.memory_space<smem>>
    %999 = vector.broadcast %998 : f32 to vector<8x256xf32>
    %1000 = arith.mulf %997, %999 : vector<8x256xf32>
    %1001 = arith.addf %977, %1000 : vector<8x256xf32>
    %c13_781 = arith.constant 13 : index
    %c0_782 = arith.constant 0 : index
    %c0_783 = arith.constant 0 : index
    %1002 = vector.load %arg1[%c13_781, %c0_782, %c0_783] : memref<36x8x256xf32, #tpu.memory_space<vmem>>, vector<1x8x256xf32>
    %1003 = vector.shape_cast %1002 : vector<1x8x256xf32> to vector<8x256xf32>
    %c4_784 = arith.constant 4 : index
    %c13_785 = arith.constant 13 : index
    %1004 = memref.load %arg2[%c4_784, %c13_785] : memref<8x36xf32, #tpu.memory_space<smem>>
    %1005 = vector.broadcast %1004 : f32 to vector<8x256xf32>
    %1006 = arith.mulf %1003, %1005 : vector<8x256xf32>
    %1007 = arith.addf %983, %1006 : vector<8x256xf32>
    %c14_786 = arith.constant 14 : index
    %c0_787 = arith.constant 0 : index
    %c0_788 = arith.constant 0 : index
    %1008 = vector.load %arg1[%c14_786, %c0_787, %c0_788] : memref<36x8x256xf32, #tpu.memory_space<vmem>>, vector<1x8x256xf32>
    %1009 = vector.shape_cast %1008 : vector<1x8x256xf32> to vector<8x256xf32>
    %c4_789 = arith.constant 4 : index
    %c14_790 = arith.constant 14 : index
    %1010 = memref.load %arg2[%c4_789, %c14_790] : memref<8x36xf32, #tpu.memory_space<smem>>
    %1011 = vector.broadcast %1010 : f32 to vector<8x256xf32>
    %1012 = arith.mulf %1009, %1011 : vector<8x256xf32>
    %1013 = arith.addf %989, %1012 : vector<8x256xf32>
    %c15_791 = arith.constant 15 : index
    %c0_792 = arith.constant 0 : index
    %c0_793 = arith.constant 0 : index
    %1014 = vector.load %arg1[%c15_791, %c0_792, %c0_793] : memref<36x8x256xf32, #tpu.memory_space<vmem>>, vector<1x8x256xf32>
    %1015 = vector.shape_cast %1014 : vector<1x8x256xf32> to vector<8x256xf32>
    %c4_794 = arith.constant 4 : index
    %c15_795 = arith.constant 15 : index
    %1016 = memref.load %arg2[%c4_794, %c15_795] : memref<8x36xf32, #tpu.memory_space<smem>>
    %1017 = vector.broadcast %1016 : f32 to vector<8x256xf32>
    %1018 = arith.mulf %1015, %1017 : vector<8x256xf32>
    %1019 = arith.addf %995, %1018 : vector<8x256xf32>
    %c16_796 = arith.constant 16 : index
    %c0_797 = arith.constant 0 : index
    %c0_798 = arith.constant 0 : index
    %1020 = vector.load %arg1[%c16_796, %c0_797, %c0_798] : memref<36x8x256xf32, #tpu.memory_space<vmem>>, vector<1x8x256xf32>
    %1021 = vector.shape_cast %1020 : vector<1x8x256xf32> to vector<8x256xf32>
    %c4_799 = arith.constant 4 : index
    %c16_800 = arith.constant 16 : index
    %1022 = memref.load %arg2[%c4_799, %c16_800] : memref<8x36xf32, #tpu.memory_space<smem>>
    %1023 = vector.broadcast %1022 : f32 to vector<8x256xf32>
    %1024 = arith.mulf %1021, %1023 : vector<8x256xf32>
    %1025 = arith.addf %1001, %1024 : vector<8x256xf32>
    %c17_801 = arith.constant 17 : index
    %c0_802 = arith.constant 0 : index
    %c0_803 = arith.constant 0 : index
    %1026 = vector.load %arg1[%c17_801, %c0_802, %c0_803] : memref<36x8x256xf32, #tpu.memory_space<vmem>>, vector<1x8x256xf32>
    %1027 = vector.shape_cast %1026 : vector<1x8x256xf32> to vector<8x256xf32>
    %c4_804 = arith.constant 4 : index
    %c17_805 = arith.constant 17 : index
    %1028 = memref.load %arg2[%c4_804, %c17_805] : memref<8x36xf32, #tpu.memory_space<smem>>
    %1029 = vector.broadcast %1028 : f32 to vector<8x256xf32>
    %1030 = arith.mulf %1027, %1029 : vector<8x256xf32>
    %1031 = arith.addf %1007, %1030 : vector<8x256xf32>
    %c18_806 = arith.constant 18 : index
    %c0_807 = arith.constant 0 : index
    %c0_808 = arith.constant 0 : index
    %1032 = vector.load %arg1[%c18_806, %c0_807, %c0_808] : memref<36x8x256xf32, #tpu.memory_space<vmem>>, vector<1x8x256xf32>
    %1033 = vector.shape_cast %1032 : vector<1x8x256xf32> to vector<8x256xf32>
    %c4_809 = arith.constant 4 : index
    %c18_810 = arith.constant 18 : index
    %1034 = memref.load %arg2[%c4_809, %c18_810] : memref<8x36xf32, #tpu.memory_space<smem>>
    %1035 = vector.broadcast %1034 : f32 to vector<8x256xf32>
    %1036 = arith.mulf %1033, %1035 : vector<8x256xf32>
    %1037 = arith.addf %1013, %1036 : vector<8x256xf32>
    %c19_811 = arith.constant 19 : index
    %c0_812 = arith.constant 0 : index
    %c0_813 = arith.constant 0 : index
    %1038 = vector.load %arg1[%c19_811, %c0_812, %c0_813] : memref<36x8x256xf32, #tpu.memory_space<vmem>>, vector<1x8x256xf32>
    %1039 = vector.shape_cast %1038 : vector<1x8x256xf32> to vector<8x256xf32>
    %c4_814 = arith.constant 4 : index
    %c19_815 = arith.constant 19 : index
    %1040 = memref.load %arg2[%c4_814, %c19_815] : memref<8x36xf32, #tpu.memory_space<smem>>
    %1041 = vector.broadcast %1040 : f32 to vector<8x256xf32>
    %1042 = arith.mulf %1039, %1041 : vector<8x256xf32>
    %1043 = arith.addf %1019, %1042 : vector<8x256xf32>
    %c20_816 = arith.constant 20 : index
    %c0_817 = arith.constant 0 : index
    %c0_818 = arith.constant 0 : index
    %1044 = vector.load %arg1[%c20_816, %c0_817, %c0_818] : memref<36x8x256xf32, #tpu.memory_space<vmem>>, vector<1x8x256xf32>
    %1045 = vector.shape_cast %1044 : vector<1x8x256xf32> to vector<8x256xf32>
    %c4_819 = arith.constant 4 : index
    %c20_820 = arith.constant 20 : index
    %1046 = memref.load %arg2[%c4_819, %c20_820] : memref<8x36xf32, #tpu.memory_space<smem>>
    %1047 = vector.broadcast %1046 : f32 to vector<8x256xf32>
    %1048 = arith.mulf %1045, %1047 : vector<8x256xf32>
    %1049 = arith.addf %1025, %1048 : vector<8x256xf32>
    %c21_821 = arith.constant 21 : index
    %c0_822 = arith.constant 0 : index
    %c0_823 = arith.constant 0 : index
    %1050 = vector.load %arg1[%c21_821, %c0_822, %c0_823] : memref<36x8x256xf32, #tpu.memory_space<vmem>>, vector<1x8x256xf32>
    %1051 = vector.shape_cast %1050 : vector<1x8x256xf32> to vector<8x256xf32>
    %c4_824 = arith.constant 4 : index
    %c21_825 = arith.constant 21 : index
    %1052 = memref.load %arg2[%c4_824, %c21_825] : memref<8x36xf32, #tpu.memory_space<smem>>
    %1053 = vector.broadcast %1052 : f32 to vector<8x256xf32>
    %1054 = arith.mulf %1051, %1053 : vector<8x256xf32>
    %1055 = arith.addf %1031, %1054 : vector<8x256xf32>
    %c22_826 = arith.constant 22 : index
    %c0_827 = arith.constant 0 : index
    %c0_828 = arith.constant 0 : index
    %1056 = vector.load %arg1[%c22_826, %c0_827, %c0_828] : memref<36x8x256xf32, #tpu.memory_space<vmem>>, vector<1x8x256xf32>
    %1057 = vector.shape_cast %1056 : vector<1x8x256xf32> to vector<8x256xf32>
    %c4_829 = arith.constant 4 : index
    %c22_830 = arith.constant 22 : index
    %1058 = memref.load %arg2[%c4_829, %c22_830] : memref<8x36xf32, #tpu.memory_space<smem>>
    %1059 = vector.broadcast %1058 : f32 to vector<8x256xf32>
    %1060 = arith.mulf %1057, %1059 : vector<8x256xf32>
    %1061 = arith.addf %1037, %1060 : vector<8x256xf32>
    %c23_831 = arith.constant 23 : index
    %c0_832 = arith.constant 0 : index
    %c0_833 = arith.constant 0 : index
    %1062 = vector.load %arg1[%c23_831, %c0_832, %c0_833] : memref<36x8x256xf32, #tpu.memory_space<vmem>>, vector<1x8x256xf32>
    %1063 = vector.shape_cast %1062 : vector<1x8x256xf32> to vector<8x256xf32>
    %c4_834 = arith.constant 4 : index
    %c23_835 = arith.constant 23 : index
    %1064 = memref.load %arg2[%c4_834, %c23_835] : memref<8x36xf32, #tpu.memory_space<smem>>
    %1065 = vector.broadcast %1064 : f32 to vector<8x256xf32>
    %1066 = arith.mulf %1063, %1065 : vector<8x256xf32>
    %1067 = arith.addf %1043, %1066 : vector<8x256xf32>
    %c24_836 = arith.constant 24 : index
    %c0_837 = arith.constant 0 : index
    %c0_838 = arith.constant 0 : index
    %1068 = vector.load %arg1[%c24_836, %c0_837, %c0_838] : memref<36x8x256xf32, #tpu.memory_space<vmem>>, vector<1x8x256xf32>
    %1069 = vector.shape_cast %1068 : vector<1x8x256xf32> to vector<8x256xf32>
    %c4_839 = arith.constant 4 : index
    %c24_840 = arith.constant 24 : index
    %1070 = memref.load %arg2[%c4_839, %c24_840] : memref<8x36xf32, #tpu.memory_space<smem>>
    %1071 = vector.broadcast %1070 : f32 to vector<8x256xf32>
    %1072 = arith.mulf %1069, %1071 : vector<8x256xf32>
    %1073 = arith.addf %1049, %1072 : vector<8x256xf32>
    %c25_841 = arith.constant 25 : index
    %c0_842 = arith.constant 0 : index
    %c0_843 = arith.constant 0 : index
    %1074 = vector.load %arg1[%c25_841, %c0_842, %c0_843] : memref<36x8x256xf32, #tpu.memory_space<vmem>>, vector<1x8x256xf32>
    %1075 = vector.shape_cast %1074 : vector<1x8x256xf32> to vector<8x256xf32>
    %c4_844 = arith.constant 4 : index
    %c25_845 = arith.constant 25 : index
    %1076 = memref.load %arg2[%c4_844, %c25_845] : memref<8x36xf32, #tpu.memory_space<smem>>
    %1077 = vector.broadcast %1076 : f32 to vector<8x256xf32>
    %1078 = arith.mulf %1075, %1077 : vector<8x256xf32>
    %1079 = arith.addf %1055, %1078 : vector<8x256xf32>
    %c26_846 = arith.constant 26 : index
    %c0_847 = arith.constant 0 : index
    %c0_848 = arith.constant 0 : index
    %1080 = vector.load %arg1[%c26_846, %c0_847, %c0_848] : memref<36x8x256xf32, #tpu.memory_space<vmem>>, vector<1x8x256xf32>
    %1081 = vector.shape_cast %1080 : vector<1x8x256xf32> to vector<8x256xf32>
    %c4_849 = arith.constant 4 : index
    %c26_850 = arith.constant 26 : index
    %1082 = memref.load %arg2[%c4_849, %c26_850] : memref<8x36xf32, #tpu.memory_space<smem>>
    %1083 = vector.broadcast %1082 : f32 to vector<8x256xf32>
    %1084 = arith.mulf %1081, %1083 : vector<8x256xf32>
    %1085 = arith.addf %1061, %1084 : vector<8x256xf32>
    %c27_851 = arith.constant 27 : index
    %c0_852 = arith.constant 0 : index
    %c0_853 = arith.constant 0 : index
    %1086 = vector.load %arg1[%c27_851, %c0_852, %c0_853] : memref<36x8x256xf32, #tpu.memory_space<vmem>>, vector<1x8x256xf32>
    %1087 = vector.shape_cast %1086 : vector<1x8x256xf32> to vector<8x256xf32>
    %c4_854 = arith.constant 4 : index
    %c27_855 = arith.constant 27 : index
    %1088 = memref.load %arg2[%c4_854, %c27_855] : memref<8x36xf32, #tpu.memory_space<smem>>
    %1089 = vector.broadcast %1088 : f32 to vector<8x256xf32>
    %1090 = arith.mulf %1087, %1089 : vector<8x256xf32>
    %1091 = arith.addf %1067, %1090 : vector<8x256xf32>
    %c28_856 = arith.constant 28 : index
    %c0_857 = arith.constant 0 : index
    %c0_858 = arith.constant 0 : index
    %1092 = vector.load %arg1[%c28_856, %c0_857, %c0_858] : memref<36x8x256xf32, #tpu.memory_space<vmem>>, vector<1x8x256xf32>
    %1093 = vector.shape_cast %1092 : vector<1x8x256xf32> to vector<8x256xf32>
    %c4_859 = arith.constant 4 : index
    %c28_860 = arith.constant 28 : index
    %1094 = memref.load %arg2[%c4_859, %c28_860] : memref<8x36xf32, #tpu.memory_space<smem>>
    %1095 = vector.broadcast %1094 : f32 to vector<8x256xf32>
    %1096 = arith.mulf %1093, %1095 : vector<8x256xf32>
    %1097 = arith.addf %1073, %1096 : vector<8x256xf32>
    %c29_861 = arith.constant 29 : index
    %c0_862 = arith.constant 0 : index
    %c0_863 = arith.constant 0 : index
    %1098 = vector.load %arg1[%c29_861, %c0_862, %c0_863] : memref<36x8x256xf32, #tpu.memory_space<vmem>>, vector<1x8x256xf32>
    %1099 = vector.shape_cast %1098 : vector<1x8x256xf32> to vector<8x256xf32>
    %c4_864 = arith.constant 4 : index
    %c29_865 = arith.constant 29 : index
    %1100 = memref.load %arg2[%c4_864, %c29_865] : memref<8x36xf32, #tpu.memory_space<smem>>
    %1101 = vector.broadcast %1100 : f32 to vector<8x256xf32>
    %1102 = arith.mulf %1099, %1101 : vector<8x256xf32>
    %1103 = arith.addf %1079, %1102 : vector<8x256xf32>
    %c30_866 = arith.constant 30 : index
    %c0_867 = arith.constant 0 : index
    %c0_868 = arith.constant 0 : index
    %1104 = vector.load %arg1[%c30_866, %c0_867, %c0_868] : memref<36x8x256xf32, #tpu.memory_space<vmem>>, vector<1x8x256xf32>
    %1105 = vector.shape_cast %1104 : vector<1x8x256xf32> to vector<8x256xf32>
    %c4_869 = arith.constant 4 : index
    %c30_870 = arith.constant 30 : index
    %1106 = memref.load %arg2[%c4_869, %c30_870] : memref<8x36xf32, #tpu.memory_space<smem>>
    %1107 = vector.broadcast %1106 : f32 to vector<8x256xf32>
    %1108 = arith.mulf %1105, %1107 : vector<8x256xf32>
    %1109 = arith.addf %1085, %1108 : vector<8x256xf32>
    %c31_871 = arith.constant 31 : index
    %c0_872 = arith.constant 0 : index
    %c0_873 = arith.constant 0 : index
    %1110 = vector.load %arg1[%c31_871, %c0_872, %c0_873] : memref<36x8x256xf32, #tpu.memory_space<vmem>>, vector<1x8x256xf32>
    %1111 = vector.shape_cast %1110 : vector<1x8x256xf32> to vector<8x256xf32>
    %c4_874 = arith.constant 4 : index
    %c31_875 = arith.constant 31 : index
    %1112 = memref.load %arg2[%c4_874, %c31_875] : memref<8x36xf32, #tpu.memory_space<smem>>
    %1113 = vector.broadcast %1112 : f32 to vector<8x256xf32>
    %1114 = arith.mulf %1111, %1113 : vector<8x256xf32>
    %1115 = arith.addf %1091, %1114 : vector<8x256xf32>
    %c32_876 = arith.constant 32 : index
    %c0_877 = arith.constant 0 : index
    %c0_878 = arith.constant 0 : index
    %1116 = vector.load %arg1[%c32_876, %c0_877, %c0_878] : memref<36x8x256xf32, #tpu.memory_space<vmem>>, vector<1x8x256xf32>
    %1117 = vector.shape_cast %1116 : vector<1x8x256xf32> to vector<8x256xf32>
    %c4_879 = arith.constant 4 : index
    %c32_880 = arith.constant 32 : index
    %1118 = memref.load %arg2[%c4_879, %c32_880] : memref<8x36xf32, #tpu.memory_space<smem>>
    %1119 = vector.broadcast %1118 : f32 to vector<8x256xf32>
    %1120 = arith.mulf %1117, %1119 : vector<8x256xf32>
    %1121 = arith.addf %1097, %1120 : vector<8x256xf32>
    %c33_881 = arith.constant 33 : index
    %c0_882 = arith.constant 0 : index
    %c0_883 = arith.constant 0 : index
    %1122 = vector.load %arg1[%c33_881, %c0_882, %c0_883] : memref<36x8x256xf32, #tpu.memory_space<vmem>>, vector<1x8x256xf32>
    %1123 = vector.shape_cast %1122 : vector<1x8x256xf32> to vector<8x256xf32>
    %c4_884 = arith.constant 4 : index
    %c33_885 = arith.constant 33 : index
    %1124 = memref.load %arg2[%c4_884, %c33_885] : memref<8x36xf32, #tpu.memory_space<smem>>
    %1125 = vector.broadcast %1124 : f32 to vector<8x256xf32>
    %1126 = arith.mulf %1123, %1125 : vector<8x256xf32>
    %1127 = arith.addf %1103, %1126 : vector<8x256xf32>
    %c34_886 = arith.constant 34 : index
    %c0_887 = arith.constant 0 : index
    %c0_888 = arith.constant 0 : index
    %1128 = vector.load %arg1[%c34_886, %c0_887, %c0_888] : memref<36x8x256xf32, #tpu.memory_space<vmem>>, vector<1x8x256xf32>
    %1129 = vector.shape_cast %1128 : vector<1x8x256xf32> to vector<8x256xf32>
    %c4_889 = arith.constant 4 : index
    %c34_890 = arith.constant 34 : index
    %1130 = memref.load %arg2[%c4_889, %c34_890] : memref<8x36xf32, #tpu.memory_space<smem>>
    %1131 = vector.broadcast %1130 : f32 to vector<8x256xf32>
    %1132 = arith.mulf %1129, %1131 : vector<8x256xf32>
    %1133 = arith.addf %1109, %1132 : vector<8x256xf32>
    %c35_891 = arith.constant 35 : index
    %c0_892 = arith.constant 0 : index
    %c0_893 = arith.constant 0 : index
    %1134 = vector.load %arg1[%c35_891, %c0_892, %c0_893] : memref<36x8x256xf32, #tpu.memory_space<vmem>>, vector<1x8x256xf32>
    %1135 = vector.shape_cast %1134 : vector<1x8x256xf32> to vector<8x256xf32>
    %c4_894 = arith.constant 4 : index
    %c35_895 = arith.constant 35 : index
    %1136 = memref.load %arg2[%c4_894, %c35_895] : memref<8x36xf32, #tpu.memory_space<smem>>
    %1137 = vector.broadcast %1136 : f32 to vector<8x256xf32>
    %1138 = arith.mulf %1135, %1137 : vector<8x256xf32>
    %1139 = arith.addf %1115, %1138 : vector<8x256xf32>
    %1140 = arith.addf %1121, %1127 : vector<8x256xf32>
    %1141 = arith.addf %1133, %1139 : vector<8x256xf32>
    %1142 = arith.addf %1140, %1141 : vector<8x256xf32>
    %c4_896 = arith.constant 4 : index
    %1143 = memref.load %arg3[%c4_896] : memref<8xf32, #tpu.memory_space<smem>>
    %1144 = vector.broadcast %1143 : f32 to vector<8x256xf32>
    %1145 = arith.addf %1142, %1144 : vector<8x256xf32>
    %cst_897 = arith.constant 0.000000e+00 : f32
    %1146 = vector.broadcast %cst_897 : f32 to vector<8x256xf32>
    %1147 = arith.maximumf %1145, %1146 : vector<8x256xf32>
    %1148 = arith.truncf %1147 : vector<8x256xf32> to vector<8x256xbf16>
    %c0_898 = arith.constant 0 : index
    %c1024 = arith.constant 1024 : index
    %1149 = vector.load %arg7[%c0_898, %c1024] : memref<8x2048xbf16, #tpu.memory_space<vmem>>, vector<8x256xbf16>
    tpu.vector_store %arg7[%c0_898, %c1024], %1148 {strides = array<i32>} : memref<8x2048xbf16, #tpu.memory_space<vmem>>, vector<8x256xbf16>,
    %cst_899 = arith.constant 0.000000e+00 : f32
    %1150 = vector.broadcast %cst_899 : f32 to vector<8x256xf32>
    %cst_900 = arith.constant 0.000000e+00 : f32
    %1151 = vector.broadcast %cst_900 : f32 to vector<8x256xf32>
    %cst_901 = arith.constant 0.000000e+00 : f32
    %1152 = vector.broadcast %cst_901 : f32 to vector<8x256xf32>
    %cst_902 = arith.constant 0.000000e+00 : f32
    %1153 = vector.broadcast %cst_902 : f32 to vector<8x256xf32>
    %c0_903 = arith.constant 0 : index
    %c0_904 = arith.constant 0 : index
    %c0_905 = arith.constant 0 : index
    %1154 = vector.load %arg1[%c0_903, %c0_904, %c0_905] : memref<36x8x256xf32, #tpu.memory_space<vmem>>, vector<1x8x256xf32>
    %1155 = vector.shape_cast %1154 : vector<1x8x256xf32> to vector<8x256xf32>
    %c5_906 = arith.constant 5 : index
    %c0_907 = arith.constant 0 : index
    %1156 = memref.load %arg2[%c5_906, %c0_907] : memref<8x36xf32, #tpu.memory_space<smem>>
    %1157 = vector.broadcast %1156 : f32 to vector<8x256xf32>
    %1158 = arith.mulf %1155, %1157 : vector<8x256xf32>
    %1159 = arith.addf %1150, %1158 : vector<8x256xf32>
    %c1_908 = arith.constant 1 : index
    %c0_909 = arith.constant 0 : index
    %c0_910 = arith.constant 0 : index
    %1160 = vector.load %arg1[%c1_908, %c0_909, %c0_910] : memref<36x8x256xf32, #tpu.memory_space<vmem>>, vector<1x8x256xf32>
    %1161 = vector.shape_cast %1160 : vector<1x8x256xf32> to vector<8x256xf32>
    %c5_911 = arith.constant 5 : index
    %c1_912 = arith.constant 1 : index
    %1162 = memref.load %arg2[%c5_911, %c1_912] : memref<8x36xf32, #tpu.memory_space<smem>>
    %1163 = vector.broadcast %1162 : f32 to vector<8x256xf32>
    %1164 = arith.mulf %1161, %1163 : vector<8x256xf32>
    %1165 = arith.addf %1151, %1164 : vector<8x256xf32>
    %c2_913 = arith.constant 2 : index
    %c0_914 = arith.constant 0 : index
    %c0_915 = arith.constant 0 : index
    %1166 = vector.load %arg1[%c2_913, %c0_914, %c0_915] : memref<36x8x256xf32, #tpu.memory_space<vmem>>, vector<1x8x256xf32>
    %1167 = vector.shape_cast %1166 : vector<1x8x256xf32> to vector<8x256xf32>
    %c5_916 = arith.constant 5 : index
    %c2_917 = arith.constant 2 : index
    %1168 = memref.load %arg2[%c5_916, %c2_917] : memref<8x36xf32, #tpu.memory_space<smem>>
    %1169 = vector.broadcast %1168 : f32 to vector<8x256xf32>
    %1170 = arith.mulf %1167, %1169 : vector<8x256xf32>
    %1171 = arith.addf %1152, %1170 : vector<8x256xf32>
    %c3_918 = arith.constant 3 : index
    %c0_919 = arith.constant 0 : index
    %c0_920 = arith.constant 0 : index
    %1172 = vector.load %arg1[%c3_918, %c0_919, %c0_920] : memref<36x8x256xf32, #tpu.memory_space<vmem>>, vector<1x8x256xf32>
    %1173 = vector.shape_cast %1172 : vector<1x8x256xf32> to vector<8x256xf32>
    %c5_921 = arith.constant 5 : index
    %c3_922 = arith.constant 3 : index
    %1174 = memref.load %arg2[%c5_921, %c3_922] : memref<8x36xf32, #tpu.memory_space<smem>>
    %1175 = vector.broadcast %1174 : f32 to vector<8x256xf32>
    %1176 = arith.mulf %1173, %1175 : vector<8x256xf32>
    %1177 = arith.addf %1153, %1176 : vector<8x256xf32>
    %c4_923 = arith.constant 4 : index
    %c0_924 = arith.constant 0 : index
    %c0_925 = arith.constant 0 : index
    %1178 = vector.load %arg1[%c4_923, %c0_924, %c0_925] : memref<36x8x256xf32, #tpu.memory_space<vmem>>, vector<1x8x256xf32>
    %1179 = vector.shape_cast %1178 : vector<1x8x256xf32> to vector<8x256xf32>
    %c5_926 = arith.constant 5 : index
    %c4_927 = arith.constant 4 : index
    %1180 = memref.load %arg2[%c5_926, %c4_927] : memref<8x36xf32, #tpu.memory_space<smem>>
    %1181 = vector.broadcast %1180 : f32 to vector<8x256xf32>
    %1182 = arith.mulf %1179, %1181 : vector<8x256xf32>
    %1183 = arith.addf %1159, %1182 : vector<8x256xf32>
    %c5_928 = arith.constant 5 : index
    %c0_929 = arith.constant 0 : index
    %c0_930 = arith.constant 0 : index
    %1184 = vector.load %arg1[%c5_928, %c0_929, %c0_930] : memref<36x8x256xf32, #tpu.memory_space<vmem>>, vector<1x8x256xf32>
    %1185 = vector.shape_cast %1184 : vector<1x8x256xf32> to vector<8x256xf32>
    %c5_931 = arith.constant 5 : index
    %c5_932 = arith.constant 5 : index
    %1186 = memref.load %arg2[%c5_931, %c5_932] : memref<8x36xf32, #tpu.memory_space<smem>>
    %1187 = vector.broadcast %1186 : f32 to vector<8x256xf32>
    %1188 = arith.mulf %1185, %1187 : vector<8x256xf32>
    %1189 = arith.addf %1165, %1188 : vector<8x256xf32>
    %c6_933 = arith.constant 6 : index
    %c0_934 = arith.constant 0 : index
    %c0_935 = arith.constant 0 : index
    %1190 = vector.load %arg1[%c6_933, %c0_934, %c0_935] : memref<36x8x256xf32, #tpu.memory_space<vmem>>, vector<1x8x256xf32>
    %1191 = vector.shape_cast %1190 : vector<1x8x256xf32> to vector<8x256xf32>
    %c5_936 = arith.constant 5 : index
    %c6_937 = arith.constant 6 : index
    %1192 = memref.load %arg2[%c5_936, %c6_937] : memref<8x36xf32, #tpu.memory_space<smem>>
    %1193 = vector.broadcast %1192 : f32 to vector<8x256xf32>
    %1194 = arith.mulf %1191, %1193 : vector<8x256xf32>
    %1195 = arith.addf %1171, %1194 : vector<8x256xf32>
    %c7_938 = arith.constant 7 : index
    %c0_939 = arith.constant 0 : index
    %c0_940 = arith.constant 0 : index
    %1196 = vector.load %arg1[%c7_938, %c0_939, %c0_940] : memref<36x8x256xf32, #tpu.memory_space<vmem>>, vector<1x8x256xf32>
    %1197 = vector.shape_cast %1196 : vector<1x8x256xf32> to vector<8x256xf32>
    %c5_941 = arith.constant 5 : index
    %c7_942 = arith.constant 7 : index
    %1198 = memref.load %arg2[%c5_941, %c7_942] : memref<8x36xf32, #tpu.memory_space<smem>>
    %1199 = vector.broadcast %1198 : f32 to vector<8x256xf32>
    %1200 = arith.mulf %1197, %1199 : vector<8x256xf32>
    %1201 = arith.addf %1177, %1200 : vector<8x256xf32>
    %c8_943 = arith.constant 8 : index
    %c0_944 = arith.constant 0 : index
    %c0_945 = arith.constant 0 : index
    %1202 = vector.load %arg1[%c8_943, %c0_944, %c0_945] : memref<36x8x256xf32, #tpu.memory_space<vmem>>, vector<1x8x256xf32>
    %1203 = vector.shape_cast %1202 : vector<1x8x256xf32> to vector<8x256xf32>
    %c5_946 = arith.constant 5 : index
    %c8_947 = arith.constant 8 : index
    %1204 = memref.load %arg2[%c5_946, %c8_947] : memref<8x36xf32, #tpu.memory_space<smem>>
    %1205 = vector.broadcast %1204 : f32 to vector<8x256xf32>
    %1206 = arith.mulf %1203, %1205 : vector<8x256xf32>
    %1207 = arith.addf %1183, %1206 : vector<8x256xf32>
    %c9_948 = arith.constant 9 : index
    %c0_949 = arith.constant 0 : index
    %c0_950 = arith.constant 0 : index
    %1208 = vector.load %arg1[%c9_948, %c0_949, %c0_950] : memref<36x8x256xf32, #tpu.memory_space<vmem>>, vector<1x8x256xf32>
    %1209 = vector.shape_cast %1208 : vector<1x8x256xf32> to vector<8x256xf32>
    %c5_951 = arith.constant 5 : index
    %c9_952 = arith.constant 9 : index
    %1210 = memref.load %arg2[%c5_951, %c9_952] : memref<8x36xf32, #tpu.memory_space<smem>>
    %1211 = vector.broadcast %1210 : f32 to vector<8x256xf32>
    %1212 = arith.mulf %1209, %1211 : vector<8x256xf32>
    %1213 = arith.addf %1189, %1212 : vector<8x256xf32>
    %c10_953 = arith.constant 10 : index
    %c0_954 = arith.constant 0 : index
    %c0_955 = arith.constant 0 : index
    %1214 = vector.load %arg1[%c10_953, %c0_954, %c0_955] : memref<36x8x256xf32, #tpu.memory_space<vmem>>, vector<1x8x256xf32>
    %1215 = vector.shape_cast %1214 : vector<1x8x256xf32> to vector<8x256xf32>
    %c5_956 = arith.constant 5 : index
    %c10_957 = arith.constant 10 : index
    %1216 = memref.load %arg2[%c5_956, %c10_957] : memref<8x36xf32, #tpu.memory_space<smem>>
    %1217 = vector.broadcast %1216 : f32 to vector<8x256xf32>
    %1218 = arith.mulf %1215, %1217 : vector<8x256xf32>
    %1219 = arith.addf %1195, %1218 : vector<8x256xf32>
    %c11_958 = arith.constant 11 : index
    %c0_959 = arith.constant 0 : index
    %c0_960 = arith.constant 0 : index
    %1220 = vector.load %arg1[%c11_958, %c0_959, %c0_960] : memref<36x8x256xf32, #tpu.memory_space<vmem>>, vector<1x8x256xf32>
    %1221 = vector.shape_cast %1220 : vector<1x8x256xf32> to vector<8x256xf32>
    %c5_961 = arith.constant 5 : index
    %c11_962 = arith.constant 11 : index
    %1222 = memref.load %arg2[%c5_961, %c11_962] : memref<8x36xf32, #tpu.memory_space<smem>>
    %1223 = vector.broadcast %1222 : f32 to vector<8x256xf32>
    %1224 = arith.mulf %1221, %1223 : vector<8x256xf32>
    %1225 = arith.addf %1201, %1224 : vector<8x256xf32>
    %c12_963 = arith.constant 12 : index
    %c0_964 = arith.constant 0 : index
    %c0_965 = arith.constant 0 : index
    %1226 = vector.load %arg1[%c12_963, %c0_964, %c0_965] : memref<36x8x256xf32, #tpu.memory_space<vmem>>, vector<1x8x256xf32>
    %1227 = vector.shape_cast %1226 : vector<1x8x256xf32> to vector<8x256xf32>
    %c5_966 = arith.constant 5 : index
    %c12_967 = arith.constant 12 : index
    %1228 = memref.load %arg2[%c5_966, %c12_967] : memref<8x36xf32, #tpu.memory_space<smem>>
    %1229 = vector.broadcast %1228 : f32 to vector<8x256xf32>
    %1230 = arith.mulf %1227, %1229 : vector<8x256xf32>
    %1231 = arith.addf %1207, %1230 : vector<8x256xf32>
    %c13_968 = arith.constant 13 : index
    %c0_969 = arith.constant 0 : index
    %c0_970 = arith.constant 0 : index
    %1232 = vector.load %arg1[%c13_968, %c0_969, %c0_970] : memref<36x8x256xf32, #tpu.memory_space<vmem>>, vector<1x8x256xf32>
    %1233 = vector.shape_cast %1232 : vector<1x8x256xf32> to vector<8x256xf32>
    %c5_971 = arith.constant 5 : index
    %c13_972 = arith.constant 13 : index
    %1234 = memref.load %arg2[%c5_971, %c13_972] : memref<8x36xf32, #tpu.memory_space<smem>>
    %1235 = vector.broadcast %1234 : f32 to vector<8x256xf32>
    %1236 = arith.mulf %1233, %1235 : vector<8x256xf32>
    %1237 = arith.addf %1213, %1236 : vector<8x256xf32>
    %c14_973 = arith.constant 14 : index
    %c0_974 = arith.constant 0 : index
    %c0_975 = arith.constant 0 : index
    %1238 = vector.load %arg1[%c14_973, %c0_974, %c0_975] : memref<36x8x256xf32, #tpu.memory_space<vmem>>, vector<1x8x256xf32>
    %1239 = vector.shape_cast %1238 : vector<1x8x256xf32> to vector<8x256xf32>
    %c5_976 = arith.constant 5 : index
    %c14_977 = arith.constant 14 : index
    %1240 = memref.load %arg2[%c5_976, %c14_977] : memref<8x36xf32, #tpu.memory_space<smem>>
    %1241 = vector.broadcast %1240 : f32 to vector<8x256xf32>
    %1242 = arith.mulf %1239, %1241 : vector<8x256xf32>
    %1243 = arith.addf %1219, %1242 : vector<8x256xf32>
    %c15_978 = arith.constant 15 : index
    %c0_979 = arith.constant 0 : index
    %c0_980 = arith.constant 0 : index
    %1244 = vector.load %arg1[%c15_978, %c0_979, %c0_980] : memref<36x8x256xf32, #tpu.memory_space<vmem>>, vector<1x8x256xf32>
    %1245 = vector.shape_cast %1244 : vector<1x8x256xf32> to vector<8x256xf32>
    %c5_981 = arith.constant 5 : index
    %c15_982 = arith.constant 15 : index
    %1246 = memref.load %arg2[%c5_981, %c15_982] : memref<8x36xf32, #tpu.memory_space<smem>>
    %1247 = vector.broadcast %1246 : f32 to vector<8x256xf32>
    %1248 = arith.mulf %1245, %1247 : vector<8x256xf32>
    %1249 = arith.addf %1225, %1248 : vector<8x256xf32>
    %c16_983 = arith.constant 16 : index
    %c0_984 = arith.constant 0 : index
    %c0_985 = arith.constant 0 : index
    %1250 = vector.load %arg1[%c16_983, %c0_984, %c0_985] : memref<36x8x256xf32, #tpu.memory_space<vmem>>, vector<1x8x256xf32>
    %1251 = vector.shape_cast %1250 : vector<1x8x256xf32> to vector<8x256xf32>
    %c5_986 = arith.constant 5 : index
    %c16_987 = arith.constant 16 : index
    %1252 = memref.load %arg2[%c5_986, %c16_987] : memref<8x36xf32, #tpu.memory_space<smem>>
    %1253 = vector.broadcast %1252 : f32 to vector<8x256xf32>
    %1254 = arith.mulf %1251, %1253 : vector<8x256xf32>
    %1255 = arith.addf %1231, %1254 : vector<8x256xf32>
    %c17_988 = arith.constant 17 : index
    %c0_989 = arith.constant 0 : index
    %c0_990 = arith.constant 0 : index
    %1256 = vector.load %arg1[%c17_988, %c0_989, %c0_990] : memref<36x8x256xf32, #tpu.memory_space<vmem>>, vector<1x8x256xf32>
    %1257 = vector.shape_cast %1256 : vector<1x8x256xf32> to vector<8x256xf32>
    %c5_991 = arith.constant 5 : index
    %c17_992 = arith.constant 17 : index
    %1258 = memref.load %arg2[%c5_991, %c17_992] : memref<8x36xf32, #tpu.memory_space<smem>>
    %1259 = vector.broadcast %1258 : f32 to vector<8x256xf32>
    %1260 = arith.mulf %1257, %1259 : vector<8x256xf32>
    %1261 = arith.addf %1237, %1260 : vector<8x256xf32>
    %c18_993 = arith.constant 18 : index
    %c0_994 = arith.constant 0 : index
    %c0_995 = arith.constant 0 : index
    %1262 = vector.load %arg1[%c18_993, %c0_994, %c0_995] : memref<36x8x256xf32, #tpu.memory_space<vmem>>, vector<1x8x256xf32>
    %1263 = vector.shape_cast %1262 : vector<1x8x256xf32> to vector<8x256xf32>
    %c5_996 = arith.constant 5 : index
    %c18_997 = arith.constant 18 : index
    %1264 = memref.load %arg2[%c5_996, %c18_997] : memref<8x36xf32, #tpu.memory_space<smem>>
    %1265 = vector.broadcast %1264 : f32 to vector<8x256xf32>
    %1266 = arith.mulf %1263, %1265 : vector<8x256xf32>
    %1267 = arith.addf %1243, %1266 : vector<8x256xf32>
    %c19_998 = arith.constant 19 : index
    %c0_999 = arith.constant 0 : index
    %c0_1000 = arith.constant 0 : index
    %1268 = vector.load %arg1[%c19_998, %c0_999, %c0_1000] : memref<36x8x256xf32, #tpu.memory_space<vmem>>, vector<1x8x256xf32>
    %1269 = vector.shape_cast %1268 : vector<1x8x256xf32> to vector<8x256xf32>
    %c5_1001 = arith.constant 5 : index
    %c19_1002 = arith.constant 19 : index
    %1270 = memref.load %arg2[%c5_1001, %c19_1002] : memref<8x36xf32, #tpu.memory_space<smem>>
    %1271 = vector.broadcast %1270 : f32 to vector<8x256xf32>
    %1272 = arith.mulf %1269, %1271 : vector<8x256xf32>
    %1273 = arith.addf %1249, %1272 : vector<8x256xf32>
    %c20_1003 = arith.constant 20 : index
    %c0_1004 = arith.constant 0 : index
    %c0_1005 = arith.constant 0 : index
    %1274 = vector.load %arg1[%c20_1003, %c0_1004, %c0_1005] : memref<36x8x256xf32, #tpu.memory_space<vmem>>, vector<1x8x256xf32>
    %1275 = vector.shape_cast %1274 : vector<1x8x256xf32> to vector<8x256xf32>
    %c5_1006 = arith.constant 5 : index
    %c20_1007 = arith.constant 20 : index
    %1276 = memref.load %arg2[%c5_1006, %c20_1007] : memref<8x36xf32, #tpu.memory_space<smem>>
    %1277 = vector.broadcast %1276 : f32 to vector<8x256xf32>
    %1278 = arith.mulf %1275, %1277 : vector<8x256xf32>
    %1279 = arith.addf %1255, %1278 : vector<8x256xf32>
    %c21_1008 = arith.constant 21 : index
    %c0_1009 = arith.constant 0 : index
    %c0_1010 = arith.constant 0 : index
    %1280 = vector.load %arg1[%c21_1008, %c0_1009, %c0_1010] : memref<36x8x256xf32, #tpu.memory_space<vmem>>, vector<1x8x256xf32>
    %1281 = vector.shape_cast %1280 : vector<1x8x256xf32> to vector<8x256xf32>
    %c5_1011 = arith.constant 5 : index
    %c21_1012 = arith.constant 21 : index
    %1282 = memref.load %arg2[%c5_1011, %c21_1012] : memref<8x36xf32, #tpu.memory_space<smem>>
    %1283 = vector.broadcast %1282 : f32 to vector<8x256xf32>
    %1284 = arith.mulf %1281, %1283 : vector<8x256xf32>
    %1285 = arith.addf %1261, %1284 : vector<8x256xf32>
    %c22_1013 = arith.constant 22 : index
    %c0_1014 = arith.constant 0 : index
    %c0_1015 = arith.constant 0 : index
    %1286 = vector.load %arg1[%c22_1013, %c0_1014, %c0_1015] : memref<36x8x256xf32, #tpu.memory_space<vmem>>, vector<1x8x256xf32>
    %1287 = vector.shape_cast %1286 : vector<1x8x256xf32> to vector<8x256xf32>
    %c5_1016 = arith.constant 5 : index
    %c22_1017 = arith.constant 22 : index
    %1288 = memref.load %arg2[%c5_1016, %c22_1017] : memref<8x36xf32, #tpu.memory_space<smem>>
    %1289 = vector.broadcast %1288 : f32 to vector<8x256xf32>
    %1290 = arith.mulf %1287, %1289 : vector<8x256xf32>
    %1291 = arith.addf %1267, %1290 : vector<8x256xf32>
    %c23_1018 = arith.constant 23 : index
    %c0_1019 = arith.constant 0 : index
    %c0_1020 = arith.constant 0 : index
    %1292 = vector.load %arg1[%c23_1018, %c0_1019, %c0_1020] : memref<36x8x256xf32, #tpu.memory_space<vmem>>, vector<1x8x256xf32>
    %1293 = vector.shape_cast %1292 : vector<1x8x256xf32> to vector<8x256xf32>
    %c5_1021 = arith.constant 5 : index
    %c23_1022 = arith.constant 23 : index
    %1294 = memref.load %arg2[%c5_1021, %c23_1022] : memref<8x36xf32, #tpu.memory_space<smem>>
    %1295 = vector.broadcast %1294 : f32 to vector<8x256xf32>
    %1296 = arith.mulf %1293, %1295 : vector<8x256xf32>
    %1297 = arith.addf %1273, %1296 : vector<8x256xf32>
    %c24_1023 = arith.constant 24 : index
    %c0_1024 = arith.constant 0 : index
    %c0_1025 = arith.constant 0 : index
    %1298 = vector.load %arg1[%c24_1023, %c0_1024, %c0_1025] : memref<36x8x256xf32, #tpu.memory_space<vmem>>, vector<1x8x256xf32>
    %1299 = vector.shape_cast %1298 : vector<1x8x256xf32> to vector<8x256xf32>
    %c5_1026 = arith.constant 5 : index
    %c24_1027 = arith.constant 24 : index
    %1300 = memref.load %arg2[%c5_1026, %c24_1027] : memref<8x36xf32, #tpu.memory_space<smem>>
    %1301 = vector.broadcast %1300 : f32 to vector<8x256xf32>
    %1302 = arith.mulf %1299, %1301 : vector<8x256xf32>
    %1303 = arith.addf %1279, %1302 : vector<8x256xf32>
    %c25_1028 = arith.constant 25 : index
    %c0_1029 = arith.constant 0 : index
    %c0_1030 = arith.constant 0 : index
    %1304 = vector.load %arg1[%c25_1028, %c0_1029, %c0_1030] : memref<36x8x256xf32, #tpu.memory_space<vmem>>, vector<1x8x256xf32>
    %1305 = vector.shape_cast %1304 : vector<1x8x256xf32> to vector<8x256xf32>
    %c5_1031 = arith.constant 5 : index
    %c25_1032 = arith.constant 25 : index
    %1306 = memref.load %arg2[%c5_1031, %c25_1032] : memref<8x36xf32, #tpu.memory_space<smem>>
    %1307 = vector.broadcast %1306 : f32 to vector<8x256xf32>
    %1308 = arith.mulf %1305, %1307 : vector<8x256xf32>
    %1309 = arith.addf %1285, %1308 : vector<8x256xf32>
    %c26_1033 = arith.constant 26 : index
    %c0_1034 = arith.constant 0 : index
    %c0_1035 = arith.constant 0 : index
    %1310 = vector.load %arg1[%c26_1033, %c0_1034, %c0_1035] : memref<36x8x256xf32, #tpu.memory_space<vmem>>, vector<1x8x256xf32>
    %1311 = vector.shape_cast %1310 : vector<1x8x256xf32> to vector<8x256xf32>
    %c5_1036 = arith.constant 5 : index
    %c26_1037 = arith.constant 26 : index
    %1312 = memref.load %arg2[%c5_1036, %c26_1037] : memref<8x36xf32, #tpu.memory_space<smem>>
    %1313 = vector.broadcast %1312 : f32 to vector<8x256xf32>
    %1314 = arith.mulf %1311, %1313 : vector<8x256xf32>
    %1315 = arith.addf %1291, %1314 : vector<8x256xf32>
    %c27_1038 = arith.constant 27 : index
    %c0_1039 = arith.constant 0 : index
    %c0_1040 = arith.constant 0 : index
    %1316 = vector.load %arg1[%c27_1038, %c0_1039, %c0_1040] : memref<36x8x256xf32, #tpu.memory_space<vmem>>, vector<1x8x256xf32>
    %1317 = vector.shape_cast %1316 : vector<1x8x256xf32> to vector<8x256xf32>
    %c5_1041 = arith.constant 5 : index
    %c27_1042 = arith.constant 27 : index
    %1318 = memref.load %arg2[%c5_1041, %c27_1042] : memref<8x36xf32, #tpu.memory_space<smem>>
    %1319 = vector.broadcast %1318 : f32 to vector<8x256xf32>
    %1320 = arith.mulf %1317, %1319 : vector<8x256xf32>
    %1321 = arith.addf %1297, %1320 : vector<8x256xf32>
    %c28_1043 = arith.constant 28 : index
    %c0_1044 = arith.constant 0 : index
    %c0_1045 = arith.constant 0 : index
    %1322 = vector.load %arg1[%c28_1043, %c0_1044, %c0_1045] : memref<36x8x256xf32, #tpu.memory_space<vmem>>, vector<1x8x256xf32>
    %1323 = vector.shape_cast %1322 : vector<1x8x256xf32> to vector<8x256xf32>
    %c5_1046 = arith.constant 5 : index
    %c28_1047 = arith.constant 28 : index
    %1324 = memref.load %arg2[%c5_1046, %c28_1047] : memref<8x36xf32, #tpu.memory_space<smem>>
    %1325 = vector.broadcast %1324 : f32 to vector<8x256xf32>
    %1326 = arith.mulf %1323, %1325 : vector<8x256xf32>
    %1327 = arith.addf %1303, %1326 : vector<8x256xf32>
    %c29_1048 = arith.constant 29 : index
    %c0_1049 = arith.constant 0 : index
    %c0_1050 = arith.constant 0 : index
    %1328 = vector.load %arg1[%c29_1048, %c0_1049, %c0_1050] : memref<36x8x256xf32, #tpu.memory_space<vmem>>, vector<1x8x256xf32>
    %1329 = vector.shape_cast %1328 : vector<1x8x256xf32> to vector<8x256xf32>
    %c5_1051 = arith.constant 5 : index
    %c29_1052 = arith.constant 29 : index
    %1330 = memref.load %arg2[%c5_1051, %c29_1052] : memref<8x36xf32, #tpu.memory_space<smem>>
    %1331 = vector.broadcast %1330 : f32 to vector<8x256xf32>
    %1332 = arith.mulf %1329, %1331 : vector<8x256xf32>
    %1333 = arith.addf %1309, %1332 : vector<8x256xf32>
    %c30_1053 = arith.constant 30 : index
    %c0_1054 = arith.constant 0 : index
    %c0_1055 = arith.constant 0 : index
    %1334 = vector.load %arg1[%c30_1053, %c0_1054, %c0_1055] : memref<36x8x256xf32, #tpu.memory_space<vmem>>, vector<1x8x256xf32>
    %1335 = vector.shape_cast %1334 : vector<1x8x256xf32> to vector<8x256xf32>
    %c5_1056 = arith.constant 5 : index
    %c30_1057 = arith.constant 30 : index
    %1336 = memref.load %arg2[%c5_1056, %c30_1057] : memref<8x36xf32, #tpu.memory_space<smem>>
    %1337 = vector.broadcast %1336 : f32 to vector<8x256xf32>
    %1338 = arith.mulf %1335, %1337 : vector<8x256xf32>
    %1339 = arith.addf %1315, %1338 : vector<8x256xf32>
    %c31_1058 = arith.constant 31 : index
    %c0_1059 = arith.constant 0 : index
    %c0_1060 = arith.constant 0 : index
    %1340 = vector.load %arg1[%c31_1058, %c0_1059, %c0_1060] : memref<36x8x256xf32, #tpu.memory_space<vmem>>, vector<1x8x256xf32>
    %1341 = vector.shape_cast %1340 : vector<1x8x256xf32> to vector<8x256xf32>
    %c5_1061 = arith.constant 5 : index
    %c31_1062 = arith.constant 31 : index
    %1342 = memref.load %arg2[%c5_1061, %c31_1062] : memref<8x36xf32, #tpu.memory_space<smem>>
    %1343 = vector.broadcast %1342 : f32 to vector<8x256xf32>
    %1344 = arith.mulf %1341, %1343 : vector<8x256xf32>
    %1345 = arith.addf %1321, %1344 : vector<8x256xf32>
    %c32_1063 = arith.constant 32 : index
    %c0_1064 = arith.constant 0 : index
    %c0_1065 = arith.constant 0 : index
    %1346 = vector.load %arg1[%c32_1063, %c0_1064, %c0_1065] : memref<36x8x256xf32, #tpu.memory_space<vmem>>, vector<1x8x256xf32>
    %1347 = vector.shape_cast %1346 : vector<1x8x256xf32> to vector<8x256xf32>
    %c5_1066 = arith.constant 5 : index
    %c32_1067 = arith.constant 32 : index
    %1348 = memref.load %arg2[%c5_1066, %c32_1067] : memref<8x36xf32, #tpu.memory_space<smem>>
    %1349 = vector.broadcast %1348 : f32 to vector<8x256xf32>
    %1350 = arith.mulf %1347, %1349 : vector<8x256xf32>
    %1351 = arith.addf %1327, %1350 : vector<8x256xf32>
    %c33_1068 = arith.constant 33 : index
    %c0_1069 = arith.constant 0 : index
    %c0_1070 = arith.constant 0 : index
    %1352 = vector.load %arg1[%c33_1068, %c0_1069, %c0_1070] : memref<36x8x256xf32, #tpu.memory_space<vmem>>, vector<1x8x256xf32>
    %1353 = vector.shape_cast %1352 : vector<1x8x256xf32> to vector<8x256xf32>
    %c5_1071 = arith.constant 5 : index
    %c33_1072 = arith.constant 33 : index
    %1354 = memref.load %arg2[%c5_1071, %c33_1072] : memref<8x36xf32, #tpu.memory_space<smem>>
    %1355 = vector.broadcast %1354 : f32 to vector<8x256xf32>
    %1356 = arith.mulf %1353, %1355 : vector<8x256xf32>
    %1357 = arith.addf %1333, %1356 : vector<8x256xf32>
    %c34_1073 = arith.constant 34 : index
    %c0_1074 = arith.constant 0 : index
    %c0_1075 = arith.constant 0 : index
    %1358 = vector.load %arg1[%c34_1073, %c0_1074, %c0_1075] : memref<36x8x256xf32, #tpu.memory_space<vmem>>, vector<1x8x256xf32>
    %1359 = vector.shape_cast %1358 : vector<1x8x256xf32> to vector<8x256xf32>
    %c5_1076 = arith.constant 5 : index
    %c34_1077 = arith.constant 34 : index
    %1360 = memref.load %arg2[%c5_1076, %c34_1077] : memref<8x36xf32, #tpu.memory_space<smem>>
    %1361 = vector.broadcast %1360 : f32 to vector<8x256xf32>
    %1362 = arith.mulf %1359, %1361 : vector<8x256xf32>
    %1363 = arith.addf %1339, %1362 : vector<8x256xf32>
    %c35_1078 = arith.constant 35 : index
    %c0_1079 = arith.constant 0 : index
    %c0_1080 = arith.constant 0 : index
    %1364 = vector.load %arg1[%c35_1078, %c0_1079, %c0_1080] : memref<36x8x256xf32, #tpu.memory_space<vmem>>, vector<1x8x256xf32>
    %1365 = vector.shape_cast %1364 : vector<1x8x256xf32> to vector<8x256xf32>
    %c5_1081 = arith.constant 5 : index
    %c35_1082 = arith.constant 35 : index
    %1366 = memref.load %arg2[%c5_1081, %c35_1082] : memref<8x36xf32, #tpu.memory_space<smem>>
    %1367 = vector.broadcast %1366 : f32 to vector<8x256xf32>
    %1368 = arith.mulf %1365, %1367 : vector<8x256xf32>
    %1369 = arith.addf %1345, %1368 : vector<8x256xf32>
    %1370 = arith.addf %1351, %1357 : vector<8x256xf32>
    %1371 = arith.addf %1363, %1369 : vector<8x256xf32>
    %1372 = arith.addf %1370, %1371 : vector<8x256xf32>
    %c5_1083 = arith.constant 5 : index
    %1373 = memref.load %arg3[%c5_1083] : memref<8xf32, #tpu.memory_space<smem>>
    %1374 = vector.broadcast %1373 : f32 to vector<8x256xf32>
    %1375 = arith.addf %1372, %1374 : vector<8x256xf32>
    %cst_1084 = arith.constant 0.000000e+00 : f32
    %1376 = vector.broadcast %cst_1084 : f32 to vector<8x256xf32>
    %1377 = arith.maximumf %1375, %1376 : vector<8x256xf32>
    %1378 = arith.truncf %1377 : vector<8x256xf32> to vector<8x256xbf16>
    %c0_1085 = arith.constant 0 : index
    %c1280 = arith.constant 1280 : index
    %1379 = vector.load %arg7[%c0_1085, %c1280] : memref<8x2048xbf16, #tpu.memory_space<vmem>>, vector<8x256xbf16>
    tpu.vector_store %arg7[%c0_1085, %c1280], %1378 {strides = array<i32>} : memref<8x2048xbf16, #tpu.memory_space<vmem>>, vector<8x256xbf16>,
    %cst_1086 = arith.constant 0.000000e+00 : f32
    %1380 = vector.broadcast %cst_1086 : f32 to vector<8x256xf32>
    %cst_1087 = arith.constant 0.000000e+00 : f32
    %1381 = vector.broadcast %cst_1087 : f32 to vector<8x256xf32>
    %cst_1088 = arith.constant 0.000000e+00 : f32
    %1382 = vector.broadcast %cst_1088 : f32 to vector<8x256xf32>
    %cst_1089 = arith.constant 0.000000e+00 : f32
    %1383 = vector.broadcast %cst_1089 : f32 to vector<8x256xf32>
    %c0_1090 = arith.constant 0 : index
    %c0_1091 = arith.constant 0 : index
    %c0_1092 = arith.constant 0 : index
    %1384 = vector.load %arg1[%c0_1090, %c0_1091, %c0_1092] : memref<36x8x256xf32, #tpu.memory_space<vmem>>, vector<1x8x256xf32>
    %1385 = vector.shape_cast %1384 : vector<1x8x256xf32> to vector<8x256xf32>
    %c6_1093 = arith.constant 6 : index
    %c0_1094 = arith.constant 0 : index
    %1386 = memref.load %arg2[%c6_1093, %c0_1094] : memref<8x36xf32, #tpu.memory_space<smem>>
    %1387 = vector.broadcast %1386 : f32 to vector<8x256xf32>
    %1388 = arith.mulf %1385, %1387 : vector<8x256xf32>
    %1389 = arith.addf %1380, %1388 : vector<8x256xf32>
    %c1_1095 = arith.constant 1 : index
    %c0_1096 = arith.constant 0 : index
    %c0_1097 = arith.constant 0 : index
    %1390 = vector.load %arg1[%c1_1095, %c0_1096, %c0_1097] : memref<36x8x256xf32, #tpu.memory_space<vmem>>, vector<1x8x256xf32>
    %1391 = vector.shape_cast %1390 : vector<1x8x256xf32> to vector<8x256xf32>
    %c6_1098 = arith.constant 6 : index
    %c1_1099 = arith.constant 1 : index
    %1392 = memref.load %arg2[%c6_1098, %c1_1099] : memref<8x36xf32, #tpu.memory_space<smem>>
    %1393 = vector.broadcast %1392 : f32 to vector<8x256xf32>
    %1394 = arith.mulf %1391, %1393 : vector<8x256xf32>
    %1395 = arith.addf %1381, %1394 : vector<8x256xf32>
    %c2_1100 = arith.constant 2 : index
    %c0_1101 = arith.constant 0 : index
    %c0_1102 = arith.constant 0 : index
    %1396 = vector.load %arg1[%c2_1100, %c0_1101, %c0_1102] : memref<36x8x256xf32, #tpu.memory_space<vmem>>, vector<1x8x256xf32>
    %1397 = vector.shape_cast %1396 : vector<1x8x256xf32> to vector<8x256xf32>
    %c6_1103 = arith.constant 6 : index
    %c2_1104 = arith.constant 2 : index
    %1398 = memref.load %arg2[%c6_1103, %c2_1104] : memref<8x36xf32, #tpu.memory_space<smem>>
    %1399 = vector.broadcast %1398 : f32 to vector<8x256xf32>
    %1400 = arith.mulf %1397, %1399 : vector<8x256xf32>
    %1401 = arith.addf %1382, %1400 : vector<8x256xf32>
    %c3_1105 = arith.constant 3 : index
    %c0_1106 = arith.constant 0 : index
    %c0_1107 = arith.constant 0 : index
    %1402 = vector.load %arg1[%c3_1105, %c0_1106, %c0_1107] : memref<36x8x256xf32, #tpu.memory_space<vmem>>, vector<1x8x256xf32>
    %1403 = vector.shape_cast %1402 : vector<1x8x256xf32> to vector<8x256xf32>
    %c6_1108 = arith.constant 6 : index
    %c3_1109 = arith.constant 3 : index
    %1404 = memref.load %arg2[%c6_1108, %c3_1109] : memref<8x36xf32, #tpu.memory_space<smem>>
    %1405 = vector.broadcast %1404 : f32 to vector<8x256xf32>
    %1406 = arith.mulf %1403, %1405 : vector<8x256xf32>
    %1407 = arith.addf %1383, %1406 : vector<8x256xf32>
    %c4_1110 = arith.constant 4 : index
    %c0_1111 = arith.constant 0 : index
    %c0_1112 = arith.constant 0 : index
    %1408 = vector.load %arg1[%c4_1110, %c0_1111, %c0_1112] : memref<36x8x256xf32, #tpu.memory_space<vmem>>, vector<1x8x256xf32>
    %1409 = vector.shape_cast %1408 : vector<1x8x256xf32> to vector<8x256xf32>
    %c6_1113 = arith.constant 6 : index
    %c4_1114 = arith.constant 4 : index
    %1410 = memref.load %arg2[%c6_1113, %c4_1114] : memref<8x36xf32, #tpu.memory_space<smem>>
    %1411 = vector.broadcast %1410 : f32 to vector<8x256xf32>
    %1412 = arith.mulf %1409, %1411 : vector<8x256xf32>
    %1413 = arith.addf %1389, %1412 : vector<8x256xf32>
    %c5_1115 = arith.constant 5 : index
    %c0_1116 = arith.constant 0 : index
    %c0_1117 = arith.constant 0 : index
    %1414 = vector.load %arg1[%c5_1115, %c0_1116, %c0_1117] : memref<36x8x256xf32, #tpu.memory_space<vmem>>, vector<1x8x256xf32>
    %1415 = vector.shape_cast %1414 : vector<1x8x256xf32> to vector<8x256xf32>
    %c6_1118 = arith.constant 6 : index
    %c5_1119 = arith.constant 5 : index
    %1416 = memref.load %arg2[%c6_1118, %c5_1119] : memref<8x36xf32, #tpu.memory_space<smem>>
    %1417 = vector.broadcast %1416 : f32 to vector<8x256xf32>
    %1418 = arith.mulf %1415, %1417 : vector<8x256xf32>
    %1419 = arith.addf %1395, %1418 : vector<8x256xf32>
    %c6_1120 = arith.constant 6 : index
    %c0_1121 = arith.constant 0 : index
    %c0_1122 = arith.constant 0 : index
    %1420 = vector.load %arg1[%c6_1120, %c0_1121, %c0_1122] : memref<36x8x256xf32, #tpu.memory_space<vmem>>, vector<1x8x256xf32>
    %1421 = vector.shape_cast %1420 : vector<1x8x256xf32> to vector<8x256xf32>
    %c6_1123 = arith.constant 6 : index
    %c6_1124 = arith.constant 6 : index
    %1422 = memref.load %arg2[%c6_1123, %c6_1124] : memref<8x36xf32, #tpu.memory_space<smem>>
    %1423 = vector.broadcast %1422 : f32 to vector<8x256xf32>
    %1424 = arith.mulf %1421, %1423 : vector<8x256xf32>
    %1425 = arith.addf %1401, %1424 : vector<8x256xf32>
    %c7_1125 = arith.constant 7 : index
    %c0_1126 = arith.constant 0 : index
    %c0_1127 = arith.constant 0 : index
    %1426 = vector.load %arg1[%c7_1125, %c0_1126, %c0_1127] : memref<36x8x256xf32, #tpu.memory_space<vmem>>, vector<1x8x256xf32>
    %1427 = vector.shape_cast %1426 : vector<1x8x256xf32> to vector<8x256xf32>
    %c6_1128 = arith.constant 6 : index
    %c7_1129 = arith.constant 7 : index
    %1428 = memref.load %arg2[%c6_1128, %c7_1129] : memref<8x36xf32, #tpu.memory_space<smem>>
    %1429 = vector.broadcast %1428 : f32 to vector<8x256xf32>
    %1430 = arith.mulf %1427, %1429 : vector<8x256xf32>
    %1431 = arith.addf %1407, %1430 : vector<8x256xf32>
    %c8_1130 = arith.constant 8 : index
    %c0_1131 = arith.constant 0 : index
    %c0_1132 = arith.constant 0 : index
    %1432 = vector.load %arg1[%c8_1130, %c0_1131, %c0_1132] : memref<36x8x256xf32, #tpu.memory_space<vmem>>, vector<1x8x256xf32>
    %1433 = vector.shape_cast %1432 : vector<1x8x256xf32> to vector<8x256xf32>
    %c6_1133 = arith.constant 6 : index
    %c8_1134 = arith.constant 8 : index
    %1434 = memref.load %arg2[%c6_1133, %c8_1134] : memref<8x36xf32, #tpu.memory_space<smem>>
    %1435 = vector.broadcast %1434 : f32 to vector<8x256xf32>
    %1436 = arith.mulf %1433, %1435 : vector<8x256xf32>
    %1437 = arith.addf %1413, %1436 : vector<8x256xf32>
    %c9_1135 = arith.constant 9 : index
    %c0_1136 = arith.constant 0 : index
    %c0_1137 = arith.constant 0 : index
    %1438 = vector.load %arg1[%c9_1135, %c0_1136, %c0_1137] : memref<36x8x256xf32, #tpu.memory_space<vmem>>, vector<1x8x256xf32>
    %1439 = vector.shape_cast %1438 : vector<1x8x256xf32> to vector<8x256xf32>
    %c6_1138 = arith.constant 6 : index
    %c9_1139 = arith.constant 9 : index
    %1440 = memref.load %arg2[%c6_1138, %c9_1139] : memref<8x36xf32, #tpu.memory_space<smem>>
    %1441 = vector.broadcast %1440 : f32 to vector<8x256xf32>
    %1442 = arith.mulf %1439, %1441 : vector<8x256xf32>
    %1443 = arith.addf %1419, %1442 : vector<8x256xf32>
    %c10_1140 = arith.constant 10 : index
    %c0_1141 = arith.constant 0 : index
    %c0_1142 = arith.constant 0 : index
    %1444 = vector.load %arg1[%c10_1140, %c0_1141, %c0_1142] : memref<36x8x256xf32, #tpu.memory_space<vmem>>, vector<1x8x256xf32>
    %1445 = vector.shape_cast %1444 : vector<1x8x256xf32> to vector<8x256xf32>
    %c6_1143 = arith.constant 6 : index
    %c10_1144 = arith.constant 10 : index
    %1446 = memref.load %arg2[%c6_1143, %c10_1144] : memref<8x36xf32, #tpu.memory_space<smem>>
    %1447 = vector.broadcast %1446 : f32 to vector<8x256xf32>
    %1448 = arith.mulf %1445, %1447 : vector<8x256xf32>
    %1449 = arith.addf %1425, %1448 : vector<8x256xf32>
    %c11_1145 = arith.constant 11 : index
    %c0_1146 = arith.constant 0 : index
    %c0_1147 = arith.constant 0 : index
    %1450 = vector.load %arg1[%c11_1145, %c0_1146, %c0_1147] : memref<36x8x256xf32, #tpu.memory_space<vmem>>, vector<1x8x256xf32>
    %1451 = vector.shape_cast %1450 : vector<1x8x256xf32> to vector<8x256xf32>
    %c6_1148 = arith.constant 6 : index
    %c11_1149 = arith.constant 11 : index
    %1452 = memref.load %arg2[%c6_1148, %c11_1149] : memref<8x36xf32, #tpu.memory_space<smem>>
    %1453 = vector.broadcast %1452 : f32 to vector<8x256xf32>
    %1454 = arith.mulf %1451, %1453 : vector<8x256xf32>
    %1455 = arith.addf %1431, %1454 : vector<8x256xf32>
    %c12_1150 = arith.constant 12 : index
    %c0_1151 = arith.constant 0 : index
    %c0_1152 = arith.constant 0 : index
    %1456 = vector.load %arg1[%c12_1150, %c0_1151, %c0_1152] : memref<36x8x256xf32, #tpu.memory_space<vmem>>, vector<1x8x256xf32>
    %1457 = vector.shape_cast %1456 : vector<1x8x256xf32> to vector<8x256xf32>
    %c6_1153 = arith.constant 6 : index
    %c12_1154 = arith.constant 12 : index
    %1458 = memref.load %arg2[%c6_1153, %c12_1154] : memref<8x36xf32, #tpu.memory_space<smem>>
    %1459 = vector.broadcast %1458 : f32 to vector<8x256xf32>
    %1460 = arith.mulf %1457, %1459 : vector<8x256xf32>
    %1461 = arith.addf %1437, %1460 : vector<8x256xf32>
    %c13_1155 = arith.constant 13 : index
    %c0_1156 = arith.constant 0 : index
    %c0_1157 = arith.constant 0 : index
    %1462 = vector.load %arg1[%c13_1155, %c0_1156, %c0_1157] : memref<36x8x256xf32, #tpu.memory_space<vmem>>, vector<1x8x256xf32>
    %1463 = vector.shape_cast %1462 : vector<1x8x256xf32> to vector<8x256xf32>
    %c6_1158 = arith.constant 6 : index
    %c13_1159 = arith.constant 13 : index
    %1464 = memref.load %arg2[%c6_1158, %c13_1159] : memref<8x36xf32, #tpu.memory_space<smem>>
    %1465 = vector.broadcast %1464 : f32 to vector<8x256xf32>
    %1466 = arith.mulf %1463, %1465 : vector<8x256xf32>
    %1467 = arith.addf %1443, %1466 : vector<8x256xf32>
    %c14_1160 = arith.constant 14 : index
    %c0_1161 = arith.constant 0 : index
    %c0_1162 = arith.constant 0 : index
    %1468 = vector.load %arg1[%c14_1160, %c0_1161, %c0_1162] : memref<36x8x256xf32, #tpu.memory_space<vmem>>, vector<1x8x256xf32>
    %1469 = vector.shape_cast %1468 : vector<1x8x256xf32> to vector<8x256xf32>
    %c6_1163 = arith.constant 6 : index
    %c14_1164 = arith.constant 14 : index
    %1470 = memref.load %arg2[%c6_1163, %c14_1164] : memref<8x36xf32, #tpu.memory_space<smem>>
    %1471 = vector.broadcast %1470 : f32 to vector<8x256xf32>
    %1472 = arith.mulf %1469, %1471 : vector<8x256xf32>
    %1473 = arith.addf %1449, %1472 : vector<8x256xf32>
    %c15_1165 = arith.constant 15 : index
    %c0_1166 = arith.constant 0 : index
    %c0_1167 = arith.constant 0 : index
    %1474 = vector.load %arg1[%c15_1165, %c0_1166, %c0_1167] : memref<36x8x256xf32, #tpu.memory_space<vmem>>, vector<1x8x256xf32>
    %1475 = vector.shape_cast %1474 : vector<1x8x256xf32> to vector<8x256xf32>
    %c6_1168 = arith.constant 6 : index
    %c15_1169 = arith.constant 15 : index
    %1476 = memref.load %arg2[%c6_1168, %c15_1169] : memref<8x36xf32, #tpu.memory_space<smem>>
    %1477 = vector.broadcast %1476 : f32 to vector<8x256xf32>
    %1478 = arith.mulf %1475, %1477 : vector<8x256xf32>
    %1479 = arith.addf %1455, %1478 : vector<8x256xf32>
    %c16_1170 = arith.constant 16 : index
    %c0_1171 = arith.constant 0 : index
    %c0_1172 = arith.constant 0 : index
    %1480 = vector.load %arg1[%c16_1170, %c0_1171, %c0_1172] : memref<36x8x256xf32, #tpu.memory_space<vmem>>, vector<1x8x256xf32>
    %1481 = vector.shape_cast %1480 : vector<1x8x256xf32> to vector<8x256xf32>
    %c6_1173 = arith.constant 6 : index
    %c16_1174 = arith.constant 16 : index
    %1482 = memref.load %arg2[%c6_1173, %c16_1174] : memref<8x36xf32, #tpu.memory_space<smem>>
    %1483 = vector.broadcast %1482 : f32 to vector<8x256xf32>
    %1484 = arith.mulf %1481, %1483 : vector<8x256xf32>
    %1485 = arith.addf %1461, %1484 : vector<8x256xf32>
    %c17_1175 = arith.constant 17 : index
    %c0_1176 = arith.constant 0 : index
    %c0_1177 = arith.constant 0 : index
    %1486 = vector.load %arg1[%c17_1175, %c0_1176, %c0_1177] : memref<36x8x256xf32, #tpu.memory_space<vmem>>, vector<1x8x256xf32>
    %1487 = vector.shape_cast %1486 : vector<1x8x256xf32> to vector<8x256xf32>
    %c6_1178 = arith.constant 6 : index
    %c17_1179 = arith.constant 17 : index
    %1488 = memref.load %arg2[%c6_1178, %c17_1179] : memref<8x36xf32, #tpu.memory_space<smem>>
    %1489 = vector.broadcast %1488 : f32 to vector<8x256xf32>
    %1490 = arith.mulf %1487, %1489 : vector<8x256xf32>
    %1491 = arith.addf %1467, %1490 : vector<8x256xf32>
    %c18_1180 = arith.constant 18 : index
    %c0_1181 = arith.constant 0 : index
    %c0_1182 = arith.constant 0 : index
    %1492 = vector.load %arg1[%c18_1180, %c0_1181, %c0_1182] : memref<36x8x256xf32, #tpu.memory_space<vmem>>, vector<1x8x256xf32>
    %1493 = vector.shape_cast %1492 : vector<1x8x256xf32> to vector<8x256xf32>
    %c6_1183 = arith.constant 6 : index
    %c18_1184 = arith.constant 18 : index
    %1494 = memref.load %arg2[%c6_1183, %c18_1184] : memref<8x36xf32, #tpu.memory_space<smem>>
    %1495 = vector.broadcast %1494 : f32 to vector<8x256xf32>
    %1496 = arith.mulf %1493, %1495 : vector<8x256xf32>
    %1497 = arith.addf %1473, %1496 : vector<8x256xf32>
    %c19_1185 = arith.constant 19 : index
    %c0_1186 = arith.constant 0 : index
    %c0_1187 = arith.constant 0 : index
    %1498 = vector.load %arg1[%c19_1185, %c0_1186, %c0_1187] : memref<36x8x256xf32, #tpu.memory_space<vmem>>, vector<1x8x256xf32>
    %1499 = vector.shape_cast %1498 : vector<1x8x256xf32> to vector<8x256xf32>
    %c6_1188 = arith.constant 6 : index
    %c19_1189 = arith.constant 19 : index
    %1500 = memref.load %arg2[%c6_1188, %c19_1189] : memref<8x36xf32, #tpu.memory_space<smem>>
    %1501 = vector.broadcast %1500 : f32 to vector<8x256xf32>
    %1502 = arith.mulf %1499, %1501 : vector<8x256xf32>
    %1503 = arith.addf %1479, %1502 : vector<8x256xf32>
    %c20_1190 = arith.constant 20 : index
    %c0_1191 = arith.constant 0 : index
    %c0_1192 = arith.constant 0 : index
    %1504 = vector.load %arg1[%c20_1190, %c0_1191, %c0_1192] : memref<36x8x256xf32, #tpu.memory_space<vmem>>, vector<1x8x256xf32>
    %1505 = vector.shape_cast %1504 : vector<1x8x256xf32> to vector<8x256xf32>
    %c6_1193 = arith.constant 6 : index
    %c20_1194 = arith.constant 20 : index
    %1506 = memref.load %arg2[%c6_1193, %c20_1194] : memref<8x36xf32, #tpu.memory_space<smem>>
    %1507 = vector.broadcast %1506 : f32 to vector<8x256xf32>
    %1508 = arith.mulf %1505, %1507 : vector<8x256xf32>
    %1509 = arith.addf %1485, %1508 : vector<8x256xf32>
    %c21_1195 = arith.constant 21 : index
    %c0_1196 = arith.constant 0 : index
    %c0_1197 = arith.constant 0 : index
    %1510 = vector.load %arg1[%c21_1195, %c0_1196, %c0_1197] : memref<36x8x256xf32, #tpu.memory_space<vmem>>, vector<1x8x256xf32>
    %1511 = vector.shape_cast %1510 : vector<1x8x256xf32> to vector<8x256xf32>
    %c6_1198 = arith.constant 6 : index
    %c21_1199 = arith.constant 21 : index
    %1512 = memref.load %arg2[%c6_1198, %c21_1199] : memref<8x36xf32, #tpu.memory_space<smem>>
    %1513 = vector.broadcast %1512 : f32 to vector<8x256xf32>
    %1514 = arith.mulf %1511, %1513 : vector<8x256xf32>
    %1515 = arith.addf %1491, %1514 : vector<8x256xf32>
    %c22_1200 = arith.constant 22 : index
    %c0_1201 = arith.constant 0 : index
    %c0_1202 = arith.constant 0 : index
    %1516 = vector.load %arg1[%c22_1200, %c0_1201, %c0_1202] : memref<36x8x256xf32, #tpu.memory_space<vmem>>, vector<1x8x256xf32>
    %1517 = vector.shape_cast %1516 : vector<1x8x256xf32> to vector<8x256xf32>
    %c6_1203 = arith.constant 6 : index
    %c22_1204 = arith.constant 22 : index
    %1518 = memref.load %arg2[%c6_1203, %c22_1204] : memref<8x36xf32, #tpu.memory_space<smem>>
    %1519 = vector.broadcast %1518 : f32 to vector<8x256xf32>
    %1520 = arith.mulf %1517, %1519 : vector<8x256xf32>
    %1521 = arith.addf %1497, %1520 : vector<8x256xf32>
    %c23_1205 = arith.constant 23 : index
    %c0_1206 = arith.constant 0 : index
    %c0_1207 = arith.constant 0 : index
    %1522 = vector.load %arg1[%c23_1205, %c0_1206, %c0_1207] : memref<36x8x256xf32, #tpu.memory_space<vmem>>, vector<1x8x256xf32>
    %1523 = vector.shape_cast %1522 : vector<1x8x256xf32> to vector<8x256xf32>
    %c6_1208 = arith.constant 6 : index
    %c23_1209 = arith.constant 23 : index
    %1524 = memref.load %arg2[%c6_1208, %c23_1209] : memref<8x36xf32, #tpu.memory_space<smem>>
    %1525 = vector.broadcast %1524 : f32 to vector<8x256xf32>
    %1526 = arith.mulf %1523, %1525 : vector<8x256xf32>
    %1527 = arith.addf %1503, %1526 : vector<8x256xf32>
    %c24_1210 = arith.constant 24 : index
    %c0_1211 = arith.constant 0 : index
    %c0_1212 = arith.constant 0 : index
    %1528 = vector.load %arg1[%c24_1210, %c0_1211, %c0_1212] : memref<36x8x256xf32, #tpu.memory_space<vmem>>, vector<1x8x256xf32>
    %1529 = vector.shape_cast %1528 : vector<1x8x256xf32> to vector<8x256xf32>
    %c6_1213 = arith.constant 6 : index
    %c24_1214 = arith.constant 24 : index
    %1530 = memref.load %arg2[%c6_1213, %c24_1214] : memref<8x36xf32, #tpu.memory_space<smem>>
    %1531 = vector.broadcast %1530 : f32 to vector<8x256xf32>
    %1532 = arith.mulf %1529, %1531 : vector<8x256xf32>
    %1533 = arith.addf %1509, %1532 : vector<8x256xf32>
    %c25_1215 = arith.constant 25 : index
    %c0_1216 = arith.constant 0 : index
    %c0_1217 = arith.constant 0 : index
    %1534 = vector.load %arg1[%c25_1215, %c0_1216, %c0_1217] : memref<36x8x256xf32, #tpu.memory_space<vmem>>, vector<1x8x256xf32>
    %1535 = vector.shape_cast %1534 : vector<1x8x256xf32> to vector<8x256xf32>
    %c6_1218 = arith.constant 6 : index
    %c25_1219 = arith.constant 25 : index
    %1536 = memref.load %arg2[%c6_1218, %c25_1219] : memref<8x36xf32, #tpu.memory_space<smem>>
    %1537 = vector.broadcast %1536 : f32 to vector<8x256xf32>
    %1538 = arith.mulf %1535, %1537 : vector<8x256xf32>
    %1539 = arith.addf %1515, %1538 : vector<8x256xf32>
    %c26_1220 = arith.constant 26 : index
    %c0_1221 = arith.constant 0 : index
    %c0_1222 = arith.constant 0 : index
    %1540 = vector.load %arg1[%c26_1220, %c0_1221, %c0_1222] : memref<36x8x256xf32, #tpu.memory_space<vmem>>, vector<1x8x256xf32>
    %1541 = vector.shape_cast %1540 : vector<1x8x256xf32> to vector<8x256xf32>
    %c6_1223 = arith.constant 6 : index
    %c26_1224 = arith.constant 26 : index
    %1542 = memref.load %arg2[%c6_1223, %c26_1224] : memref<8x36xf32, #tpu.memory_space<smem>>
    %1543 = vector.broadcast %1542 : f32 to vector<8x256xf32>
    %1544 = arith.mulf %1541, %1543 : vector<8x256xf32>
    %1545 = arith.addf %1521, %1544 : vector<8x256xf32>
    %c27_1225 = arith.constant 27 : index
    %c0_1226 = arith.constant 0 : index
    %c0_1227 = arith.constant 0 : index
    %1546 = vector.load %arg1[%c27_1225, %c0_1226, %c0_1227] : memref<36x8x256xf32, #tpu.memory_space<vmem>>, vector<1x8x256xf32>
    %1547 = vector.shape_cast %1546 : vector<1x8x256xf32> to vector<8x256xf32>
    %c6_1228 = arith.constant 6 : index
    %c27_1229 = arith.constant 27 : index
    %1548 = memref.load %arg2[%c6_1228, %c27_1229] : memref<8x36xf32, #tpu.memory_space<smem>>
    %1549 = vector.broadcast %1548 : f32 to vector<8x256xf32>
    %1550 = arith.mulf %1547, %1549 : vector<8x256xf32>
    %1551 = arith.addf %1527, %1550 : vector<8x256xf32>
    %c28_1230 = arith.constant 28 : index
    %c0_1231 = arith.constant 0 : index
    %c0_1232 = arith.constant 0 : index
    %1552 = vector.load %arg1[%c28_1230, %c0_1231, %c0_1232] : memref<36x8x256xf32, #tpu.memory_space<vmem>>, vector<1x8x256xf32>
    %1553 = vector.shape_cast %1552 : vector<1x8x256xf32> to vector<8x256xf32>
    %c6_1233 = arith.constant 6 : index
    %c28_1234 = arith.constant 28 : index
    %1554 = memref.load %arg2[%c6_1233, %c28_1234] : memref<8x36xf32, #tpu.memory_space<smem>>
    %1555 = vector.broadcast %1554 : f32 to vector<8x256xf32>
    %1556 = arith.mulf %1553, %1555 : vector<8x256xf32>
    %1557 = arith.addf %1533, %1556 : vector<8x256xf32>
    %c29_1235 = arith.constant 29 : index
    %c0_1236 = arith.constant 0 : index
    %c0_1237 = arith.constant 0 : index
    %1558 = vector.load %arg1[%c29_1235, %c0_1236, %c0_1237] : memref<36x8x256xf32, #tpu.memory_space<vmem>>, vector<1x8x256xf32>
    %1559 = vector.shape_cast %1558 : vector<1x8x256xf32> to vector<8x256xf32>
    %c6_1238 = arith.constant 6 : index
    %c29_1239 = arith.constant 29 : index
    %1560 = memref.load %arg2[%c6_1238, %c29_1239] : memref<8x36xf32, #tpu.memory_space<smem>>
    %1561 = vector.broadcast %1560 : f32 to vector<8x256xf32>
    %1562 = arith.mulf %1559, %1561 : vector<8x256xf32>
    %1563 = arith.addf %1539, %1562 : vector<8x256xf32>
    %c30_1240 = arith.constant 30 : index
    %c0_1241 = arith.constant 0 : index
    %c0_1242 = arith.constant 0 : index
    %1564 = vector.load %arg1[%c30_1240, %c0_1241, %c0_1242] : memref<36x8x256xf32, #tpu.memory_space<vmem>>, vector<1x8x256xf32>
    %1565 = vector.shape_cast %1564 : vector<1x8x256xf32> to vector<8x256xf32>
    %c6_1243 = arith.constant 6 : index
    %c30_1244 = arith.constant 30 : index
    %1566 = memref.load %arg2[%c6_1243, %c30_1244] : memref<8x36xf32, #tpu.memory_space<smem>>
    %1567 = vector.broadcast %1566 : f32 to vector<8x256xf32>
    %1568 = arith.mulf %1565, %1567 : vector<8x256xf32>
    %1569 = arith.addf %1545, %1568 : vector<8x256xf32>
    %c31_1245 = arith.constant 31 : index
    %c0_1246 = arith.constant 0 : index
    %c0_1247 = arith.constant 0 : index
    %1570 = vector.load %arg1[%c31_1245, %c0_1246, %c0_1247] : memref<36x8x256xf32, #tpu.memory_space<vmem>>, vector<1x8x256xf32>
    %1571 = vector.shape_cast %1570 : vector<1x8x256xf32> to vector<8x256xf32>
    %c6_1248 = arith.constant 6 : index
    %c31_1249 = arith.constant 31 : index
    %1572 = memref.load %arg2[%c6_1248, %c31_1249] : memref<8x36xf32, #tpu.memory_space<smem>>
    %1573 = vector.broadcast %1572 : f32 to vector<8x256xf32>
    %1574 = arith.mulf %1571, %1573 : vector<8x256xf32>
    %1575 = arith.addf %1551, %1574 : vector<8x256xf32>
    %c32_1250 = arith.constant 32 : index
    %c0_1251 = arith.constant 0 : index
    %c0_1252 = arith.constant 0 : index
    %1576 = vector.load %arg1[%c32_1250, %c0_1251, %c0_1252] : memref<36x8x256xf32, #tpu.memory_space<vmem>>, vector<1x8x256xf32>
    %1577 = vector.shape_cast %1576 : vector<1x8x256xf32> to vector<8x256xf32>
    %c6_1253 = arith.constant 6 : index
    %c32_1254 = arith.constant 32 : index
    %1578 = memref.load %arg2[%c6_1253, %c32_1254] : memref<8x36xf32, #tpu.memory_space<smem>>
    %1579 = vector.broadcast %1578 : f32 to vector<8x256xf32>
    %1580 = arith.mulf %1577, %1579 : vector<8x256xf32>
    %1581 = arith.addf %1557, %1580 : vector<8x256xf32>
    %c33_1255 = arith.constant 33 : index
    %c0_1256 = arith.constant 0 : index
    %c0_1257 = arith.constant 0 : index
    %1582 = vector.load %arg1[%c33_1255, %c0_1256, %c0_1257] : memref<36x8x256xf32, #tpu.memory_space<vmem>>, vector<1x8x256xf32>
    %1583 = vector.shape_cast %1582 : vector<1x8x256xf32> to vector<8x256xf32>
    %c6_1258 = arith.constant 6 : index
    %c33_1259 = arith.constant 33 : index
    %1584 = memref.load %arg2[%c6_1258, %c33_1259] : memref<8x36xf32, #tpu.memory_space<smem>>
    %1585 = vector.broadcast %1584 : f32 to vector<8x256xf32>
    %1586 = arith.mulf %1583, %1585 : vector<8x256xf32>
    %1587 = arith.addf %1563, %1586 : vector<8x256xf32>
    %c34_1260 = arith.constant 34 : index
    %c0_1261 = arith.constant 0 : index
    %c0_1262 = arith.constant 0 : index
    %1588 = vector.load %arg1[%c34_1260, %c0_1261, %c0_1262] : memref<36x8x256xf32, #tpu.memory_space<vmem>>, vector<1x8x256xf32>
    %1589 = vector.shape_cast %1588 : vector<1x8x256xf32> to vector<8x256xf32>
    %c6_1263 = arith.constant 6 : index
    %c34_1264 = arith.constant 34 : index
    %1590 = memref.load %arg2[%c6_1263, %c34_1264] : memref<8x36xf32, #tpu.memory_space<smem>>
    %1591 = vector.broadcast %1590 : f32 to vector<8x256xf32>
    %1592 = arith.mulf %1589, %1591 : vector<8x256xf32>
    %1593 = arith.addf %1569, %1592 : vector<8x256xf32>
    %c35_1265 = arith.constant 35 : index
    %c0_1266 = arith.constant 0 : index
    %c0_1267 = arith.constant 0 : index
    %1594 = vector.load %arg1[%c35_1265, %c0_1266, %c0_1267] : memref<36x8x256xf32, #tpu.memory_space<vmem>>, vector<1x8x256xf32>
    %1595 = vector.shape_cast %1594 : vector<1x8x256xf32> to vector<8x256xf32>
    %c6_1268 = arith.constant 6 : index
    %c35_1269 = arith.constant 35 : index
    %1596 = memref.load %arg2[%c6_1268, %c35_1269] : memref<8x36xf32, #tpu.memory_space<smem>>
    %1597 = vector.broadcast %1596 : f32 to vector<8x256xf32>
    %1598 = arith.mulf %1595, %1597 : vector<8x256xf32>
    %1599 = arith.addf %1575, %1598 : vector<8x256xf32>
    %1600 = arith.addf %1581, %1587 : vector<8x256xf32>
    %1601 = arith.addf %1593, %1599 : vector<8x256xf32>
    %1602 = arith.addf %1600, %1601 : vector<8x256xf32>
    %c6_1270 = arith.constant 6 : index
    %1603 = memref.load %arg3[%c6_1270] : memref<8xf32, #tpu.memory_space<smem>>
    %1604 = vector.broadcast %1603 : f32 to vector<8x256xf32>
    %1605 = arith.addf %1602, %1604 : vector<8x256xf32>
    %cst_1271 = arith.constant 0.000000e+00 : f32
    %1606 = vector.broadcast %cst_1271 : f32 to vector<8x256xf32>
    %1607 = arith.maximumf %1605, %1606 : vector<8x256xf32>
    %1608 = arith.truncf %1607 : vector<8x256xf32> to vector<8x256xbf16>
    %c0_1272 = arith.constant 0 : index
    %c1536 = arith.constant 1536 : index
    %1609 = vector.load %arg7[%c0_1272, %c1536] : memref<8x2048xbf16, #tpu.memory_space<vmem>>, vector<8x256xbf16>
    tpu.vector_store %arg7[%c0_1272, %c1536], %1608 {strides = array<i32>} : memref<8x2048xbf16, #tpu.memory_space<vmem>>, vector<8x256xbf16>,
    %cst_1273 = arith.constant 0.000000e+00 : f32
    %1610 = vector.broadcast %cst_1273 : f32 to vector<8x256xf32>
    %cst_1274 = arith.constant 0.000000e+00 : f32
    %1611 = vector.broadcast %cst_1274 : f32 to vector<8x256xf32>
    %cst_1275 = arith.constant 0.000000e+00 : f32
    %1612 = vector.broadcast %cst_1275 : f32 to vector<8x256xf32>
    %cst_1276 = arith.constant 0.000000e+00 : f32
    %1613 = vector.broadcast %cst_1276 : f32 to vector<8x256xf32>
    %c0_1277 = arith.constant 0 : index
    %c0_1278 = arith.constant 0 : index
    %c0_1279 = arith.constant 0 : index
    %1614 = vector.load %arg1[%c0_1277, %c0_1278, %c0_1279] : memref<36x8x256xf32, #tpu.memory_space<vmem>>, vector<1x8x256xf32>
    %1615 = vector.shape_cast %1614 : vector<1x8x256xf32> to vector<8x256xf32>
    %c7_1280 = arith.constant 7 : index
    %c0_1281 = arith.constant 0 : index
    %1616 = memref.load %arg2[%c7_1280, %c0_1281] : memref<8x36xf32, #tpu.memory_space<smem>>
    %1617 = vector.broadcast %1616 : f32 to vector<8x256xf32>
    %1618 = arith.mulf %1615, %1617 : vector<8x256xf32>
    %1619 = arith.addf %1610, %1618 : vector<8x256xf32>
    %c1_1282 = arith.constant 1 : index
    %c0_1283 = arith.constant 0 : index
    %c0_1284 = arith.constant 0 : index
    %1620 = vector.load %arg1[%c1_1282, %c0_1283, %c0_1284] : memref<36x8x256xf32, #tpu.memory_space<vmem>>, vector<1x8x256xf32>
    %1621 = vector.shape_cast %1620 : vector<1x8x256xf32> to vector<8x256xf32>
    %c7_1285 = arith.constant 7 : index
    %c1_1286 = arith.constant 1 : index
    %1622 = memref.load %arg2[%c7_1285, %c1_1286] : memref<8x36xf32, #tpu.memory_space<smem>>
    %1623 = vector.broadcast %1622 : f32 to vector<8x256xf32>
    %1624 = arith.mulf %1621, %1623 : vector<8x256xf32>
    %1625 = arith.addf %1611, %1624 : vector<8x256xf32>
    %c2_1287 = arith.constant 2 : index
    %c0_1288 = arith.constant 0 : index
    %c0_1289 = arith.constant 0 : index
    %1626 = vector.load %arg1[%c2_1287, %c0_1288, %c0_1289] : memref<36x8x256xf32, #tpu.memory_space<vmem>>, vector<1x8x256xf32>
    %1627 = vector.shape_cast %1626 : vector<1x8x256xf32> to vector<8x256xf32>
    %c7_1290 = arith.constant 7 : index
    %c2_1291 = arith.constant 2 : index
    %1628 = memref.load %arg2[%c7_1290, %c2_1291] : memref<8x36xf32, #tpu.memory_space<smem>>
    %1629 = vector.broadcast %1628 : f32 to vector<8x256xf32>
    %1630 = arith.mulf %1627, %1629 : vector<8x256xf32>
    %1631 = arith.addf %1612, %1630 : vector<8x256xf32>
    %c3_1292 = arith.constant 3 : index
    %c0_1293 = arith.constant 0 : index
    %c0_1294 = arith.constant 0 : index
    %1632 = vector.load %arg1[%c3_1292, %c0_1293, %c0_1294] : memref<36x8x256xf32, #tpu.memory_space<vmem>>, vector<1x8x256xf32>
    %1633 = vector.shape_cast %1632 : vector<1x8x256xf32> to vector<8x256xf32>
    %c7_1295 = arith.constant 7 : index
    %c3_1296 = arith.constant 3 : index
    %1634 = memref.load %arg2[%c7_1295, %c3_1296] : memref<8x36xf32, #tpu.memory_space<smem>>
    %1635 = vector.broadcast %1634 : f32 to vector<8x256xf32>
    %1636 = arith.mulf %1633, %1635 : vector<8x256xf32>
    %1637 = arith.addf %1613, %1636 : vector<8x256xf32>
    %c4_1297 = arith.constant 4 : index
    %c0_1298 = arith.constant 0 : index
    %c0_1299 = arith.constant 0 : index
    %1638 = vector.load %arg1[%c4_1297, %c0_1298, %c0_1299] : memref<36x8x256xf32, #tpu.memory_space<vmem>>, vector<1x8x256xf32>
    %1639 = vector.shape_cast %1638 : vector<1x8x256xf32> to vector<8x256xf32>
    %c7_1300 = arith.constant 7 : index
    %c4_1301 = arith.constant 4 : index
    %1640 = memref.load %arg2[%c7_1300, %c4_1301] : memref<8x36xf32, #tpu.memory_space<smem>>
    %1641 = vector.broadcast %1640 : f32 to vector<8x256xf32>
    %1642 = arith.mulf %1639, %1641 : vector<8x256xf32>
    %1643 = arith.addf %1619, %1642 : vector<8x256xf32>
    %c5_1302 = arith.constant 5 : index
    %c0_1303 = arith.constant 0 : index
    %c0_1304 = arith.constant 0 : index
    %1644 = vector.load %arg1[%c5_1302, %c0_1303, %c0_1304] : memref<36x8x256xf32, #tpu.memory_space<vmem>>, vector<1x8x256xf32>
    %1645 = vector.shape_cast %1644 : vector<1x8x256xf32> to vector<8x256xf32>
    %c7_1305 = arith.constant 7 : index
    %c5_1306 = arith.constant 5 : index
    %1646 = memref.load %arg2[%c7_1305, %c5_1306] : memref<8x36xf32, #tpu.memory_space<smem>>
    %1647 = vector.broadcast %1646 : f32 to vector<8x256xf32>
    %1648 = arith.mulf %1645, %1647 : vector<8x256xf32>
    %1649 = arith.addf %1625, %1648 : vector<8x256xf32>
    %c6_1307 = arith.constant 6 : index
    %c0_1308 = arith.constant 0 : index
    %c0_1309 = arith.constant 0 : index
    %1650 = vector.load %arg1[%c6_1307, %c0_1308, %c0_1309] : memref<36x8x256xf32, #tpu.memory_space<vmem>>, vector<1x8x256xf32>
    %1651 = vector.shape_cast %1650 : vector<1x8x256xf32> to vector<8x256xf32>
    %c7_1310 = arith.constant 7 : index
    %c6_1311 = arith.constant 6 : index
    %1652 = memref.load %arg2[%c7_1310, %c6_1311] : memref<8x36xf32, #tpu.memory_space<smem>>
    %1653 = vector.broadcast %1652 : f32 to vector<8x256xf32>
    %1654 = arith.mulf %1651, %1653 : vector<8x256xf32>
    %1655 = arith.addf %1631, %1654 : vector<8x256xf32>
    %c7_1312 = arith.constant 7 : index
    %c0_1313 = arith.constant 0 : index
    %c0_1314 = arith.constant 0 : index
    %1656 = vector.load %arg1[%c7_1312, %c0_1313, %c0_1314] : memref<36x8x256xf32, #tpu.memory_space<vmem>>, vector<1x8x256xf32>
    %1657 = vector.shape_cast %1656 : vector<1x8x256xf32> to vector<8x256xf32>
    %c7_1315 = arith.constant 7 : index
    %c7_1316 = arith.constant 7 : index
    %1658 = memref.load %arg2[%c7_1315, %c7_1316] : memref<8x36xf32, #tpu.memory_space<smem>>
    %1659 = vector.broadcast %1658 : f32 to vector<8x256xf32>
    %1660 = arith.mulf %1657, %1659 : vector<8x256xf32>
    %1661 = arith.addf %1637, %1660 : vector<8x256xf32>
    %c8_1317 = arith.constant 8 : index
    %c0_1318 = arith.constant 0 : index
    %c0_1319 = arith.constant 0 : index
    %1662 = vector.load %arg1[%c8_1317, %c0_1318, %c0_1319] : memref<36x8x256xf32, #tpu.memory_space<vmem>>, vector<1x8x256xf32>
    %1663 = vector.shape_cast %1662 : vector<1x8x256xf32> to vector<8x256xf32>
    %c7_1320 = arith.constant 7 : index
    %c8_1321 = arith.constant 8 : index
    %1664 = memref.load %arg2[%c7_1320, %c8_1321] : memref<8x36xf32, #tpu.memory_space<smem>>
    %1665 = vector.broadcast %1664 : f32 to vector<8x256xf32>
    %1666 = arith.mulf %1663, %1665 : vector<8x256xf32>
    %1667 = arith.addf %1643, %1666 : vector<8x256xf32>
    %c9_1322 = arith.constant 9 : index
    %c0_1323 = arith.constant 0 : index
    %c0_1324 = arith.constant 0 : index
    %1668 = vector.load %arg1[%c9_1322, %c0_1323, %c0_1324] : memref<36x8x256xf32, #tpu.memory_space<vmem>>, vector<1x8x256xf32>
    %1669 = vector.shape_cast %1668 : vector<1x8x256xf32> to vector<8x256xf32>
    %c7_1325 = arith.constant 7 : index
    %c9_1326 = arith.constant 9 : index
    %1670 = memref.load %arg2[%c7_1325, %c9_1326] : memref<8x36xf32, #tpu.memory_space<smem>>
    %1671 = vector.broadcast %1670 : f32 to vector<8x256xf32>
    %1672 = arith.mulf %1669, %1671 : vector<8x256xf32>
    %1673 = arith.addf %1649, %1672 : vector<8x256xf32>
    %c10_1327 = arith.constant 10 : index
    %c0_1328 = arith.constant 0 : index
    %c0_1329 = arith.constant 0 : index
    %1674 = vector.load %arg1[%c10_1327, %c0_1328, %c0_1329] : memref<36x8x256xf32, #tpu.memory_space<vmem>>, vector<1x8x256xf32>
    %1675 = vector.shape_cast %1674 : vector<1x8x256xf32> to vector<8x256xf32>
    %c7_1330 = arith.constant 7 : index
    %c10_1331 = arith.constant 10 : index
    %1676 = memref.load %arg2[%c7_1330, %c10_1331] : memref<8x36xf32, #tpu.memory_space<smem>>
    %1677 = vector.broadcast %1676 : f32 to vector<8x256xf32>
    %1678 = arith.mulf %1675, %1677 : vector<8x256xf32>
    %1679 = arith.addf %1655, %1678 : vector<8x256xf32>
    %c11_1332 = arith.constant 11 : index
    %c0_1333 = arith.constant 0 : index
    %c0_1334 = arith.constant 0 : index
    %1680 = vector.load %arg1[%c11_1332, %c0_1333, %c0_1334] : memref<36x8x256xf32, #tpu.memory_space<vmem>>, vector<1x8x256xf32>
    %1681 = vector.shape_cast %1680 : vector<1x8x256xf32> to vector<8x256xf32>
    %c7_1335 = arith.constant 7 : index
    %c11_1336 = arith.constant 11 : index
    %1682 = memref.load %arg2[%c7_1335, %c11_1336] : memref<8x36xf32, #tpu.memory_space<smem>>
    %1683 = vector.broadcast %1682 : f32 to vector<8x256xf32>
    %1684 = arith.mulf %1681, %1683 : vector<8x256xf32>
    %1685 = arith.addf %1661, %1684 : vector<8x256xf32>
    %c12_1337 = arith.constant 12 : index
    %c0_1338 = arith.constant 0 : index
    %c0_1339 = arith.constant 0 : index
    %1686 = vector.load %arg1[%c12_1337, %c0_1338, %c0_1339] : memref<36x8x256xf32, #tpu.memory_space<vmem>>, vector<1x8x256xf32>
    %1687 = vector.shape_cast %1686 : vector<1x8x256xf32> to vector<8x256xf32>
    %c7_1340 = arith.constant 7 : index
    %c12_1341 = arith.constant 12 : index
    %1688 = memref.load %arg2[%c7_1340, %c12_1341] : memref<8x36xf32, #tpu.memory_space<smem>>
    %1689 = vector.broadcast %1688 : f32 to vector<8x256xf32>
    %1690 = arith.mulf %1687, %1689 : vector<8x256xf32>
    %1691 = arith.addf %1667, %1690 : vector<8x256xf32>
    %c13_1342 = arith.constant 13 : index
    %c0_1343 = arith.constant 0 : index
    %c0_1344 = arith.constant 0 : index
    %1692 = vector.load %arg1[%c13_1342, %c0_1343, %c0_1344] : memref<36x8x256xf32, #tpu.memory_space<vmem>>, vector<1x8x256xf32>
    %1693 = vector.shape_cast %1692 : vector<1x8x256xf32> to vector<8x256xf32>
    %c7_1345 = arith.constant 7 : index
    %c13_1346 = arith.constant 13 : index
    %1694 = memref.load %arg2[%c7_1345, %c13_1346] : memref<8x36xf32, #tpu.memory_space<smem>>
    %1695 = vector.broadcast %1694 : f32 to vector<8x256xf32>
    %1696 = arith.mulf %1693, %1695 : vector<8x256xf32>
    %1697 = arith.addf %1673, %1696 : vector<8x256xf32>
    %c14_1347 = arith.constant 14 : index
    %c0_1348 = arith.constant 0 : index
    %c0_1349 = arith.constant 0 : index
    %1698 = vector.load %arg1[%c14_1347, %c0_1348, %c0_1349] : memref<36x8x256xf32, #tpu.memory_space<vmem>>, vector<1x8x256xf32>
    %1699 = vector.shape_cast %1698 : vector<1x8x256xf32> to vector<8x256xf32>
    %c7_1350 = arith.constant 7 : index
    %c14_1351 = arith.constant 14 : index
    %1700 = memref.load %arg2[%c7_1350, %c14_1351] : memref<8x36xf32, #tpu.memory_space<smem>>
    %1701 = vector.broadcast %1700 : f32 to vector<8x256xf32>
    %1702 = arith.mulf %1699, %1701 : vector<8x256xf32>
    %1703 = arith.addf %1679, %1702 : vector<8x256xf32>
    %c15_1352 = arith.constant 15 : index
    %c0_1353 = arith.constant 0 : index
    %c0_1354 = arith.constant 0 : index
    %1704 = vector.load %arg1[%c15_1352, %c0_1353, %c0_1354] : memref<36x8x256xf32, #tpu.memory_space<vmem>>, vector<1x8x256xf32>
    %1705 = vector.shape_cast %1704 : vector<1x8x256xf32> to vector<8x256xf32>
    %c7_1355 = arith.constant 7 : index
    %c15_1356 = arith.constant 15 : index
    %1706 = memref.load %arg2[%c7_1355, %c15_1356] : memref<8x36xf32, #tpu.memory_space<smem>>
    %1707 = vector.broadcast %1706 : f32 to vector<8x256xf32>
    %1708 = arith.mulf %1705, %1707 : vector<8x256xf32>
    %1709 = arith.addf %1685, %1708 : vector<8x256xf32>
    %c16_1357 = arith.constant 16 : index
    %c0_1358 = arith.constant 0 : index
    %c0_1359 = arith.constant 0 : index
    %1710 = vector.load %arg1[%c16_1357, %c0_1358, %c0_1359] : memref<36x8x256xf32, #tpu.memory_space<vmem>>, vector<1x8x256xf32>
    %1711 = vector.shape_cast %1710 : vector<1x8x256xf32> to vector<8x256xf32>
    %c7_1360 = arith.constant 7 : index
    %c16_1361 = arith.constant 16 : index
    %1712 = memref.load %arg2[%c7_1360, %c16_1361] : memref<8x36xf32, #tpu.memory_space<smem>>
    %1713 = vector.broadcast %1712 : f32 to vector<8x256xf32>
    %1714 = arith.mulf %1711, %1713 : vector<8x256xf32>
    %1715 = arith.addf %1691, %1714 : vector<8x256xf32>
    %c17_1362 = arith.constant 17 : index
    %c0_1363 = arith.constant 0 : index
    %c0_1364 = arith.constant 0 : index
    %1716 = vector.load %arg1[%c17_1362, %c0_1363, %c0_1364] : memref<36x8x256xf32, #tpu.memory_space<vmem>>, vector<1x8x256xf32>
    %1717 = vector.shape_cast %1716 : vector<1x8x256xf32> to vector<8x256xf32>
    %c7_1365 = arith.constant 7 : index
    %c17_1366 = arith.constant 17 : index
    %1718 = memref.load %arg2[%c7_1365, %c17_1366] : memref<8x36xf32, #tpu.memory_space<smem>>
    %1719 = vector.broadcast %1718 : f32 to vector<8x256xf32>
    %1720 = arith.mulf %1717, %1719 : vector<8x256xf32>
    %1721 = arith.addf %1697, %1720 : vector<8x256xf32>
    %c18_1367 = arith.constant 18 : index
    %c0_1368 = arith.constant 0 : index
    %c0_1369 = arith.constant 0 : index
    %1722 = vector.load %arg1[%c18_1367, %c0_1368, %c0_1369] : memref<36x8x256xf32, #tpu.memory_space<vmem>>, vector<1x8x256xf32>
    %1723 = vector.shape_cast %1722 : vector<1x8x256xf32> to vector<8x256xf32>
    %c7_1370 = arith.constant 7 : index
    %c18_1371 = arith.constant 18 : index
    %1724 = memref.load %arg2[%c7_1370, %c18_1371] : memref<8x36xf32, #tpu.memory_space<smem>>
    %1725 = vector.broadcast %1724 : f32 to vector<8x256xf32>
    %1726 = arith.mulf %1723, %1725 : vector<8x256xf32>
    %1727 = arith.addf %1703, %1726 : vector<8x256xf32>
    %c19_1372 = arith.constant 19 : index
    %c0_1373 = arith.constant 0 : index
    %c0_1374 = arith.constant 0 : index
    %1728 = vector.load %arg1[%c19_1372, %c0_1373, %c0_1374] : memref<36x8x256xf32, #tpu.memory_space<vmem>>, vector<1x8x256xf32>
    %1729 = vector.shape_cast %1728 : vector<1x8x256xf32> to vector<8x256xf32>
    %c7_1375 = arith.constant 7 : index
    %c19_1376 = arith.constant 19 : index
    %1730 = memref.load %arg2[%c7_1375, %c19_1376] : memref<8x36xf32, #tpu.memory_space<smem>>
    %1731 = vector.broadcast %1730 : f32 to vector<8x256xf32>
    %1732 = arith.mulf %1729, %1731 : vector<8x256xf32>
    %1733 = arith.addf %1709, %1732 : vector<8x256xf32>
    %c20_1377 = arith.constant 20 : index
    %c0_1378 = arith.constant 0 : index
    %c0_1379 = arith.constant 0 : index
    %1734 = vector.load %arg1[%c20_1377, %c0_1378, %c0_1379] : memref<36x8x256xf32, #tpu.memory_space<vmem>>, vector<1x8x256xf32>
    %1735 = vector.shape_cast %1734 : vector<1x8x256xf32> to vector<8x256xf32>
    %c7_1380 = arith.constant 7 : index
    %c20_1381 = arith.constant 20 : index
    %1736 = memref.load %arg2[%c7_1380, %c20_1381] : memref<8x36xf32, #tpu.memory_space<smem>>
    %1737 = vector.broadcast %1736 : f32 to vector<8x256xf32>
    %1738 = arith.mulf %1735, %1737 : vector<8x256xf32>
    %1739 = arith.addf %1715, %1738 : vector<8x256xf32>
    %c21_1382 = arith.constant 21 : index
    %c0_1383 = arith.constant 0 : index
    %c0_1384 = arith.constant 0 : index
    %1740 = vector.load %arg1[%c21_1382, %c0_1383, %c0_1384] : memref<36x8x256xf32, #tpu.memory_space<vmem>>, vector<1x8x256xf32>
    %1741 = vector.shape_cast %1740 : vector<1x8x256xf32> to vector<8x256xf32>
    %c7_1385 = arith.constant 7 : index
    %c21_1386 = arith.constant 21 : index
    %1742 = memref.load %arg2[%c7_1385, %c21_1386] : memref<8x36xf32, #tpu.memory_space<smem>>
    %1743 = vector.broadcast %1742 : f32 to vector<8x256xf32>
    %1744 = arith.mulf %1741, %1743 : vector<8x256xf32>
    %1745 = arith.addf %1721, %1744 : vector<8x256xf32>
    %c22_1387 = arith.constant 22 : index
    %c0_1388 = arith.constant 0 : index
    %c0_1389 = arith.constant 0 : index
    %1746 = vector.load %arg1[%c22_1387, %c0_1388, %c0_1389] : memref<36x8x256xf32, #tpu.memory_space<vmem>>, vector<1x8x256xf32>
    %1747 = vector.shape_cast %1746 : vector<1x8x256xf32> to vector<8x256xf32>
    %c7_1390 = arith.constant 7 : index
    %c22_1391 = arith.constant 22 : index
    %1748 = memref.load %arg2[%c7_1390, %c22_1391] : memref<8x36xf32, #tpu.memory_space<smem>>
    %1749 = vector.broadcast %1748 : f32 to vector<8x256xf32>
    %1750 = arith.mulf %1747, %1749 : vector<8x256xf32>
    %1751 = arith.addf %1727, %1750 : vector<8x256xf32>
    %c23_1392 = arith.constant 23 : index
    %c0_1393 = arith.constant 0 : index
    %c0_1394 = arith.constant 0 : index
    %1752 = vector.load %arg1[%c23_1392, %c0_1393, %c0_1394] : memref<36x8x256xf32, #tpu.memory_space<vmem>>, vector<1x8x256xf32>
    %1753 = vector.shape_cast %1752 : vector<1x8x256xf32> to vector<8x256xf32>
    %c7_1395 = arith.constant 7 : index
    %c23_1396 = arith.constant 23 : index
    %1754 = memref.load %arg2[%c7_1395, %c23_1396] : memref<8x36xf32, #tpu.memory_space<smem>>
    %1755 = vector.broadcast %1754 : f32 to vector<8x256xf32>
    %1756 = arith.mulf %1753, %1755 : vector<8x256xf32>
    %1757 = arith.addf %1733, %1756 : vector<8x256xf32>
    %c24_1397 = arith.constant 24 : index
    %c0_1398 = arith.constant 0 : index
    %c0_1399 = arith.constant 0 : index
    %1758 = vector.load %arg1[%c24_1397, %c0_1398, %c0_1399] : memref<36x8x256xf32, #tpu.memory_space<vmem>>, vector<1x8x256xf32>
    %1759 = vector.shape_cast %1758 : vector<1x8x256xf32> to vector<8x256xf32>
    %c7_1400 = arith.constant 7 : index
    %c24_1401 = arith.constant 24 : index
    %1760 = memref.load %arg2[%c7_1400, %c24_1401] : memref<8x36xf32, #tpu.memory_space<smem>>
    %1761 = vector.broadcast %1760 : f32 to vector<8x256xf32>
    %1762 = arith.mulf %1759, %1761 : vector<8x256xf32>
    %1763 = arith.addf %1739, %1762 : vector<8x256xf32>
    %c25_1402 = arith.constant 25 : index
    %c0_1403 = arith.constant 0 : index
    %c0_1404 = arith.constant 0 : index
    %1764 = vector.load %arg1[%c25_1402, %c0_1403, %c0_1404] : memref<36x8x256xf32, #tpu.memory_space<vmem>>, vector<1x8x256xf32>
    %1765 = vector.shape_cast %1764 : vector<1x8x256xf32> to vector<8x256xf32>
    %c7_1405 = arith.constant 7 : index
    %c25_1406 = arith.constant 25 : index
    %1766 = memref.load %arg2[%c7_1405, %c25_1406] : memref<8x36xf32, #tpu.memory_space<smem>>
    %1767 = vector.broadcast %1766 : f32 to vector<8x256xf32>
    %1768 = arith.mulf %1765, %1767 : vector<8x256xf32>
    %1769 = arith.addf %1745, %1768 : vector<8x256xf32>
    %c26_1407 = arith.constant 26 : index
    %c0_1408 = arith.constant 0 : index
    %c0_1409 = arith.constant 0 : index
    %1770 = vector.load %arg1[%c26_1407, %c0_1408, %c0_1409] : memref<36x8x256xf32, #tpu.memory_space<vmem>>, vector<1x8x256xf32>
    %1771 = vector.shape_cast %1770 : vector<1x8x256xf32> to vector<8x256xf32>
    %c7_1410 = arith.constant 7 : index
    %c26_1411 = arith.constant 26 : index
    %1772 = memref.load %arg2[%c7_1410, %c26_1411] : memref<8x36xf32, #tpu.memory_space<smem>>
    %1773 = vector.broadcast %1772 : f32 to vector<8x256xf32>
    %1774 = arith.mulf %1771, %1773 : vector<8x256xf32>
    %1775 = arith.addf %1751, %1774 : vector<8x256xf32>
    %c27_1412 = arith.constant 27 : index
    %c0_1413 = arith.constant 0 : index
    %c0_1414 = arith.constant 0 : index
    %1776 = vector.load %arg1[%c27_1412, %c0_1413, %c0_1414] : memref<36x8x256xf32, #tpu.memory_space<vmem>>, vector<1x8x256xf32>
    %1777 = vector.shape_cast %1776 : vector<1x8x256xf32> to vector<8x256xf32>
    %c7_1415 = arith.constant 7 : index
    %c27_1416 = arith.constant 27 : index
    %1778 = memref.load %arg2[%c7_1415, %c27_1416] : memref<8x36xf32, #tpu.memory_space<smem>>
    %1779 = vector.broadcast %1778 : f32 to vector<8x256xf32>
    %1780 = arith.mulf %1777, %1779 : vector<8x256xf32>
    %1781 = arith.addf %1757, %1780 : vector<8x256xf32>
    %c28_1417 = arith.constant 28 : index
    %c0_1418 = arith.constant 0 : index
    %c0_1419 = arith.constant 0 : index
    %1782 = vector.load %arg1[%c28_1417, %c0_1418, %c0_1419] : memref<36x8x256xf32, #tpu.memory_space<vmem>>, vector<1x8x256xf32>
    %1783 = vector.shape_cast %1782 : vector<1x8x256xf32> to vector<8x256xf32>
    %c7_1420 = arith.constant 7 : index
    %c28_1421 = arith.constant 28 : index
    %1784 = memref.load %arg2[%c7_1420, %c28_1421] : memref<8x36xf32, #tpu.memory_space<smem>>
    %1785 = vector.broadcast %1784 : f32 to vector<8x256xf32>
    %1786 = arith.mulf %1783, %1785 : vector<8x256xf32>
    %1787 = arith.addf %1763, %1786 : vector<8x256xf32>
    %c29_1422 = arith.constant 29 : index
    %c0_1423 = arith.constant 0 : index
    %c0_1424 = arith.constant 0 : index
    %1788 = vector.load %arg1[%c29_1422, %c0_1423, %c0_1424] : memref<36x8x256xf32, #tpu.memory_space<vmem>>, vector<1x8x256xf32>
    %1789 = vector.shape_cast %1788 : vector<1x8x256xf32> to vector<8x256xf32>
    %c7_1425 = arith.constant 7 : index
    %c29_1426 = arith.constant 29 : index
    %1790 = memref.load %arg2[%c7_1425, %c29_1426] : memref<8x36xf32, #tpu.memory_space<smem>>
    %1791 = vector.broadcast %1790 : f32 to vector<8x256xf32>
    %1792 = arith.mulf %1789, %1791 : vector<8x256xf32>
    %1793 = arith.addf %1769, %1792 : vector<8x256xf32>
    %c30_1427 = arith.constant 30 : index
    %c0_1428 = arith.constant 0 : index
    %c0_1429 = arith.constant 0 : index
    %1794 = vector.load %arg1[%c30_1427, %c0_1428, %c0_1429] : memref<36x8x256xf32, #tpu.memory_space<vmem>>, vector<1x8x256xf32>
    %1795 = vector.shape_cast %1794 : vector<1x8x256xf32> to vector<8x256xf32>
    %c7_1430 = arith.constant 7 : index
    %c30_1431 = arith.constant 30 : index
    %1796 = memref.load %arg2[%c7_1430, %c30_1431] : memref<8x36xf32, #tpu.memory_space<smem>>
    %1797 = vector.broadcast %1796 : f32 to vector<8x256xf32>
    %1798 = arith.mulf %1795, %1797 : vector<8x256xf32>
    %1799 = arith.addf %1775, %1798 : vector<8x256xf32>
    %c31_1432 = arith.constant 31 : index
    %c0_1433 = arith.constant 0 : index
    %c0_1434 = arith.constant 0 : index
    %1800 = vector.load %arg1[%c31_1432, %c0_1433, %c0_1434] : memref<36x8x256xf32, #tpu.memory_space<vmem>>, vector<1x8x256xf32>
    %1801 = vector.shape_cast %1800 : vector<1x8x256xf32> to vector<8x256xf32>
    %c7_1435 = arith.constant 7 : index
    %c31_1436 = arith.constant 31 : index
    %1802 = memref.load %arg2[%c7_1435, %c31_1436] : memref<8x36xf32, #tpu.memory_space<smem>>
    %1803 = vector.broadcast %1802 : f32 to vector<8x256xf32>
    %1804 = arith.mulf %1801, %1803 : vector<8x256xf32>
    %1805 = arith.addf %1781, %1804 : vector<8x256xf32>
    %c32_1437 = arith.constant 32 : index
    %c0_1438 = arith.constant 0 : index
    %c0_1439 = arith.constant 0 : index
    %1806 = vector.load %arg1[%c32_1437, %c0_1438, %c0_1439] : memref<36x8x256xf32, #tpu.memory_space<vmem>>, vector<1x8x256xf32>
    %1807 = vector.shape_cast %1806 : vector<1x8x256xf32> to vector<8x256xf32>
    %c7_1440 = arith.constant 7 : index
    %c32_1441 = arith.constant 32 : index
    %1808 = memref.load %arg2[%c7_1440, %c32_1441] : memref<8x36xf32, #tpu.memory_space<smem>>
    %1809 = vector.broadcast %1808 : f32 to vector<8x256xf32>
    %1810 = arith.mulf %1807, %1809 : vector<8x256xf32>
    %1811 = arith.addf %1787, %1810 : vector<8x256xf32>
    %c33_1442 = arith.constant 33 : index
    %c0_1443 = arith.constant 0 : index
    %c0_1444 = arith.constant 0 : index
    %1812 = vector.load %arg1[%c33_1442, %c0_1443, %c0_1444] : memref<36x8x256xf32, #tpu.memory_space<vmem>>, vector<1x8x256xf32>
    %1813 = vector.shape_cast %1812 : vector<1x8x256xf32> to vector<8x256xf32>
    %c7_1445 = arith.constant 7 : index
    %c33_1446 = arith.constant 33 : index
    %1814 = memref.load %arg2[%c7_1445, %c33_1446] : memref<8x36xf32, #tpu.memory_space<smem>>
    %1815 = vector.broadcast %1814 : f32 to vector<8x256xf32>
    %1816 = arith.mulf %1813, %1815 : vector<8x256xf32>
    %1817 = arith.addf %1793, %1816 : vector<8x256xf32>
    %c34_1447 = arith.constant 34 : index
    %c0_1448 = arith.constant 0 : index
    %c0_1449 = arith.constant 0 : index
    %1818 = vector.load %arg1[%c34_1447, %c0_1448, %c0_1449] : memref<36x8x256xf32, #tpu.memory_space<vmem>>, vector<1x8x256xf32>
    %1819 = vector.shape_cast %1818 : vector<1x8x256xf32> to vector<8x256xf32>
    %c7_1450 = arith.constant 7 : index
    %c34_1451 = arith.constant 34 : index
    %1820 = memref.load %arg2[%c7_1450, %c34_1451] : memref<8x36xf32, #tpu.memory_space<smem>>
    %1821 = vector.broadcast %1820 : f32 to vector<8x256xf32>
    %1822 = arith.mulf %1819, %1821 : vector<8x256xf32>
    %1823 = arith.addf %1799, %1822 : vector<8x256xf32>
    %c35_1452 = arith.constant 35 : index
    %c0_1453 = arith.constant 0 : index
    %c0_1454 = arith.constant 0 : index
    %1824 = vector.load %arg1[%c35_1452, %c0_1453, %c0_1454] : memref<36x8x256xf32, #tpu.memory_space<vmem>>, vector<1x8x256xf32>
    %1825 = vector.shape_cast %1824 : vector<1x8x256xf32> to vector<8x256xf32>
    %c7_1455 = arith.constant 7 : index
    %c35_1456 = arith.constant 35 : index
    %1826 = memref.load %arg2[%c7_1455, %c35_1456] : memref<8x36xf32, #tpu.memory_space<smem>>
    %1827 = vector.broadcast %1826 : f32 to vector<8x256xf32>
    %1828 = arith.mulf %1825, %1827 : vector<8x256xf32>
    %1829 = arith.addf %1805, %1828 : vector<8x256xf32>
    %1830 = arith.addf %1811, %1817 : vector<8x256xf32>
    %1831 = arith.addf %1823, %1829 : vector<8x256xf32>
    %1832 = arith.addf %1830, %1831 : vector<8x256xf32>
    %c7_1457 = arith.constant 7 : index
    %1833 = memref.load %arg3[%c7_1457] : memref<8xf32, #tpu.memory_space<smem>>
    %1834 = vector.broadcast %1833 : f32 to vector<8x256xf32>
    %1835 = arith.addf %1832, %1834 : vector<8x256xf32>
    %cst_1458 = arith.constant 0.000000e+00 : f32
    %1836 = vector.broadcast %cst_1458 : f32 to vector<8x256xf32>
    %1837 = arith.maximumf %1835, %1836 : vector<8x256xf32>
    %1838 = arith.truncf %1837 : vector<8x256xf32> to vector<8x256xbf16>
    %c0_1459 = arith.constant 0 : index
    %c1792 = arith.constant 1792 : index
    %1839 = vector.load %arg7[%c0_1459, %c1792] : memref<8x2048xbf16, #tpu.memory_space<vmem>>, vector<8x256xbf16>
    tpu.vector_store %arg7[%c0_1459, %c1792], %1838 {strides = array<i32>} : memref<8x2048xbf16, #tpu.memory_space<vmem>>, vector<8x256xbf16>,
    %c0_1460 = arith.constant 0 : index
    %c0_1461 = arith.constant 0 : index
    %1840 = vector.load %arg7[%c0_1460, %c0_1461] : memref<8x2048xbf16, #tpu.memory_space<vmem>>, vector<8x2048xbf16>
    %c0_1462 = arith.constant 0 : index
    %c0_1463 = arith.constant 0 : index
    %1841 = vector.load %arg4[%c0_1462, %c0_1463] : memref<2048x128xbf16, #tpu.memory_space<vmem>>, vector<2048x128xbf16>
    %cst_1464 = arith.constant dense<0.000000e+00> : vector<8x128xf32>
    %1842 = tpu.matmul %1840, %1841, %cst_1464 {dimension_numbers = #tpu.dot_dimension_numbers<[1], [0], [0], [1], [0, 0, 1, 1], [], []>} : vector<8x2048xbf16>, vector<2048x128xbf16>, vector<8x128xf32> -> vector<8x128xf32>
    %c0_1465 = arith.constant 0 : index
    %c0_1466 = arith.constant 0 : index
    %1843 = vector.load %arg5[%c0_1465, %c0_1466] : memref<1x128xf32, #tpu.memory_space<vmem>>, vector<1x128xf32>
    %1844 = vector.broadcast %1843 : vector<1x128xf32> to vector<8x128xf32>
    %1845 = arith.addf %1842, %1844 : vector<8x128xf32>
    %c0_1467 = arith.constant 0 : index
    %c0_1468 = arith.constant 0 : index
    %1846 = vector.load %arg6[%c0_1467, %c0_1468] : memref<8x128xf32, #tpu.memory_space<vmem>>, vector<8x128xf32>
    tpu.vector_store %arg6[%c0_1467, %c0_1468], %1845 {strides = array<i32>} : memref<8x128xf32, #tpu.memory_space<vmem>>, vector<8x128xf32>,
    return
  }
  func.func @transform_0(%arg0: i32) -> (i32, i32, i32) {
    %c0_i32 = arith.constant 0 : i32
    %c0_i32_0 = arith.constant 0 : i32
    %c0_i32_1 = arith.constant 0 : i32
    return %c0_i32, %arg0, %c0_i32_0 : i32, i32, i32
  }
  func.func @transform_1(%arg0: i32) -> (i32, i32) {
    %c0_i32 = arith.constant 0 : i32
    %c0_i32_0 = arith.constant 0 : i32
    %c0_i32_1 = arith.constant 0 : i32
    return %c0_i32, %c0_i32_0 : i32, i32
  }
  func.func @transform_2(%arg0: i32) -> i32 {
    %c0_i32 = arith.constant 0 : i32
    %c0_i32_0 = arith.constant 0 : i32
    return %c0_i32 : i32
  }
  func.func @transform_3(%arg0: i32) -> (i32, i32) {
    %c0_i32 = arith.constant 0 : i32
    %c0_i32_0 = arith.constant 0 : i32
    %c0_i32_1 = arith.constant 0 : i32
    return %c0_i32, %c0_i32_0 : i32, i32
  }
  func.func @transform_4(%arg0: i32) -> (i32, i32) {
    %c0_i32 = arith.constant 0 : i32
    %c0_i32_0 = arith.constant 0 : i32
    %c0_i32_1 = arith.constant 0 : i32
    return %c0_i32, %c0_i32_0 : i32, i32
  }
  func.func @transform_5(%arg0: i32) -> (i32, i32) {
    %c0_i32 = arith.constant 0 : i32
    %c0_i32_0 = arith.constant 0 : i32
    return %arg0, %c0_i32 : i32, i32
  }
}

</mosaic_0001>

<llo_original>
// kernel: compute_block_forward.1
$region0: #{compute_block_forward.1}
  #allocation0 [shape = 'u32[]', space=smem, size = 0x4, offset = 0x4, fixed_abs, tag = 'smem constant byte address 0x4 - core index']
  #allocation1 [shape = 'u32[144,128]{1,0:T(1,128)}', space=vmem, size = 0x12000, scoped, tag = 'internal scratch']
  #allocation2 [shape = 'bf16[8,2048]{1,0:T(8,128)(2,1)}', space=vmem, size = 0x8000, scoped, tag = 'scratch operand']
  %s0 = inlined_call_operand.vmem [shape: f32[36,8,256], index: 0, kind: input, shape index: {}]
  %s1 = inlined_call_operand.vmem [shape: f32[8,36], index: 1, kind: input, shape index: {}]
  %s2 = inlined_call_operand.vmem [shape: f32[8], index: 2, kind: input, shape index: {}]
  %s3 = inlined_call_operand.vmem [shape: bf16[2048,128], index: 3, kind: input, shape index: {}]
  %s4 = inlined_call_operand.vmem [shape: f32[1,128], index: 4, kind: input, shape index: {}]
  %s5 = inlined_call_operand.vmem [shape: f32[8,128], index: 5, kind: output, shape index: {}]
  %s6 = sld [smem:[#allocation0]]
  $region38: #{compute_block_forward.1} parent=0
    _
  %s8 = ssub.s32 1, %s6
  %s9 = scalar_select 0, %s8, %s6
  $region1: #{compute_block_forward.1} parent=0
    #allocation3 [shape = 'u8[4096]{0}', space=smem, size = 0x1000, scoped, tag = 'input window, operand 1, single buffered']
    #allocation4 [shape = 's32[1]{0}', space=sflag, size = 0x4, scoped, tag = 'scoped memory for compute_block_forward.1']
    #allocation5 [shape = 'u8[512]{0}', space=smem, size = 0x200, scoped, tag = 'input window, operand 2, single buffered']
    #allocation6 [shape = 's32[1]{0}', space=sflag, size = 0x4, scoped, tag = 'scoped memory for compute_block_forward.1']
    %10 = vsyncpa [#allocation4], 0
    %11 = vsyncpa [#allocation6], 0
    // Predicated region
    $region2: #{compute_block_forward.1} parent=1 // pred_check
      _
    $region3: #{compute_block_forward.1} parent=1 // pred_check_branch
      %13 = sbr.rel (0) target = $region5
    $region4: #{compute_block_forward.1} parent=1 // pred_region
      _
    $region5: #{compute_block_forward.1} parent=1 // pred_fallthru
      _
    // Predicated region
    $region6: #{compute_block_forward.1} parent=1 // pred_check
      _
    $region7: #{compute_block_forward.1} parent=1 // pred_check_branch
      %15 = sbr.rel (0) target = $region9
    $region8: #{compute_block_forward.1} parent=1 // pred_region
      %s17 = ssub.s32 128, 128
      %18 = vsyncadd [#allocation4], %s17
      %s20 = sshll.u32 %s1, 4
      %s21 = int_to_ptr.vmem [resolvable:$true] %s20
      %23 = dma.vmem_to_smem %s21, 128, [#allocation3], [#allocation4]
    $region9: #{compute_block_forward.1} parent=1 // pred_fallthru
      _
    // Predicated region
    $region10: #{compute_block_forward.1} parent=1 // pred_check
      _
    $region11: #{compute_block_forward.1} parent=1 // pred_check_branch
      %25 = sbr.rel (0) target = $region13
    $region12: #{compute_block_forward.1} parent=1 // pred_region
      %s27 = ssub.s32 16, 16
      %28 = vsyncadd [#allocation6], %s27
      %s30 = sshll.u32 %s2, 4
      %s31 = int_to_ptr.vmem [resolvable:$true] %s30
      %33 = dma.vmem_to_smem %s31, 16, [#allocation5], [#allocation6]
    $region13: #{compute_block_forward.1} parent=1 // pred_fallthru
      _
    // Predicated region
    $region14: #{compute_block_forward.1} parent=1 // pred_check
      _
    $region15: #{compute_block_forward.1} parent=1 // pred_check_branch
      %35 = sbr.rel (0) target = $region17
    $region16: #{compute_block_forward.1} parent=1 // pred_region
      _
    $region17: #{compute_block_forward.1} parent=1 // pred_fallthru
      _
    // Predicated region
    $region18: #{compute_block_forward.1} parent=1 // pred_check
      _
    $region19: #{compute_block_forward.1} parent=1 // pred_check_branch
      %37 = sbr.rel (0) target = $region21
    $region20: #{compute_block_forward.1} parent=1 // pred_region
      _
    $region21: #{compute_block_forward.1} parent=1 // pred_fallthru
      _
    // Predicated region
    $region22: #{compute_block_forward.1} parent=1 // pred_check
      _
    $region23: #{compute_block_forward.1} parent=1 // pred_check_branch
      %39 = sbr.rel (0) target = $region25
    $region24: #{compute_block_forward.1} parent=1 // pred_region
      %40 = dma.done [#allocation4], 128
    $region25: #{compute_block_forward.1} parent=1 // pred_fallthru
      _
    // Predicated region
    $region26: #{compute_block_forward.1} parent=1 // pred_check
      _
    $region27: #{compute_block_forward.1} parent=1 // pred_check_branch
      %42 = sbr.rel (0) target = $region29
    $region28: #{compute_block_forward.1} parent=1 // pred_region
      %43 = dma.done [#allocation6], 16
    $region29: #{compute_block_forward.1} parent=1 // pred_fallthru
      _
    %44 = sfence
    %v46 = vld [vmem:[%s0] sm:$0xff]
    %v47 = vld [vmem:[%s0 + $0x8] sm:$0xff]
    %s48 = sld [smem:[#allocation3]]
    %v49 = vstv %s48
    %v50 = vmul.f32 %v46, %v49
    %v51 = vmul.f32 %v47, %v49
    %v52 = vadd.f32 %v50, 0.0
    %v53 = vadd.f32 %v51, 0.0
    %s54 = scalar_lea.vmem %s0, 16
    %v55 = vld [vmem:[%s54] sm:$0xff]
    %v56 = vld [vmem:[%s54 + $0x8] sm:$0xff]
    %s57 = sld [smem:[#allocation3 + $0x1]]
    %v58 = vstv %s57
    %v59 = vmul.f32 %v55, %v58
    %v60 = vmul.f32 %v56, %v58
    %v61 = vadd.f32 %v59, 0.0
    %v62 = vadd.f32 %v60, 0.0
    %s63 = scalar_lea.vmem %s0, 32
    %v64 = vld [vmem:[%s63] sm:$0xff]
    %v65 = vld [vmem:[%s63 + $0x8] sm:$0xff]
    %s66 = sld [smem:[#allocation3 + $0x2]]
    %v67 = vstv %s66
    %v68 = vmul.f32 %v64, %v67
    %v69 = vmul.f32 %v65, %v67
    %v70 = vadd.f32 %v68, 0.0
    %v71 = vadd.f32 %v69, 0.0
    %s72 = scalar_lea.vmem %s0, 48
    %v73 = vld [vmem:[%s72] sm:$0xff]
    %v74 = vld [vmem:[%s72 + $0x8] sm:$0xff]
    %s75 = sld [smem:[#allocation3 + $0x3]]
    %v76 = vstv %s75
    %v77 = vmul.f32 %v73, %v76
    %v78 = vmul.f32 %v74, %v76
    %v79 = vadd.f32 %v77, 0.0
    %v80 = vadd.f32 %v78, 0.0
    %s81 = scalar_lea.vmem %s0, 64
    %v82 = vld [vmem:[%s81] sm:$0xff]
    %v83 = vld [vmem:[%s81 + $0x8] sm:$0xff]
    %s84 = sld [smem:[#allocation3 + $0x4]]
    %v85 = vstv %s84
    %v86 = vmul.f32 %v82, %v85
    %v87 = vmul.f32 %v83, %v85
    %v88 = vadd.f32 %v52, %v86
    %v89 = vadd.f32 %v53, %v87
    %s90 = scalar_lea.vmem %s0, 80
    %v91 = vld [vmem:[%s90] sm:$0xff]
    %v92 = vld [vmem:[%s90 + $0x8] sm:$0xff]
    %s93 = sld [smem:[#allocation3 + $0x5]]
    %v94 = vstv %s93
    %v95 = vmul.f32 %v91, %v94
    %v96 = vmul.f32 %v92, %v94
    %v97 = vadd.f32 %v61, %v95
    %v98 = vadd.f32 %v62, %v96
    %s99 = scalar_lea.vmem %s0, 96
    %v100 = vld [vmem:[%s99] sm:$0xff]
    %v101 = vld [vmem:[%s99 + $0x8] sm:$0xff]
    %s102 = sld [smem:[#allocation3 + $0x6]]
    %v103 = vstv %s102
    %v104 = vmul.f32 %v100, %v103
    %v105 = vmul.f32 %v101, %v103
    %v106 = vadd.f32 %v70, %v104
    %v107 = vadd.f32 %v71, %v105
    %s108 = scalar_lea.vmem %s0, 112
    %v109 = vld [vmem:[%s108] sm:$0xff]
    %v110 = vld [vmem:[%s108 + $0x8] sm:$0xff]
    %s111 = sld [smem:[#allocation3 + $0x7]]
    %v112 = vstv %s111
    %v113 = vmul.f32 %v109, %v112
    %v114 = vmul.f32 %v110, %v112
    %v115 = vadd.f32 %v79, %v113
    %v116 = vadd.f32 %v80, %v114
    %s117 = scalar_lea.vmem %s0, 128
    %v118 = vld [vmem:[%s117] sm:$0xff]
    %v119 = vld [vmem:[%s117 + $0x8] sm:$0xff]
    %s120 = sld [smem:[#allocation3 + $0x8]]
    %v121 = vstv %s120
    %v122 = vmul.f32 %v118, %v121
    %v123 = vmul.f32 %v119, %v121
    %v124 = vadd.f32 %v88, %v122
    %v125 = vadd.f32 %v89, %v123
    %s126 = scalar_lea.vmem %s0, 144
    %v127 = vld [vmem:[%s126] sm:$0xff]
    %v128 = vld [vmem:[%s126 + $0x8] sm:$0xff]
    %s129 = sld [smem:[#allocation3 + $0x9]]
    %v130 = vstv %s129
    %v131 = vmul.f32 %v127, %v130
    %v132 = vmul.f32 %v128, %v130
    %v133 = vadd.f32 %v97, %v131
    %v134 = vadd.f32 %v98, %v132
    %s135 = scalar_lea.vmem %s0, 160
    %v136 = vld [vmem:[%s135] sm:$0xff]
    %v137 = vld [vmem:[%s135 + $0x8] sm:$0xff]
    %s138 = sld [smem:[#allocation3 + $0xa]]
    %v139 = vstv %s138
    %v140 = vmul.f32 %v136, %v139
    %v141 = vmul.f32 %v137, %v139
    %v142 = vadd.f32 %v106, %v140
    %v143 = vadd.f32 %v107, %v141
    %s144 = scalar_lea.vmem %s0, 176
    %v145 = vld [vmem:[%s144] sm:$0xff]
    %v146 = vld [vmem:[%s144 + $0x8] sm:$0xff]
    %s147 = sld [smem:[#allocation3 + $0xb]]
    %v148 = vstv %s147
    %v149 = vmul.f32 %v145, %v148
    %v150 = vmul.f32 %v146, %v148
    %v151 = vadd.f32 %v115, %v149
    %v152 = vadd.f32 %v116, %v150
    %s153 = scalar_lea.vmem %s0, 192
    %v154 = vld [vmem:[%s153] sm:$0xff]
    %v155 = vld [vmem:[%s153 + $0x8] sm:$0xff]
    %s156 = sld [smem:[#allocation3 + $0xc]]
    %v157 = vstv %s156
    %v158 = vmul.f32 %v154, %v157
    %v159 = vmul.f32 %v155, %v157
    %v160 = vadd.f32 %v124, %v158
    %v161 = vadd.f32 %v125, %v159
    %s162 = scalar_lea.vmem %s0, 208
    %v163 = vld [vmem:[%s162] sm:$0xff]
    %v164 = vld [vmem:[%s162 + $0x8] sm:$0xff]
    %s165 = sld [smem:[#allocation3 + $0xd]]
    %v166 = vstv %s165
    %v167 = vmul.f32 %v163, %v166
    %v168 = vmul.f32 %v164, %v166
    %v169 = vadd.f32 %v133, %v167
    %v170 = vadd.f32 %v134, %v168
    %s171 = scalar_lea.vmem %s0, 224
    %v172 = vld [vmem:[%s171] sm:$0xff]
    %v173 = vld [vmem:[%s171 + $0x8] sm:$0xff]
    %s174 = sld [smem:[#allocation3 + $0xe]]
    %v175 = vstv %s174
    %v176 = vmul.f32 %v172, %v175
    %v177 = vmul.f32 %v173, %v175
    %v178 = vadd.f32 %v142, %v176
    %v179 = vadd.f32 %v143, %v177
    %s180 = scalar_lea.vmem %s0, 240
    %v181 = vld [vmem:[%s180] sm:$0xff]
    %v182 = vld [vmem:[%s180 + $0x8] sm:$0xff]
    %s183 = sld [smem:[#allocation3 + $0xf]]
    %v184 = vstv %s183
    %v185 = vmul.f32 %v181, %v184
    %v186 = vmul.f32 %v182, %v184
    %v187 = vadd.f32 %v151, %v185
    %v188 = vadd.f32 %v152, %v186
    %s189 = scalar_lea.vmem %s0, 256
    %v190 = vld [vmem:[%s189] sm:$0xff]
    %v191 = vld [vmem:[%s189 + $0x8] sm:$0xff]
    %s192 = sld [smem:[#allocation3 + $0x10]]
    %v193 = vstv %s192
    %v194 = vmul.f32 %v190, %v193
    %v195 = vmul.f32 %v191, %v193
    %v196 = vadd.f32 %v160, %v194
    %v197 = vadd.f32 %v161, %v195
    %s198 = scalar_lea.vmem %s0, 272
    %v199 = vld [vmem:[%s198] sm:$0xff]
    %v200 = vld [vmem:[%s198 + $0x8] sm:$0xff]
    %s201 = sld [smem:[#allocation3 + $0x11]]
    %v202 = vstv %s201
    %v203 = vmul.f32 %v199, %v202
    %v204 = vmul.f32 %v200, %v202
    %v205 = vadd.f32 %v169, %v203
    %v206 = vadd.f32 %v170, %v204
    %s207 = scalar_lea.vmem %s0, 288
    %v208 = vld [vmem:[%s207] sm:$0xff]
    %v209 = vld [vmem:[%s207 + $0x8] sm:$0xff]
    %s210 = sld [smem:[#allocation3 + $0x12]]
    %v211 = vstv %s210
    %v212 = vmul.f32 %v208, %v211
    %v213 = vmul.f32 %v209, %v211
    %v214 = vadd.f32 %v178, %v212
    %v215 = vadd.f32 %v179, %v213
    %s216 = scalar_lea.vmem %s0, 304
    %v217 = vld [vmem:[%s216] sm:$0xff]
    %v218 = vld [vmem:[%s216 + $0x8] sm:$0xff]
    %s219 = sld [smem:[#allocation3 + $0x13]]
    %v220 = vstv %s219
    %v221 = vmul.f32 %v217, %v220
    %v222 = vmul.f32 %v218, %v220
    %v223 = vadd.f32 %v187, %v221
    %v224 = vadd.f32 %v188, %v222
    %s225 = scalar_lea.vmem %s0, 320
    %v226 = vld [vmem:[%s225] sm:$0xff]
    %v227 = vld [vmem:[%s225 + $0x8] sm:$0xff]
    %s228 = sld [smem:[#allocation3 + $0x14]]
    %v229 = vstv %s228
    %v230 = vmul.f32 %v226, %v229
    %v231 = vmul.f32 %v227, %v229
    %v232 = vadd.f32 %v196, %v230
    %v233 = vadd.f32 %v197, %v231
    %s234 = scalar_lea.vmem %s0, 336
    %v235 = vld [vmem:[%s234] sm:$0xff]
    %v236 = vld [vmem:[%s234 + $0x8] sm:$0xff]
    %s237 = sld [smem:[#allocation3 + $0x15]]
    %v238 = vstv %s237
    %v239 = vmul.f32 %v235, %v238
    %v240 = vmul.f32 %v236, %v238
    %v241 = vadd.f32 %v205, %v239
    %v242 = vadd.f32 %v206, %v240
    %s243 = scalar_lea.vmem %s0, 352
    %v244 = vld [vmem:[%s243] sm:$0xff]
    %v245 = vld [vmem:[%s243 + $0x8] sm:$0xff]
    %s246 = sld [smem:[#allocation3 + $0x16]]
    %v247 = vstv %s246
    %v248 = vmul.f32 %v244, %v247
    %v249 = vmul.f32 %v245, %v247
    %v250 = vadd.f32 %v214, %v248
    %v251 = vadd.f32 %v215, %v249
    %s252 = scalar_lea.vmem %s0, 368
    %v253 = vld [vmem:[%s252] sm:$0xff]
    %v254 = vld [vmem:[%s252 + $0x8] sm:$0xff]
    %s255 = sld [smem:[#allocation3 + $0x17]]
    %v256 = vstv %s255
    %v257 = vmul.f32 %v253, %v256
    %v258 = vmul.f32 %v254, %v256
    %v259 = vadd.f32 %v223, %v257
    %v260 = vadd.f32 %v224, %v258
    %s261 = scalar_lea.vmem %s0, 384
    %v262 = vld [vmem:[%s261] sm:$0xff]
    %v263 = vld [vmem:[%s261 + $0x8] sm:$0xff]
    %s264 = sld [smem:[#allocation3 + $0x18]]
    %v265 = vstv %s264
    %v266 = vmul.f32 %v262, %v265
    %v267 = vmul.f32 %v263, %v265
    %v268 = vadd.f32 %v232, %v266
    %v269 = vadd.f32 %v233, %v267
    %s270 = scalar_lea.vmem %s0, 400
    %v271 = vld [vmem:[%s270] sm:$0xff]
    %v272 = vld [vmem:[%s270 + $0x8] sm:$0xff]
    %s273 = sld [smem:[#allocation3 + $0x19]]
    %v274 = vstv %s273
    %v275 = vmul.f32 %v271, %v274
    %v276 = vmul.f32 %v272, %v274
    %v277 = vadd.f32 %v241, %v275
    %v278 = vadd.f32 %v242, %v276
    %s279 = scalar_lea.vmem %s0, 416
    %v280 = vld [vmem:[%s279] sm:$0xff]
    %v281 = vld [vmem:[%s279 + $0x8] sm:$0xff]
    %s282 = sld [smem:[#allocation3 + $0x1a]]
    %v283 = vstv %s282
    %v284 = vmul.f32 %v280, %v283
    %v285 = vmul.f32 %v281, %v283
    %v286 = vadd.f32 %v250, %v284
    %v287 = vadd.f32 %v251, %v285
    %s288 = scalar_lea.vmem %s0, 432
    %v289 = vld [vmem:[%s288] sm:$0xff]
    %v290 = vld [vmem:[%s288 + $0x8] sm:$0xff]
    %s291 = sld [smem:[#allocation3 + $0x1b]]
    %v292 = vstv %s291
    %v293 = vmul.f32 %v289, %v292
    %v294 = vmul.f32 %v290, %v292
    %v295 = vadd.f32 %v259, %v293
    %v296 = vadd.f32 %v260, %v294
    %s297 = scalar_lea.vmem %s0, 448
    %v298 = vld [vmem:[%s297] sm:$0xff]
    %v299 = vld [vmem:[%s297 + $0x8] sm:$0xff]
    %s300 = sld [smem:[#allocation3 + $0x1c]]
    %v301 = vstv %s300
    %v302 = vmul.f32 %v298, %v301
    %v303 = vmul.f32 %v299, %v301
    %v304 = vadd.f32 %v268, %v302
    %v305 = vadd.f32 %v269, %v303
    %s306 = scalar_lea.vmem %s0, 464
    %v307 = vld [vmem:[%s306] sm:$0xff]
    %v308 = vld [vmem:[%s306 + $0x8] sm:$0xff]
    %s309 = sld [smem:[#allocation3 + $0x1d]]
    %v310 = vstv %s309
    %v311 = vmul.f32 %v307, %v310
    %v312 = vmul.f32 %v308, %v310
    %v313 = vadd.f32 %v277, %v311
    %v314 = vadd.f32 %v278, %v312
    %s315 = scalar_lea.vmem %s0, 480
    %v316 = vld [vmem:[%s315] sm:$0xff]
    %v317 = vld [vmem:[%s315 + $0x8] sm:$0xff]
    %s318 = sld [smem:[#allocation3 + $0x1e]]
    %v319 = vstv %s318
    %v320 = vmul.f32 %v316, %v319
    %v321 = vmul.f32 %v317, %v319
    %v322 = vadd.f32 %v286, %v320
    %v323 = vadd.f32 %v287, %v321
    %s324 = scalar_lea.vmem %s0, 496
    %v325 = vld [vmem:[%s324] sm:$0xff]
    %v326 = vld [vmem:[%s324 + $0x8] sm:$0xff]
    %s327 = sld [smem:[#allocation3 + $0x1f]]
    %v328 = vstv %s327
    %v329 = vmul.f32 %v325, %v328
    %v330 = vmul.f32 %v326, %v328
    %v331 = vadd.f32 %v295, %v329
    %v332 = vadd.f32 %v296, %v330
    %s333 = scalar_lea.vmem %s0, 512
    %v334 = vld [vmem:[%s333] sm:$0xff]
    %v335 = vld [vmem:[%s333 + $0x8] sm:$0xff]
    %s336 = sld [smem:[#allocation3 + $0x20]]
    %v337 = vstv %s336
    %v338 = vmul.f32 %v334, %v337
    %v339 = vmul.f32 %v335, %v337
    %v340 = vadd.f32 %v304, %v338
    %v341 = vadd.f32 %v305, %v339
    %s342 = scalar_lea.vmem %s0, 528
    %v343 = vld [vmem:[%s342] sm:$0xff]
    %v344 = vld [vmem:[%s342 + $0x8] sm:$0xff]
    %s345 = sld [smem:[#allocation3 + $0x21]]
    %v346 = vstv %s345
    %v347 = vmul.f32 %v343, %v346
    %v348 = vmul.f32 %v344, %v346
    %v349 = vadd.f32 %v313, %v347
    %v350 = vadd.f32 %v314, %v348
    %s351 = scalar_lea.vmem %s0, 544
    %v352 = vld [vmem:[%s351] sm:$0xff]
    %v353 = vld [vmem:[%s351 + $0x8] sm:$0xff]
    %s354 = sld [smem:[#allocation3 + $0x22]]
    %v355 = vstv %s354
    %v356 = vmul.f32 %v352, %v355
    %v357 = vmul.f32 %v353, %v355
    %v358 = vadd.f32 %v322, %v356
    %v359 = vadd.f32 %v323, %v357
    %s360 = scalar_lea.vmem %s0, 560
    %v361 = vld [vmem:[%s360] sm:$0xff]
    %v362 = vld [vmem:[%s360 + $0x8] sm:$0xff]
    %s363 = sld [smem:[#allocation3 + $0x23]]
    %v364 = vstv %s363
    %v365 = vmul.f32 %v361, %v364
    %v366 = vmul.f32 %v362, %v364
    %v367 = vadd.f32 %v331, %v365
    %v368 = vadd.f32 %v332, %v366
    %v369 = vadd.f32 %v340, %v349
    %v370 = vadd.f32 %v341, %v350
    %v371 = vadd.f32 %v358, %v367
    %v372 = vadd.f32 %v359, %v368
    %v373 = vadd.f32 %v369, %v371
    %v374 = vadd.f32 %v370, %v372
    %s375 = sld [smem:[#allocation5]]
    %v376 = vstv %s375
    %v377 = vadd.f32 %v373, %v376
    %v378 = vadd.f32 %v374, %v376
    %v379 = vmax.f32 %v377, 0.0
    %v380 = vmax.f32 %v378, 0.0
    %v381 = vpack.c.bf16 %v379, %v379
    %v382 = vpack.c.bf16 %v380, %v380
    %v385 = vunpack.c.l.b16 %v381
    %v386 = vunpack.c.l.b16 %v382
    %v387 = vpack.c.b16 %v386, %v385
    %389 = vst [vmem:[#allocation2] sm:$0xff] %v387
    %v390 = vld [vmem:[%s0] sm:$0xff]
    %v391 = vld [vmem:[%s0 + $0x8] sm:$0xff]
    %s392 = sld [smem:[#allocation3 + $0x80]]
    %v393 = vstv %s392
    %v394 = vmul.f32 %v390, %v393
    %v395 = vmul.f32 %v391, %v393
    %v396 = vadd.f32 %v394, 0.0
    %v397 = vadd.f32 %v395, 0.0
    %v398 = vld [vmem:[%s54] sm:$0xff]
    %v399 = vld [vmem:[%s54 + $0x8] sm:$0xff]
    %s400 = sld [smem:[#allocation3 + $0x81]]
    %v401 = vstv %s400
    %v402 = vmul.f32 %v398, %v401
    %v403 = vmul.f32 %v399, %v401
    %v404 = vadd.f32 %v402, 0.0
    %v405 = vadd.f32 %v403, 0.0
    %v406 = vld [vmem:[%s63] sm:$0xff]
    %v407 = vld [vmem:[%s63 + $0x8] sm:$0xff]
    %s408 = sld [smem:[#allocation3 + $0x82]]
    %v409 = vstv %s408
    %v410 = vmul.f32 %v406, %v409
    %v411 = vmul.f32 %v407, %v409
    %v412 = vadd.f32 %v410, 0.0
    %v413 = vadd.f32 %v411, 0.0
    %v414 = vld [vmem:[%s72] sm:$0xff]
    %v415 = vld [vmem:[%s72 + $0x8] sm:$0xff]
    %s416 = sld [smem:[#allocation3 + $0x83]]
    %v417 = vstv %s416
    %v418 = vmul.f32 %v414, %v417
    %v419 = vmul.f32 %v415, %v417
    %v420 = vadd.f32 %v418, 0.0
    %v421 = vadd.f32 %v419, 0.0
    %v422 = vld [vmem:[%s81] sm:$0xff]
    %v423 = vld [vmem:[%s81 + $0x8] sm:$0xff]
    %s424 = sld [smem:[#allocation3 + $0x84]]
    %v425 = vstv %s424
    %v426 = vmul.f32 %v422, %v425
    %v427 = vmul.f32 %v423, %v425
    %v428 = vadd.f32 %v396, %v426
    %v429 = vadd.f32 %v397, %v427
    %v430 = vld [vmem:[%s90] sm:$0xff]
    %v431 = vld [vmem:[%s90 + $0x8] sm:$0xff]
    %s432 = sld [smem:[#allocation3 + $0x85]]
    %v433 = vstv %s432
    %v434 = vmul.f32 %v430, %v433
    %v435 = vmul.f32 %v431, %v433
    %v436 = vadd.f32 %v404, %v434
    %v437 = vadd.f32 %v405, %v435
    %v438 = vld [vmem:[%s99] sm:$0xff]
    %v439 = vld [vmem:[%s99 + $0x8] sm:$0xff]
    %s440 = sld [smem:[#allocation3 + $0x86]]
    %v441 = vstv %s440
    %v442 = vmul.f32 %v438, %v441
    %v443 = vmul.f32 %v439, %v441
    %v444 = vadd.f32 %v412, %v442
    %v445 = vadd.f32 %v413, %v443
    %v446 = vld [vmem:[%s108] sm:$0xff]
    %v447 = vld [vmem:[%s108 + $0x8] sm:$0xff]
    %s448 = sld [smem:[#allocation3 + $0x87]]
    %v449 = vstv %s448
    %v450 = vmul.f32 %v446, %v449
    %v451 = vmul.f32 %v447, %v449
    %v452 = vadd.f32 %v420, %v450
    %v453 = vadd.f32 %v421, %v451
    %v454 = vld [vmem:[%s117] sm:$0xff]
    %v455 = vld [vmem:[%s117 + $0x8] sm:$0xff]
    %s456 = sld [smem:[#allocation3 + $0x88]]
    %v457 = vstv %s456
    %v458 = vmul.f32 %v454, %v457
    %v459 = vmul.f32 %v455, %v457
    %v460 = vadd.f32 %v428, %v458
    %v461 = vadd.f32 %v429, %v459
    %v462 = vld [vmem:[%s126] sm:$0xff]
    %v463 = vld [vmem:[%s126 + $0x8] sm:$0xff]
    %s464 = sld [smem:[#allocation3 + $0x89]]
    %v465 = vstv %s464
    %v466 = vmul.f32 %v462, %v465
    %v467 = vmul.f32 %v463, %v465
    %v468 = vadd.f32 %v436, %v466
    %v469 = vadd.f32 %v437, %v467
    %v470 = vld [vmem:[%s135] sm:$0xff]
    %v471 = vld [vmem:[%s135 + $0x8] sm:$0xff]
    %s472 = sld [smem:[#allocation3 + $0x8a]]
    %v473 = vstv %s472
    %v474 = vmul.f32 %v470, %v473
    %v475 = vmul.f32 %v471, %v473
    %v476 = vadd.f32 %v444, %v474
    %v477 = vadd.f32 %v445, %v475
    %v478 = vld [vmem:[%s144] sm:$0xff]
    %v479 = vld [vmem:[%s144 + $0x8] sm:$0xff]
    %s480 = sld [smem:[#allocation3 + $0x8b]]
    %v481 = vstv %s480
    %v482 = vmul.f32 %v478, %v481
    %v483 = vmul.f32 %v479, %v481
    %v484 = vadd.f32 %v452, %v482
    %v485 = vadd.f32 %v453, %v483
    %v486 = vld [vmem:[%s153] sm:$0xff]
    %v487 = vld [vmem:[%s153 + $0x8] sm:$0xff]
    %s488 = sld [smem:[#allocation3 + $0x8c]]
    %v489 = vstv %s488
    %v490 = vmul.f32 %v486, %v489
    %v491 = vmul.f32 %v487, %v489
    %v492 = vadd.f32 %v460, %v490
    %v493 = vadd.f32 %v461, %v491
    %v494 = vld [vmem:[%s162] sm:$0xff]
    %v495 = vld [vmem:[%s162 + $0x8] sm:$0xff]
    %s496 = sld [smem:[#allocation3 + $0x8d]]
    %v497 = vstv %s496
    %v498 = vmul.f32 %v494, %v497
    %v499 = vmul.f32 %v495, %v497
    %v500 = vadd.f32 %v468, %v498
    %v501 = vadd.f32 %v469, %v499
    %v502 = vld [vmem:[%s171] sm:$0xff]
    %v503 = vld [vmem:[%s171 + $0x8] sm:$0xff]
    %s504 = sld [smem:[#allocation3 + $0x8e]]
    %v505 = vstv %s504
    %v506 = vmul.f32 %v502, %v505
    %v507 = vmul.f32 %v503, %v505
    %v508 = vadd.f32 %v476, %v506
    %v509 = vadd.f32 %v477, %v507
    %v510 = vld [vmem:[%s180] sm:$0xff]
    %v511 = vld [vmem:[%s180 + $0x8] sm:$0xff]
    %s512 = sld [smem:[#allocation3 + $0x8f]]
    %v513 = vstv %s512
    %v514 = vmul.f32 %v510, %v513
    %v515 = vmul.f32 %v511, %v513
    %v516 = vadd.f32 %v484, %v514
    %v517 = vadd.f32 %v485, %v515
    %v518 = vld [vmem:[%s189] sm:$0xff]
    %v519 = vld [vmem:[%s189 + $0x8] sm:$0xff]
    %s520 = sld [smem:[#allocation3 + $0x90]]
    %v521 = vstv %s520
    %v522 = vmul.f32 %v518, %v521
    %v523 = vmul.f32 %v519, %v521
    %v524 = vadd.f32 %v492, %v522
    %v525 = vadd.f32 %v493, %v523
    %v526 = vld [vmem:[%s198] sm:$0xff]
    %v527 = vld [vmem:[%s198 + $0x8] sm:$0xff]
    %s528 = sld [smem:[#allocation3 + $0x91]]
    %v529 = vstv %s528
    %v530 = vmul.f32 %v526, %v529
    %v531 = vmul.f32 %v527, %v529
    %v532 = vadd.f32 %v500, %v530
    %v533 = vadd.f32 %v501, %v531
    %v534 = vld [vmem:[%s207] sm:$0xff]
    %v535 = vld [vmem:[%s207 + $0x8] sm:$0xff]
    %s536 = sld [smem:[#allocation3 + $0x92]]
    %v537 = vstv %s536
    %v538 = vmul.f32 %v534, %v537
    %v539 = vmul.f32 %v535, %v537
    %v540 = vadd.f32 %v508, %v538
    %v541 = vadd.f32 %v509, %v539
    %v542 = vld [vmem:[%s216] sm:$0xff]
    %v543 = vld [vmem:[%s216 + $0x8] sm:$0xff]
    %s544 = sld [smem:[#allocation3 + $0x93]]
    %v545 = vstv %s544
    %v546 = vmul.f32 %v542, %v545
    %v547 = vmul.f32 %v543, %v545
    %v548 = vadd.f32 %v516, %v546
    %v549 = vadd.f32 %v517, %v547
    %v550 = vld [vmem:[%s225] sm:$0xff]
    %v551 = vld [vmem:[%s225 + $0x8] sm:$0xff]
    %s552 = sld [smem:[#allocation3 + $0x94]]
    %v553 = vstv %s552
    %v554 = vmul.f32 %v550, %v553
    %v555 = vmul.f32 %v551, %v553
    %v556 = vadd.f32 %v524, %v554
    %v557 = vadd.f32 %v525, %v555
    %v558 = vld [vmem:[%s234] sm:$0xff]
    %v559 = vld [vmem:[%s234 + $0x8] sm:$0xff]
    %s560 = sld [smem:[#allocation3 + $0x95]]
    %v561 = vstv %s560
    %v562 = vmul.f32 %v558, %v561
    %v563 = vmul.f32 %v559, %v561
    %v564 = vadd.f32 %v532, %v562
    %v565 = vadd.f32 %v533, %v563
    %v566 = vld [vmem:[%s243] sm:$0xff]
    %v567 = vld [vmem:[%s243 + $0x8] sm:$0xff]
    %s568 = sld [smem:[#allocation3 + $0x96]]
    %v569 = vstv %s568
    %v570 = vmul.f32 %v566, %v569
    %v571 = vmul.f32 %v567, %v569
    %v572 = vadd.f32 %v540, %v570
    %v573 = vadd.f32 %v541, %v571
    %v574 = vld [vmem:[%s252] sm:$0xff]
    %v575 = vld [vmem:[%s252 + $0x8] sm:$0xff]
    %s576 = sld [smem:[#allocation3 + $0x97]]
    %v577 = vstv %s576
    %v578 = vmul.f32 %v574, %v577
    %v579 = vmul.f32 %v575, %v577
    %v580 = vadd.f32 %v548, %v578
    %v581 = vadd.f32 %v549, %v579
    %v582 = vld [vmem:[%s261] sm:$0xff]
    %v583 = vld [vmem:[%s261 + $0x8] sm:$0xff]
    %s584 = sld [smem:[#allocation3 + $0x98]]
    %v585 = vstv %s584
    %v586 = vmul.f32 %v582, %v585
    %v587 = vmul.f32 %v583, %v585
    %v588 = vadd.f32 %v556, %v586
    %v589 = vadd.f32 %v557, %v587
    %v590 = vld [vmem:[%s270] sm:$0xff]
    %v591 = vld [vmem:[%s270 + $0x8] sm:$0xff]
    %s592 = sld [smem:[#allocation3 + $0x99]]
    %v593 = vstv %s592
    %v594 = vmul.f32 %v590, %v593
    %v595 = vmul.f32 %v591, %v593
    %v596 = vadd.f32 %v564, %v594
    %v597 = vadd.f32 %v565, %v595
    %v598 = vld [vmem:[%s279] sm:$0xff]
    %v599 = vld [vmem:[%s279 + $0x8] sm:$0xff]
    %s600 = sld [smem:[#allocation3 + $0x9a]]
    %v601 = vstv %s600
    %v602 = vmul.f32 %v598, %v601
    %v603 = vmul.f32 %v599, %v601
    %v604 = vadd.f32 %v572, %v602
    %v605 = vadd.f32 %v573, %v603
    %v606 = vld [vmem:[%s288] sm:$0xff]
    %v607 = vld [vmem:[%s288 + $0x8] sm:$0xff]
    %s608 = sld [smem:[#allocation3 + $0x9b]]
    %v609 = vstv %s608
    %v610 = vmul.f32 %v606, %v609
    %v611 = vmul.f32 %v607, %v609
    %v612 = vadd.f32 %v580, %v610
    %v613 = vadd.f32 %v581, %v611
    %v614 = vld [vmem:[%s297] sm:$0xff]
    %v615 = vld [vmem:[%s297 + $0x8] sm:$0xff]
    %s616 = sld [smem:[#allocation3 + $0x9c]]
    %v617 = vstv %s616
    %v618 = vmul.f32 %v614, %v617
    %v619 = vmul.f32 %v615, %v617
    %v620 = vadd.f32 %v588, %v618
    %v621 = vadd.f32 %v589, %v619
    %v622 = vld [vmem:[%s306] sm:$0xff]
    %v623 = vld [vmem:[%s306 + $0x8] sm:$0xff]
    %s624 = sld [smem:[#allocation3 + $0x9d]]
    %v625 = vstv %s624
    %v626 = vmul.f32 %v622, %v625
    %v627 = vmul.f32 %v623, %v625
    %v628 = vadd.f32 %v596, %v626
    %v629 = vadd.f32 %v597, %v627
    %v630 = vld [vmem:[%s315] sm:$0xff]
    %v631 = vld [vmem:[%s315 + $0x8] sm:$0xff]
    %s632 = sld [smem:[#allocation3 + $0x9e]]
    %v633 = vstv %s632
    %v634 = vmul.f32 %v630, %v633
    %v635 = vmul.f32 %v631, %v633
    %v636 = vadd.f32 %v604, %v634
    %v637 = vadd.f32 %v605, %v635
    %v638 = vld [vmem:[%s324] sm:$0xff]
    %v639 = vld [vmem:[%s324 + $0x8] sm:$0xff]
    %s640 = sld [smem:[#allocation3 + $0x9f]]
    %v641 = vstv %s640
    %v642 = vmul.f32 %v638, %v641
    %v643 = vmul.f32 %v639, %v641
    %v644 = vadd.f32 %v612, %v642
    %v645 = vadd.f32 %v613, %v643
    %v646 = vld [vmem:[%s333] sm:$0xff]
    %v647 = vld [vmem:[%s333 + $0x8] sm:$0xff]
    %s648 = sld [smem:[#allocation3 + $0xa0]]
    %v649 = vstv %s648
    %v650 = vmul.f32 %v646, %v649
    %v651 = vmul.f32 %v647, %v649
    %v652 = vadd.f32 %v620, %v650
    %v653 = vadd.f32 %v621, %v651
    %v654 = vld [vmem:[%s342] sm:$0xff]
    %v655 = vld [vmem:[%s342 + $0x8] sm:$0xff]
    %s656 = sld [smem:[#allocation3 + $0xa1]]
    %v657 = vstv %s656
    %v658 = vmul.f32 %v654, %v657
    %v659 = vmul.f32 %v655, %v657
    %v660 = vadd.f32 %v628, %v658
    %v661 = vadd.f32 %v629, %v659
    %v662 = vld [vmem:[%s351] sm:$0xff]
    %v663 = vld [vmem:[%s351 + $0x8] sm:$0xff]
    %s664 = sld [smem:[#allocation3 + $0xa2]]
    %v665 = vstv %s664
    %v666 = vmul.f32 %v662, %v665
    %v667 = vmul.f32 %v663, %v665
    %v668 = vadd.f32 %v636, %v666
    %v669 = vadd.f32 %v637, %v667
    %v670 = vld [vmem:[%s360] sm:$0xff]
    %v671 = vld [vmem:[%s360 + $0x8] sm:$0xff]
    %s672 = sld [smem:[#allocation3 + $0xa3]]
    %v673 = vstv %s672
    %v674 = vmul.f32 %v670, %v673
    %v675 = vmul.f32 %v671, %v673
    %v676 = vadd.f32 %v644, %v674
    %v677 = vadd.f32 %v645, %v675
    %v678 = vadd.f32 %v652, %v660
    %v679 = vadd.f32 %v653, %v661
    %v680 = vadd.f32 %v668, %v676
    %v681 = vadd.f32 %v669, %v677
    %v682 = vadd.f32 %v678, %v680
    %v683 = vadd.f32 %v679, %v681
    %s684 = sld [smem:[#allocation5 + $0x1]]
    %v685 = vstv %s684
    %v686 = vadd.f32 %v682, %v685
    %v687 = vadd.f32 %v683, %v685
    %v688 = vmax.f32 %v686, 0.0
    %v689 = vmax.f32 %v687, 0.0
    %v690 = vpack.c.bf16 %v688, %v688
    %v691 = vpack.c.bf16 %v689, %v689
    %v694 = vunpack.c.l.b16 %v690
    %v695 = vunpack.c.l.b16 %v691
    %v696 = vpack.c.b16 %v695, %v694
    %698 = vst [vmem:[#allocation2 + $0x8] sm:$0xff] %v696
    %v699 = vld [vmem:[%s0] sm:$0xff]
    %v700 = vld [vmem:[%s0 + $0x8] sm:$0xff]
    %s701 = sld [smem:[#allocation3 + $0x100]]
    %v702 = vstv %s701
    %v703 = vmul.f32 %v699, %v702
    %v704 = vmul.f32 %v700, %v702
    %v705 = vadd.f32 %v703, 0.0
    %v706 = vadd.f32 %v704, 0.0
    %v707 = vld [vmem:[%s54] sm:$0xff]
    %v708 = vld [vmem:[%s54 + $0x8] sm:$0xff]
    %s709 = sld [smem:[#allocation3 + $0x101]]
    %v710 = vstv %s709
    %v711 = vmul.f32 %v707, %v710
    %v712 = vmul.f32 %v708, %v710
    %v713 = vadd.f32 %v711, 0.0
    %v714 = vadd.f32 %v712, 0.0
    %v715 = vld [vmem:[%s63] sm:$0xff]
    %v716 = vld [vmem:[%s63 + $0x8] sm:$0xff]
    %s717 = sld [smem:[#allocation3 + $0x102]]
    %v718 = vstv %s717
    %v719 = vmul.f32 %v715, %v718
    %v720 = vmul.f32 %v716, %v718
    %v721 = vadd.f32 %v719, 0.0
    %v722 = vadd.f32 %v720, 0.0
    %v723 = vld [vmem:[%s72] sm:$0xff]
    %v724 = vld [vmem:[%s72 + $0x8] sm:$0xff]
    %s725 = sld [smem:[#allocation3 + $0x103]]
    %v726 = vstv %s725
    %v727 = vmul.f32 %v723, %v726
    %v728 = vmul.f32 %v724, %v726
    %v729 = vadd.f32 %v727, 0.0
    %v730 = vadd.f32 %v728, 0.0
    %v731 = vld [vmem:[%s81] sm:$0xff]
    %v732 = vld [vmem:[%s81 + $0x8] sm:$0xff]
    %s733 = sld [smem:[#allocation3 + $0x104]]
    %v734 = vstv %s733
    %v735 = vmul.f32 %v731, %v734
    %v736 = vmul.f32 %v732, %v734
    %v737 = vadd.f32 %v705, %v735
    %v738 = vadd.f32 %v706, %v736
    %v739 = vld [vmem:[%s90] sm:$0xff]
    %v740 = vld [vmem:[%s90 + $0x8] sm:$0xff]
    %s741 = sld [smem:[#allocation3 + $0x105]]
    %v742 = vstv %s741
    %v743 = vmul.f32 %v739, %v742
    %v744 = vmul.f32 %v740, %v742
    %v745 = vadd.f32 %v713, %v743
    %v746 = vadd.f32 %v714, %v744
    %v747 = vld [vmem:[%s99] sm:$0xff]
    %v748 = vld [vmem:[%s99 + $0x8] sm:$0xff]
    %s749 = sld [smem:[#allocation3 + $0x106]]
    %v750 = vstv %s749
    %v751 = vmul.f32 %v747, %v750
    %v752 = vmul.f32 %v748, %v750
    %v753 = vadd.f32 %v721, %v751
    %v754 = vadd.f32 %v722, %v752
    %v755 = vld [vmem:[%s108] sm:$0xff]
    %v756 = vld [vmem:[%s108 + $0x8] sm:$0xff]
    %s757 = sld [smem:[#allocation3 + $0x107]]
    %v758 = vstv %s757
    %v759 = vmul.f32 %v755, %v758
    %v760 = vmul.f32 %v756, %v758
    %v761 = vadd.f32 %v729, %v759
    %v762 = vadd.f32 %v730, %v760
    %v763 = vld [vmem:[%s117] sm:$0xff]
    %v764 = vld [vmem:[%s117 + $0x8] sm:$0xff]
    %s765 = sld [smem:[#allocation3 + $0x108]]
    %v766 = vstv %s765
    %v767 = vmul.f32 %v763, %v766
    %v768 = vmul.f32 %v764, %v766
    %v769 = vadd.f32 %v737, %v767
    %v770 = vadd.f32 %v738, %v768
    %v771 = vld [vmem:[%s126] sm:$0xff]
    %v772 = vld [vmem:[%s126 + $0x8] sm:$0xff]
    %s773 = sld [smem:[#allocation3 + $0x109]]
    %v774 = vstv %s773
    %v775 = vmul.f32 %v771, %v774
    %v776 = vmul.f32 %v772, %v774
    %v777 = vadd.f32 %v745, %v775
    %v778 = vadd.f32 %v746, %v776
    %v779 = vld [vmem:[%s135] sm:$0xff]
    %v780 = vld [vmem:[%s135 + $0x8] sm:$0xff]
    %s781 = sld [smem:[#allocation3 + $0x10a]]
    %v782 = vstv %s781
    %v783 = vmul.f32 %v779, %v782
    %v784 = vmul.f32 %v780, %v782
    %v785 = vadd.f32 %v753, %v783
    %v786 = vadd.f32 %v754, %v784
    %v787 = vld [vmem:[%s144] sm:$0xff]
    %v788 = vld [vmem:[%s144 + $0x8] sm:$0xff]
    %s789 = sld [smem:[#allocation3 + $0x10b]]
    %v790 = vstv %s789
    %v791 = vmul.f32 %v787, %v790
    %v792 = vmul.f32 %v788, %v790
    %v793 = vadd.f32 %v761, %v791
    %v794 = vadd.f32 %v762, %v792
    %v795 = vld [vmem:[%s153] sm:$0xff]
    %v796 = vld [vmem:[%s153 + $0x8] sm:$0xff]
    %s797 = sld [smem:[#allocation3 + $0x10c]]
    %v798 = vstv %s797
    %v799 = vmul.f32 %v795, %v798
    %v800 = vmul.f32 %v796, %v798
    %v801 = vadd.f32 %v769, %v799
    %v802 = vadd.f32 %v770, %v800
    %v803 = vld [vmem:[%s162] sm:$0xff]
    %v804 = vld [vmem:[%s162 + $0x8] sm:$0xff]
    %s805 = sld [smem:[#allocation3 + $0x10d]]
    %v806 = vstv %s805
    %v807 = vmul.f32 %v803, %v806
    %v808 = vmul.f32 %v804, %v806
    %v809 = vadd.f32 %v777, %v807
    %v810 = vadd.f32 %v778, %v808
    %v811 = vld [vmem:[%s171] sm:$0xff]
    %v812 = vld [vmem:[%s171 + $0x8] sm:$0xff]
    %s813 = sld [smem:[#allocation3 + $0x10e]]
    %v814 = vstv %s813
    %v815 = vmul.f32 %v811, %v814
    %v816 = vmul.f32 %v812, %v814
    %v817 = vadd.f32 %v785, %v815
    %v818 = vadd.f32 %v786, %v816
    %v819 = vld [vmem:[%s180] sm:$0xff]
    %v820 = vld [vmem:[%s180 + $0x8] sm:$0xff]
    %s821 = sld [smem:[#allocation3 + $0x10f]]
    %v822 = vstv %s821
    %v823 = vmul.f32 %v819, %v822
    %v824 = vmul.f32 %v820, %v822
    %v825 = vadd.f32 %v793, %v823
    %v826 = vadd.f32 %v794, %v824
    %v827 = vld [vmem:[%s189] sm:$0xff]
    %v828 = vld [vmem:[%s189 + $0x8] sm:$0xff]
    %s829 = sld [smem:[#allocation3 + $0x110]]
    %v830 = vstv %s829
    %v831 = vmul.f32 %v827, %v830
    %v832 = vmul.f32 %v828, %v830
    %v833 = vadd.f32 %v801, %v831
    %v834 = vadd.f32 %v802, %v832
    %v835 = vld [vmem:[%s198] sm:$0xff]
    %v836 = vld [vmem:[%s198 + $0x8] sm:$0xff]
    %s837 = sld [smem:[#allocation3 + $0x111]]
    %v838 = vstv %s837
    %v839 = vmul.f32 %v835, %v838
    %v840 = vmul.f32 %v836, %v838
    %v841 = vadd.f32 %v809, %v839
    %v842 = vadd.f32 %v810, %v840
    %v843 = vld [vmem:[%s207] sm:$0xff]
    %v844 = vld [vmem:[%s207 + $0x8] sm:$0xff]
    %s845 = sld [smem:[#allocation3 + $0x112]]
    %v846 = vstv %s845
    %v847 = vmul.f32 %v843, %v846
    %v848 = vmul.f32 %v844, %v846
    %v849 = vadd.f32 %v817, %v847
    %v850 = vadd.f32 %v818, %v848
    %v851 = vld [vmem:[%s216] sm:$0xff]
    %v852 = vld [vmem:[%s216 + $0x8] sm:$0xff]
    %s853 = sld [smem:[#allocation3 + $0x113]]
    %v854 = vstv %s853
    %v855 = vmul.f32 %v851, %v854
    %v856 = vmul.f32 %v852, %v854
    %v857 = vadd.f32 %v825, %v855
    %v858 = vadd.f32 %v826, %v856
    %v859 = vld [vmem:[%s225] sm:$0xff]
    %v860 = vld [vmem:[%s225 + $0x8] sm:$0xff]
    %s861 = sld [smem:[#allocation3 + $0x114]]
    %v862 = vstv %s861
    %v863 = vmul.f32 %v859, %v862
    %v864 = vmul.f32 %v860, %v862
    %v865 = vadd.f32 %v833, %v863
    %v866 = vadd.f32 %v834, %v864
    %v867 = vld [vmem:[%s234] sm:$0xff]
    %v868 = vld [vmem:[%s234 + $0x8] sm:$0xff]
    %s869 = sld [smem:[#allocation3 + $0x115]]
    %v870 = vstv %s869
    %v871 = vmul.f32 %v867, %v870
    %v872 = vmul.f32 %v868, %v870
    %v873 = vadd.f32 %v841, %v871
    %v874 = vadd.f32 %v842, %v872
    %v875 = vld [vmem:[%s243] sm:$0xff]
    %v876 = vld [vmem:[%s243 + $0x8] sm:$0xff]
    %s877 = sld [smem:[#allocation3 + $0x116]]
    %v878 = vstv %s877
    %v879 = vmul.f32 %v875, %v878
    %v880 = vmul.f32 %v876, %v878
    %v881 = vadd.f32 %v849, %v879
    %v882 = vadd.f32 %v850, %v880
    %v883 = vld [vmem:[%s252] sm:$0xff]
    %v884 = vld [vmem:[%s252 + $0x8] sm:$0xff]
    %s885 = sld [smem:[#allocation3 + $0x117]]
    %v886 = vstv %s885
    %v887 = vmul.f32 %v883, %v886
    %v888 = vmul.f32 %v884, %v886
    %v889 = vadd.f32 %v857, %v887
    %v890 = vadd.f32 %v858, %v888
    %v891 = vld [vmem:[%s261] sm:$0xff]
    %v892 = vld [vmem:[%s261 + $0x8] sm:$0xff]
    %s893 = sld [smem:[#allocation3 + $0x118]]
    %v894 = vstv %s893
    %v895 = vmul.f32 %v891, %v894
    %v896 = vmul.f32 %v892, %v894
    %v897 = vadd.f32 %v865, %v895
    %v898 = vadd.f32 %v866, %v896
    %v899 = vld [vmem:[%s270] sm:$0xff]
    %v900 = vld [vmem:[%s270 + $0x8] sm:$0xff]
    %s901 = sld [smem:[#allocation3 + $0x119]]
    %v902 = vstv %s901
    %v903 = vmul.f32 %v899, %v902
    %v904 = vmul.f32 %v900, %v902
    %v905 = vadd.f32 %v873, %v903
    %v906 = vadd.f32 %v874, %v904
    %v907 = vld [vmem:[%s279] sm:$0xff]
    %v908 = vld [vmem:[%s279 + $0x8] sm:$0xff]
    %s909 = sld [smem:[#allocation3 + $0x11a]]
    %v910 = vstv %s909
    %v911 = vmul.f32 %v907, %v910
    %v912 = vmul.f32 %v908, %v910
    %v913 = vadd.f32 %v881, %v911
    %v914 = vadd.f32 %v882, %v912
    %v915 = vld [vmem:[%s288] sm:$0xff]
    %v916 = vld [vmem:[%s288 + $0x8] sm:$0xff]
    %s917 = sld [smem:[#allocation3 + $0x11b]]
    %v918 = vstv %s917
    %v919 = vmul.f32 %v915, %v918
    %v920 = vmul.f32 %v916, %v918
    %v921 = vadd.f32 %v889, %v919
    %v922 = vadd.f32 %v890, %v920
    %v923 = vld [vmem:[%s297] sm:$0xff]
    %v924 = vld [vmem:[%s297 + $0x8] sm:$0xff]
    %s925 = sld [smem:[#allocation3 + $0x11c]]
    %v926 = vstv %s925
    %v927 = vmul.f32 %v923, %v926
    %v928 = vmul.f32 %v924, %v926
    %v929 = vadd.f32 %v897, %v927
    %v930 = vadd.f32 %v898, %v928
    %v931 = vld [vmem:[%s306] sm:$0xff]
    %v932 = vld [vmem:[%s306 + $0x8] sm:$0xff]
    %s933 = sld [smem:[#allocation3 + $0x11d]]
    %v934 = vstv %s933
    %v935 = vmul.f32 %v931, %v934
    %v936 = vmul.f32 %v932, %v934
    %v937 = vadd.f32 %v905, %v935
    %v938 = vadd.f32 %v906, %v936
    %v939 = vld [vmem:[%s315] sm:$0xff]
    %v940 = vld [vmem:[%s315 + $0x8] sm:$0xff]
    %s941 = sld [smem:[#allocation3 + $0x11e]]
    %v942 = vstv %s941
    %v943 = vmul.f32 %v939, %v942
    %v944 = vmul.f32 %v940, %v942
    %v945 = vadd.f32 %v913, %v943
    %v946 = vadd.f32 %v914, %v944
    %v947 = vld [vmem:[%s324] sm:$0xff]
    %v948 = vld [vmem:[%s324 + $0x8] sm:$0xff]
    %s949 = sld [smem:[#allocation3 + $0x11f]]
    %v950 = vstv %s949
    %v951 = vmul.f32 %v947, %v950
    %v952 = vmul.f32 %v948, %v950
    %v953 = vadd.f32 %v921, %v951
    %v954 = vadd.f32 %v922, %v952
    %v955 = vld [vmem:[%s333] sm:$0xff]
    %v956 = vld [vmem:[%s333 + $0x8] sm:$0xff]
    %s957 = sld [smem:[#allocation3 + $0x120]]
    %v958 = vstv %s957
    %v959 = vmul.f32 %v955, %v958
    %v960 = vmul.f32 %v956, %v958
    %v961 = vadd.f32 %v929, %v959
    %v962 = vadd.f32 %v930, %v960
    %v963 = vld [vmem:[%s342] sm:$0xff]
    %v964 = vld [vmem:[%s342 + $0x8] sm:$0xff]
    %s965 = sld [smem:[#allocation3 + $0x121]]
    %v966 = vstv %s965
    %v967 = vmul.f32 %v963, %v966
    %v968 = vmul.f32 %v964, %v966
    %v969 = vadd.f32 %v937, %v967
    %v970 = vadd.f32 %v938, %v968
    %v971 = vld [vmem:[%s351] sm:$0xff]
    %v972 = vld [vmem:[%s351 + $0x8] sm:$0xff]
    %s973 = sld [smem:[#allocation3 + $0x122]]
    %v974 = vstv %s973
    %v975 = vmul.f32 %v971, %v974
    %v976 = vmul.f32 %v972, %v974
    %v977 = vadd.f32 %v945, %v975
    %v978 = vadd.f32 %v946, %v976
    %v979 = vld [vmem:[%s360] sm:$0xff]
    %v980 = vld [vmem:[%s360 + $0x8] sm:$0xff]
    %s981 = sld [smem:[#allocation3 + $0x123]]
    %v982 = vstv %s981
    %v983 = vmul.f32 %v979, %v982
    %v984 = vmul.f32 %v980, %v982
    %v985 = vadd.f32 %v953, %v983
    %v986 = vadd.f32 %v954, %v984
    %v987 = vadd.f32 %v961, %v969
    %v988 = vadd.f32 %v962, %v970
    %v989 = vadd.f32 %v977, %v985
    %v990 = vadd.f32 %v978, %v986
    %v991 = vadd.f32 %v987, %v989
    %v992 = vadd.f32 %v988, %v990
    %s993 = sld [smem:[#allocation5 + $0x2]]
    %v994 = vstv %s993
    %v995 = vadd.f32 %v991, %v994
    %v996 = vadd.f32 %v992, %v994
    %v997 = vmax.f32 %v995, 0.0
    %v998 = vmax.f32 %v996, 0.0
    %v999 = vpack.c.bf16 %v997, %v997
    %v1000 = vpack.c.bf16 %v998, %v998
    %v1003 = vunpack.c.l.b16 %v999
    %v1004 = vunpack.c.l.b16 %v1000
    %v1005 = vpack.c.b16 %v1004, %v1003
    %1007 = vst [vmem:[#allocation2 + $0x10] sm:$0xff] %v1005
    %v1008 = vld [vmem:[%s0] sm:$0xff]
    %v1009 = vld [vmem:[%s0 + $0x8] sm:$0xff]
    %s1010 = sld [smem:[#allocation3 + $0x180]]
    %v1011 = vstv %s1010
    %v1012 = vmul.f32 %v1008, %v1011
    %v1013 = vmul.f32 %v1009, %v1011
    %v1014 = vadd.f32 %v1012, 0.0
    %v1015 = vadd.f32 %v1013, 0.0
    %v1016 = vld [vmem:[%s54] sm:$0xff]
    %v1017 = vld [vmem:[%s54 + $0x8] sm:$0xff]
    %s1018 = sld [smem:[#allocation3 + $0x181]]
    %v1019 = vstv %s1018
    %v1020 = vmul.f32 %v1016, %v1019
    %v1021 = vmul.f32 %v1017, %v1019
    %v1022 = vadd.f32 %v1020, 0.0
    %v1023 = vadd.f32 %v1021, 0.0
    %v1024 = vld [vmem:[%s63] sm:$0xff]
    %v1025 = vld [vmem:[%s63 + $0x8] sm:$0xff]
    %s1026 = sld [smem:[#allocation3 + $0x182]]
    %v1027 = vstv %s1026
    %v1028 = vmul.f32 %v1024, %v1027
    %v1029 = vmul.f32 %v1025, %v1027
    %v1030 = vadd.f32 %v1028, 0.0
    %v1031 = vadd.f32 %v1029, 0.0
    %v1032 = vld [vmem:[%s72] sm:$0xff]
    %v1033 = vld [vmem:[%s72 + $0x8] sm:$0xff]
    %s1034 = sld [smem:[#allocation3 + $0x183]]
    %v1035 = vstv %s1034
    %v1036 = vmul.f32 %v1032, %v1035
    %v1037 = vmul.f32 %v1033, %v1035
    %v1038 = vadd.f32 %v1036, 0.0
    %v1039 = vadd.f32 %v1037, 0.0
    %v1040 = vld [vmem:[%s81] sm:$0xff]
    %v1041 = vld [vmem:[%s81 + $0x8] sm:$0xff]
    %s1042 = sld [smem:[#allocation3 + $0x184]]
    %v1043 = vstv %s1042
    %v1044 = vmul.f32 %v1040, %v1043
    %v1045 = vmul.f32 %v1041, %v1043
    %v1046 = vadd.f32 %v1014, %v1044
    %v1047 = vadd.f32 %v1015, %v1045
    %v1048 = vld [vmem:[%s90] sm:$0xff]
    %v1049 = vld [vmem:[%s90 + $0x8] sm:$0xff]
    %s1050 = sld [smem:[#allocation3 + $0x185]]
    %v1051 = vstv %s1050
    %v1052 = vmul.f32 %v1048, %v1051
    %v1053 = vmul.f32 %v1049, %v1051
    %v1054 = vadd.f32 %v1022, %v1052
    %v1055 = vadd.f32 %v1023, %v1053
    %v1056 = vld [vmem:[%s99] sm:$0xff]
    %v1057 = vld [vmem:[%s99 + $0x8] sm:$0xff]
    %s1058 = sld [smem:[#allocation3 + $0x186]]
    %v1059 = vstv %s1058
    %v1060 = vmul.f32 %v1056, %v1059
    %v1061 = vmul.f32 %v1057, %v1059
    %v1062 = vadd.f32 %v1030, %v1060
    %v1063 = vadd.f32 %v1031, %v1061
    %v1064 = vld [vmem:[%s108] sm:$0xff]
    %v1065 = vld [vmem:[%s108 + $0x8] sm:$0xff]
    %s1066 = sld [smem:[#allocation3 + $0x187]]
    %v1067 = vstv %s1066
    %v1068 = vmul.f32 %v1064, %v1067
    %v1069 = vmul.f32 %v1065, %v1067
    %v1070 = vadd.f32 %v1038, %v1068
    %v1071 = vadd.f32 %v1039, %v1069
    %v1072 = vld [vmem:[%s117] sm:$0xff]
    %v1073 = vld [vmem:[%s117 + $0x8] sm:$0xff]
    %s1074 = sld [smem:[#allocation3 + $0x188]]
    %v1075 = vstv %s1074
    %v1076 = vmul.f32 %v1072, %v1075
    %v1077 = vmul.f32 %v1073, %v1075
    %v1078 = vadd.f32 %v1046, %v1076
    %v1079 = vadd.f32 %v1047, %v1077
    %v1080 = vld [vmem:[%s126] sm:$0xff]
    %v1081 = vld [vmem:[%s126 + $0x8] sm:$0xff]
    %s1082 = sld [smem:[#allocation3 + $0x189]]
    %v1083 = vstv %s1082
    %v1084 = vmul.f32 %v1080, %v1083
    %v1085 = vmul.f32 %v1081, %v1083
    %v1086 = vadd.f32 %v1054, %v1084
    %v1087 = vadd.f32 %v1055, %v1085
    %v1088 = vld [vmem:[%s135] sm:$0xff]
    %v1089 = vld [vmem:[%s135 + $0x8] sm:$0xff]
    %s1090 = sld [smem:[#allocation3 + $0x18a]]
    %v1091 = vstv %s1090
    %v1092 = vmul.f32 %v1088, %v1091
    %v1093 = vmul.f32 %v1089, %v1091
    %v1094 = vadd.f32 %v1062, %v1092
    %v1095 = vadd.f32 %v1063, %v1093
    %v1096 = vld [vmem:[%s144] sm:$0xff]
    %v1097 = vld [vmem:[%s144 + $0x8] sm:$0xff]
    %s1098 = sld [smem:[#allocation3 + $0x18b]]
    %v1099 = vstv %s1098
    %v1100 = vmul.f32 %v1096, %v1099
    %v1101 = vmul.f32 %v1097, %v1099
    %v1102 = vadd.f32 %v1070, %v1100
    %v1103 = vadd.f32 %v1071, %v1101
    %v1104 = vld [vmem:[%s153] sm:$0xff]
    %v1105 = vld [vmem:[%s153 + $0x8] sm:$0xff]
    %s1106 = sld [smem:[#allocation3 + $0x18c]]
    %v1107 = vstv %s1106
    %v1108 = vmul.f32 %v1104, %v1107
    %v1109 = vmul.f32 %v1105, %v1107
    %v1110 = vadd.f32 %v1078, %v1108
    %v1111 = vadd.f32 %v1079, %v1109
    %v1112 = vld [vmem:[%s162] sm:$0xff]
    %v1113 = vld [vmem:[%s162 + $0x8] sm:$0xff]
    %s1114 = sld [smem:[#allocation3 + $0x18d]]
    %v1115 = vstv %s1114
    %v1116 = vmul.f32 %v1112, %v1115
    %v1117 = vmul.f32 %v1113, %v1115
    %v1118 = vadd.f32 %v1086, %v1116
    %v1119 = vadd.f32 %v1087, %v1117
    %v1120 = vld [vmem:[%s171] sm:$0xff]
    %v1121 = vld [vmem:[%s171 + $0x8] sm:$0xff]
    %s1122 = sld [smem:[#allocation3 + $0x18e]]
    %v1123 = vstv %s1122
    %v1124 = vmul.f32 %v1120, %v1123
    %v1125 = vmul.f32 %v1121, %v1123
    %v1126 = vadd.f32 %v1094, %v1124
    %v1127 = vadd.f32 %v1095, %v1125
    %v1128 = vld [vmem:[%s180] sm:$0xff]
    %v1129 = vld [vmem:[%s180 + $0x8] sm:$0xff]
    %s1130 = sld [smem:[#allocation3 + $0x18f]]
    %v1131 = vstv %s1130
    %v1132 = vmul.f32 %v1128, %v1131
    %v1133 = vmul.f32 %v1129, %v1131
    %v1134 = vadd.f32 %v1102, %v1132
    %v1135 = vadd.f32 %v1103, %v1133
    %v1136 = vld [vmem:[%s189] sm:$0xff]
    %v1137 = vld [vmem:[%s189 + $0x8] sm:$0xff]
    %s1138 = sld [smem:[#allocation3 + $0x190]]
    %v1139 = vstv %s1138
    %v1140 = vmul.f32 %v1136, %v1139
    %v1141 = vmul.f32 %v1137, %v1139
    %v1142 = vadd.f32 %v1110, %v1140
    %v1143 = vadd.f32 %v1111, %v1141
    %v1144 = vld [vmem:[%s198] sm:$0xff]
    %v1145 = vld [vmem:[%s198 + $0x8] sm:$0xff]
    %s1146 = sld [smem:[#allocation3 + $0x191]]
    %v1147 = vstv %s1146
    %v1148 = vmul.f32 %v1144, %v1147
    %v1149 = vmul.f32 %v1145, %v1147
    %v1150 = vadd.f32 %v1118, %v1148
    %v1151 = vadd.f32 %v1119, %v1149
    %v1152 = vld [vmem:[%s207] sm:$0xff]
    %v1153 = vld [vmem:[%s207 + $0x8] sm:$0xff]
    %s1154 = sld [smem:[#allocation3 + $0x192]]
    %v1155 = vstv %s1154
    %v1156 = vmul.f32 %v1152, %v1155
    %v1157 = vmul.f32 %v1153, %v1155
    %v1158 = vadd.f32 %v1126, %v1156
    %v1159 = vadd.f32 %v1127, %v1157
    %v1160 = vld [vmem:[%s216] sm:$0xff]
    %v1161 = vld [vmem:[%s216 + $0x8] sm:$0xff]
    %s1162 = sld [smem:[#allocation3 + $0x193]]
    %v1163 = vstv %s1162
    %v1164 = vmul.f32 %v1160, %v1163
    %v1165 = vmul.f32 %v1161, %v1163
    %v1166 = vadd.f32 %v1134, %v1164
    %v1167 = vadd.f32 %v1135, %v1165
    %v1168 = vld [vmem:[%s225] sm:$0xff]
    %v1169 = vld [vmem:[%s225 + $0x8] sm:$0xff]
    %s1170 = sld [smem:[#allocation3 + $0x194]]
    %v1171 = vstv %s1170
    %v1172 = vmul.f32 %v1168, %v1171
    %v1173 = vmul.f32 %v1169, %v1171
    %v1174 = vadd.f32 %v1142, %v1172
    %v1175 = vadd.f32 %v1143, %v1173
    %v1176 = vld [vmem:[%s234] sm:$0xff]
    %v1177 = vld [vmem:[%s234 + $0x8] sm:$0xff]
    %s1178 = sld [smem:[#allocation3 + $0x195]]
    %v1179 = vstv %s1178
    %v1180 = vmul.f32 %v1176, %v1179
    %v1181 = vmul.f32 %v1177, %v1179
    %v1182 = vadd.f32 %v1150, %v1180
    %v1183 = vadd.f32 %v1151, %v1181
    %v1184 = vld [vmem:[%s243] sm:$0xff]
    %v1185 = vld [vmem:[%s243 + $0x8] sm:$0xff]
    %s1186 = sld [smem:[#allocation3 + $0x196]]
    %v1187 = vstv %s1186
    %v1188 = vmul.f32 %v1184, %v1187
    %v1189 = vmul.f32 %v1185, %v1187
    %v1190 = vadd.f32 %v1158, %v1188
    %v1191 = vadd.f32 %v1159, %v1189
    %v1192 = vld [vmem:[%s252] sm:$0xff]
    %v1193 = vld [vmem:[%s252 + $0x8] sm:$0xff]
    %s1194 = sld [smem:[#allocation3 + $0x197]]
    %v1195 = vstv %s1194
    %v1196 = vmul.f32 %v1192, %v1195
    %v1197 = vmul.f32 %v1193, %v1195
    %v1198 = vadd.f32 %v1166, %v1196
    %v1199 = vadd.f32 %v1167, %v1197
    %v1200 = vld [vmem:[%s261] sm:$0xff]
    %v1201 = vld [vmem:[%s261 + $0x8] sm:$0xff]
    %s1202 = sld [smem:[#allocation3 + $0x198]]
    %v1203 = vstv %s1202
    %v1204 = vmul.f32 %v1200, %v1203
    %v1205 = vmul.f32 %v1201, %v1203
    %v1206 = vadd.f32 %v1174, %v1204
    %v1207 = vadd.f32 %v1175, %v1205
    %v1208 = vld [vmem:[%s270] sm:$0xff]
    %v1209 = vld [vmem:[%s270 + $0x8] sm:$0xff]
    %s1210 = sld [smem:[#allocation3 + $0x199]]
    %v1211 = vstv %s1210
    %v1212 = vmul.f32 %v1208, %v1211
    %v1213 = vmul.f32 %v1209, %v1211
    %v1214 = vadd.f32 %v1182, %v1212
    %v1215 = vadd.f32 %v1183, %v1213
    %v1216 = vld [vmem:[%s279] sm:$0xff]
    %v1217 = vld [vmem:[%s279 + $0x8] sm:$0xff]
    %s1218 = sld [smem:[#allocation3 + $0x19a]]
    %v1219 = vstv %s1218
    %v1220 = vmul.f32 %v1216, %v1219
    %v1221 = vmul.f32 %v1217, %v1219
    %v1222 = vadd.f32 %v1190, %v1220
    %v1223 = vadd.f32 %v1191, %v1221
    %v1224 = vld [vmem:[%s288] sm:$0xff]
    %v1225 = vld [vmem:[%s288 + $0x8] sm:$0xff]
    %s1226 = sld [smem:[#allocation3 + $0x19b]]
    %v1227 = vstv %s1226
    %v1228 = vmul.f32 %v1224, %v1227
    %v1229 = vmul.f32 %v1225, %v1227
    %v1230 = vadd.f32 %v1198, %v1228
    %v1231 = vadd.f32 %v1199, %v1229
    %v1232 = vld [vmem:[%s297] sm:$0xff]
    %v1233 = vld [vmem:[%s297 + $0x8] sm:$0xff]
    %s1234 = sld [smem:[#allocation3 + $0x19c]]
    %v1235 = vstv %s1234
    %v1236 = vmul.f32 %v1232, %v1235
    %v1237 = vmul.f32 %v1233, %v1235
    %v1238 = vadd.f32 %v1206, %v1236
    %v1239 = vadd.f32 %v1207, %v1237
    %v1240 = vld [vmem:[%s306] sm:$0xff]
    %v1241 = vld [vmem:[%s306 + $0x8] sm:$0xff]
    %s1242 = sld [smem:[#allocation3 + $0x19d]]
    %v1243 = vstv %s1242
    %v1244 = vmul.f32 %v1240, %v1243
    %v1245 = vmul.f32 %v1241, %v1243
    %v1246 = vadd.f32 %v1214, %v1244
    %v1247 = vadd.f32 %v1215, %v1245
    %v1248 = vld [vmem:[%s315] sm:$0xff]
    %v1249 = vld [vmem:[%s315 + $0x8] sm:$0xff]
    %s1250 = sld [smem:[#allocation3 + $0x19e]]
    %v1251 = vstv %s1250
    %v1252 = vmul.f32 %v1248, %v1251
    %v1253 = vmul.f32 %v1249, %v1251
    %v1254 = vadd.f32 %v1222, %v1252
    %v1255 = vadd.f32 %v1223, %v1253
    %v1256 = vld [vmem:[%s324] sm:$0xff]
    %v1257 = vld [vmem:[%s324 + $0x8] sm:$0xff]
    %s1258 = sld [smem:[#allocation3 + $0x19f]]
    %v1259 = vstv %s1258
    %v1260 = vmul.f32 %v1256, %v1259
    %v1261 = vmul.f32 %v1257, %v1259
    %v1262 = vadd.f32 %v1230, %v1260
    %v1263 = vadd.f32 %v1231, %v1261
    %v1264 = vld [vmem:[%s333] sm:$0xff]
    %v1265 = vld [vmem:[%s333 + $0x8] sm:$0xff]
    %s1266 = sld [smem:[#allocation3 + $0x1a0]]
    %v1267 = vstv %s1266
    %v1268 = vmul.f32 %v1264, %v1267
    %v1269 = vmul.f32 %v1265, %v1267
    %v1270 = vadd.f32 %v1238, %v1268
    %v1271 = vadd.f32 %v1239, %v1269
    %v1272 = vld [vmem:[%s342] sm:$0xff]
    %v1273 = vld [vmem:[%s342 + $0x8] sm:$0xff]
    %s1274 = sld [smem:[#allocation3 + $0x1a1]]
    %v1275 = vstv %s1274
    %v1276 = vmul.f32 %v1272, %v1275
    %v1277 = vmul.f32 %v1273, %v1275
    %v1278 = vadd.f32 %v1246, %v1276
    %v1279 = vadd.f32 %v1247, %v1277
    %v1280 = vld [vmem:[%s351] sm:$0xff]
    %v1281 = vld [vmem:[%s351 + $0x8] sm:$0xff]
    %s1282 = sld [smem:[#allocation3 + $0x1a2]]
    %v1283 = vstv %s1282
    %v1284 = vmul.f32 %v1280, %v1283
    %v1285 = vmul.f32 %v1281, %v1283
    %v1286 = vadd.f32 %v1254, %v1284
    %v1287 = vadd.f32 %v1255, %v1285
    %v1288 = vld [vmem:[%s360] sm:$0xff]
    %v1289 = vld [vmem:[%s360 + $0x8] sm:$0xff]
    %s1290 = sld [smem:[#allocation3 + $0x1a3]]
    %v1291 = vstv %s1290
    %v1292 = vmul.f32 %v1288, %v1291
    %v1293 = vmul.f32 %v1289, %v1291
    %v1294 = vadd.f32 %v1262, %v1292
    %v1295 = vadd.f32 %v1263, %v1293
    %v1296 = vadd.f32 %v1270, %v1278
    %v1297 = vadd.f32 %v1271, %v1279
    %v1298 = vadd.f32 %v1286, %v1294
    %v1299 = vadd.f32 %v1287, %v1295
    %v1300 = vadd.f32 %v1296, %v1298
    %v1301 = vadd.f32 %v1297, %v1299
    %s1302 = sld [smem:[#allocation5 + $0x3]]
    %v1303 = vstv %s1302
    %v1304 = vadd.f32 %v1300, %v1303
    %v1305 = vadd.f32 %v1301, %v1303
    %v1306 = vmax.f32 %v1304, 0.0
    %v1307 = vmax.f32 %v1305, 0.0
    %v1308 = vpack.c.bf16 %v1306, %v1306
    %v1309 = vpack.c.bf16 %v1307, %v1307
    %v1312 = vunpack.c.l.b16 %v1308
    %v1313 = vunpack.c.l.b16 %v1309
    %v1314 = vpack.c.b16 %v1313, %v1312
    %1316 = vst [vmem:[#allocation2 + $0x18] sm:$0xff] %v1314
    %v1317 = vld [vmem:[%s0] sm:$0xff]
    %v1318 = vld [vmem:[%s0 + $0x8] sm:$0xff]
    %s1319 = sld [smem:[#allocation3 + $0x200]]
    %v1320 = vstv %s1319
    %v1321 = vmul.f32 %v1317, %v1320
    %v1322 = vmul.f32 %v1318, %v1320
    %v1323 = vadd.f32 %v1321, 0.0
    %v1324 = vadd.f32 %v1322, 0.0
    %v1325 = vld [vmem:[%s54] sm:$0xff]
    %v1326 = vld [vmem:[%s54 + $0x8] sm:$0xff]
    %s1327 = sld [smem:[#allocation3 + $0x201]]
    %v1328 = vstv %s1327
    %v1329 = vmul.f32 %v1325, %v1328
    %v1330 = vmul.f32 %v1326, %v1328
    %v1331 = vadd.f32 %v1329, 0.0
    %v1332 = vadd.f32 %v1330, 0.0
    %v1333 = vld [vmem:[%s63] sm:$0xff]
    %v1334 = vld [vmem:[%s63 + $0x8] sm:$0xff]
    %s1335 = sld [smem:[#allocation3 + $0x202]]
    %v1336 = vstv %s1335
    %v1337 = vmul.f32 %v1333, %v1336
    %v1338 = vmul.f32 %v1334, %v1336
    %v1339 = vadd.f32 %v1337, 0.0
    %v1340 = vadd.f32 %v1338, 0.0
    %v1341 = vld [vmem:[%s72] sm:$0xff]
    %v1342 = vld [vmem:[%s72 + $0x8] sm:$0xff]
    %s1343 = sld [smem:[#allocation3 + $0x203]]
    %v1344 = vstv %s1343
    %v1345 = vmul.f32 %v1341, %v1344
    %v1346 = vmul.f32 %v1342, %v1344
    %v1347 = vadd.f32 %v1345, 0.0
    %v1348 = vadd.f32 %v1346, 0.0
    %v1349 = vld [vmem:[%s81] sm:$0xff]
    %v1350 = vld [vmem:[%s81 + $0x8] sm:$0xff]
    %s1351 = sld [smem:[#allocation3 + $0x204]]
    %v1352 = vstv %s1351
    %v1353 = vmul.f32 %v1349, %v1352
    %v1354 = vmul.f32 %v1350, %v1352
    %v1355 = vadd.f32 %v1323, %v1353
    %v1356 = vadd.f32 %v1324, %v1354
    %v1357 = vld [vmem:[%s90] sm:$0xff]
    %v1358 = vld [vmem:[%s90 + $0x8] sm:$0xff]
    %s1359 = sld [smem:[#allocation3 + $0x205]]
    %v1360 = vstv %s1359
    %v1361 = vmul.f32 %v1357, %v1360
    %v1362 = vmul.f32 %v1358, %v1360
    %v1363 = vadd.f32 %v1331, %v1361
    %v1364 = vadd.f32 %v1332, %v1362
    %v1365 = vld [vmem:[%s99] sm:$0xff]
    %v1366 = vld [vmem:[%s99 + $0x8] sm:$0xff]
    %s1367 = sld [smem:[#allocation3 + $0x206]]
    %v1368 = vstv %s1367
    %v1369 = vmul.f32 %v1365, %v1368
    %v1370 = vmul.f32 %v1366, %v1368
    %v1371 = vadd.f32 %v1339, %v1369
    %v1372 = vadd.f32 %v1340, %v1370
    %v1373 = vld [vmem:[%s108] sm:$0xff]
    %v1374 = vld [vmem:[%s108 + $0x8] sm:$0xff]
    %s1375 = sld [smem:[#allocation3 + $0x207]]
    %v1376 = vstv %s1375
    %v1377 = vmul.f32 %v1373, %v1376
    %v1378 = vmul.f32 %v1374, %v1376
    %v1379 = vadd.f32 %v1347, %v1377
    %v1380 = vadd.f32 %v1348, %v1378
    %v1381 = vld [vmem:[%s117] sm:$0xff]
    %v1382 = vld [vmem:[%s117 + $0x8] sm:$0xff]
    %s1383 = sld [smem:[#allocation3 + $0x208]]
    %v1384 = vstv %s1383
    %v1385 = vmul.f32 %v1381, %v1384
    %v1386 = vmul.f32 %v1382, %v1384
    %v1387 = vadd.f32 %v1355, %v1385
    %v1388 = vadd.f32 %v1356, %v1386
    %v1389 = vld [vmem:[%s126] sm:$0xff]
    %v1390 = vld [vmem:[%s126 + $0x8] sm:$0xff]
    %s1391 = sld [smem:[#allocation3 + $0x209]]
    %v1392 = vstv %s1391
    %v1393 = vmul.f32 %v1389, %v1392
    %v1394 = vmul.f32 %v1390, %v1392
    %v1395 = vadd.f32 %v1363, %v1393
    %v1396 = vadd.f32 %v1364, %v1394
    %v1397 = vld [vmem:[%s135] sm:$0xff]
    %v1398 = vld [vmem:[%s135 + $0x8] sm:$0xff]
    %s1399 = sld [smem:[#allocation3 + $0x20a]]
    %v1400 = vstv %s1399
    %v1401 = vmul.f32 %v1397, %v1400
    %v1402 = vmul.f32 %v1398, %v1400
    %v1403 = vadd.f32 %v1371, %v1401
    %v1404 = vadd.f32 %v1372, %v1402
    %v1405 = vld [vmem:[%s144] sm:$0xff]
    %v1406 = vld [vmem:[%s144 + $0x8] sm:$0xff]
    %s1407 = sld [smem:[#allocation3 + $0x20b]]
    %v1408 = vstv %s1407
    %v1409 = vmul.f32 %v1405, %v1408
    %v1410 = vmul.f32 %v1406, %v1408
    %v1411 = vadd.f32 %v1379, %v1409
    %v1412 = vadd.f32 %v1380, %v1410
    %v1413 = vld [vmem:[%s153] sm:$0xff]
    %v1414 = vld [vmem:[%s153 + $0x8] sm:$0xff]
    %s1415 = sld [smem:[#allocation3 + $0x20c]]
    %v1416 = vstv %s1415
    %v1417 = vmul.f32 %v1413, %v1416
    %v1418 = vmul.f32 %v1414, %v1416
    %v1419 = vadd.f32 %v1387, %v1417
    %v1420 = vadd.f32 %v1388, %v1418
    %v1421 = vld [vmem:[%s162] sm:$0xff]
    %v1422 = vld [vmem:[%s162 + $0x8] sm:$0xff]
    %s1423 = sld [smem:[#allocation3 + $0x20d]]
    %v1424 = vstv %s1423
    %v1425 = vmul.f32 %v1421, %v1424
    %v1426 = vmul.f32 %v1422, %v1424
    %v1427 = vadd.f32 %v1395, %v1425
    %v1428 = vadd.f32 %v1396, %v1426
    %v1429 = vld [vmem:[%s171] sm:$0xff]
    %v1430 = vld [vmem:[%s171 + $0x8] sm:$0xff]
    %s1431 = sld [smem:[#allocation3 + $0x20e]]
    %v1432 = vstv %s1431
    %v1433 = vmul.f32 %v1429, %v1432
    %v1434 = vmul.f32 %v1430, %v1432
    %v1435 = vadd.f32 %v1403, %v1433
    %v1436 = vadd.f32 %v1404, %v1434
    %v1437 = vld [vmem:[%s180] sm:$0xff]
    %v1438 = vld [vmem:[%s180 + $0x8] sm:$0xff]
    %s1439 = sld [smem:[#allocation3 + $0x20f]]
    %v1440 = vstv %s1439
    %v1441 = vmul.f32 %v1437, %v1440
    %v1442 = vmul.f32 %v1438, %v1440
    %v1443 = vadd.f32 %v1411, %v1441
    %v1444 = vadd.f32 %v1412, %v1442
    %v1445 = vld [vmem:[%s189] sm:$0xff]
    %v1446 = vld [vmem:[%s189 + $0x8] sm:$0xff]
    %s1447 = sld [smem:[#allocation3 + $0x210]]
    %v1448 = vstv %s1447
    %v1449 = vmul.f32 %v1445, %v1448
    %v1450 = vmul.f32 %v1446, %v1448
    %v1451 = vadd.f32 %v1419, %v1449
    %v1452 = vadd.f32 %v1420, %v1450
    %v1453 = vld [vmem:[%s198] sm:$0xff]
    %v1454 = vld [vmem:[%s198 + $0x8] sm:$0xff]
    %s1455 = sld [smem:[#allocation3 + $0x211]]
    %v1456 = vstv %s1455
    %v1457 = vmul.f32 %v1453, %v1456
    %v1458 = vmul.f32 %v1454, %v1456
    %v1459 = vadd.f32 %v1427, %v1457
    %v1460 = vadd.f32 %v1428, %v1458
    %v1461 = vld [vmem:[%s207] sm:$0xff]
    %v1462 = vld [vmem:[%s207 + $0x8] sm:$0xff]
    %s1463 = sld [smem:[#allocation3 + $0x212]]
    %v1464 = vstv %s1463
    %v1465 = vmul.f32 %v1461, %v1464
    %v1466 = vmul.f32 %v1462, %v1464
    %v1467 = vadd.f32 %v1435, %v1465
    %v1468 = vadd.f32 %v1436, %v1466
    %v1469 = vld [vmem:[%s216] sm:$0xff]
    %v1470 = vld [vmem:[%s216 + $0x8] sm:$0xff]
    %s1471 = sld [smem:[#allocation3 + $0x213]]
    %v1472 = vstv %s1471
    %v1473 = vmul.f32 %v1469, %v1472
    %v1474 = vmul.f32 %v1470, %v1472
    %v1475 = vadd.f32 %v1443, %v1473
    %v1476 = vadd.f32 %v1444, %v1474
    %v1477 = vld [vmem:[%s225] sm:$0xff]
    %v1478 = vld [vmem:[%s225 + $0x8] sm:$0xff]
    %s1479 = sld [smem:[#allocation3 + $0x214]]
    %v1480 = vstv %s1479
    %v1481 = vmul.f32 %v1477, %v1480
    %v1482 = vmul.f32 %v1478, %v1480
    %v1483 = vadd.f32 %v1451, %v1481
    %v1484 = vadd.f32 %v1452, %v1482
    %v1485 = vld [vmem:[%s234] sm:$0xff]
    %v1486 = vld [vmem:[%s234 + $0x8] sm:$0xff]
    %s1487 = sld [smem:[#allocation3 + $0x215]]
    %v1488 = vstv %s1487
    %v1489 = vmul.f32 %v1485, %v1488
    %v1490 = vmul.f32 %v1486, %v1488
    %v1491 = vadd.f32 %v1459, %v1489
    %v1492 = vadd.f32 %v1460, %v1490
    %v1493 = vld [vmem:[%s243] sm:$0xff]
    %v1494 = vld [vmem:[%s243 + $0x8] sm:$0xff]
    %s1495 = sld [smem:[#allocation3 + $0x216]]
    %v1496 = vstv %s1495
    %v1497 = vmul.f32 %v1493, %v1496
    %v1498 = vmul.f32 %v1494, %v1496
    %v1499 = vadd.f32 %v1467, %v1497
    %v1500 = vadd.f32 %v1468, %v1498
    %v1501 = vld [vmem:[%s252] sm:$0xff]
    %v1502 = vld [vmem:[%s252 + $0x8] sm:$0xff]
    %s1503 = sld [smem:[#allocation3 + $0x217]]
    %v1504 = vstv %s1503
    %v1505 = vmul.f32 %v1501, %v1504
    %v1506 = vmul.f32 %v1502, %v1504
    %v1507 = vadd.f32 %v1475, %v1505
    %v1508 = vadd.f32 %v1476, %v1506
    %v1509 = vld [vmem:[%s261] sm:$0xff]
    %v1510 = vld [vmem:[%s261 + $0x8] sm:$0xff]
    %s1511 = sld [smem:[#allocation3 + $0x218]]
    %v1512 = vstv %s1511
    %v1513 = vmul.f32 %v1509, %v1512
    %v1514 = vmul.f32 %v1510, %v1512
    %v1515 = vadd.f32 %v1483, %v1513
    %v1516 = vadd.f32 %v1484, %v1514
    %v1517 = vld [vmem:[%s270] sm:$0xff]
    %v1518 = vld [vmem:[%s270 + $0x8] sm:$0xff]
    %s1519 = sld [smem:[#allocation3 + $0x219]]
    %v1520 = vstv %s1519
    %v1521 = vmul.f32 %v1517, %v1520
    %v1522 = vmul.f32 %v1518, %v1520
    %v1523 = vadd.f32 %v1491, %v1521
    %v1524 = vadd.f32 %v1492, %v1522
    %v1525 = vld [vmem:[%s279] sm:$0xff]
    %v1526 = vld [vmem:[%s279 + $0x8] sm:$0xff]
    %s1527 = sld [smem:[#allocation3 + $0x21a]]
    %v1528 = vstv %s1527
    %v1529 = vmul.f32 %v1525, %v1528
    %v1530 = vmul.f32 %v1526, %v1528
    %v1531 = vadd.f32 %v1499, %v1529
    %v1532 = vadd.f32 %v1500, %v1530
    %v1533 = vld [vmem:[%s288] sm:$0xff]
    %v1534 = vld [vmem:[%s288 + $0x8] sm:$0xff]
    %s1535 = sld [smem:[#allocation3 + $0x21b]]
    %v1536 = vstv %s1535
    %v1537 = vmul.f32 %v1533, %v1536
    %v1538 = vmul.f32 %v1534, %v1536
    %v1539 = vadd.f32 %v1507, %v1537
    %v1540 = vadd.f32 %v1508, %v1538
    %v1541 = vld [vmem:[%s297] sm:$0xff]
    %v1542 = vld [vmem:[%s297 + $0x8] sm:$0xff]
    %s1543 = sld [smem:[#allocation3 + $0x21c]]
    %v1544 = vstv %s1543
    %v1545 = vmul.f32 %v1541, %v1544
    %v1546 = vmul.f32 %v1542, %v1544
    %v1547 = vadd.f32 %v1515, %v1545
    %v1548 = vadd.f32 %v1516, %v1546
    %v1549 = vld [vmem:[%s306] sm:$0xff]
    %v1550 = vld [vmem:[%s306 + $0x8] sm:$0xff]
    %s1551 = sld [smem:[#allocation3 + $0x21d]]
    %v1552 = vstv %s1551
    %v1553 = vmul.f32 %v1549, %v1552
    %v1554 = vmul.f32 %v1550, %v1552
    %v1555 = vadd.f32 %v1523, %v1553
    %v1556 = vadd.f32 %v1524, %v1554
    %v1557 = vld [vmem:[%s315] sm:$0xff]
    %v1558 = vld [vmem:[%s315 + $0x8] sm:$0xff]
    %s1559 = sld [smem:[#allocation3 + $0x21e]]
    %v1560 = vstv %s1559
    %v1561 = vmul.f32 %v1557, %v1560
    %v1562 = vmul.f32 %v1558, %v1560
    %v1563 = vadd.f32 %v1531, %v1561
    %v1564 = vadd.f32 %v1532, %v1562
    %v1565 = vld [vmem:[%s324] sm:$0xff]
    %v1566 = vld [vmem:[%s324 + $0x8] sm:$0xff]
    %s1567 = sld [smem:[#allocation3 + $0x21f]]
    %v1568 = vstv %s1567
    %v1569 = vmul.f32 %v1565, %v1568
    %v1570 = vmul.f32 %v1566, %v1568
    %v1571 = vadd.f32 %v1539, %v1569
    %v1572 = vadd.f32 %v1540, %v1570
    %v1573 = vld [vmem:[%s333] sm:$0xff]
    %v1574 = vld [vmem:[%s333 + $0x8] sm:$0xff]
    %s1575 = sld [smem:[#allocation3 + $0x220]]
    %v1576 = vstv %s1575
    %v1577 = vmul.f32 %v1573, %v1576
    %v1578 = vmul.f32 %v1574, %v1576
    %v1579 = vadd.f32 %v1547, %v1577
    %v1580 = vadd.f32 %v1548, %v1578
    %v1581 = vld [vmem:[%s342] sm:$0xff]
    %v1582 = vld [vmem:[%s342 + $0x8] sm:$0xff]
    %s1583 = sld [smem:[#allocation3 + $0x221]]
    %v1584 = vstv %s1583
    %v1585 = vmul.f32 %v1581, %v1584
    %v1586 = vmul.f32 %v1582, %v1584
    %v1587 = vadd.f32 %v1555, %v1585
    %v1588 = vadd.f32 %v1556, %v1586
    %v1589 = vld [vmem:[%s351] sm:$0xff]
    %v1590 = vld [vmem:[%s351 + $0x8] sm:$0xff]
    %s1591 = sld [smem:[#allocation3 + $0x222]]
    %v1592 = vstv %s1591
    %v1593 = vmul.f32 %v1589, %v1592
    %v1594 = vmul.f32 %v1590, %v1592
    %v1595 = vadd.f32 %v1563, %v1593
    %v1596 = vadd.f32 %v1564, %v1594
    %v1597 = vld [vmem:[%s360] sm:$0xff]
    %v1598 = vld [vmem:[%s360 + $0x8] sm:$0xff]
    %s1599 = sld [smem:[#allocation3 + $0x223]]
    %v1600 = vstv %s1599
    %v1601 = vmul.f32 %v1597, %v1600
    %v1602 = vmul.f32 %v1598, %v1600
    %v1603 = vadd.f32 %v1571, %v1601
    %v1604 = vadd.f32 %v1572, %v1602
    %v1605 = vadd.f32 %v1579, %v1587
    %v1606 = vadd.f32 %v1580, %v1588
    %v1607 = vadd.f32 %v1595, %v1603
    %v1608 = vadd.f32 %v1596, %v1604
    %v1609 = vadd.f32 %v1605, %v1607
    %v1610 = vadd.f32 %v1606, %v1608
    %s1611 = sld [smem:[#allocation5 + $0x4]]
    %v1612 = vstv %s1611
    %v1613 = vadd.f32 %v1609, %v1612
    %v1614 = vadd.f32 %v1610, %v1612
    %v1615 = vmax.f32 %v1613, 0.0
    %v1616 = vmax.f32 %v1614, 0.0
    %v1617 = vpack.c.bf16 %v1615, %v1615
    %v1618 = vpack.c.bf16 %v1616, %v1616
    %v1621 = vunpack.c.l.b16 %v1617
    %v1622 = vunpack.c.l.b16 %v1618
    %v1623 = vpack.c.b16 %v1622, %v1621
    %1625 = vst [vmem:[#allocation2 + $0x20] sm:$0xff] %v1623
    %v1626 = vld [vmem:[%s0] sm:$0xff]
    %v1627 = vld [vmem:[%s0 + $0x8] sm:$0xff]
    %s1628 = sld [smem:[#allocation3 + $0x280]]
    %v1629 = vstv %s1628
    %v1630 = vmul.f32 %v1626, %v1629
    %v1631 = vmul.f32 %v1627, %v1629
    %v1632 = vadd.f32 %v1630, 0.0
    %v1633 = vadd.f32 %v1631, 0.0
    %v1634 = vld [vmem:[%s54] sm:$0xff]
    %v1635 = vld [vmem:[%s54 + $0x8] sm:$0xff]
    %s1636 = sld [smem:[#allocation3 + $0x281]]
    %v1637 = vstv %s1636
    %v1638 = vmul.f32 %v1634, %v1637
    %v1639 = vmul.f32 %v1635, %v1637
    %v1640 = vadd.f32 %v1638, 0.0
    %v1641 = vadd.f32 %v1639, 0.0
    %v1642 = vld [vmem:[%s63] sm:$0xff]
    %v1643 = vld [vmem:[%s63 + $0x8] sm:$0xff]
    %s1644 = sld [smem:[#allocation3 + $0x282]]
    %v1645 = vstv %s1644
    %v1646 = vmul.f32 %v1642, %v1645
    %v1647 = vmul.f32 %v1643, %v1645
    %v1648 = vadd.f32 %v1646, 0.0
    %v1649 = vadd.f32 %v1647, 0.0
    %v1650 = vld [vmem:[%s72] sm:$0xff]
    %v1651 = vld [vmem:[%s72 + $0x8] sm:$0xff]
    %s1652 = sld [smem:[#allocation3 + $0x283]]
    %v1653 = vstv %s1652
    %v1654 = vmul.f32 %v1650, %v1653
    %v1655 = vmul.f32 %v1651, %v1653
    %v1656 = vadd.f32 %v1654, 0.0
    %v1657 = vadd.f32 %v1655, 0.0
    %v1658 = vld [vmem:[%s81] sm:$0xff]
    %v1659 = vld [vmem:[%s81 + $0x8] sm:$0xff]
    %s1660 = sld [smem:[#allocation3 + $0x284]]
    %v1661 = vstv %s1660
    %v1662 = vmul.f32 %v1658, %v1661
    %v1663 = vmul.f32 %v1659, %v1661
    %v1664 = vadd.f32 %v1632, %v1662
    %v1665 = vadd.f32 %v1633, %v1663
    %v1666 = vld [vmem:[%s90] sm:$0xff]
    %v1667 = vld [vmem:[%s90 + $0x8] sm:$0xff]
    %s1668 = sld [smem:[#allocation3 + $0x285]]
    %v1669 = vstv %s1668
    %v1670 = vmul.f32 %v1666, %v1669
    %v1671 = vmul.f32 %v1667, %v1669
    %v1672 = vadd.f32 %v1640, %v1670
    %v1673 = vadd.f32 %v1641, %v1671
    %v1674 = vld [vmem:[%s99] sm:$0xff]
    %v1675 = vld [vmem:[%s99 + $0x8] sm:$0xff]
    %s1676 = sld [smem:[#allocation3 + $0x286]]
    %v1677 = vstv %s1676
    %v1678 = vmul.f32 %v1674, %v1677
    %v1679 = vmul.f32 %v1675, %v1677
    %v1680 = vadd.f32 %v1648, %v1678
    %v1681 = vadd.f32 %v1649, %v1679
    %v1682 = vld [vmem:[%s108] sm:$0xff]
    %v1683 = vld [vmem:[%s108 + $0x8] sm:$0xff]
    %s1684 = sld [smem:[#allocation3 + $0x287]]
    %v1685 = vstv %s1684
    %v1686 = vmul.f32 %v1682, %v1685
    %v1687 = vmul.f32 %v1683, %v1685
    %v1688 = vadd.f32 %v1656, %v1686
    %v1689 = vadd.f32 %v1657, %v1687
    %v1690 = vld [vmem:[%s117] sm:$0xff]
    %v1691 = vld [vmem:[%s117 + $0x8] sm:$0xff]
    %s1692 = sld [smem:[#allocation3 + $0x288]]
    %v1693 = vstv %s1692
    %v1694 = vmul.f32 %v1690, %v1693
    %v1695 = vmul.f32 %v1691, %v1693
    %v1696 = vadd.f32 %v1664, %v1694
    %v1697 = vadd.f32 %v1665, %v1695
    %v1698 = vld [vmem:[%s126] sm:$0xff]
    %v1699 = vld [vmem:[%s126 + $0x8] sm:$0xff]
    %s1700 = sld [smem:[#allocation3 + $0x289]]
    %v1701 = vstv %s1700
    %v1702 = vmul.f32 %v1698, %v1701
    %v1703 = vmul.f32 %v1699, %v1701
    %v1704 = vadd.f32 %v1672, %v1702
    %v1705 = vadd.f32 %v1673, %v1703
    %v1706 = vld [vmem:[%s135] sm:$0xff]
    %v1707 = vld [vmem:[%s135 + $0x8] sm:$0xff]
    %s1708 = sld [smem:[#allocation3 + $0x28a]]
    %v1709 = vstv %s1708
    %v1710 = vmul.f32 %v1706, %v1709
    %v1711 = vmul.f32 %v1707, %v1709
    %v1712 = vadd.f32 %v1680, %v1710
    %v1713 = vadd.f32 %v1681, %v1711
    %v1714 = vld [vmem:[%s144] sm:$0xff]
    %v1715 = vld [vmem:[%s144 + $0x8] sm:$0xff]
    %s1716 = sld [smem:[#allocation3 + $0x28b]]
    %v1717 = vstv %s1716
    %v1718 = vmul.f32 %v1714, %v1717
    %v1719 = vmul.f32 %v1715, %v1717
    %v1720 = vadd.f32 %v1688, %v1718
    %v1721 = vadd.f32 %v1689, %v1719
    %v1722 = vld [vmem:[%s153] sm:$0xff]
    %v1723 = vld [vmem:[%s153 + $0x8] sm:$0xff]
    %s1724 = sld [smem:[#allocation3 + $0x28c]]
    %v1725 = vstv %s1724
    %v1726 = vmul.f32 %v1722, %v1725
    %v1727 = vmul.f32 %v1723, %v1725
    %v1728 = vadd.f32 %v1696, %v1726
    %v1729 = vadd.f32 %v1697, %v1727
    %v1730 = vld [vmem:[%s162] sm:$0xff]
    %v1731 = vld [vmem:[%s162 + $0x8] sm:$0xff]
    %s1732 = sld [smem:[#allocation3 + $0x28d]]
    %v1733 = vstv %s1732
    %v1734 = vmul.f32 %v1730, %v1733
    %v1735 = vmul.f32 %v1731, %v1733
    %v1736 = vadd.f32 %v1704, %v1734
    %v1737 = vadd.f32 %v1705, %v1735
    %v1738 = vld [vmem:[%s171] sm:$0xff]
    %v1739 = vld [vmem:[%s171 + $0x8] sm:$0xff]
    %s1740 = sld [smem:[#allocation3 + $0x28e]]
    %v1741 = vstv %s1740
    %v1742 = vmul.f32 %v1738, %v1741
    %v1743 = vmul.f32 %v1739, %v1741
    %v1744 = vadd.f32 %v1712, %v1742
    %v1745 = vadd.f32 %v1713, %v1743
    %v1746 = vld [vmem:[%s180] sm:$0xff]
    %v1747 = vld [vmem:[%s180 + $0x8] sm:$0xff]
    %s1748 = sld [smem:[#allocation3 + $0x28f]]
    %v1749 = vstv %s1748
    %v1750 = vmul.f32 %v1746, %v1749
    %v1751 = vmul.f32 %v1747, %v1749
    %v1752 = vadd.f32 %v1720, %v1750
    %v1753 = vadd.f32 %v1721, %v1751
    %v1754 = vld [vmem:[%s189] sm:$0xff]
    %v1755 = vld [vmem:[%s189 + $0x8] sm:$0xff]
    %s1756 = sld [smem:[#allocation3 + $0x290]]
    %v1757 = vstv %s1756
    %v1758 = vmul.f32 %v1754, %v1757
    %v1759 = vmul.f32 %v1755, %v1757
    %v1760 = vadd.f32 %v1728, %v1758
    %v1761 = vadd.f32 %v1729, %v1759
    %v1762 = vld [vmem:[%s198] sm:$0xff]
    %v1763 = vld [vmem:[%s198 + $0x8] sm:$0xff]
    %s1764 = sld [smem:[#allocation3 + $0x291]]
    %v1765 = vstv %s1764
    %v1766 = vmul.f32 %v1762, %v1765
    %v1767 = vmul.f32 %v1763, %v1765
    %v1768 = vadd.f32 %v1736, %v1766
    %v1769 = vadd.f32 %v1737, %v1767
    %v1770 = vld [vmem:[%s207] sm:$0xff]
    %v1771 = vld [vmem:[%s207 + $0x8] sm:$0xff]
    %s1772 = sld [smem:[#allocation3 + $0x292]]
    %v1773 = vstv %s1772
    %v1774 = vmul.f32 %v1770, %v1773
    %v1775 = vmul.f32 %v1771, %v1773
    %v1776 = vadd.f32 %v1744, %v1774
    %v1777 = vadd.f32 %v1745, %v1775
    %v1778 = vld [vmem:[%s216] sm:$0xff]
    %v1779 = vld [vmem:[%s216 + $0x8] sm:$0xff]
    %s1780 = sld [smem:[#allocation3 + $0x293]]
    %v1781 = vstv %s1780
    %v1782 = vmul.f32 %v1778, %v1781
    %v1783 = vmul.f32 %v1779, %v1781
    %v1784 = vadd.f32 %v1752, %v1782
    %v1785 = vadd.f32 %v1753, %v1783
    %v1786 = vld [vmem:[%s225] sm:$0xff]
    %v1787 = vld [vmem:[%s225 + $0x8] sm:$0xff]
    %s1788 = sld [smem:[#allocation3 + $0x294]]
    %v1789 = vstv %s1788
    %v1790 = vmul.f32 %v1786, %v1789
    %v1791 = vmul.f32 %v1787, %v1789
    %v1792 = vadd.f32 %v1760, %v1790
    %v1793 = vadd.f32 %v1761, %v1791
    %v1794 = vld [vmem:[%s234] sm:$0xff]
    %v1795 = vld [vmem:[%s234 + $0x8] sm:$0xff]
    %s1796 = sld [smem:[#allocation3 + $0x295]]
    %v1797 = vstv %s1796
    %v1798 = vmul.f32 %v1794, %v1797
    %v1799 = vmul.f32 %v1795, %v1797
    %v1800 = vadd.f32 %v1768, %v1798
    %v1801 = vadd.f32 %v1769, %v1799
    %v1802 = vld [vmem:[%s243] sm:$0xff]
    %v1803 = vld [vmem:[%s243 + $0x8] sm:$0xff]
    %s1804 = sld [smem:[#allocation3 + $0x296]]
    %v1805 = vstv %s1804
    %v1806 = vmul.f32 %v1802, %v1805
    %v1807 = vmul.f32 %v1803, %v1805
    %v1808 = vadd.f32 %v1776, %v1806
    %v1809 = vadd.f32 %v1777, %v1807
    %v1810 = vld [vmem:[%s252] sm:$0xff]
    %v1811 = vld [vmem:[%s252 + $0x8] sm:$0xff]
    %s1812 = sld [smem:[#allocation3 + $0x297]]
    %v1813 = vstv %s1812
    %v1814 = vmul.f32 %v1810, %v1813
    %v1815 = vmul.f32 %v1811, %v1813
    %v1816 = vadd.f32 %v1784, %v1814
    %v1817 = vadd.f32 %v1785, %v1815
    %v1818 = vld [vmem:[%s261] sm:$0xff]
    %v1819 = vld [vmem:[%s261 + $0x8] sm:$0xff]
    %s1820 = sld [smem:[#allocation3 + $0x298]]
    %v1821 = vstv %s1820
    %v1822 = vmul.f32 %v1818, %v1821
    %v1823 = vmul.f32 %v1819, %v1821
    %v1824 = vadd.f32 %v1792, %v1822
    %v1825 = vadd.f32 %v1793, %v1823
    %v1826 = vld [vmem:[%s270] sm:$0xff]
    %v1827 = vld [vmem:[%s270 + $0x8] sm:$0xff]
    %s1828 = sld [smem:[#allocation3 + $0x299]]
    %v1829 = vstv %s1828
    %v1830 = vmul.f32 %v1826, %v1829
    %v1831 = vmul.f32 %v1827, %v1829
    %v1832 = vadd.f32 %v1800, %v1830
    %v1833 = vadd.f32 %v1801, %v1831
    %v1834 = vld [vmem:[%s279] sm:$0xff]
    %v1835 = vld [vmem:[%s279 + $0x8] sm:$0xff]
    %s1836 = sld [smem:[#allocation3 + $0x29a]]
    %v1837 = vstv %s1836
    %v1838 = vmul.f32 %v1834, %v1837
    %v1839 = vmul.f32 %v1835, %v1837
    %v1840 = vadd.f32 %v1808, %v1838
    %v1841 = vadd.f32 %v1809, %v1839
    %v1842 = vld [vmem:[%s288] sm:$0xff]
    %v1843 = vld [vmem:[%s288 + $0x8] sm:$0xff]
    %s1844 = sld [smem:[#allocation3 + $0x29b]]
    %v1845 = vstv %s1844
    %v1846 = vmul.f32 %v1842, %v1845
    %v1847 = vmul.f32 %v1843, %v1845
    %v1848 = vadd.f32 %v1816, %v1846
    %v1849 = vadd.f32 %v1817, %v1847
    %v1850 = vld [vmem:[%s297] sm:$0xff]
    %v1851 = vld [vmem:[%s297 + $0x8] sm:$0xff]
    %s1852 = sld [smem:[#allocation3 + $0x29c]]
    %v1853 = vstv %s1852
    %v1854 = vmul.f32 %v1850, %v1853
    %v1855 = vmul.f32 %v1851, %v1853
    %v1856 = vadd.f32 %v1824, %v1854
    %v1857 = vadd.f32 %v1825, %v1855
    %v1858 = vld [vmem:[%s306] sm:$0xff]
    %v1859 = vld [vmem:[%s306 + $0x8] sm:$0xff]
    %s1860 = sld [smem:[#allocation3 + $0x29d]]
    %v1861 = vstv %s1860
    %v1862 = vmul.f32 %v1858, %v1861
    %v1863 = vmul.f32 %v1859, %v1861
    %v1864 = vadd.f32 %v1832, %v1862
    %v1865 = vadd.f32 %v1833, %v1863
    %v1866 = vld [vmem:[%s315] sm:$0xff]
    %v1867 = vld [vmem:[%s315 + $0x8] sm:$0xff]
    %s1868 = sld [smem:[#allocation3 + $0x29e]]
    %v1869 = vstv %s1868
    %v1870 = vmul.f32 %v1866, %v1869
    %v1871 = vmul.f32 %v1867, %v1869
    %v1872 = vadd.f32 %v1840, %v1870
    %v1873 = vadd.f32 %v1841, %v1871
    %v1874 = vld [vmem:[%s324] sm:$0xff]
    %v1875 = vld [vmem:[%s324 + $0x8] sm:$0xff]
    %s1876 = sld [smem:[#allocation3 + $0x29f]]
    %v1877 = vstv %s1876
    %v1878 = vmul.f32 %v1874, %v1877
    %v1879 = vmul.f32 %v1875, %v1877
    %v1880 = vadd.f32 %v1848, %v1878
    %v1881 = vadd.f32 %v1849, %v1879
    %v1882 = vld [vmem:[%s333] sm:$0xff]
    %v1883 = vld [vmem:[%s333 + $0x8] sm:$0xff]
    %s1884 = sld [smem:[#allocation3 + $0x2a0]]
    %v1885 = vstv %s1884
    %v1886 = vmul.f32 %v1882, %v1885
    %v1887 = vmul.f32 %v1883, %v1885
    %v1888 = vadd.f32 %v1856, %v1886
    %v1889 = vadd.f32 %v1857, %v1887
    %v1890 = vld [vmem:[%s342] sm:$0xff]
    %v1891 = vld [vmem:[%s342 + $0x8] sm:$0xff]
    %s1892 = sld [smem:[#allocation3 + $0x2a1]]
    %v1893 = vstv %s1892
    %v1894 = vmul.f32 %v1890, %v1893
    %v1895 = vmul.f32 %v1891, %v1893
    %v1896 = vadd.f32 %v1864, %v1894
    %v1897 = vadd.f32 %v1865, %v1895
    %v1898 = vld [vmem:[%s351] sm:$0xff]
    %v1899 = vld [vmem:[%s351 + $0x8] sm:$0xff]
    %s1900 = sld [smem:[#allocation3 + $0x2a2]]
    %v1901 = vstv %s1900
    %v1902 = vmul.f32 %v1898, %v1901
    %v1903 = vmul.f32 %v1899, %v1901
    %v1904 = vadd.f32 %v1872, %v1902
    %v1905 = vadd.f32 %v1873, %v1903
    %v1906 = vld [vmem:[%s360] sm:$0xff]
    %v1907 = vld [vmem:[%s360 + $0x8] sm:$0xff]
    %s1908 = sld [smem:[#allocation3 + $0x2a3]]
    %v1909 = vstv %s1908
    %v1910 = vmul.f32 %v1906, %v1909
    %v1911 = vmul.f32 %v1907, %v1909
    %v1912 = vadd.f32 %v1880, %v1910
    %v1913 = vadd.f32 %v1881, %v1911
    %v1914 = vadd.f32 %v1888, %v1896
    %v1915 = vadd.f32 %v1889, %v1897
    %v1916 = vadd.f32 %v1904, %v1912
    %v1917 = vadd.f32 %v1905, %v1913
    %v1918 = vadd.f32 %v1914, %v1916
    %v1919 = vadd.f32 %v1915, %v1917
    %s1920 = sld [smem:[#allocation5 + $0x5]]
    %v1921 = vstv %s1920
    %v1922 = vadd.f32 %v1918, %v1921
    %v1923 = vadd.f32 %v1919, %v1921
    %v1924 = vmax.f32 %v1922, 0.0
    %v1925 = vmax.f32 %v1923, 0.0
    %v1926 = vpack.c.bf16 %v1924, %v1924
    %v1927 = vpack.c.bf16 %v1925, %v1925
    %v1930 = vunpack.c.l.b16 %v1926
    %v1931 = vunpack.c.l.b16 %v1927
    %v1932 = vpack.c.b16 %v1931, %v1930
    %1934 = vst [vmem:[#allocation2 + $0x28] sm:$0xff] %v1932
    %v1935 = vld [vmem:[%s0] sm:$0xff]
    %v1936 = vld [vmem:[%s0 + $0x8] sm:$0xff]
    %s1937 = sld [smem:[#allocation3 + $0x300]]
    %v1938 = vstv %s1937
    %v1939 = vmul.f32 %v1935, %v1938
    %v1940 = vmul.f32 %v1936, %v1938
    %v1941 = vadd.f32 %v1939, 0.0
    %v1942 = vadd.f32 %v1940, 0.0
    %v1943 = vld [vmem:[%s54] sm:$0xff]
    %v1944 = vld [vmem:[%s54 + $0x8] sm:$0xff]
    %s1945 = sld [smem:[#allocation3 + $0x301]]
    %v1946 = vstv %s1945
    %v1947 = vmul.f32 %v1943, %v1946
    %v1948 = vmul.f32 %v1944, %v1946
    %v1949 = vadd.f32 %v1947, 0.0
    %v1950 = vadd.f32 %v1948, 0.0
    %v1951 = vld [vmem:[%s63] sm:$0xff]
    %v1952 = vld [vmem:[%s63 + $0x8] sm:$0xff]
    %s1953 = sld [smem:[#allocation3 + $0x302]]
    %v1954 = vstv %s1953
    %v1955 = vmul.f32 %v1951, %v1954
    %v1956 = vmul.f32 %v1952, %v1954
    %v1957 = vadd.f32 %v1955, 0.0
    %v1958 = vadd.f32 %v1956, 0.0
    %v1959 = vld [vmem:[%s72] sm:$0xff]
    %v1960 = vld [vmem:[%s72 + $0x8] sm:$0xff]
    %s1961 = sld [smem:[#allocation3 + $0x303]]
    %v1962 = vstv %s1961
    %v1963 = vmul.f32 %v1959, %v1962
    %v1964 = vmul.f32 %v1960, %v1962
    %v1965 = vadd.f32 %v1963, 0.0
    %v1966 = vadd.f32 %v1964, 0.0
    %v1967 = vld [vmem:[%s81] sm:$0xff]
    %v1968 = vld [vmem:[%s81 + $0x8] sm:$0xff]
    %s1969 = sld [smem:[#allocation3 + $0x304]]
    %v1970 = vstv %s1969
    %v1971 = vmul.f32 %v1967, %v1970
    %v1972 = vmul.f32 %v1968, %v1970
    %v1973 = vadd.f32 %v1941, %v1971
    %v1974 = vadd.f32 %v1942, %v1972
    %v1975 = vld [vmem:[%s90] sm:$0xff]
    %v1976 = vld [vmem:[%s90 + $0x8] sm:$0xff]
    %s1977 = sld [smem:[#allocation3 + $0x305]]
    %v1978 = vstv %s1977
    %v1979 = vmul.f32 %v1975, %v1978
    %v1980 = vmul.f32 %v1976, %v1978
    %v1981 = vadd.f32 %v1949, %v1979
    %v1982 = vadd.f32 %v1950, %v1980
    %v1983 = vld [vmem:[%s99] sm:$0xff]
    %v1984 = vld [vmem:[%s99 + $0x8] sm:$0xff]
    %s1985 = sld [smem:[#allocation3 + $0x306]]
    %v1986 = vstv %s1985
    %v1987 = vmul.f32 %v1983, %v1986
    %v1988 = vmul.f32 %v1984, %v1986
    %v1989 = vadd.f32 %v1957, %v1987
    %v1990 = vadd.f32 %v1958, %v1988
    %v1991 = vld [vmem:[%s108] sm:$0xff]
    %v1992 = vld [vmem:[%s108 + $0x8] sm:$0xff]
    %s1993 = sld [smem:[#allocation3 + $0x307]]
    %v1994 = vstv %s1993
    %v1995 = vmul.f32 %v1991, %v1994
    %v1996 = vmul.f32 %v1992, %v1994
    %v1997 = vadd.f32 %v1965, %v1995
    %v1998 = vadd.f32 %v1966, %v1996
    %v1999 = vld [vmem:[%s117] sm:$0xff]
    %v2000 = vld [vmem:[%s117 + $0x8] sm:$0xff]
    %s2001 = sld [smem:[#allocation3 + $0x308]]
    %v2002 = vstv %s2001
    %v2003 = vmul.f32 %v1999, %v2002
    %v2004 = vmul.f32 %v2000, %v2002
    %v2005 = vadd.f32 %v1973, %v2003
    %v2006 = vadd.f32 %v1974, %v2004
    %v2007 = vld [vmem:[%s126] sm:$0xff]
    %v2008 = vld [vmem:[%s126 + $0x8] sm:$0xff]
    %s2009 = sld [smem:[#allocation3 + $0x309]]
    %v2010 = vstv %s2009
    %v2011 = vmul.f32 %v2007, %v2010
    %v2012 = vmul.f32 %v2008, %v2010
    %v2013 = vadd.f32 %v1981, %v2011
    %v2014 = vadd.f32 %v1982, %v2012
    %v2015 = vld [vmem:[%s135] sm:$0xff]
    %v2016 = vld [vmem:[%s135 + $0x8] sm:$0xff]
    %s2017 = sld [smem:[#allocation3 + $0x30a]]
    %v2018 = vstv %s2017
    %v2019 = vmul.f32 %v2015, %v2018
    %v2020 = vmul.f32 %v2016, %v2018
    %v2021 = vadd.f32 %v1989, %v2019
    %v2022 = vadd.f32 %v1990, %v2020
    %v2023 = vld [vmem:[%s144] sm:$0xff]
    %v2024 = vld [vmem:[%s144 + $0x8] sm:$0xff]
    %s2025 = sld [smem:[#allocation3 + $0x30b]]
    %v2026 = vstv %s2025
    %v2027 = vmul.f32 %v2023, %v2026
    %v2028 = vmul.f32 %v2024, %v2026
    %v2029 = vadd.f32 %v1997, %v2027
    %v2030 = vadd.f32 %v1998, %v2028
    %v2031 = vld [vmem:[%s153] sm:$0xff]
    %v2032 = vld [vmem:[%s153 + $0x8] sm:$0xff]
    %s2033 = sld [smem:[#allocation3 + $0x30c]]
    %v2034 = vstv %s2033
    %v2035 = vmul.f32 %v2031, %v2034
    %v2036 = vmul.f32 %v2032, %v2034
    %v2037 = vadd.f32 %v2005, %v2035
    %v2038 = vadd.f32 %v2006, %v2036
    %v2039 = vld [vmem:[%s162] sm:$0xff]
    %v2040 = vld [vmem:[%s162 + $0x8] sm:$0xff]
    %s2041 = sld [smem:[#allocation3 + $0x30d]]
    %v2042 = vstv %s2041
    %v2043 = vmul.f32 %v2039, %v2042
    %v2044 = vmul.f32 %v2040, %v2042
    %v2045 = vadd.f32 %v2013, %v2043
    %v2046 = vadd.f32 %v2014, %v2044
    %v2047 = vld [vmem:[%s171] sm:$0xff]
    %v2048 = vld [vmem:[%s171 + $0x8] sm:$0xff]
    %s2049 = sld [smem:[#allocation3 + $0x30e]]
    %v2050 = vstv %s2049
    %v2051 = vmul.f32 %v2047, %v2050
    %v2052 = vmul.f32 %v2048, %v2050
    %v2053 = vadd.f32 %v2021, %v2051
    %v2054 = vadd.f32 %v2022, %v2052
    %v2055 = vld [vmem:[%s180] sm:$0xff]
    %v2056 = vld [vmem:[%s180 + $0x8] sm:$0xff]
    %s2057 = sld [smem:[#allocation3 + $0x30f]]
    %v2058 = vstv %s2057
    %v2059 = vmul.f32 %v2055, %v2058
    %v2060 = vmul.f32 %v2056, %v2058
    %v2061 = vadd.f32 %v2029, %v2059
    %v2062 = vadd.f32 %v2030, %v2060
    %v2063 = vld [vmem:[%s189] sm:$0xff]
    %v2064 = vld [vmem:[%s189 + $0x8] sm:$0xff]
    %s2065 = sld [smem:[#allocation3 + $0x310]]
    %v2066 = vstv %s2065
    %v2067 = vmul.f32 %v2063, %v2066
    %v2068 = vmul.f32 %v2064, %v2066
    %v2069 = vadd.f32 %v2037, %v2067
    %v2070 = vadd.f32 %v2038, %v2068
    %v2071 = vld [vmem:[%s198] sm:$0xff]
    %v2072 = vld [vmem:[%s198 + $0x8] sm:$0xff]
    %s2073 = sld [smem:[#allocation3 + $0x311]]
    %v2074 = vstv %s2073
    %v2075 = vmul.f32 %v2071, %v2074
    %v2076 = vmul.f32 %v2072, %v2074
    %v2077 = vadd.f32 %v2045, %v2075
    %v2078 = vadd.f32 %v2046, %v2076
    %v2079 = vld [vmem:[%s207] sm:$0xff]
    %v2080 = vld [vmem:[%s207 + $0x8] sm:$0xff]
    %s2081 = sld [smem:[#allocation3 + $0x312]]
    %v2082 = vstv %s2081
    %v2083 = vmul.f32 %v2079, %v2082
    %v2084 = vmul.f32 %v2080, %v2082
    %v2085 = vadd.f32 %v2053, %v2083
    %v2086 = vadd.f32 %v2054, %v2084
    %v2087 = vld [vmem:[%s216] sm:$0xff]
    %v2088 = vld [vmem:[%s216 + $0x8] sm:$0xff]
    %s2089 = sld [smem:[#allocation3 + $0x313]]
    %v2090 = vstv %s2089
    %v2091 = vmul.f32 %v2087, %v2090
    %v2092 = vmul.f32 %v2088, %v2090
    %v2093 = vadd.f32 %v2061, %v2091
    %v2094 = vadd.f32 %v2062, %v2092
    %v2095 = vld [vmem:[%s225] sm:$0xff]
    %v2096 = vld [vmem:[%s225 + $0x8] sm:$0xff]
    %s2097 = sld [smem:[#allocation3 + $0x314]]
    %v2098 = vstv %s2097
    %v2099 = vmul.f32 %v2095, %v2098
    %v2100 = vmul.f32 %v2096, %v2098
    %v2101 = vadd.f32 %v2069, %v2099
    %v2102 = vadd.f32 %v2070, %v2100
    %v2103 = vld [vmem:[%s234] sm:$0xff]
    %v2104 = vld [vmem:[%s234 + $0x8] sm:$0xff]
    %s2105 = sld [smem:[#allocation3 + $0x315]]
    %v2106 = vstv %s2105
    %v2107 = vmul.f32 %v2103, %v2106
    %v2108 = vmul.f32 %v2104, %v2106
    %v2109 = vadd.f32 %v2077, %v2107
    %v2110 = vadd.f32 %v2078, %v2108
    %v2111 = vld [vmem:[%s243] sm:$0xff]
    %v2112 = vld [vmem:[%s243 + $0x8] sm:$0xff]
    %s2113 = sld [smem:[#allocation3 + $0x316]]
    %v2114 = vstv %s2113
    %v2115 = vmul.f32 %v2111, %v2114
    %v2116 = vmul.f32 %v2112, %v2114
    %v2117 = vadd.f32 %v2085, %v2115
    %v2118 = vadd.f32 %v2086, %v2116
    %v2119 = vld [vmem:[%s252] sm:$0xff]
    %v2120 = vld [vmem:[%s252 + $0x8] sm:$0xff]
    %s2121 = sld [smem:[#allocation3 + $0x317]]
    %v2122 = vstv %s2121
    %v2123 = vmul.f32 %v2119, %v2122
    %v2124 = vmul.f32 %v2120, %v2122
    %v2125 = vadd.f32 %v2093, %v2123
    %v2126 = vadd.f32 %v2094, %v2124
    %v2127 = vld [vmem:[%s261] sm:$0xff]
    %v2128 = vld [vmem:[%s261 + $0x8] sm:$0xff]
    %s2129 = sld [smem:[#allocation3 + $0x318]]
    %v2130 = vstv %s2129
    %v2131 = vmul.f32 %v2127, %v2130
    %v2132 = vmul.f32 %v2128, %v2130
    %v2133 = vadd.f32 %v2101, %v2131
    %v2134 = vadd.f32 %v2102, %v2132
    %v2135 = vld [vmem:[%s270] sm:$0xff]
    %v2136 = vld [vmem:[%s270 + $0x8] sm:$0xff]
    %s2137 = sld [smem:[#allocation3 + $0x319]]
    %v2138 = vstv %s2137
    %v2139 = vmul.f32 %v2135, %v2138
    %v2140 = vmul.f32 %v2136, %v2138
    %v2141 = vadd.f32 %v2109, %v2139
    %v2142 = vadd.f32 %v2110, %v2140
    %v2143 = vld [vmem:[%s279] sm:$0xff]
    %v2144 = vld [vmem:[%s279 + $0x8] sm:$0xff]
    %s2145 = sld [smem:[#allocation3 + $0x31a]]
    %v2146 = vstv %s2145
    %v2147 = vmul.f32 %v2143, %v2146
    %v2148 = vmul.f32 %v2144, %v2146
    %v2149 = vadd.f32 %v2117, %v2147
    %v2150 = vadd.f32 %v2118, %v2148
    %v2151 = vld [vmem:[%s288] sm:$0xff]
    %v2152 = vld [vmem:[%s288 + $0x8] sm:$0xff]
    %s2153 = sld [smem:[#allocation3 + $0x31b]]
    %v2154 = vstv %s2153
    %v2155 = vmul.f32 %v2151, %v2154
    %v2156 = vmul.f32 %v2152, %v2154
    %v2157 = vadd.f32 %v2125, %v2155
    %v2158 = vadd.f32 %v2126, %v2156
    %v2159 = vld [vmem:[%s297] sm:$0xff]
    %v2160 = vld [vmem:[%s297 + $0x8] sm:$0xff]
    %s2161 = sld [smem:[#allocation3 + $0x31c]]
    %v2162 = vstv %s2161
    %v2163 = vmul.f32 %v2159, %v2162
    %v2164 = vmul.f32 %v2160, %v2162
    %v2165 = vadd.f32 %v2133, %v2163
    %v2166 = vadd.f32 %v2134, %v2164
    %v2167 = vld [vmem:[%s306] sm:$0xff]
    %v2168 = vld [vmem:[%s306 + $0x8] sm:$0xff]
    %s2169 = sld [smem:[#allocation3 + $0x31d]]
    %v2170 = vstv %s2169
    %v2171 = vmul.f32 %v2167, %v2170
    %v2172 = vmul.f32 %v2168, %v2170
    %v2173 = vadd.f32 %v2141, %v2171
    %v2174 = vadd.f32 %v2142, %v2172
    %v2175 = vld [vmem:[%s315] sm:$0xff]
    %v2176 = vld [vmem:[%s315 + $0x8] sm:$0xff]
    %s2177 = sld [smem:[#allocation3 + $0x31e]]
    %v2178 = vstv %s2177
    %v2179 = vmul.f32 %v2175, %v2178
    %v2180 = vmul.f32 %v2176, %v2178
    %v2181 = vadd.f32 %v2149, %v2179
    %v2182 = vadd.f32 %v2150, %v2180
    %v2183 = vld [vmem:[%s324] sm:$0xff]
    %v2184 = vld [vmem:[%s324 + $0x8] sm:$0xff]
    %s2185 = sld [smem:[#allocation3 + $0x31f]]
    %v2186 = vstv %s2185
    %v2187 = vmul.f32 %v2183, %v2186
    %v2188 = vmul.f32 %v2184, %v2186
    %v2189 = vadd.f32 %v2157, %v2187
    %v2190 = vadd.f32 %v2158, %v2188
    %v2191 = vld [vmem:[%s333] sm:$0xff]
    %v2192 = vld [vmem:[%s333 + $0x8] sm:$0xff]
    %s2193 = sld [smem:[#allocation3 + $0x320]]
    %v2194 = vstv %s2193
    %v2195 = vmul.f32 %v2191, %v2194
    %v2196 = vmul.f32 %v2192, %v2194
    %v2197 = vadd.f32 %v2165, %v2195
    %v2198 = vadd.f32 %v2166, %v2196
    %v2199 = vld [vmem:[%s342] sm:$0xff]
    %v2200 = vld [vmem:[%s342 + $0x8] sm:$0xff]
    %s2201 = sld [smem:[#allocation3 + $0x321]]
    %v2202 = vstv %s2201
    %v2203 = vmul.f32 %v2199, %v2202
    %v2204 = vmul.f32 %v2200, %v2202
    %v2205 = vadd.f32 %v2173, %v2203
    %v2206 = vadd.f32 %v2174, %v2204
    %v2207 = vld [vmem:[%s351] sm:$0xff]
    %v2208 = vld [vmem:[%s351 + $0x8] sm:$0xff]
    %s2209 = sld [smem:[#allocation3 + $0x322]]
    %v2210 = vstv %s2209
    %v2211 = vmul.f32 %v2207, %v2210
    %v2212 = vmul.f32 %v2208, %v2210
    %v2213 = vadd.f32 %v2181, %v2211
    %v2214 = vadd.f32 %v2182, %v2212
    %v2215 = vld [vmem:[%s360] sm:$0xff]
    %v2216 = vld [vmem:[%s360 + $0x8] sm:$0xff]
    %s2217 = sld [smem:[#allocation3 + $0x323]]
    %v2218 = vstv %s2217
    %v2219 = vmul.f32 %v2215, %v2218
    %v2220 = vmul.f32 %v2216, %v2218
    %v2221 = vadd.f32 %v2189, %v2219
    %v2222 = vadd.f32 %v2190, %v2220
    %v2223 = vadd.f32 %v2197, %v2205
    %v2224 = vadd.f32 %v2198, %v2206
    %v2225 = vadd.f32 %v2213, %v2221
    %v2226 = vadd.f32 %v2214, %v2222
    %v2227 = vadd.f32 %v2223, %v2225
    %v2228 = vadd.f32 %v2224, %v2226
    %s2229 = sld [smem:[#allocation5 + $0x6]]
    %v2230 = vstv %s2229
    %v2231 = vadd.f32 %v2227, %v2230
    %v2232 = vadd.f32 %v2228, %v2230
    %v2233 = vmax.f32 %v2231, 0.0
    %v2234 = vmax.f32 %v2232, 0.0
    %v2235 = vpack.c.bf16 %v2233, %v2233
    %v2236 = vpack.c.bf16 %v2234, %v2234
    %v2239 = vunpack.c.l.b16 %v2235
    %v2240 = vunpack.c.l.b16 %v2236
    %v2241 = vpack.c.b16 %v2240, %v2239
    %2243 = vst [vmem:[#allocation2 + $0x30] sm:$0xff] %v2241
    %v2244 = vld [vmem:[%s0] sm:$0xff]
    %v2245 = vld [vmem:[%s0 + $0x8] sm:$0xff]
    %s2246 = sld [smem:[#allocation3 + $0x380]]
    %v2247 = vstv %s2246
    %v2248 = vmul.f32 %v2244, %v2247
    %v2249 = vmul.f32 %v2245, %v2247
    %v2250 = vadd.f32 %v2248, 0.0
    %v2251 = vadd.f32 %v2249, 0.0
    %v2252 = vld [vmem:[%s54] sm:$0xff]
    %v2253 = vld [vmem:[%s54 + $0x8] sm:$0xff]
    %s2254 = sld [smem:[#allocation3 + $0x381]]
    %v2255 = vstv %s2254
    %v2256 = vmul.f32 %v2252, %v2255
    %v2257 = vmul.f32 %v2253, %v2255
    %v2258 = vadd.f32 %v2256, 0.0
    %v2259 = vadd.f32 %v2257, 0.0
    %v2260 = vld [vmem:[%s63] sm:$0xff]
    %v2261 = vld [vmem:[%s63 + $0x8] sm:$0xff]
    %s2262 = sld [smem:[#allocation3 + $0x382]]
    %v2263 = vstv %s2262
    %v2264 = vmul.f32 %v2260, %v2263
    %v2265 = vmul.f32 %v2261, %v2263
    %v2266 = vadd.f32 %v2264, 0.0
    %v2267 = vadd.f32 %v2265, 0.0
    %v2268 = vld [vmem:[%s72] sm:$0xff]
    %v2269 = vld [vmem:[%s72 + $0x8] sm:$0xff]
    %s2270 = sld [smem:[#allocation3 + $0x383]]
    %v2271 = vstv %s2270
    %v2272 = vmul.f32 %v2268, %v2271
    %v2273 = vmul.f32 %v2269, %v2271
    %v2274 = vadd.f32 %v2272, 0.0
    %v2275 = vadd.f32 %v2273, 0.0
    %v2276 = vld [vmem:[%s81] sm:$0xff]
    %v2277 = vld [vmem:[%s81 + $0x8] sm:$0xff]
    %s2278 = sld [smem:[#allocation3 + $0x384]]
    %v2279 = vstv %s2278
    %v2280 = vmul.f32 %v2276, %v2279
    %v2281 = vmul.f32 %v2277, %v2279
    %v2282 = vadd.f32 %v2250, %v2280
    %v2283 = vadd.f32 %v2251, %v2281
    %v2284 = vld [vmem:[%s90] sm:$0xff]
    %v2285 = vld [vmem:[%s90 + $0x8] sm:$0xff]
    %s2286 = sld [smem:[#allocation3 + $0x385]]
    %v2287 = vstv %s2286
    %v2288 = vmul.f32 %v2284, %v2287
    %v2289 = vmul.f32 %v2285, %v2287
    %v2290 = vadd.f32 %v2258, %v2288
    %v2291 = vadd.f32 %v2259, %v2289
    %v2292 = vld [vmem:[%s99] sm:$0xff]
    %v2293 = vld [vmem:[%s99 + $0x8] sm:$0xff]
    %s2294 = sld [smem:[#allocation3 + $0x386]]
    %v2295 = vstv %s2294
    %v2296 = vmul.f32 %v2292, %v2295
    %v2297 = vmul.f32 %v2293, %v2295
    %v2298 = vadd.f32 %v2266, %v2296
    %v2299 = vadd.f32 %v2267, %v2297
    %v2300 = vld [vmem:[%s108] sm:$0xff]
    %v2301 = vld [vmem:[%s108 + $0x8] sm:$0xff]
    %s2302 = sld [smem:[#allocation3 + $0x387]]
    %v2303 = vstv %s2302
    %v2304 = vmul.f32 %v2300, %v2303
    %v2305 = vmul.f32 %v2301, %v2303
    %v2306 = vadd.f32 %v2274, %v2304
    %v2307 = vadd.f32 %v2275, %v2305
    %v2308 = vld [vmem:[%s117] sm:$0xff]
    %v2309 = vld [vmem:[%s117 + $0x8] sm:$0xff]
    %s2310 = sld [smem:[#allocation3 + $0x388]]
    %v2311 = vstv %s2310
    %v2312 = vmul.f32 %v2308, %v2311
    %v2313 = vmul.f32 %v2309, %v2311
    %v2314 = vadd.f32 %v2282, %v2312
    %v2315 = vadd.f32 %v2283, %v2313
    %v2316 = vld [vmem:[%s126] sm:$0xff]
    %v2317 = vld [vmem:[%s126 + $0x8] sm:$0xff]
    %s2318 = sld [smem:[#allocation3 + $0x389]]
    %v2319 = vstv %s2318
    %v2320 = vmul.f32 %v2316, %v2319
    %v2321 = vmul.f32 %v2317, %v2319
    %v2322 = vadd.f32 %v2290, %v2320
    %v2323 = vadd.f32 %v2291, %v2321
    %v2324 = vld [vmem:[%s135] sm:$0xff]
    %v2325 = vld [vmem:[%s135 + $0x8] sm:$0xff]
    %s2326 = sld [smem:[#allocation3 + $0x38a]]
    %v2327 = vstv %s2326
    %v2328 = vmul.f32 %v2324, %v2327
    %v2329 = vmul.f32 %v2325, %v2327
    %v2330 = vadd.f32 %v2298, %v2328
    %v2331 = vadd.f32 %v2299, %v2329
    %v2332 = vld [vmem:[%s144] sm:$0xff]
    %v2333 = vld [vmem:[%s144 + $0x8] sm:$0xff]
    %s2334 = sld [smem:[#allocation3 + $0x38b]]
    %v2335 = vstv %s2334
    %v2336 = vmul.f32 %v2332, %v2335
    %v2337 = vmul.f32 %v2333, %v2335
    %v2338 = vadd.f32 %v2306, %v2336
    %v2339 = vadd.f32 %v2307, %v2337
    %v2340 = vld [vmem:[%s153] sm:$0xff]
    %v2341 = vld [vmem:[%s153 + $0x8] sm:$0xff]
    %s2342 = sld [smem:[#allocation3 + $0x38c]]
    %v2343 = vstv %s2342
    %v2344 = vmul.f32 %v2340, %v2343
    %v2345 = vmul.f32 %v2341, %v2343
    %v2346 = vadd.f32 %v2314, %v2344
    %v2347 = vadd.f32 %v2315, %v2345
    %v2348 = vld [vmem:[%s162] sm:$0xff]
    %v2349 = vld [vmem:[%s162 + $0x8] sm:$0xff]
    %s2350 = sld [smem:[#allocation3 + $0x38d]]
    %v2351 = vstv %s2350
    %v2352 = vmul.f32 %v2348, %v2351
    %v2353 = vmul.f32 %v2349, %v2351
    %v2354 = vadd.f32 %v2322, %v2352
    %v2355 = vadd.f32 %v2323, %v2353
    %v2356 = vld [vmem:[%s171] sm:$0xff]
    %v2357 = vld [vmem:[%s171 + $0x8] sm:$0xff]
    %s2358 = sld [smem:[#allocation3 + $0x38e]]
    %v2359 = vstv %s2358
    %v2360 = vmul.f32 %v2356, %v2359
    %v2361 = vmul.f32 %v2357, %v2359
    %v2362 = vadd.f32 %v2330, %v2360
    %v2363 = vadd.f32 %v2331, %v2361
    %v2364 = vld [vmem:[%s180] sm:$0xff]
    %v2365 = vld [vmem:[%s180 + $0x8] sm:$0xff]
    %s2366 = sld [smem:[#allocation3 + $0x38f]]
    %v2367 = vstv %s2366
    %v2368 = vmul.f32 %v2364, %v2367
    %v2369 = vmul.f32 %v2365, %v2367
    %v2370 = vadd.f32 %v2338, %v2368
    %v2371 = vadd.f32 %v2339, %v2369
    %v2372 = vld [vmem:[%s189] sm:$0xff]
    %v2373 = vld [vmem:[%s189 + $0x8] sm:$0xff]
    %s2374 = sld [smem:[#allocation3 + $0x390]]
    %v2375 = vstv %s2374
    %v2376 = vmul.f32 %v2372, %v2375
    %v2377 = vmul.f32 %v2373, %v2375
    %v2378 = vadd.f32 %v2346, %v2376
    %v2379 = vadd.f32 %v2347, %v2377
    %v2380 = vld [vmem:[%s198] sm:$0xff]
    %v2381 = vld [vmem:[%s198 + $0x8] sm:$0xff]
    %s2382 = sld [smem:[#allocation3 + $0x391]]
    %v2383 = vstv %s2382
    %v2384 = vmul.f32 %v2380, %v2383
    %v2385 = vmul.f32 %v2381, %v2383
    %v2386 = vadd.f32 %v2354, %v2384
    %v2387 = vadd.f32 %v2355, %v2385
    %v2388 = vld [vmem:[%s207] sm:$0xff]
    %v2389 = vld [vmem:[%s207 + $0x8] sm:$0xff]
    %s2390 = sld [smem:[#allocation3 + $0x392]]
    %v2391 = vstv %s2390
    %v2392 = vmul.f32 %v2388, %v2391
    %v2393 = vmul.f32 %v2389, %v2391
    %v2394 = vadd.f32 %v2362, %v2392
    %v2395 = vadd.f32 %v2363, %v2393
    %v2396 = vld [vmem:[%s216] sm:$0xff]
    %v2397 = vld [vmem:[%s216 + $0x8] sm:$0xff]
    %s2398 = sld [smem:[#allocation3 + $0x393]]
    %v2399 = vstv %s2398
    %v2400 = vmul.f32 %v2396, %v2399
    %v2401 = vmul.f32 %v2397, %v2399
    %v2402 = vadd.f32 %v2370, %v2400
    %v2403 = vadd.f32 %v2371, %v2401
    %v2404 = vld [vmem:[%s225] sm:$0xff]
    %v2405 = vld [vmem:[%s225 + $0x8] sm:$0xff]
    %s2406 = sld [smem:[#allocation3 + $0x394]]
    %v2407 = vstv %s2406
    %v2408 = vmul.f32 %v2404, %v2407
    %v2409 = vmul.f32 %v2405, %v2407
    %v2410 = vadd.f32 %v2378, %v2408
    %v2411 = vadd.f32 %v2379, %v2409
    %v2412 = vld [vmem:[%s234] sm:$0xff]
    %v2413 = vld [vmem:[%s234 + $0x8] sm:$0xff]
    %s2414 = sld [smem:[#allocation3 + $0x395]]
    %v2415 = vstv %s2414
    %v2416 = vmul.f32 %v2412, %v2415
    %v2417 = vmul.f32 %v2413, %v2415
    %v2418 = vadd.f32 %v2386, %v2416
    %v2419 = vadd.f32 %v2387, %v2417
    %v2420 = vld [vmem:[%s243] sm:$0xff]
    %v2421 = vld [vmem:[%s243 + $0x8] sm:$0xff]
    %s2422 = sld [smem:[#allocation3 + $0x396]]
    %v2423 = vstv %s2422
    %v2424 = vmul.f32 %v2420, %v2423
    %v2425 = vmul.f32 %v2421, %v2423
    %v2426 = vadd.f32 %v2394, %v2424
    %v2427 = vadd.f32 %v2395, %v2425
    %v2428 = vld [vmem:[%s252] sm:$0xff]
    %v2429 = vld [vmem:[%s252 + $0x8] sm:$0xff]
    %s2430 = sld [smem:[#allocation3 + $0x397]]
    %v2431 = vstv %s2430
    %v2432 = vmul.f32 %v2428, %v2431
    %v2433 = vmul.f32 %v2429, %v2431
    %v2434 = vadd.f32 %v2402, %v2432
    %v2435 = vadd.f32 %v2403, %v2433
    %v2436 = vld [vmem:[%s261] sm:$0xff]
    %v2437 = vld [vmem:[%s261 + $0x8] sm:$0xff]
    %s2438 = sld [smem:[#allocation3 + $0x398]]
    %v2439 = vstv %s2438
    %v2440 = vmul.f32 %v2436, %v2439
    %v2441 = vmul.f32 %v2437, %v2439
    %v2442 = vadd.f32 %v2410, %v2440
    %v2443 = vadd.f32 %v2411, %v2441
    %v2444 = vld [vmem:[%s270] sm:$0xff]
    %v2445 = vld [vmem:[%s270 + $0x8] sm:$0xff]
    %s2446 = sld [smem:[#allocation3 + $0x399]]
    %v2447 = vstv %s2446
    %v2448 = vmul.f32 %v2444, %v2447
    %v2449 = vmul.f32 %v2445, %v2447
    %v2450 = vadd.f32 %v2418, %v2448
    %v2451 = vadd.f32 %v2419, %v2449
    %v2452 = vld [vmem:[%s279] sm:$0xff]
    %v2453 = vld [vmem:[%s279 + $0x8] sm:$0xff]
    %s2454 = sld [smem:[#allocation3 + $0x39a]]
    %v2455 = vstv %s2454
    %v2456 = vmul.f32 %v2452, %v2455
    %v2457 = vmul.f32 %v2453, %v2455
    %v2458 = vadd.f32 %v2426, %v2456
    %v2459 = vadd.f32 %v2427, %v2457
    %v2460 = vld [vmem:[%s288] sm:$0xff]
    %v2461 = vld [vmem:[%s288 + $0x8] sm:$0xff]
    %s2462 = sld [smem:[#allocation3 + $0x39b]]
    %v2463 = vstv %s2462
    %v2464 = vmul.f32 %v2460, %v2463
    %v2465 = vmul.f32 %v2461, %v2463
    %v2466 = vadd.f32 %v2434, %v2464
    %v2467 = vadd.f32 %v2435, %v2465
    %v2468 = vld [vmem:[%s297] sm:$0xff]
    %v2469 = vld [vmem:[%s297 + $0x8] sm:$0xff]
    %s2470 = sld [smem:[#allocation3 + $0x39c]]
    %v2471 = vstv %s2470
    %v2472 = vmul.f32 %v2468, %v2471
    %v2473 = vmul.f32 %v2469, %v2471
    %v2474 = vadd.f32 %v2442, %v2472
    %v2475 = vadd.f32 %v2443, %v2473
    %v2476 = vld [vmem:[%s306] sm:$0xff]
    %v2477 = vld [vmem:[%s306 + $0x8] sm:$0xff]
    %s2478 = sld [smem:[#allocation3 + $0x39d]]
    %v2479 = vstv %s2478
    %v2480 = vmul.f32 %v2476, %v2479
    %v2481 = vmul.f32 %v2477, %v2479
    %v2482 = vadd.f32 %v2450, %v2480
    %v2483 = vadd.f32 %v2451, %v2481
    %v2484 = vld [vmem:[%s315] sm:$0xff]
    %v2485 = vld [vmem:[%s315 + $0x8] sm:$0xff]
    %s2486 = sld [smem:[#allocation3 + $0x39e]]
    %v2487 = vstv %s2486
    %v2488 = vmul.f32 %v2484, %v2487
    %v2489 = vmul.f32 %v2485, %v2487
    %v2490 = vadd.f32 %v2458, %v2488
    %v2491 = vadd.f32 %v2459, %v2489
    %v2492 = vld [vmem:[%s324] sm:$0xff]
    %v2493 = vld [vmem:[%s324 + $0x8] sm:$0xff]
    %s2494 = sld [smem:[#allocation3 + $0x39f]]
    %v2495 = vstv %s2494
    %v2496 = vmul.f32 %v2492, %v2495
    %v2497 = vmul.f32 %v2493, %v2495
    %v2498 = vadd.f32 %v2466, %v2496
    %v2499 = vadd.f32 %v2467, %v2497
    %v2500 = vld [vmem:[%s333] sm:$0xff]
    %v2501 = vld [vmem:[%s333 + $0x8] sm:$0xff]
    %s2502 = sld [smem:[#allocation3 + $0x3a0]]
    %v2503 = vstv %s2502
    %v2504 = vmul.f32 %v2500, %v2503
    %v2505 = vmul.f32 %v2501, %v2503
    %v2506 = vadd.f32 %v2474, %v2504
    %v2507 = vadd.f32 %v2475, %v2505
    %v2508 = vld [vmem:[%s342] sm:$0xff]
    %v2509 = vld [vmem:[%s342 + $0x8] sm:$0xff]
    %s2510 = sld [smem:[#allocation3 + $0x3a1]]
    %v2511 = vstv %s2510
    %v2512 = vmul.f32 %v2508, %v2511
    %v2513 = vmul.f32 %v2509, %v2511
    %v2514 = vadd.f32 %v2482, %v2512
    %v2515 = vadd.f32 %v2483, %v2513
    %v2516 = vld [vmem:[%s351] sm:$0xff]
    %v2517 = vld [vmem:[%s351 + $0x8] sm:$0xff]
    %s2518 = sld [smem:[#allocation3 + $0x3a2]]
    %v2519 = vstv %s2518
    %v2520 = vmul.f32 %v2516, %v2519
    %v2521 = vmul.f32 %v2517, %v2519
    %v2522 = vadd.f32 %v2490, %v2520
    %v2523 = vadd.f32 %v2491, %v2521
    %v2524 = vld [vmem:[%s360] sm:$0xff]
    %v2525 = vld [vmem:[%s360 + $0x8] sm:$0xff]
    %s2526 = sld [smem:[#allocation3 + $0x3a3]]
    %v2527 = vstv %s2526
    %v2528 = vmul.f32 %v2524, %v2527
    %v2529 = vmul.f32 %v2525, %v2527
    %v2530 = vadd.f32 %v2498, %v2528
    %v2531 = vadd.f32 %v2499, %v2529
    %v2532 = vadd.f32 %v2506, %v2514
    %v2533 = vadd.f32 %v2507, %v2515
    %v2534 = vadd.f32 %v2522, %v2530
    %v2535 = vadd.f32 %v2523, %v2531
    %v2536 = vadd.f32 %v2532, %v2534
    %v2537 = vadd.f32 %v2533, %v2535
    %s2538 = sld [smem:[#allocation5 + $0x7]]
    %v2539 = vstv %s2538
    %v2540 = vadd.f32 %v2536, %v2539
    %v2541 = vadd.f32 %v2537, %v2539
    %v2542 = vmax.f32 %v2540, 0.0
    %v2543 = vmax.f32 %v2541, 0.0
    %v2544 = vpack.c.bf16 %v2542, %v2542
    %v2545 = vpack.c.bf16 %v2543, %v2543
    %v2548 = vunpack.c.l.b16 %v2544
    %v2549 = vunpack.c.l.b16 %v2545
    %v2550 = vpack.c.b16 %v2549, %v2548
    %2552 = vst [vmem:[#allocation2 + $0x38] sm:$0xff] %v2550
    %v2553 = vld [vmem:[#allocation2] sm:$0xff]
    %v2554 = vld [vmem:[#allocation2 + $0x8] sm:$0xff]
    %v2555 = vld [vmem:[#allocation2 + $0x10] sm:$0xff]
    %v2556 = vld [vmem:[#allocation2 + $0x18] sm:$0xff]
    %v2557 = vld [vmem:[#allocation2 + $0x20] sm:$0xff]
    %v2558 = vld [vmem:[#allocation2 + $0x28] sm:$0xff]
    %v2559 = vld [vmem:[#allocation2 + $0x30] sm:$0xff]
    %v2560 = vld [vmem:[#allocation2 + $0x38] sm:$0xff]
    %v2561 = vld [vmem:[%s3] sm:$0xf]
    %v2562 = vld [vmem:[%s3 + $0x4] sm:$0xf]
    %v2563 = vld [vmem:[%s3 + $0x8] sm:$0xf]
    %v2564 = vld [vmem:[%s3 + $0xc] sm:$0xf]
    %v2565 = vld [vmem:[%s3 + $0x10] sm:$0xf]
    %v2566 = vld [vmem:[%s3 + $0x14] sm:$0xf]
    %v2567 = vld [vmem:[%s3 + $0x18] sm:$0xf]
    %v2568 = vld [vmem:[%s3 + $0x1c] sm:$0xf]
    %v2569 = vld [vmem:[%s3 + $0x20] sm:$0xf]
    %v2570 = vld [vmem:[%s3 + $0x24] sm:$0xf]
    %v2571 = vld [vmem:[%s3 + $0x28] sm:$0xf]
    %v2572 = vld [vmem:[%s3 + $0x2c] sm:$0xf]
    %v2573 = vld [vmem:[%s3 + $0x30] sm:$0xf]
    %v2574 = vld [vmem:[%s3 + $0x34] sm:$0xf]
    %v2575 = vld [vmem:[%s3 + $0x38] sm:$0xf]
    %v2576 = vld [vmem:[%s3 + $0x3c] sm:$0xf]
    %v2577 = vld [vmem:[%s3 + $0x40] sm:$0xf]
    %v2578 = vld [vmem:[%s3 + $0x44] sm:$0xf]
    %v2579 = vld [vmem:[%s3 + $0x48] sm:$0xf]
    %v2580 = vld [vmem:[%s3 + $0x4c] sm:$0xf]
    %v2581 = vld [vmem:[%s3 + $0x50] sm:$0xf]
    %v2582 = vld [vmem:[%s3 + $0x54] sm:$0xf]
    %v2583 = vld [vmem:[%s3 + $0x58] sm:$0xf]
    %v2584 = vld [vmem:[%s3 + $0x5c] sm:$0xf]
    %v2585 = vld [vmem:[%s3 + $0x60] sm:$0xf]
    %v2586 = vld [vmem:[%s3 + $0x64] sm:$0xf]
    %v2587 = vld [vmem:[%s3 + $0x68] sm:$0xf]
    %v2588 = vld [vmem:[%s3 + $0x6c] sm:$0xf]
    %v2589 = vld [vmem:[%s3 + $0x70] sm:$0xf]
    %v2590 = vld [vmem:[%s3 + $0x74] sm:$0xf]
    %v2591 = vld [vmem:[%s3 + $0x78] sm:$0xf]
    %v2592 = vld [vmem:[%s3 + $0x7c] sm:$0xf]
    %v2593 = vld [vmem:[%s3 + $0x80] sm:$0xf]
    %v2594 = vld [vmem:[%s3 + $0x84] sm:$0xf]
    %v2595 = vld [vmem:[%s3 + $0x88] sm:$0xf]
    %v2596 = vld [vmem:[%s3 + $0x8c] sm:$0xf]
    %v2597 = vld [vmem:[%s3 + $0x90] sm:$0xf]
    %v2598 = vld [vmem:[%s3 + $0x94] sm:$0xf]
    %v2599 = vld [vmem:[%s3 + $0x98] sm:$0xf]
    %v2600 = vld [vmem:[%s3 + $0x9c] sm:$0xf]
    %v2601 = vld [vmem:[%s3 + $0xa0] sm:$0xf]
    %v2602 = vld [vmem:[%s3 + $0xa4] sm:$0xf]
    %v2603 = vld [vmem:[%s3 + $0xa8] sm:$0xf]
    %v2604 = vld [vmem:[%s3 + $0xac] sm:$0xf]
    %v2605 = vld [vmem:[%s3 + $0xb0] sm:$0xf]
    %v2606 = vld [vmem:[%s3 + $0xb4] sm:$0xf]
    %v2607 = vld [vmem:[%s3 + $0xb8] sm:$0xf]
    %v2608 = vld [vmem:[%s3 + $0xbc] sm:$0xf]
    %v2609 = vld [vmem:[%s3 + $0xc0] sm:$0xf]
    %v2610 = vld [vmem:[%s3 + $0xc4] sm:$0xf]
    %v2611 = vld [vmem:[%s3 + $0xc8] sm:$0xf]
    %v2612 = vld [vmem:[%s3 + $0xcc] sm:$0xf]
    %v2613 = vld [vmem:[%s3 + $0xd0] sm:$0xf]
    %v2614 = vld [vmem:[%s3 + $0xd4] sm:$0xf]
    %v2615 = vld [vmem:[%s3 + $0xd8] sm:$0xf]
    %v2616 = vld [vmem:[%s3 + $0xdc] sm:$0xf]
    %v2617 = vld [vmem:[%s3 + $0xe0] sm:$0xf]
    %v2618 = vld [vmem:[%s3 + $0xe4] sm:$0xf]
    %v2619 = vld [vmem:[%s3 + $0xe8] sm:$0xf]
    %v2620 = vld [vmem:[%s3 + $0xec] sm:$0xf]
    %v2621 = vld [vmem:[%s3 + $0xf0] sm:$0xf]
    %v2622 = vld [vmem:[%s3 + $0xf4] sm:$0xf]
    %v2623 = vld [vmem:[%s3 + $0xf8] sm:$0xf]
    %v2624 = vld [vmem:[%s3 + $0xfc] sm:$0xf]
    %v2625 = vld [vmem:[%s3 + $0x100] sm:$0xf]
    %v2626 = vld [vmem:[%s3 + $0x104] sm:$0xf]
    %v2627 = vld [vmem:[%s3 + $0x108] sm:$0xf]
    %v2628 = vld [vmem:[%s3 + $0x10c] sm:$0xf]
    %v2629 = vld [vmem:[%s3 + $0x110] sm:$0xf]
    %v2630 = vld [vmem:[%s3 + $0x114] sm:$0xf]
    %v2631 = vld [vmem:[%s3 + $0x118] sm:$0xf]
    %v2632 = vld [vmem:[%s3 + $0x11c] sm:$0xf]
    %v2633 = vld [vmem:[%s3 + $0x120] sm:$0xf]
    %v2634 = vld [vmem:[%s3 + $0x124] sm:$0xf]
    %v2635 = vld [vmem:[%s3 + $0x128] sm:$0xf]
    %v2636 = vld [vmem:[%s3 + $0x12c] sm:$0xf]
    %v2637 = vld [vmem:[%s3 + $0x130] sm:$0xf]
    %v2638 = vld [vmem:[%s3 + $0x134] sm:$0xf]
    %v2639 = vld [vmem:[%s3 + $0x138] sm:$0xf]
    %v2640 = vld [vmem:[%s3 + $0x13c] sm:$0xf]
    %v2641 = vld [vmem:[%s3 + $0x140] sm:$0xf]
    %v2642 = vld [vmem:[%s3 + $0x144] sm:$0xf]
    %v2643 = vld [vmem:[%s3 + $0x148] sm:$0xf]
    %v2644 = vld [vmem:[%s3 + $0x14c] sm:$0xf]
    %v2645 = vld [vmem:[%s3 + $0x150] sm:$0xf]
    %v2646 = vld [vmem:[%s3 + $0x154] sm:$0xf]
    %v2647 = vld [vmem:[%s3 + $0x158] sm:$0xf]
    %v2648 = vld [vmem:[%s3 + $0x15c] sm:$0xf]
    %v2649 = vld [vmem:[%s3 + $0x160] sm:$0xf]
    %v2650 = vld [vmem:[%s3 + $0x164] sm:$0xf]
    %v2651 = vld [vmem:[%s3 + $0x168] sm:$0xf]
    %v2652 = vld [vmem:[%s3 + $0x16c] sm:$0xf]
    %v2653 = vld [vmem:[%s3 + $0x170] sm:$0xf]
    %v2654 = vld [vmem:[%s3 + $0x174] sm:$0xf]
    %v2655 = vld [vmem:[%s3 + $0x178] sm:$0xf]
    %v2656 = vld [vmem:[%s3 + $0x17c] sm:$0xf]
    %v2657 = vld [vmem:[%s3 + $0x180] sm:$0xf]
    %v2658 = vld [vmem:[%s3 + $0x184] sm:$0xf]
    %v2659 = vld [vmem:[%s3 + $0x188] sm:$0xf]
    %v2660 = vld [vmem:[%s3 + $0x18c] sm:$0xf]
    %v2661 = vld [vmem:[%s3 + $0x190] sm:$0xf]
    %v2662 = vld [vmem:[%s3 + $0x194] sm:$0xf]
    %v2663 = vld [vmem:[%s3 + $0x198] sm:$0xf]
    %v2664 = vld [vmem:[%s3 + $0x19c] sm:$0xf]
    %v2665 = vld [vmem:[%s3 + $0x1a0] sm:$0xf]
    %v2666 = vld [vmem:[%s3 + $0x1a4] sm:$0xf]
    %v2667 = vld [vmem:[%s3 + $0x1a8] sm:$0xf]
    %v2668 = vld [vmem:[%s3 + $0x1ac] sm:$0xf]
    %v2669 = vld [vmem:[%s3 + $0x1b0] sm:$0xf]
    %v2670 = vld [vmem:[%s3 + $0x1b4] sm:$0xf]
    %v2671 = vld [vmem:[%s3 + $0x1b8] sm:$0xf]
    %v2672 = vld [vmem:[%s3 + $0x1bc] sm:$0xf]
    %v2673 = vld [vmem:[%s3 + $0x1c0] sm:$0xf]
    %v2674 = vld [vmem:[%s3 + $0x1c4] sm:$0xf]
    %v2675 = vld [vmem:[%s3 + $0x1c8] sm:$0xf]
    %v2676 = vld [vmem:[%s3 + $0x1cc] sm:$0xf]
    %v2677 = vld [vmem:[%s3 + $0x1d0] sm:$0xf]
    %v2678 = vld [vmem:[%s3 + $0x1d4] sm:$0xf]
    %v2679 = vld [vmem:[%s3 + $0x1d8] sm:$0xf]
    %v2680 = vld [vmem:[%s3 + $0x1dc] sm:$0xf]
    %v2681 = vld [vmem:[%s3 + $0x1e0] sm:$0xf]
    %v2682 = vld [vmem:[%s3 + $0x1e4] sm:$0xf]
    %v2683 = vld [vmem:[%s3 + $0x1e8] sm:$0xf]
    %v2684 = vld [vmem:[%s3 + $0x1ec] sm:$0xf]
    %v2685 = vld [vmem:[%s3 + $0x1f0] sm:$0xf]
    %v2686 = vld [vmem:[%s3 + $0x1f4] sm:$0xf]
    %v2687 = vld [vmem:[%s3 + $0x1f8] sm:$0xf]
    %v2688 = vld [vmem:[%s3 + $0x1fc] sm:$0xf]
    %v2689 = vld [vmem:[%s3 + $0x200] sm:$0xf]
    %v2690 = vld [vmem:[%s3 + $0x204] sm:$0xf]
    %v2691 = vld [vmem:[%s3 + $0x208] sm:$0xf]
    %v2692 = vld [vmem:[%s3 + $0x20c] sm:$0xf]
    %v2693 = vld [vmem:[%s3 + $0x210] sm:$0xf]
    %v2694 = vld [vmem:[%s3 + $0x214] sm:$0xf]
    %v2695 = vld [vmem:[%s3 + $0x218] sm:$0xf]
    %v2696 = vld [vmem:[%s3 + $0x21c] sm:$0xf]
    %v2697 = vld [vmem:[%s3 + $0x220] sm:$0xf]
    %v2698 = vld [vmem:[%s3 + $0x224] sm:$0xf]
    %v2699 = vld [vmem:[%s3 + $0x228] sm:$0xf]
    %v2700 = vld [vmem:[%s3 + $0x22c] sm:$0xf]
    %v2701 = vld [vmem:[%s3 + $0x230] sm:$0xf]
    %v2702 = vld [vmem:[%s3 + $0x234] sm:$0xf]
    %v2703 = vld [vmem:[%s3 + $0x238] sm:$0xf]
    %v2704 = vld [vmem:[%s3 + $0x23c] sm:$0xf]
    %v2705 = vld [vmem:[%s3 + $0x240] sm:$0xf]
    %v2706 = vld [vmem:[%s3 + $0x244] sm:$0xf]
    %v2707 = vld [vmem:[%s3 + $0x248] sm:$0xf]
    %v2708 = vld [vmem:[%s3 + $0x24c] sm:$0xf]
    %v2709 = vld [vmem:[%s3 + $0x250] sm:$0xf]
    %v2710 = vld [vmem:[%s3 + $0x254] sm:$0xf]
    %v2711 = vld [vmem:[%s3 + $0x258] sm:$0xf]
    %v2712 = vld [vmem:[%s3 + $0x25c] sm:$0xf]
    %v2713 = vld [vmem:[%s3 + $0x260] sm:$0xf]
    %v2714 = vld [vmem:[%s3 + $0x264] sm:$0xf]
    %v2715 = vld [vmem:[%s3 + $0x268] sm:$0xf]
    %v2716 = vld [vmem:[%s3 + $0x26c] sm:$0xf]
    %v2717 = vld [vmem:[%s3 + $0x270] sm:$0xf]
    %v2718 = vld [vmem:[%s3 + $0x274] sm:$0xf]
    %v2719 = vld [vmem:[%s3 + $0x278] sm:$0xf]
    %v2720 = vld [vmem:[%s3 + $0x27c] sm:$0xf]
    %v2721 = vld [vmem:[%s3 + $0x280] sm:$0xf]
    %v2722 = vld [vmem:[%s3 + $0x284] sm:$0xf]
    %v2723 = vld [vmem:[%s3 + $0x288] sm:$0xf]
    %v2724 = vld [vmem:[%s3 + $0x28c] sm:$0xf]
    %v2725 = vld [vmem:[%s3 + $0x290] sm:$0xf]
    %v2726 = vld [vmem:[%s3 + $0x294] sm:$0xf]
    %v2727 = vld [vmem:[%s3 + $0x298] sm:$0xf]
    %v2728 = vld [vmem:[%s3 + $0x29c] sm:$0xf]
    %v2729 = vld [vmem:[%s3 + $0x2a0] sm:$0xf]
    %v2730 = vld [vmem:[%s3 + $0x2a4] sm:$0xf]
    %v2731 = vld [vmem:[%s3 + $0x2a8] sm:$0xf]
    %v2732 = vld [vmem:[%s3 + $0x2ac] sm:$0xf]
    %v2733 = vld [vmem:[%s3 + $0x2b0] sm:$0xf]
    %v2734 = vld [vmem:[%s3 + $0x2b4] sm:$0xf]
    %v2735 = vld [vmem:[%s3 + $0x2b8] sm:$0xf]
    %v2736 = vld [vmem:[%s3 + $0x2bc] sm:$0xf]
    %v2737 = vld [vmem:[%s3 + $0x2c0] sm:$0xf]
    %v2738 = vld [vmem:[%s3 + $0x2c4] sm:$0xf]
    %v2739 = vld [vmem:[%s3 + $0x2c8] sm:$0xf]
    %v2740 = vld [vmem:[%s3 + $0x2cc] sm:$0xf]
    %v2741 = vld [vmem:[%s3 + $0x2d0] sm:$0xf]
    %v2742 = vld [vmem:[%s3 + $0x2d4] sm:$0xf]
    %v2743 = vld [vmem:[%s3 + $0x2d8] sm:$0xf]
    %v2744 = vld [vmem:[%s3 + $0x2dc] sm:$0xf]
    %v2745 = vld [vmem:[%s3 + $0x2e0] sm:$0xf]
    %v2746 = vld [vmem:[%s3 + $0x2e4] sm:$0xf]
    %v2747 = vld [vmem:[%s3 + $0x2e8] sm:$0xf]
    %v2748 = vld [vmem:[%s3 + $0x2ec] sm:$0xf]
    %v2749 = vld [vmem:[%s3 + $0x2f0] sm:$0xf]
    %v2750 = vld [vmem:[%s3 + $0x2f4] sm:$0xf]
    %v2751 = vld [vmem:[%s3 + $0x2f8] sm:$0xf]
    %v2752 = vld [vmem:[%s3 + $0x2fc] sm:$0xf]
    %v2753 = vld [vmem:[%s3 + $0x300] sm:$0xf]
    %v2754 = vld [vmem:[%s3 + $0x304] sm:$0xf]
    %v2755 = vld [vmem:[%s3 + $0x308] sm:$0xf]
    %v2756 = vld [vmem:[%s3 + $0x30c] sm:$0xf]
    %v2757 = vld [vmem:[%s3 + $0x310] sm:$0xf]
    %v2758 = vld [vmem:[%s3 + $0x314] sm:$0xf]
    %v2759 = vld [vmem:[%s3 + $0x318] sm:$0xf]
    %v2760 = vld [vmem:[%s3 + $0x31c] sm:$0xf]
    %v2761 = vld [vmem:[%s3 + $0x320] sm:$0xf]
    %v2762 = vld [vmem:[%s3 + $0x324] sm:$0xf]
    %v2763 = vld [vmem:[%s3 + $0x328] sm:$0xf]
    %v2764 = vld [vmem:[%s3 + $0x32c] sm:$0xf]
    %v2765 = vld [vmem:[%s3 + $0x330] sm:$0xf]
    %v2766 = vld [vmem:[%s3 + $0x334] sm:$0xf]
    %v2767 = vld [vmem:[%s3 + $0x338] sm:$0xf]
    %v2768 = vld [vmem:[%s3 + $0x33c] sm:$0xf]
    %v2769 = vld [vmem:[%s3 + $0x340] sm:$0xf]
    %v2770 = vld [vmem:[%s3 + $0x344] sm:$0xf]
    %v2771 = vld [vmem:[%s3 + $0x348] sm:$0xf]
    %v2772 = vld [vmem:[%s3 + $0x34c] sm:$0xf]
    %v2773 = vld [vmem:[%s3 + $0x350] sm:$0xf]
    %v2774 = vld [vmem:[%s3 + $0x354] sm:$0xf]
    %v2775 = vld [vmem:[%s3 + $0x358] sm:$0xf]
    %v2776 = vld [vmem:[%s3 + $0x35c] sm:$0xf]
    %v2777 = vld [vmem:[%s3 + $0x360] sm:$0xf]
    %v2778 = vld [vmem:[%s3 + $0x364] sm:$0xf]
    %v2779 = vld [vmem:[%s3 + $0x368] sm:$0xf]
    %v2780 = vld [vmem:[%s3 + $0x36c] sm:$0xf]
    %v2781 = vld [vmem:[%s3 + $0x370] sm:$0xf]
    %v2782 = vld [vmem:[%s3 + $0x374] sm:$0xf]
    %v2783 = vld [vmem:[%s3 + $0x378] sm:$0xf]
    %v2784 = vld [vmem:[%s3 + $0x37c] sm:$0xf]
    %v2785 = vld [vmem:[%s3 + $0x380] sm:$0xf]
    %v2786 = vld [vmem:[%s3 + $0x384] sm:$0xf]
    %v2787 = vld [vmem:[%s3 + $0x388] sm:$0xf]
    %v2788 = vld [vmem:[%s3 + $0x38c] sm:$0xf]
    %v2789 = vld [vmem:[%s3 + $0x390] sm:$0xf]
    %v2790 = vld [vmem:[%s3 + $0x394] sm:$0xf]
    %v2791 = vld [vmem:[%s3 + $0x398] sm:$0xf]
    %v2792 = vld [vmem:[%s3 + $0x39c] sm:$0xf]
    %v2793 = vld [vmem:[%s3 + $0x3a0] sm:$0xf]
    %v2794 = vld [vmem:[%s3 + $0x3a4] sm:$0xf]
    %v2795 = vld [vmem:[%s3 + $0x3a8] sm:$0xf]
    %v2796 = vld [vmem:[%s3 + $0x3ac] sm:$0xf]
    %v2797 = vld [vmem:[%s3 + $0x3b0] sm:$0xf]
    %v2798 = vld [vmem:[%s3 + $0x3b4] sm:$0xf]
    %v2799 = vld [vmem:[%s3 + $0x3b8] sm:$0xf]
    %v2800 = vld [vmem:[%s3 + $0x3bc] sm:$0xf]
    %v2801 = vld [vmem:[%s3 + $0x3c0] sm:$0xf]
    %v2802 = vld [vmem:[%s3 + $0x3c4] sm:$0xf]
    %v2803 = vld [vmem:[%s3 + $0x3c8] sm:$0xf]
    %v2804 = vld [vmem:[%s3 + $0x3cc] sm:$0xf]
    %v2805 = vld [vmem:[%s3 + $0x3d0] sm:$0xf]
    %v2806 = vld [vmem:[%s3 + $0x3d4] sm:$0xf]
    %v2807 = vld [vmem:[%s3 + $0x3d8] sm:$0xf]
    %v2808 = vld [vmem:[%s3 + $0x3dc] sm:$0xf]
    %v2809 = vld [vmem:[%s3 + $0x3e0] sm:$0xf]
    %v2810 = vld [vmem:[%s3 + $0x3e4] sm:$0xf]
    %v2811 = vld [vmem:[%s3 + $0x3e8] sm:$0xf]
    %v2812 = vld [vmem:[%s3 + $0x3ec] sm:$0xf]
    %v2813 = vld [vmem:[%s3 + $0x3f0] sm:$0xf]
    %v2814 = vld [vmem:[%s3 + $0x3f4] sm:$0xf]
    %v2815 = vld [vmem:[%s3 + $0x3f8] sm:$0xf]
    %v2816 = vld [vmem:[%s3 + $0x3fc] sm:$0xf]
    %v2817 = vld [vmem:[%s4] sm:$0x1]
    %v2819 = vlaneseq
    %v2820 = vshrl.u32 %v2819, 7
    %v2821 = vsub.s32 0, %v2820
    %v2822 = vrot.slane %v2817, %v2821
    %v2832 = vunpack.c.l.b16 %v2553
    %v2833 = vunpack.c.h.b16 %v2553
    %v2834 = vunpack.c.l.b16 %v2554
    %v2835 = vunpack.c.h.b16 %v2554
    %v2836 = vunpack.c.l.b16 %v2555
    %v2837 = vunpack.c.h.b16 %v2555
    %v2838 = vunpack.c.l.b16 %v2556
    %v2839 = vunpack.c.h.b16 %v2556
    %v2840 = vunpack.c.l.b16 %v2557
    %v2841 = vunpack.c.h.b16 %v2557
    %v2842 = vunpack.c.l.b16 %v2558
    %v2843 = vunpack.c.h.b16 %v2558
    %v2844 = vunpack.c.l.b16 %v2559
    %v2845 = vunpack.c.h.b16 %v2559
    %v2846 = vunpack.c.l.b16 %v2560
    %v2847 = vunpack.c.h.b16 %v2560
    %v2848 = vpack.c.b16 %v2832, %v2832
    %v2849 = vpack.c.b16 %v2833, %v2833
    %v2850 = vpack.c.b16 %v2834, %v2834
    %v2851 = vpack.c.b16 %v2835, %v2835
    %v2852 = vpack.c.b16 %v2836, %v2836
    %v2853 = vpack.c.b16 %v2837, %v2837
    %v2854 = vpack.c.b16 %v2838, %v2838
    %v2855 = vpack.c.b16 %v2839, %v2839
    %v2856 = vpack.c.b16 %v2840, %v2840
    %v2857 = vpack.c.b16 %v2841, %v2841
    %v2858 = vpack.c.b16 %v2842, %v2842
    %v2859 = vpack.c.b16 %v2843, %v2843
    %v2860 = vpack.c.b16 %v2844, %v2844
    %v2861 = vpack.c.b16 %v2845, %v2845
    %v2862 = vpack.c.b16 %v2846, %v2846
    %v2863 = vpack.c.b16 %v2847, %v2847
    %v3136 = vunpack.c.l.b16 %v2561
    %v3137 = vunpack.c.l.b16 %v2562
    %v3138 = vunpack.c.l.b16 %v2563
    %v3139 = vunpack.c.l.b16 %v2564
    %v3140 = vunpack.c.l.b16 %v2565
    %v3141 = vunpack.c.l.b16 %v2566
    %v3142 = vunpack.c.l.b16 %v2567
    %v3143 = vunpack.c.l.b16 %v2568
    %v3144 = vunpack.c.l.b16 %v2569
    %v3145 = vunpack.c.l.b16 %v2570
    %v3146 = vunpack.c.l.b16 %v2571
    %v3147 = vunpack.c.l.b16 %v2572
    %v3148 = vunpack.c.l.b16 %v2573
    %v3149 = vunpack.c.l.b16 %v2574
    %v3150 = vunpack.c.l.b16 %v2575
    %v3151 = vunpack.c.l.b16 %v2576
    %v3152 = vunpack.c.l.b16 %v2577
    %v3153 = vunpack.c.l.b16 %v2578
    %v3154 = vunpack.c.l.b16 %v2579
    %v3155 = vunpack.c.l.b16 %v2580
    %v3156 = vunpack.c.l.b16 %v2581
    %v3157 = vunpack.c.l.b16 %v2582
    %v3158 = vunpack.c.l.b16 %v2583
    %v3159 = vunpack.c.l.b16 %v2584
    %v3160 = vunpack.c.l.b16 %v2585
    %v3161 = vunpack.c.l.b16 %v2586
    %v3162 = vunpack.c.l.b16 %v2587
    %v3163 = vunpack.c.l.b16 %v2588
    %v3164 = vunpack.c.l.b16 %v2589
    %v3165 = vunpack.c.l.b16 %v2590
    %v3166 = vunpack.c.l.b16 %v2591
    %v3167 = vunpack.c.l.b16 %v2592
    %v3168 = vunpack.c.l.b16 %v2593
    %v3169 = vunpack.c.l.b16 %v2594
    %v3170 = vunpack.c.l.b16 %v2595
    %v3171 = vunpack.c.l.b16 %v2596
    %v3172 = vunpack.c.l.b16 %v2597
    %v3173 = vunpack.c.l.b16 %v2598
    %v3174 = vunpack.c.l.b16 %v2599
    %v3175 = vunpack.c.l.b16 %v2600
    %v3176 = vunpack.c.l.b16 %v2601
    %v3177 = vunpack.c.l.b16 %v2602
    %v3178 = vunpack.c.l.b16 %v2603
    %v3179 = vunpack.c.l.b16 %v2604
    %v3180 = vunpack.c.l.b16 %v2605
    %v3181 = vunpack.c.l.b16 %v2606
    %v3182 = vunpack.c.l.b16 %v2607
    %v3183 = vunpack.c.l.b16 %v2608
    %v3184 = vunpack.c.l.b16 %v2609
    %v3185 = vunpack.c.l.b16 %v2610
    %v3186 = vunpack.c.l.b16 %v2611
    %v3187 = vunpack.c.l.b16 %v2612
    %v3188 = vunpack.c.l.b16 %v2613
    %v3189 = vunpack.c.l.b16 %v2614
    %v3190 = vunpack.c.l.b16 %v2615
    %v3191 = vunpack.c.l.b16 %v2616
    %v3192 = vunpack.c.l.b16 %v2617
    %v3193 = vunpack.c.l.b16 %v2618
    %v3194 = vunpack.c.l.b16 %v2619
    %v3195 = vunpack.c.l.b16 %v2620
    %v3196 = vunpack.c.l.b16 %v2621
    %v3197 = vunpack.c.l.b16 %v2622
    %v3198 = vunpack.c.l.b16 %v2623
    %v3199 = vunpack.c.l.b16 %v2624
    %v3200 = vunpack.c.l.b16 %v2625
    %v3201 = vunpack.c.l.b16 %v2626
    %v3202 = vunpack.c.l.b16 %v2627
    %v3203 = vunpack.c.l.b16 %v2628
    %v3204 = vunpack.c.l.b16 %v2629
    %v3205 = vunpack.c.l.b16 %v2630
    %v3206 = vunpack.c.l.b16 %v2631
    %v3207 = vunpack.c.l.b16 %v2632
    %v3208 = vunpack.c.l.b16 %v2633
    %v3209 = vunpack.c.l.b16 %v2634
    %v3210 = vunpack.c.l.b16 %v2635
    %v3211 = vunpack.c.l.b16 %v2636
    %v3212 = vunpack.c.l.b16 %v2637
    %v3213 = vunpack.c.l.b16 %v2638
    %v3214 = vunpack.c.l.b16 %v2639
    %v3215 = vunpack.c.l.b16 %v2640
    %v3216 = vunpack.c.l.b16 %v2641
    %v3217 = vunpack.c.l.b16 %v2642
    %v3218 = vunpack.c.l.b16 %v2643
    %v3219 = vunpack.c.l.b16 %v2644
    %v3220 = vunpack.c.l.b16 %v2645
    %v3221 = vunpack.c.l.b16 %v2646
    %v3222 = vunpack.c.l.b16 %v2647
    %v3223 = vunpack.c.l.b16 %v2648
    %v3224 = vunpack.c.l.b16 %v2649
    %v3225 = vunpack.c.l.b16 %v2650
    %v3226 = vunpack.c.l.b16 %v2651
    %v3227 = vunpack.c.l.b16 %v2652
    %v3228 = vunpack.c.l.b16 %v2653
    %v3229 = vunpack.c.l.b16 %v2654
    %v3230 = vunpack.c.l.b16 %v2655
    %v3231 = vunpack.c.l.b16 %v2656
    %v3232 = vunpack.c.l.b16 %v2657
    %v3233 = vunpack.c.l.b16 %v2658
    %v3234 = vunpack.c.l.b16 %v2659
    %v3235 = vunpack.c.l.b16 %v2660
    %v3236 = vunpack.c.l.b16 %v2661
    %v3237 = vunpack.c.l.b16 %v2662
    %v3238 = vunpack.c.l.b16 %v2663
    %v3239 = vunpack.c.l.b16 %v2664
    %v3240 = vunpack.c.l.b16 %v2665
    %v3241 = vunpack.c.l.b16 %v2666
    %v3242 = vunpack.c.l.b16 %v2667
    %v3243 = vunpack.c.l.b16 %v2668
    %v3244 = vunpack.c.l.b16 %v2669
    %v3245 = vunpack.c.l.b16 %v2670
    %v3246 = vunpack.c.l.b16 %v2671
    %v3247 = vunpack.c.l.b16 %v2672
    %v3248 = vunpack.c.l.b16 %v2673
    %v3249 = vunpack.c.l.b16 %v2674
    %v3250 = vunpack.c.l.b16 %v2675
    %v3251 = vunpack.c.l.b16 %v2676
    %v3252 = vunpack.c.l.b16 %v2677
    %v3253 = vunpack.c.l.b16 %v2678
    %v3254 = vunpack.c.l.b16 %v2679
    %v3255 = vunpack.c.l.b16 %v2680
    %v3256 = vunpack.c.l.b16 %v2681
    %v3257 = vunpack.c.l.b16 %v2682
    %v3258 = vunpack.c.l.b16 %v2683
    %v3259 = vunpack.c.l.b16 %v2684
    %v3260 = vunpack.c.l.b16 %v2685
    %v3261 = vunpack.c.l.b16 %v2686
    %v3262 = vunpack.c.l.b16 %v2687
    %v3263 = vunpack.c.l.b16 %v2688
    %v3264 = vunpack.c.l.b16 %v2689
    %v3265 = vunpack.c.l.b16 %v2690
    %v3266 = vunpack.c.l.b16 %v2691
    %v3267 = vunpack.c.l.b16 %v2692
    %v3268 = vunpack.c.l.b16 %v2693
    %v3269 = vunpack.c.l.b16 %v2694
    %v3270 = vunpack.c.l.b16 %v2695
    %v3271 = vunpack.c.l.b16 %v2696
    %v3272 = vunpack.c.l.b16 %v2697
    %v3273 = vunpack.c.l.b16 %v2698
    %v3274 = vunpack.c.l.b16 %v2699
    %v3275 = vunpack.c.l.b16 %v2700
    %v3276 = vunpack.c.l.b16 %v2701
    %v3277 = vunpack.c.l.b16 %v2702
    %v3278 = vunpack.c.l.b16 %v2703
    %v3279 = vunpack.c.l.b16 %v2704
    %v3280 = vunpack.c.l.b16 %v2705
    %v3281 = vunpack.c.l.b16 %v2706
    %v3282 = vunpack.c.l.b16 %v2707
    %v3283 = vunpack.c.l.b16 %v2708
    %v3284 = vunpack.c.l.b16 %v2709
    %v3285 = vunpack.c.l.b16 %v2710
    %v3286 = vunpack.c.l.b16 %v2711
    %v3287 = vunpack.c.l.b16 %v2712
    %v3288 = vunpack.c.l.b16 %v2713
    %v3289 = vunpack.c.l.b16 %v2714
    %v3290 = vunpack.c.l.b16 %v2715
    %v3291 = vunpack.c.l.b16 %v2716
    %v3292 = vunpack.c.l.b16 %v2717
    %v3293 = vunpack.c.l.b16 %v2718
    %v3294 = vunpack.c.l.b16 %v2719
    %v3295 = vunpack.c.l.b16 %v2720
    %v3296 = vunpack.c.l.b16 %v2721
    %v3297 = vunpack.c.l.b16 %v2722
    %v3298 = vunpack.c.l.b16 %v2723
    %v3299 = vunpack.c.l.b16 %v2724
    %v3300 = vunpack.c.l.b16 %v2725
    %v3301 = vunpack.c.l.b16 %v2726
    %v3302 = vunpack.c.l.b16 %v2727
    %v3303 = vunpack.c.l.b16 %v2728
    %v3304 = vunpack.c.l.b16 %v2729
    %v3305 = vunpack.c.l.b16 %v2730
    %v3306 = vunpack.c.l.b16 %v2731
    %v3307 = vunpack.c.l.b16 %v2732
    %v3308 = vunpack.c.l.b16 %v2733
    %v3309 = vunpack.c.l.b16 %v2734
    %v3310 = vunpack.c.l.b16 %v2735
    %v3311 = vunpack.c.l.b16 %v2736
    %v3312 = vunpack.c.l.b16 %v2737
    %v3313 = vunpack.c.l.b16 %v2738
    %v3314 = vunpack.c.l.b16 %v2739
    %v3315 = vunpack.c.l.b16 %v2740
    %v3316 = vunpack.c.l.b16 %v2741
    %v3317 = vunpack.c.l.b16 %v2742
    %v3318 = vunpack.c.l.b16 %v2743
    %v3319 = vunpack.c.l.b16 %v2744
    %v3320 = vunpack.c.l.b16 %v2745
    %v3321 = vunpack.c.l.b16 %v2746
    %v3322 = vunpack.c.l.b16 %v2747
    %v3323 = vunpack.c.l.b16 %v2748
    %v3324 = vunpack.c.l.b16 %v2749
    %v3325 = vunpack.c.l.b16 %v2750
    %v3326 = vunpack.c.l.b16 %v2751
    %v3327 = vunpack.c.l.b16 %v2752
    %v3328 = vunpack.c.l.b16 %v2753
    %v3329 = vunpack.c.l.b16 %v2754
    %v3330 = vunpack.c.l.b16 %v2755
    %v3331 = vunpack.c.l.b16 %v2756
    %v3332 = vunpack.c.l.b16 %v2757
    %v3333 = vunpack.c.l.b16 %v2758
    %v3334 = vunpack.c.l.b16 %v2759
    %v3335 = vunpack.c.l.b16 %v2760
    %v3336 = vunpack.c.l.b16 %v2761
    %v3337 = vunpack.c.l.b16 %v2762
    %v3338 = vunpack.c.l.b16 %v2763
    %v3339 = vunpack.c.l.b16 %v2764
    %v3340 = vunpack.c.l.b16 %v2765
    %v3341 = vunpack.c.l.b16 %v2766
    %v3342 = vunpack.c.l.b16 %v2767
    %v3343 = vunpack.c.l.b16 %v2768
    %v3344 = vunpack.c.l.b16 %v2769
    %v3345 = vunpack.c.l.b16 %v2770
    %v3346 = vunpack.c.l.b16 %v2771
    %v3347 = vunpack.c.l.b16 %v2772
    %v3348 = vunpack.c.l.b16 %v2773
    %v3349 = vunpack.c.l.b16 %v2774
    %v3350 = vunpack.c.l.b16 %v2775
    %v3351 = vunpack.c.l.b16 %v2776
    %v3352 = vunpack.c.l.b16 %v2777
    %v3353 = vunpack.c.l.b16 %v2778
    %v3354 = vunpack.c.l.b16 %v2779
    %v3355 = vunpack.c.l.b16 %v2780
    %v3356 = vunpack.c.l.b16 %v2781
    %v3357 = vunpack.c.l.b16 %v2782
    %v3358 = vunpack.c.l.b16 %v2783
    %v3359 = vunpack.c.l.b16 %v2784
    %v3360 = vunpack.c.l.b16 %v2785
    %v3361 = vunpack.c.l.b16 %v2786
    %v3362 = vunpack.c.l.b16 %v2787
    %v3363 = vunpack.c.l.b16 %v2788
    %v3364 = vunpack.c.l.b16 %v2789
    %v3365 = vunpack.c.l.b16 %v2790
    %v3366 = vunpack.c.l.b16 %v2791
    %v3367 = vunpack.c.l.b16 %v2792
    %v3368 = vunpack.c.l.b16 %v2793
    %v3369 = vunpack.c.l.b16 %v2794
    %v3370 = vunpack.c.l.b16 %v2795
    %v3371 = vunpack.c.l.b16 %v2796
    %v3372 = vunpack.c.l.b16 %v2797
    %v3373 = vunpack.c.l.b16 %v2798
    %v3374 = vunpack.c.l.b16 %v2799
    %v3375 = vunpack.c.l.b16 %v2800
    %v3376 = vunpack.c.l.b16 %v2801
    %v3377 = vunpack.c.l.b16 %v2802
    %v3378 = vunpack.c.l.b16 %v2803
    %v3379 = vunpack.c.l.b16 %v2804
    %v3380 = vunpack.c.l.b16 %v2805
    %v3381 = vunpack.c.l.b16 %v2806
    %v3382 = vunpack.c.l.b16 %v2807
    %v3383 = vunpack.c.l.b16 %v2808
    %v3384 = vunpack.c.l.b16 %v2809
    %v3385 = vunpack.c.l.b16 %v2810
    %v3386 = vunpack.c.l.b16 %v2811
    %v3387 = vunpack.c.l.b16 %v2812
    %v3388 = vunpack.c.l.b16 %v2813
    %v3389 = vunpack.c.l.b16 %v2814
    %v3390 = vunpack.c.l.b16 %v2815
    %v3391 = vunpack.c.l.b16 %v2816
    %v3392 = vpack.c.b16 %v3137, %v3136
    %v3393 = vpack.c.b16 %v3139, %v3138
    %v3394 = vpack.c.b16 %v3141, %v3140
    %v3395 = vpack.c.b16 %v3143, %v3142
    %v3396 = vpack.c.b16 %v3145, %v3144
    %v3397 = vpack.c.b16 %v3147, %v3146
    %v3398 = vpack.c.b16 %v3149, %v3148
    %v3399 = vpack.c.b16 %v3151, %v3150
    %v3400 = vpack.c.b16 %v3153, %v3152
    %v3401 = vpack.c.b16 %v3155, %v3154
    %v3402 = vpack.c.b16 %v3157, %v3156
    %v3403 = vpack.c.b16 %v3159, %v3158
    %v3404 = vpack.c.b16 %v3161, %v3160
    %v3405 = vpack.c.b16 %v3163, %v3162
    %v3406 = vpack.c.b16 %v3165, %v3164
    %v3407 = vpack.c.b16 %v3167, %v3166
    %v3408 = vpack.c.b16 %v3169, %v3168
    %v3409 = vpack.c.b16 %v3171, %v3170
    %v3410 = vpack.c.b16 %v3173, %v3172
    %v3411 = vpack.c.b16 %v3175, %v3174
    %v3412 = vpack.c.b16 %v3177, %v3176
    %v3413 = vpack.c.b16 %v3179, %v3178
    %v3414 = vpack.c.b16 %v3181, %v3180
    %v3415 = vpack.c.b16 %v3183, %v3182
    %v3416 = vpack.c.b16 %v3185, %v3184
    %v3417 = vpack.c.b16 %v3187, %v3186
    %v3418 = vpack.c.b16 %v3189, %v3188
    %v3419 = vpack.c.b16 %v3191, %v3190
    %v3420 = vpack.c.b16 %v3193, %v3192
    %v3421 = vpack.c.b16 %v3195, %v3194
    %v3422 = vpack.c.b16 %v3197, %v3196
    %v3423 = vpack.c.b16 %v3199, %v3198
    %v3424 = vpack.c.b16 %v3201, %v3200
    %v3425 = vpack.c.b16 %v3203, %v3202
    %v3426 = vpack.c.b16 %v3205, %v3204
    %v3427 = vpack.c.b16 %v3207, %v3206
    %v3428 = vpack.c.b16 %v3209, %v3208
    %v3429 = vpack.c.b16 %v3211, %v3210
    %v3430 = vpack.c.b16 %v3213, %v3212
    %v3431 = vpack.c.b16 %v3215, %v3214
    %v3432 = vpack.c.b16 %v3217, %v3216
    %v3433 = vpack.c.b16 %v3219, %v3218
    %v3434 = vpack.c.b16 %v3221, %v3220
    %v3435 = vpack.c.b16 %v3223, %v3222
    %v3436 = vpack.c.b16 %v3225, %v3224
    %v3437 = vpack.c.b16 %v3227, %v3226
    %v3438 = vpack.c.b16 %v3229, %v3228
    %v3439 = vpack.c.b16 %v3231, %v3230
    %v3440 = vpack.c.b16 %v3233, %v3232
    %v3441 = vpack.c.b16 %v3235, %v3234
    %v3442 = vpack.c.b16 %v3237, %v3236
    %v3443 = vpack.c.b16 %v3239, %v3238
    %v3444 = vpack.c.b16 %v3241, %v3240
    %v3445 = vpack.c.b16 %v3243, %v3242
    %v3446 = vpack.c.b16 %v3245, %v3244
    %v3447 = vpack.c.b16 %v3247, %v3246
    %v3448 = vpack.c.b16 %v3249, %v3248
    %v3449 = vpack.c.b16 %v3251, %v3250
    %v3450 = vpack.c.b16 %v3253, %v3252
    %v3451 = vpack.c.b16 %v3255, %v3254
    %v3452 = vpack.c.b16 %v3257, %v3256
    %v3453 = vpack.c.b16 %v3259, %v3258
    %v3454 = vpack.c.b16 %v3261, %v3260
    %v3455 = vpack.c.b16 %v3263, %v3262
    %v3456 = vpack.c.b16 %v3265, %v3264
    %v3457 = vpack.c.b16 %v3267, %v3266
    %v3458 = vpack.c.b16 %v3269, %v3268
    %v3459 = vpack.c.b16 %v3271, %v3270
    %v3460 = vpack.c.b16 %v3273, %v3272
    %v3461 = vpack.c.b16 %v3275, %v3274
    %v3462 = vpack.c.b16 %v3277, %v3276
    %v3463 = vpack.c.b16 %v3279, %v3278
    %v3464 = vpack.c.b16 %v3281, %v3280
    %v3465 = vpack.c.b16 %v3283, %v3282
    %v3466 = vpack.c.b16 %v3285, %v3284
    %v3467 = vpack.c.b16 %v3287, %v3286
    %v3468 = vpack.c.b16 %v3289, %v3288
    %v3469 = vpack.c.b16 %v3291, %v3290
    %v3470 = vpack.c.b16 %v3293, %v3292
    %v3471 = vpack.c.b16 %v3295, %v3294
    %v3472 = vpack.c.b16 %v3297, %v3296
    %v3473 = vpack.c.b16 %v3299, %v3298
    %v3474 = vpack.c.b16 %v3301, %v3300
    %v3475 = vpack.c.b16 %v3303, %v3302
    %v3476 = vpack.c.b16 %v3305, %v3304
    %v3477 = vpack.c.b16 %v3307, %v3306
    %v3478 = vpack.c.b16 %v3309, %v3308
    %v3479 = vpack.c.b16 %v3311, %v3310
    %v3480 = vpack.c.b16 %v3313, %v3312
    %v3481 = vpack.c.b16 %v3315, %v3314
    %v3482 = vpack.c.b16 %v3317, %v3316
    %v3483 = vpack.c.b16 %v3319, %v3318
    %v3484 = vpack.c.b16 %v3321, %v3320
    %v3485 = vpack.c.b16 %v3323, %v3322
    %v3486 = vpack.c.b16 %v3325, %v3324
    %v3487 = vpack.c.b16 %v3327, %v3326
    %v3488 = vpack.c.b16 %v3329, %v3328
    %v3489 = vpack.c.b16 %v3331, %v3330
    %v3490 = vpack.c.b16 %v3333, %v3332
    %v3491 = vpack.c.b16 %v3335, %v3334
    %v3492 = vpack.c.b16 %v3337, %v3336
    %v3493 = vpack.c.b16 %v3339, %v3338
    %v3494 = vpack.c.b16 %v3341, %v3340
    %v3495 = vpack.c.b16 %v3343, %v3342
    %v3496 = vpack.c.b16 %v3345, %v3344
    %v3497 = vpack.c.b16 %v3347, %v3346
    %v3498 = vpack.c.b16 %v3349, %v3348
    %v3499 = vpack.c.b16 %v3351, %v3350
    %v3500 = vpack.c.b16 %v3353, %v3352
    %v3501 = vpack.c.b16 %v3355, %v3354
    %v3502 = vpack.c.b16 %v3357, %v3356
    %v3503 = vpack.c.b16 %v3359, %v3358
    %v3504 = vpack.c.b16 %v3361, %v3360
    %v3505 = vpack.c.b16 %v3363, %v3362
    %v3506 = vpack.c.b16 %v3365, %v3364
    %v3507 = vpack.c.b16 %v3367, %v3366
    %v3508 = vpack.c.b16 %v3369, %v3368
    %v3509 = vpack.c.b16 %v3371, %v3370
    %v3510 = vpack.c.b16 %v3373, %v3372
    %v3511 = vpack.c.b16 %v3375, %v3374
    %v3512 = vpack.c.b16 %v3377, %v3376
    %v3513 = vpack.c.b16 %v3379, %v3378
    %v3514 = vpack.c.b16 %v3381, %v3380
    %v3515 = vpack.c.b16 %v3383, %v3382
    %v3516 = vpack.c.b16 %v3385, %v3384
    %v3517 = vpack.c.b16 %v3387, %v3386
    %v3518 = vpack.c.b16 %v3389, %v3388
    %v3519 = vpack.c.b16 %v3391, %v3390
    %3648 = vmatprep.subr.bf16.mxu0 0
    %3649 = vmatpush1.bf16.msra.mxu0 %v3392
    %3650 = vmatprep.subr.bf16.mxu0 0
    %3651 = vmatpush1.bf16.msra.mxu0 %v3393
    %3652 = vmatprep.subr.bf16.mxu0 0
    %3653 = vmatpush1.bf16.msra.mxu0 %v3394
    %3654 = vmatprep.subr.bf16.mxu0 0
    %3655 = vmatpush1.bf16.msra.mxu0 %v3395
    %3656 = vmatprep.subr.bf16.mxu0 0
    %3657 = vmatpush1.bf16.msra.mxu0 %v3396
    %3658 = vmatprep.subr.bf16.mxu0 0
    %3659 = vmatpush1.bf16.msra.mxu0 %v3397
    %3660 = vmatprep.subr.bf16.mxu0 0
    %3661 = vmatpush1.bf16.msra.mxu0 %v3398
    %3662 = vmatprep.subr.bf16.mxu0 0
    %3663 = vmatpush1.bf16.msra.mxu0 %v3399
    %3664 = vmatprep.subr.bf16.mxu0 0
    %3665 = vmatpush1.bf16.msra.mxu0 %v3400
    %3666 = vmatprep.subr.bf16.mxu0 0
    %3667 = vmatpush1.bf16.msra.mxu0 %v3401
    %3668 = vmatprep.subr.bf16.mxu0 0
    %3669 = vmatpush1.bf16.msra.mxu0 %v3402
    %3670 = vmatprep.subr.bf16.mxu0 0
    %3671 = vmatpush1.bf16.msra.mxu0 %v3403
    %3672 = vmatprep.subr.bf16.mxu0 0
    %3673 = vmatpush1.bf16.msra.mxu0 %v3404
    %3674 = vmatprep.subr.bf16.mxu0 0
    %3675 = vmatpush1.bf16.msra.mxu0 %v3405
    %3676 = vmatprep.subr.bf16.mxu0 0
    %3677 = vmatpush1.bf16.msra.mxu0 %v3406
    %3678 = vmatprep.subr.bf16.mxu0 0
    %3679 = vmatpush1.bf16.msra.mxu0 %v3407
    %3680 = vmatprep.mubr.bf16.mxu0 %v2849
    %3681 = vmatmul.mubr.bf16.gmra.mrb[0].mxu0 %v2848
    %v3682 = vpop.f32.mrb[0].mxu0
    %v3683 = vadd.f32 %v2822, %v3682
    %v3684 = vpop.f32.mrb[0].mxu0
    %v3685 = vpop.f32.mrb[0].mxu0
    %v3686 = vpop.f32.mrb[0].mxu0
    %3687 = vdwg.mxu0
    %3688 = vmatprep.subr.bf16.mxu0 0
    %3689 = vmatpush1.bf16.msra.mxu0 %v3408
    %3690 = vmatprep.subr.bf16.mxu0 0
    %3691 = vmatpush1.bf16.msra.mxu0 %v3409
    %3692 = vmatprep.subr.bf16.mxu0 0
    %3693 = vmatpush1.bf16.msra.mxu0 %v3410
    %3694 = vmatprep.subr.bf16.mxu0 0
    %3695 = vmatpush1.bf16.msra.mxu0 %v3411
    %3696 = vmatprep.subr.bf16.mxu0 0
    %3697 = vmatpush1.bf16.msra.mxu0 %v3412
    %3698 = vmatprep.subr.bf16.mxu0 0
    %3699 = vmatpush1.bf16.msra.mxu0 %v3413
    %3700 = vmatprep.subr.bf16.mxu0 0
    %3701 = vmatpush1.bf16.msra.mxu0 %v3414
    %3702 = vmatprep.subr.bf16.mxu0 0
    %3703 = vmatpush1.bf16.msra.mxu0 %v3415
    %3704 = vmatprep.subr.bf16.mxu0 0
    %3705 = vmatpush1.bf16.msra.mxu0 %v3416
    %3706 = vmatprep.subr.bf16.mxu0 0
    %3707 = vmatpush1.bf16.msra.mxu0 %v3417
    %3708 = vmatprep.subr.bf16.mxu0 0
    %3709 = vmatpush1.bf16.msra.mxu0 %v3418
    %3710 = vmatprep.subr.bf16.mxu0 0
    %3711 = vmatpush1.bf16.msra.mxu0 %v3419
    %3712 = vmatprep.subr.bf16.mxu0 0
    %3713 = vmatpush1.bf16.msra.mxu0 %v3420
    %3714 = vmatprep.subr.bf16.mxu0 0
    %3715 = vmatpush1.bf16.msra.mxu0 %v3421
    %3716 = vmatprep.subr.bf16.mxu0 0
    %3717 = vmatpush1.bf16.msra.mxu0 %v3422
    %3718 = vmatprep.subr.bf16.mxu0 0
    %3719 = vmatpush1.bf16.msra.mxu0 %v3423
    %3720 = vmatprep.mubr.bf16.mxu0 %v2851
    %3721 = vmatmul.mubr.bf16.gmra.mrb[0].mxu0 %v2850
    %v3722 = vpop.f32.mrb[0].mxu0
    %v3723 = vadd.f32 %v3683, %v3722
    %v3724 = vpop.f32.mrb[0].mxu0
    %v3725 = vpop.f32.mrb[0].mxu0
    %v3726 = vpop.f32.mrb[0].mxu0
    %3727 = vdwg.mxu0
    %3728 = vmatprep.subr.bf16.mxu0 0
    %3729 = vmatpush1.bf16.msra.mxu0 %v3424
    %3730 = vmatprep.subr.bf16.mxu0 0
    %3731 = vmatpush1.bf16.msra.mxu0 %v3425
    %3732 = vmatprep.subr.bf16.mxu0 0
    %3733 = vmatpush1.bf16.msra.mxu0 %v3426
    %3734 = vmatprep.subr.bf16.mxu0 0
    %3735 = vmatpush1.bf16.msra.mxu0 %v3427
    %3736 = vmatprep.subr.bf16.mxu0 0
    %3737 = vmatpush1.bf16.msra.mxu0 %v3428
    %3738 = vmatprep.subr.bf16.mxu0 0
    %3739 = vmatpush1.bf16.msra.mxu0 %v3429
    %3740 = vmatprep.subr.bf16.mxu0 0
    %3741 = vmatpush1.bf16.msra.mxu0 %v3430
    %3742 = vmatprep.subr.bf16.mxu0 0
    %3743 = vmatpush1.bf16.msra.mxu0 %v3431
    %3744 = vmatprep.subr.bf16.mxu0 0
    %3745 = vmatpush1.bf16.msra.mxu0 %v3432
    %3746 = vmatprep.subr.bf16.mxu0 0
    %3747 = vmatpush1.bf16.msra.mxu0 %v3433
    %3748 = vmatprep.subr.bf16.mxu0 0
    %3749 = vmatpush1.bf16.msra.mxu0 %v3434
    %3750 = vmatprep.subr.bf16.mxu0 0
    %3751 = vmatpush1.bf16.msra.mxu0 %v3435
    %3752 = vmatprep.subr.bf16.mxu0 0
    %3753 = vmatpush1.bf16.msra.mxu0 %v3436
    %3754 = vmatprep.subr.bf16.mxu0 0
    %3755 = vmatpush1.bf16.msra.mxu0 %v3437
    %3756 = vmatprep.subr.bf16.mxu0 0
    %3757 = vmatpush1.bf16.msra.mxu0 %v3438
    %3758 = vmatprep.subr.bf16.mxu0 0
    %3759 = vmatpush1.bf16.msra.mxu0 %v3439
    %3760 = vmatprep.mubr.bf16.mxu0 %v2853
    %3761 = vmatmul.mubr.bf16.gmra.mrb[0].mxu0 %v2852
    %v3762 = vpop.f32.mrb[0].mxu0
    %v3763 = vadd.f32 %v3723, %v3762
    %v3764 = vpop.f32.mrb[0].mxu0
    %v3765 = vpop.f32.mrb[0].mxu0
    %v3766 = vpop.f32.mrb[0].mxu0
    %3767 = vdwg.mxu0
    %3768 = vmatprep.subr.bf16.mxu0 0
    %3769 = vmatpush1.bf16.msra.mxu0 %v3440
    %3770 = vmatprep.subr.bf16.mxu0 0
    %3771 = vmatpush1.bf16.msra.mxu0 %v3441
    %3772 = vmatprep.subr.bf16.mxu0 0
    %3773 = vmatpush1.bf16.msra.mxu0 %v3442
    %3774 = vmatprep.subr.bf16.mxu0 0
    %3775 = vmatpush1.bf16.msra.mxu0 %v3443
    %3776 = vmatprep.subr.bf16.mxu0 0
    %3777 = vmatpush1.bf16.msra.mxu0 %v3444
    %3778 = vmatprep.subr.bf16.mxu0 0
    %3779 = vmatpush1.bf16.msra.mxu0 %v3445
    %3780 = vmatprep.subr.bf16.mxu0 0
    %3781 = vmatpush1.bf16.msra.mxu0 %v3446
    %3782 = vmatprep.subr.bf16.mxu0 0
    %3783 = vmatpush1.bf16.msra.mxu0 %v3447
    %3784 = vmatprep.subr.bf16.mxu0 0
    %3785 = vmatpush1.bf16.msra.mxu0 %v3448
    %3786 = vmatprep.subr.bf16.mxu0 0
    %3787 = vmatpush1.bf16.msra.mxu0 %v3449
    %3788 = vmatprep.subr.bf16.mxu0 0
    %3789 = vmatpush1.bf16.msra.mxu0 %v3450
    %3790 = vmatprep.subr.bf16.mxu0 0
    %3791 = vmatpush1.bf16.msra.mxu0 %v3451
    %3792 = vmatprep.subr.bf16.mxu0 0
    %3793 = vmatpush1.bf16.msra.mxu0 %v3452
    %3794 = vmatprep.subr.bf16.mxu0 0
    %3795 = vmatpush1.bf16.msra.mxu0 %v3453
    %3796 = vmatprep.subr.bf16.mxu0 0
    %3797 = vmatpush1.bf16.msra.mxu0 %v3454
    %3798 = vmatprep.subr.bf16.mxu0 0
    %3799 = vmatpush1.bf16.msra.mxu0 %v3455
    %3800 = vmatprep.mubr.bf16.mxu0 %v2855
    %3801 = vmatmul.mubr.bf16.gmra.mrb[0].mxu0 %v2854
    %v3802 = vpop.f32.mrb[0].mxu0
    %v3803 = vadd.f32 %v3763, %v3802
    %v3804 = vpop.f32.mrb[0].mxu0
    %v3805 = vpop.f32.mrb[0].mxu0
    %v3806 = vpop.f32.mrb[0].mxu0
    %3807 = vdwg.mxu0
    %3808 = vmatprep.subr.bf16.mxu0 0
    %3809 = vmatpush1.bf16.msra.mxu0 %v3456
    %3810 = vmatprep.subr.bf16.mxu0 0
    %3811 = vmatpush1.bf16.msra.mxu0 %v3457
    %3812 = vmatprep.subr.bf16.mxu0 0
    %3813 = vmatpush1.bf16.msra.mxu0 %v3458
    %3814 = vmatprep.subr.bf16.mxu0 0
    %3815 = vmatpush1.bf16.msra.mxu0 %v3459
    %3816 = vmatprep.subr.bf16.mxu0 0
    %3817 = vmatpush1.bf16.msra.mxu0 %v3460
    %3818 = vmatprep.subr.bf16.mxu0 0
    %3819 = vmatpush1.bf16.msra.mxu0 %v3461
    %3820 = vmatprep.subr.bf16.mxu0 0
    %3821 = vmatpush1.bf16.msra.mxu0 %v3462
    %3822 = vmatprep.subr.bf16.mxu0 0
    %3823 = vmatpush1.bf16.msra.mxu0 %v3463
    %3824 = vmatprep.subr.bf16.mxu0 0
    %3825 = vmatpush1.bf16.msra.mxu0 %v3464
    %3826 = vmatprep.subr.bf16.mxu0 0
    %3827 = vmatpush1.bf16.msra.mxu0 %v3465
    %3828 = vmatprep.subr.bf16.mxu0 0
    %3829 = vmatpush1.bf16.msra.mxu0 %v3466
    %3830 = vmatprep.subr.bf16.mxu0 0
    %3831 = vmatpush1.bf16.msra.mxu0 %v3467
    %3832 = vmatprep.subr.bf16.mxu0 0
    %3833 = vmatpush1.bf16.msra.mxu0 %v3468
    %3834 = vmatprep.subr.bf16.mxu0 0
    %3835 = vmatpush1.bf16.msra.mxu0 %v3469
    %3836 = vmatprep.subr.bf16.mxu0 0
    %3837 = vmatpush1.bf16.msra.mxu0 %v3470
    %3838 = vmatprep.subr.bf16.mxu0 0
    %3839 = vmatpush1.bf16.msra.mxu0 %v3471
    %3840 = vmatprep.mubr.bf16.mxu0 %v2857
    %3841 = vmatmul.mubr.bf16.gmra.mrb[0].mxu0 %v2856
    %v3842 = vpop.f32.mrb[0].mxu0
    %v3843 = vadd.f32 %v3803, %v3842
    %v3844 = vpop.f32.mrb[0].mxu0
    %v3845 = vpop.f32.mrb[0].mxu0
    %v3846 = vpop.f32.mrb[0].mxu0
    %3847 = vdwg.mxu0
    %3848 = vmatprep.subr.bf16.mxu0 0
    %3849 = vmatpush1.bf16.msra.mxu0 %v3472
    %3850 = vmatprep.subr.bf16.mxu0 0
    %3851 = vmatpush1.bf16.msra.mxu0 %v3473
    %3852 = vmatprep.subr.bf16.mxu0 0
    %3853 = vmatpush1.bf16.msra.mxu0 %v3474
    %3854 = vmatprep.subr.bf16.mxu0 0
    %3855 = vmatpush1.bf16.msra.mxu0 %v3475
    %3856 = vmatprep.subr.bf16.mxu0 0
    %3857 = vmatpush1.bf16.msra.mxu0 %v3476
    %3858 = vmatprep.subr.bf16.mxu0 0
    %3859 = vmatpush1.bf16.msra.mxu0 %v3477
    %3860 = vmatprep.subr.bf16.mxu0 0
    %3861 = vmatpush1.bf16.msra.mxu0 %v3478
    %3862 = vmatprep.subr.bf16.mxu0 0
    %3863 = vmatpush1.bf16.msra.mxu0 %v3479
    %3864 = vmatprep.subr.bf16.mxu0 0
    %3865 = vmatpush1.bf16.msra.mxu0 %v3480
    %3866 = vmatprep.subr.bf16.mxu0 0
    %3867 = vmatpush1.bf16.msra.mxu0 %v3481
    %3868 = vmatprep.subr.bf16.mxu0 0
    %3869 = vmatpush1.bf16.msra.mxu0 %v3482
    %3870 = vmatprep.subr.bf16.mxu0 0
    %3871 = vmatpush1.bf16.msra.mxu0 %v3483
    %3872 = vmatprep.subr.bf16.mxu0 0
    %3873 = vmatpush1.bf16.msra.mxu0 %v3484
    %3874 = vmatprep.subr.bf16.mxu0 0
    %3875 = vmatpush1.bf16.msra.mxu0 %v3485
    %3876 = vmatprep.subr.bf16.mxu0 0
    %3877 = vmatpush1.bf16.msra.mxu0 %v3486
    %3878 = vmatprep.subr.bf16.mxu0 0
    %3879 = vmatpush1.bf16.msra.mxu0 %v3487
    %3880 = vmatprep.mubr.bf16.mxu0 %v2859
    %3881 = vmatmul.mubr.bf16.gmra.mrb[0].mxu0 %v2858
    %v3882 = vpop.f32.mrb[0].mxu0
    %v3883 = vadd.f32 %v3843, %v3882
    %v3884 = vpop.f32.mrb[0].mxu0
    %v3885 = vpop.f32.mrb[0].mxu0
    %v3886 = vpop.f32.mrb[0].mxu0
    %3887 = vdwg.mxu0
    %3888 = vmatprep.subr.bf16.mxu0 0
    %3889 = vmatpush1.bf16.msra.mxu0 %v3488
    %3890 = vmatprep.subr.bf16.mxu0 0
    %3891 = vmatpush1.bf16.msra.mxu0 %v3489
    %3892 = vmatprep.subr.bf16.mxu0 0
    %3893 = vmatpush1.bf16.msra.mxu0 %v3490
    %3894 = vmatprep.subr.bf16.mxu0 0
    %3895 = vmatpush1.bf16.msra.mxu0 %v3491
    %3896 = vmatprep.subr.bf16.mxu0 0
    %3897 = vmatpush1.bf16.msra.mxu0 %v3492
    %3898 = vmatprep.subr.bf16.mxu0 0
    %3899 = vmatpush1.bf16.msra.mxu0 %v3493
    %3900 = vmatprep.subr.bf16.mxu0 0
    %3901 = vmatpush1.bf16.msra.mxu0 %v3494
    %3902 = vmatprep.subr.bf16.mxu0 0
    %3903 = vmatpush1.bf16.msra.mxu0 %v3495
    %3904 = vmatprep.subr.bf16.mxu0 0
    %3905 = vmatpush1.bf16.msra.mxu0 %v3496
    %3906 = vmatprep.subr.bf16.mxu0 0
    %3907 = vmatpush1.bf16.msra.mxu0 %v3497
    %3908 = vmatprep.subr.bf16.mxu0 0
    %3909 = vmatpush1.bf16.msra.mxu0 %v3498
    %3910 = vmatprep.subr.bf16.mxu0 0
    %3911 = vmatpush1.bf16.msra.mxu0 %v3499
    %3912 = vmatprep.subr.bf16.mxu0 0
    %3913 = vmatpush1.bf16.msra.mxu0 %v3500
    %3914 = vmatprep.subr.bf16.mxu0 0
    %3915 = vmatpush1.bf16.msra.mxu0 %v3501
    %3916 = vmatprep.subr.bf16.mxu0 0
    %3917 = vmatpush1.bf16.msra.mxu0 %v3502
    %3918 = vmatprep.subr.bf16.mxu0 0
    %3919 = vmatpush1.bf16.msra.mxu0 %v3503
    %3920 = vmatprep.mubr.bf16.mxu0 %v2861
    %3921 = vmatmul.mubr.bf16.gmra.mrb[0].mxu0 %v2860
    %v3922 = vpop.f32.mrb[0].mxu0
    %v3923 = vadd.f32 %v3883, %v3922
    %v3924 = vpop.f32.mrb[0].mxu0
    %v3925 = vpop.f32.mrb[0].mxu0
    %v3926 = vpop.f32.mrb[0].mxu0
    %3927 = vdwg.mxu0
    %3928 = vmatprep.subr.bf16.mxu0 0
    %3929 = vmatpush1.bf16.msra.mxu0 %v3504
    %3930 = vmatprep.subr.bf16.mxu0 0
    %3931 = vmatpush1.bf16.msra.mxu0 %v3505
    %3932 = vmatprep.subr.bf16.mxu0 0
    %3933 = vmatpush1.bf16.msra.mxu0 %v3506
    %3934 = vmatprep.subr.bf16.mxu0 0
    %3935 = vmatpush1.bf16.msra.mxu0 %v3507
    %3936 = vmatprep.subr.bf16.mxu0 0
    %3937 = vmatpush1.bf16.msra.mxu0 %v3508
    %3938 = vmatprep.subr.bf16.mxu0 0
    %3939 = vmatpush1.bf16.msra.mxu0 %v3509
    %3940 = vmatprep.subr.bf16.mxu0 0
    %3941 = vmatpush1.bf16.msra.mxu0 %v3510
    %3942 = vmatprep.subr.bf16.mxu0 0
    %3943 = vmatpush1.bf16.msra.mxu0 %v3511
    %3944 = vmatprep.subr.bf16.mxu0 0
    %3945 = vmatpush1.bf16.msra.mxu0 %v3512
    %3946 = vmatprep.subr.bf16.mxu0 0
    %3947 = vmatpush1.bf16.msra.mxu0 %v3513
    %3948 = vmatprep.subr.bf16.mxu0 0
    %3949 = vmatpush1.bf16.msra.mxu0 %v3514
    %3950 = vmatprep.subr.bf16.mxu0 0
    %3951 = vmatpush1.bf16.msra.mxu0 %v3515
    %3952 = vmatprep.subr.bf16.mxu0 0
    %3953 = vmatpush1.bf16.msra.mxu0 %v3516
    %3954 = vmatprep.subr.bf16.mxu0 0
    %3955 = vmatpush1.bf16.msra.mxu0 %v3517
    %3956 = vmatprep.subr.bf16.mxu0 0
    %3957 = vmatpush1.bf16.msra.mxu0 %v3518
    %3958 = vmatprep.subr.bf16.mxu0 0
    %3959 = vmatpush1.bf16.msra.mxu0 %v3519
    %3960 = vmatprep.mubr.bf16.mxu0 %v2863
    %3961 = vmatmul.mubr.bf16.gmra.mrb[0].mxu0 %v2862
    %v3962 = vpop.f32.mrb[0].mxu0
    %v3963 = vadd.f32 %v3923, %v3962
    %v3964 = vpop.f32.mrb[0].mxu0
    %v3965 = vpop.f32.mrb[0].mxu0
    %v3966 = vpop.f32.mrb[0].mxu0
    %3967 = vdwg.mxu0
    %3968 = vst [vmem:[%s5] sm:$0xff] %v3963
    // Predicated region
    $region30: #{compute_block_forward.1} parent=1 // pred_check
      _
    $region31: #{compute_block_forward.1} parent=1 // pred_check_branch
      %3970 = sbr.rel (0) target = $region33
    $region32: #{compute_block_forward.1} parent=1 // pred_region
      _
    $region33: #{compute_block_forward.1} parent=1 // pred_fallthru
      _
    // Predicated region
    $region34: #{compute_block_forward.1} parent=1 // pred_check
      _
    $region35: #{compute_block_forward.1} parent=1 // pred_check_branch
      %3972 = sbr.rel (0) target = $region37
    $region36: #{compute_block_forward.1} parent=1 // pred_region
      _
    $region37: #{compute_block_forward.1} parent=1 // pred_fallthru
      _
    %3973 = vsyncpa [#allocation4], 1
    %3974 = vsyncpa [#allocation6], 1

</llo_original>
